<compile_context>
chip_gen: v7x
topology: tpu7x:2x2x1
jax: 0.10.0
libtpu: 0.0.40
codegen_flags: <defaults>
</compile_context>

<pallas_src>
import functools

import jax
import jax.numpy as jnp
from jax.experimental import pallas as pl
from jax.experimental.pallas import tpu as pltpu

C_PAD = 128  # lane-dense padded channel width carried through the network


# ----------------------------------------------------------------------------
# tiling helpers
# ----------------------------------------------------------------------------
def _pick_tm(M):
    # biggest row tile that divides M and still leaves >=2 parallel grid steps
    for tm in (256, 128, 64, 32, 16, 8):
        if M % tm == 0 and M // tm >= 2:
            return tm
    return M


def _pick_tk(K):
    for tk in (256, 128):
        if K % tk == 0:
            return tk
    return K


# ----------------------------------------------------------------------------
# Pallas kernels
# ----------------------------------------------------------------------------
def _matmul_kernel(*refs, relu, has_res):
    """K-tiled matmul with fused bias (+ residual) (+ ReLU) epilogue."""
    if has_res:
        a_ref, b_ref, bias_ref, res_ref, o_ref, acc_ref = refs
    else:
        a_ref, b_ref, bias_ref, o_ref, acc_ref = refs
        res_ref = None
    k = pl.program_id(1)

    @pl.when(k == 0)
    def _():
        acc_ref[...] = jnp.zeros_like(acc_ref)

    acc_ref[...] += jnp.dot(a_ref[...], b_ref[...],
                            preferred_element_type=jnp.float32)

    @pl.when(k == pl.num_programs(1) - 1)
    def _():
        acc = acc_ref[...] + bias_ref[...]
        if has_res:
            acc = acc + res_ref[...].astype(jnp.float32)
        if relu:
            acc = jnp.maximum(acc, 0.0)
        o_ref[...] = acc.astype(o_ref.dtype)


def matmul_bias_act(a, b, bias, res=None, *, relu=False, out_dtype=jnp.bfloat16):
    """(M,K) @ (K,N) + bias[N] (+ res[M,N]) (+ ReLU).

    K is reduced over the grid with an f32 VMEM accumulator; M is tiled; N must be
    a multiple of 128 so every store is lane-dense (unmasked vst). Inputs are fed
    to the MXU in bf16 with f32 accumulation.
    """
    M, K = a.shape
    K2, N = b.shape
    assert K == K2 and N % 128 == 0, (a.shape, b.shape)
    tm, tk = _pick_tm(M), _pick_tk(K)
    assert M % tm == 0 and K % tk == 0

    has_res = res is not None
    in_specs = [
        pl.BlockSpec((tm, tk), lambda i, k: (i, k)),
        pl.BlockSpec((tk, N), lambda i, k: (k, 0)),
        pl.BlockSpec((1, N), lambda i, k: (0, 0)),
    ]
    args = [a.astype(jnp.bfloat16), b.astype(jnp.bfloat16),
            bias.reshape(1, N).astype(jnp.float32)]
    if has_res:
        in_specs.append(pl.BlockSpec((tm, N), lambda i, k: (i, 0)))
        args.append(res)

    return pl.pallas_call(
        functools.partial(_matmul_kernel, relu=relu, has_res=has_res),
        out_shape=jax.ShapeDtypeStruct((M, N), out_dtype),
        grid_spec=pltpu.PrefetchScalarGridSpec(
            num_scalar_prefetch=0,
            grid=(M // tm, K // tk),
            in_specs=in_specs,
            out_specs=pl.BlockSpec((tm, N), lambda i, k: (i, 0)),
            scratch_shapes=[pltpu.VMEM((tm, N), jnp.float32)],
        ),
        compiler_params=pltpu.CompilerParams(
            dimension_semantics=("parallel", "arbitrary")),
    )(*args)


def _conv3x3_kernel(x_ref, w_ref, bias_ref, o_ref, *, relu, Ho, Wo):
    """Fused 3x3 / stride-1 conv + folded BN (+ ReLU) for one batch element.

    x_ref : (1, 3, Ho+2, Wo, Cin) bf16 -- dim 1 indexes the three W-shifted views,
            so the kernel only ever slices untiled dims (no unaligned sublane shifts).
    w_ref : (3, 3, Cin, Cout) bf16 (BN folded)
    bias  : (1, Cout) f32
    o_ref : (1, Ho*Wo, Cout) bf16
    """
    cin = w_ref.shape[2]
    cout = w_ref.shape[3]
    acc = jnp.zeros((Ho * Wo, cout), jnp.float32)
    for dj in range(3):
        for di in range(3):
            # cast to f32 so the (Ho, Wo, C) -> (Ho*Wo, C) collapse stays on
            # (8, 128)-aligned tiles for any Wo that is a multiple of 8
            win = x_ref[0, dj, di:di + Ho].astype(jnp.float32)
            win = win.reshape(Ho * Wo, cin).astype(jnp.bfloat16)
            acc = acc + jnp.dot(win, w_ref[di, dj],
                                preferred_element_type=jnp.float32)
    acc = acc + bias_ref[...]
    if relu:
        acc = jnp.maximum(acc, 0.0)
    o_ref[0] = acc.astype(o_ref.dtype)


def conv3x3_bn(x, w, bias, *, relu=True):
    """3x3 / stride-1 / pad-1 conv + folded BN (+ ReLU), one fused kernel per batch.

    The kh*kw tap reduction runs in-kernel from VMEM, so no 9x im2col slab is ever
    written to HBM.  Three W-shifted copies of the padded input are built once in
    the wrapper so the kernel only slices untiled dims.
    """
    # TODO(synk): the 3 W-shifted copies could be removed with Element-offset
    # BlockSpecs (unaligned sublane windows); kept as wrapper glue for portability.
    B, H, W, C = x.shape
    cout = w.shape[3]
    xp = jnp.pad(x, ((0, 0), (1, 1), (1, 1), (0, 0)))                    # (B, H+2, W+2, C)
    xs = jnp.stack([xp[:, :, j:j + W, :] for j in range(3)], axis=1)     # (B, 3, H+2, W, C)
    out = pl.pallas_call(
        functools.partial(_conv3x3_kernel, relu=relu, Ho=H, Wo=W),
        out_shape=jax.ShapeDtypeStruct((B, H * W, cout), jnp.bfloat16),
        grid_spec=pltpu.PrefetchScalarGridSpec(
            num_scalar_prefetch=0,
            grid=(B,),
            in_specs=[
                pl.BlockSpec((1, 3, H + 2, W, C), lambda b: (b, 0, 0, 0, 0)),
                pl.BlockSpec((3, 3, C, cout), lambda b: (0, 0, 0, 0)),
                pl.BlockSpec((1, cout), lambda b: (0, 0)),
            ],
            out_specs=pl.BlockSpec((1, H * W, cout), lambda b: (b, 0, 0)),
        ),
        compiler_params=pltpu.CompilerParams(dimension_semantics=("parallel",)),
    )(xs, w, bias.reshape(1, cout))
    return out.reshape(B, H, W, cout)


def _attnpool_kernel(x_ref, pcls_ref, ptok_ref, wqkv_ref, bqkv_ref, wo_ref, bo_ref,
                     o_ref, xt_ref, *, heads):
    """CLIP AttentionPool2d (all-token query), fully fused for one batch element.

    mean-token prep + positional add + fused qkv projection + per-head softmax
    attention (scale pre-folded into wq) + output projection, all in VMEM.
    """
    x = x_ref[0].astype(jnp.float32)                                   # (HW, C)
    xt_ref[0:1, :] = jnp.mean(x, axis=0, keepdims=True) + pcls_ref[...]
    xt_ref[1:, :] = x + ptok_ref[...]
    xt = xt_ref[...].astype(jnp.bfloat16)                              # (T, C)

    qkv = jnp.dot(xt, wqkv_ref[...],
                  preferred_element_type=jnp.float32) + bqkv_ref[...]  # (T, 3C) f32
    C = xt.shape[-1]
    dph = C // heads
    q, k, v = qkv[:, :C], qkv[:, C:2 * C], qkv[:, 2 * C:]

    outs = []
    for h in range(heads):
        sl = slice(h * dph, (h + 1) * dph)
        qh = q[:, sl].astype(jnp.bfloat16)
        kh = k[:, sl].astype(jnp.bfloat16)
        vh = v[:, sl].astype(jnp.bfloat16)
        # contract on the feature dim of both -> no explicit k transpose materialized
        s = jax.lax.dot_general(qh, kh, (((1,), (1,)), ((), ())),
                                preferred_element_type=jnp.float32)     # (T, T)
        s = s - jnp.max(s, axis=-1, keepdims=True)
        p = jnp.exp(s)
        inv_l = pl.reciprocal(jnp.sum(p, axis=-1, keepdims=True), approx=True)
        oh = jnp.dot(p.astype(jnp.bfloat16), vh,
                     preferred_element_type=jnp.float32)                # (T, dph)
        outs.append(oh * inv_l)

    o = jnp.concatenate(outs, axis=-1).astype(jnp.bfloat16)             # (T, C)
    o_ref[0] = (jnp.dot(o, wo_ref[...], preferred_element_type=jnp.float32)
                + bo_ref[...]).astype(o_ref.dtype)


def attention_pool(tokens, ap):
    B, HW, C = tokens.shape
    T = HW + 1
    return pl.pallas_call(
        functools.partial(_attnpool_kernel, heads=ap["heads"]),
        out_shape=jax.ShapeDtypeStruct((B, T, C), jnp.float32),
        grid_spec=pltpu.PrefetchScalarGridSpec(
            num_scalar_prefetch=0,
            grid=(B,),
            in_specs=[
                pl.BlockSpec((1, HW, C), lambda b: (b, 0, 0)),   # tokens
                pl.BlockSpec((1, C), lambda b: (0, 0)),          # pos (mean/CLS slot)
                pl.BlockSpec((HW, C), lambda b: (0, 0)),         # pos (spatial tokens)
                pl.BlockSpec((C, 3 * C), lambda b: (0, 0)),      # fused wq|wk|wv
                pl.BlockSpec((1, 3 * C), lambda b: (0, 0)),      # fused bq|bk|bv
                pl.BlockSpec((C, C), lambda b: (0, 0)),          # wo
                pl.BlockSpec((1, C), lambda b: (0, 0)),          # bo
            ],
            out_specs=pl.BlockSpec((1, T, C), lambda b: (b, 0, 0)),
            scratch_shapes=[pltpu.VMEM((T, C), jnp.float32)],
        ),
        compiler_params=pltpu.CompilerParams(dimension_semantics=("parallel",)),
    )(tokens, ap["pos_cls"], ap["pos_tok"], ap["wqkv"], ap["bqkv"], ap["wo"], ap["bo"])


# ----------------------------------------------------------------------------
# wrapper-side glue (XLA): stem im2col (K=27 only) and the avgpool tap gather
# ----------------------------------------------------------------------------
def _im2col(x, kh, kw, stride, pad):
    if pad:
        x = jnp.pad(x, ((0, 0), (pad, pad), (pad, pad), (0, 0)))
    B, H, W, C = x.shape
    Ho = (H - kh) // stride + 1
    Wo = (W - kw) // stride + 1
    cols = []
    for i in range(kh):
        for j in range(kw):
            cols.append(x[:, i:i + stride * Ho:stride, j:j + stride * Wo:stride, :])
    patches = jnp.stack(cols, axis=3)                          # (B, Ho, Wo, kh*kw, C)
    return patches.reshape(B * Ho * Wo, kh * kw * C), (B, Ho, Wo)


def _pool_taps(x):
    """2x2 / stride-2 avgpool expressed as a 4-tap channel concat so it fuses into
    the following 1x1 convs' matmul (the 1/4 factor lives in their weights)."""
    B, H, W, C = x.shape
    taps = [x[:, 0::2, 0::2, :], x[:, 0::2, 1::2, :],
            x[:, 1::2, 0::2, :], x[:, 1::2, 1::2, :]]
    cat = jnp.concatenate(taps, axis=-1)                       # (B, H//2, W//2, 4C)
    return cat.reshape(B * (H // 2) * (W // 2), 4 * C), (B, H // 2, W // 2)


# ----------------------------------------------------------------------------
# Parameters (deterministic synthetic init; no checkpoint)
# ----------------------------------------------------------------------------
def build_params(key):
    keys = iter(jax.random.split(key, 64))

    def nrm(shape, scale):
        return scale * jax.random.normal(next(keys), shape, dtype=jnp.float32)

    def conv_bn_params(cin, cout, k):
        fan_in = cin * k * k
        return dict(
            w=nrm((cout, cin, k, k), fan_in ** -0.5),
            gamma=1.0 + 0.1 * nrm((cout,), 1.0),
            beta=0.1 * nrm((cout,), 1.0),
            mean=0.1 * nrm((cout,), 1.0),
            var=1.0 + 0.1 * jnp.abs(nrm((cout,), 1.0)),
        )

    width = 16                      # scaled-down RN50 stem width (real RN50: 64)
    planes = width // 2
    embed = planes * 4              # bottleneck expansion x4 -> 32
    heads = 4
    out_dim = 32                    # attnpool output_dim
    spatial = 8                     # feature-map side seen by the attn pool
    T = spatial * spatial + 1

    return {
        "conv1": conv_bn_params(3, width // 2, 3),
        "conv2": conv_bn_params(width // 2, width // 2, 3),
        "conv3": conv_bn_params(width // 2, width, 3),
        "b_conv1": conv_bn_params(width, planes, 1),
        "b_conv2": conv_bn_params(planes, planes, 3),
        "b_conv3": conv_bn_params(planes, embed, 1),
        "b_down": conv_bn_params(width, embed, 1),
        "attnpool": dict(
            pos=nrm((T, embed), embed ** -0.5),
            wq=nrm((embed, embed), embed ** -0.5), bq=0.01 * nrm((embed,), 1.0),
            wk=nrm((embed, embed), embed ** -0.5), bk=0.01 * nrm((embed,), 1.0),
            wv=nrm((embed, embed), embed ** -0.5), bv=0.01 * nrm((embed,), 1.0),
            wo=nrm((out_dim, embed), embed ** -0.5), bo=0.01 * nrm((out_dim,), 1.0),
            heads=heads,
        ),
    }


def prepare_kernel_params(p):
    """Fold eval-mode BatchNorm, zero-pad every channel dim to C_PAD (lane-dense),
    cast weights to bf16, and pre-build the fused weight matrices the kernels use."""

    def fold_bn(pc):
        s = pc["gamma"] / jnp.sqrt(pc["var"] + 1e-5)
        return pc["w"] * s[:, None, None, None], pc["beta"] - pc["mean"] * s

    def pad_to(a, shape):
        return jnp.pad(a, [(0, t - s) for s, t in zip(a.shape, shape)])

    def conv3x3(pc):
        w, b = fold_bn(pc)
        w = jnp.transpose(w, (2, 3, 1, 0))                              # (3,3,cin,cout)
        return (pad_to(w, (3, 3, C_PAD, C_PAD)).astype(jnp.bfloat16),
                pad_to(b, (C_PAD,)).astype(jnp.float32))

    def conv_mat(pc, pad_rows=None):
        w, b = fold_bn(pc)
        cout, cin, kh, kw = w.shape
        wm = jnp.transpose(w, (2, 3, 1, 0)).reshape(kh * kw * cin, cout)
        rows = wm.shape[0] if pad_rows is None else pad_rows
        return (pad_to(wm, (rows, C_PAD)).astype(jnp.bfloat16),
                pad_to(b, (C_PAD,)).astype(jnp.float32))

    def pooled_1x1(pc):
        # fold the 2x2/stride-2 avgpool into the 1x1 conv: 4 taps, each weighted 1/4
        wm, b = conv_mat(pc, pad_rows=C_PAD)
        wm = 0.25 * jnp.concatenate([wm.astype(jnp.float32)] * 4, axis=0)
        return wm.astype(jnp.bfloat16), b

    kp = {
        "conv1": conv_mat(p["conv1"]),            # stride-2 stem conv (im2col, K = 27)
        "conv2": conv3x3(p["conv2"]),
        "conv3": conv3x3(p["conv3"]),
        "b_conv1": pooled_1x1(p["b_conv1"]),      # avgpool fused into the input gather
        "b_down": pooled_1x1(p["b_down"]),        # avgpool fused into the input gather
        "b_conv2": conv3x3(p["b_conv2"]),
        "b_conv3": conv_mat(p["b_conv3"], pad_rows=C_PAD),
    }

    ap = p["attnpool"]
    heads = ap["heads"]
    embed = ap["wq"].shape[0]
    dh = embed // heads
    dh_pad = C_PAD // heads
    out_dim = ap["wo"].shape[0]
    scale = dh ** -0.5

    def head_padded_proj(w, b, s=1.0):
        # y = x @ w.T + b with output channels laid out head-major so padded C_PAD
        # splits into `heads` blocks of dh_pad (real dims first, zeros after)
        wt = (w * s).T                                    # (embed_in, embed_out)
        bs = b * s
        wm = jnp.zeros((C_PAD, C_PAD), jnp.float32)
        bm = jnp.zeros((C_PAD,), jnp.float32)
        for h in range(heads):
            wm = wm.at[:embed, h * dh_pad:h * dh_pad + dh].set(wt[:, h * dh:(h + 1) * dh])
            bm = bm.at[h * dh_pad:h * dh_pad + dh].set(bs[h * dh:(h + 1) * dh])
        return wm, bm

    wq, bq = head_padded_proj(ap["wq"], ap["bq"], scale)   # fold 1/sqrt(dh) into wq, bq
    wk, bk = head_padded_proj(ap["wk"], ap["bk"])
    wv, bv = head_padded_proj(ap["wv"], ap["bv"])
    wqkv = jnp.concatenate([wq, wk, wv], axis=1).astype(jnp.bfloat16)       # (C_PAD, 3C)
    bqkv = jnp.concatenate([bq, bk, bv]).reshape(1, 3 * C_PAD).astype(jnp.float32)

    wo = jnp.zeros((C_PAD, C_PAD), jnp.float32)
    wot = ap["wo"].T                                       # (embed, out_dim)
    for h in range(heads):
        wo = wo.at[h * dh_pad:h * dh_pad + dh, :out_dim].set(wot[h * dh:(h + 1) * dh, :])
    pos = jnp.pad(ap["pos"], ((0, 0), (0, C_PAD - embed))).astype(jnp.float32)

    kp["attnpool"] = dict(
        pos_cls=pos[:1], pos_tok=pos[1:],
        wqkv=wqkv, bqkv=bqkv,
        wo=wo.astype(jnp.bfloat16),
        bo=jnp.pad(ap["bo"], (0, C_PAD - out_dim)).reshape(1, C_PAD).astype(jnp.float32),
        heads=heads, out_dim=out_dim,
    )
    return kp


# ----------------------------------------------------------------------------
# Forward pass:  TokenVisionClip.forward(x) -> intermediate_features
# ----------------------------------------------------------------------------
def token_vision_clip_forward(x_nchw, kp):
    # NCHW (PyTorch) -> NHWC (TPU lanes = channels); activations carried in bf16,
    # channels padded to C_PAD = 128 so every kernel store is lane-dense.
    x = jnp.transpose(x_nchw, (0, 2, 3, 1)).astype(jnp.bfloat16)

    # --- CLIP ModifiedResNet stem: 3x(conv+BN+ReLU) then avgpool(2) ---
    # conv1 is the stride-2 3-channel conv (K = 27): im2col stays in the wrapper.
    # TODO(synk): a strided-tap fused kernel would remove this im2col at RN50 scale.
    cols, (B, H1, W1) = _im2col(x, 3, 3, 2, 1)
    h = matmul_bias_act(cols, *kp["conv1"], relu=True).reshape(B, H1, W1, C_PAD)
    h = conv3x3_bn(h, *kp["conv2"], relu=True)
    h = conv3x3_bn(h, *kp["conv3"], relu=True)

    # stem avgpool(2), fused into the two consumer 1x1 convs (weights carry the 1/4)
    pool_cols, (B, H2, W2) = _pool_taps(h)
    h1 = matmul_bias_act(pool_cols, *kp["b_conv1"], relu=True)   # bottleneck conv1
    idn = matmul_bias_act(pool_cols, *kp["b_down"], relu=False)  # downsample / identity

    # --- one representative bottleneck residual block ---
    # TODO(synk): real RN50 has 4 stages of (3,4,6,3) bottlenecks; only one synthetic
    # stage is instantiated here (no pretrained checkpoint is loaded).
    h2 = conv3x3_bn(h1.reshape(B, H2, W2, C_PAD), *kp["b_conv2"], relu=True)
    h3 = matmul_bias_act(h2.reshape(B * H2 * W2, C_PAD), *kp["b_conv3"],
                         res=idn, relu=True)                     # fused add + ReLU

    # --- AttentionPool2d with all-token query (token variant), fully fused ---
    ap = kp["attnpool"]
    tokens = h3.reshape(B, H2 * W2, C_PAD)
    o = attention_pool(tokens, ap)                               # (B, T, C_PAD) f32

    # intermediate_features: per-spatial-token outputs (mean/CLS token dropped);
    # the padded channels are sliced away only once, at the very end.
    return o[:, 1:, :ap["out_dim"]]


if __name__ == "__main__":
    key = jax.random.PRNGKey(0)
    pkey, xkey = jax.random.split(key)
    params = build_params(pkey)
    kparams = prepare_kernel_params(params)

    x = jax.random.normal(xkey, (2, 3, 32, 32), dtype=jnp.float32)   # NCHW like PyTorch

    fwd = jax.jit(lambda inp: token_vision_clip_forward(inp, kparams))
    feats = fwd(x)
    feats = jax.block_until_ready(feats)

    assert feats.shape == (2, 64, 32), feats.shape
    assert bool(jnp.all(jnp.isfinite(feats)))
    print("KERNEL_OK")
</pallas_src>

<mosaic_0001>
module attributes {stable_mosaic.version = 11 : i64} {
  func.func @_matmul_kernel(%arg0: i32, %arg1: i32, %arg2: memref<256x27xbf16, #tpu.memory_space<vmem>>, %arg3: memref<27x128xbf16, #tpu.memory_space<vmem>>, %arg4: memref<1x128xf32, #tpu.memory_space<vmem>>, %arg5: memref<256x128xbf16, #tpu.memory_space<vmem>>, %arg6: memref<256x128xf32, #tpu.memory_space<vmem>>) attributes {dimension_semantics = [#tpu.dimension_semantics<parallel>, #tpu.dimension_semantics<arbitrary>], iteration_bounds = array<i64: 2, 1>, scalar_prefetch = 0 : i64, scratch_operands = 1 : i64, tpu.core_type = #tpu.core_type<tc>, window_params = [{transform_indices = @transform_0, window_bounds = array<i64: 256, 27>}, {transform_indices = @transform_1, window_bounds = array<i64: 27, 128>}, {pipeline_mode = #tpu.pipeline_mode<synchronous>, transform_indices = @transform_2, window_bounds = array<i64: 1, 128>}, {transform_indices = @transform_3, window_bounds = array<i64: 256, 128>}]} {
    %c0_i32 = arith.constant 0 : i32
    %0 = arith.cmpi eq, %arg1, %c0_i32 : i32
    %1 = arith.extui %0 : i1 to i32
    %c0_i32_0 = arith.constant 0 : i32
    %2 = arith.cmpi ne, %1, %c0_i32_0 : i32
    scf.if %2 {
      %cst_10 = arith.constant 0.000000e+00 : f32
      %12 = vector.broadcast %cst_10 : f32 to vector<256x128xf32>
      %c0_11 = arith.constant 0 : index
      %c0_12 = arith.constant 0 : index
      %13 = vector.load %arg6[%c0_11, %c0_12] : memref<256x128xf32, #tpu.memory_space<vmem>>, vector<256x128xf32>
      tpu.vector_store %arg6[%c0_11, %c0_12], %12 {strides = array<i32>} : memref<256x128xf32, #tpu.memory_space<vmem>>, vector<256x128xf32>,
    } else {
    }
    %c0 = arith.constant 0 : index
    %c0_1 = arith.constant 0 : index
    %3 = vector.load %arg6[%c0, %c0_1] : memref<256x128xf32, #tpu.memory_space<vmem>>, vector<256x128xf32>
    %c0_2 = arith.constant 0 : index
    %c0_3 = arith.constant 0 : index
    %4 = vector.load %arg2[%c0_2, %c0_3] : memref<256x27xbf16, #tpu.memory_space<vmem>>, vector<256x27xbf16>
    %c0_4 = arith.constant 0 : index
    %c0_5 = arith.constant 0 : index
    %5 = vector.load %arg3[%c0_4, %c0_5] : memref<27x128xbf16, #tpu.memory_space<vmem>>, vector<27x128xbf16>
    %cst = arith.constant dense<0.000000e+00> : vector<256x128xf32>
    %6 = tpu.matmul %4, %5, %cst {dimension_numbers = #tpu.dot_dimension_numbers<[1], [0], [0], [1], [0, 0, 1, 1], [], []>} : vector<256x27xbf16>, vector<27x128xbf16>, vector<256x128xf32> -> vector<256x128xf32>
    %7 = arith.addf %3, %6 : vector<256x128xf32>
    %c0_6 = arith.constant 0 : index
    %c0_7 = arith.constant 0 : index
    %8 = vector.load %arg6[%c0_6, %c0_7] : memref<256x128xf32, #tpu.memory_space<vmem>>, vector<256x128xf32>
    tpu.vector_store %arg6[%c0_6, %c0_7], %7 {strides = array<i32>} : memref<256x128xf32, #tpu.memory_space<vmem>>, vector<256x128xf32>,
    %c0_i32_8 = arith.constant 0 : i32
    %9 = arith.cmpi eq, %arg1, %c0_i32_8 : i32
    %10 = arith.extui %9 : i1 to i32
    %c0_i32_9 = arith.constant 0 : i32
    %11 = arith.cmpi ne, %10, %c0_i32_9 : i32
    scf.if %11 {
      %c0_10 = arith.constant 0 : index
      %c0_11 = arith.constant 0 : index
      %12 = vector.load %arg6[%c0_10, %c0_11] : memref<256x128xf32, #tpu.memory_space<vmem>>, vector<256x128xf32>
      %c0_12 = arith.constant 0 : index
      %c0_13 = arith.constant 0 : index
      %13 = vector.load %arg4[%c0_12, %c0_13] : memref<1x128xf32, #tpu.memory_space<vmem>>, vector<1x128xf32>
      %14 = vector.broadcast %13 : vector<1x128xf32> to vector<256x128xf32>
      %15 = arith.addf %12, %14 : vector<256x128xf32>
      %cst_14 = arith.constant 0.000000e+00 : f32
      %16 = vector.broadcast %cst_14 : f32 to vector<256x128xf32>
      %17 = arith.maximumf %15, %16 : vector<256x128xf32>
      %18 = arith.truncf %17 : vector<256x128xf32> to vector<256x128xbf16>
      %c0_15 = arith.constant 0 : index
      %c0_16 = arith.constant 0 : index
      %19 = vector.load %arg5[%c0_15, %c0_16] : memref<256x128xbf16, #tpu.memory_space<vmem>>, vector<256x128xbf16>
      tpu.vector_store %arg5[%c0_15, %c0_16], %18 {strides = array<i32>} : memref<256x128xbf16, #tpu.memory_space<vmem>>, vector<256x128xbf16>,
    } else {
    }
    return
  }
  func.func @transform_0(%arg0: i32, %arg1: i32) -> (i32, i32) {
    %c0_i32 = arith.constant 0 : i32
    return %arg0, %arg1 : i32, i32
  }
  func.func @transform_1(%arg0: i32, %arg1: i32) -> (i32, i32) {
    %c0_i32 = arith.constant 0 : i32
    %c0_i32_0 = arith.constant 0 : i32
    return %arg1, %c0_i32 : i32, i32
  }
  func.func @transform_2(%arg0: i32, %arg1: i32) -> (i32, i32) {
    %c0_i32 = arith.constant 0 : i32
    %c0_i32_0 = arith.constant 0 : i32
    %c0_i32_1 = arith.constant 0 : i32
    return %c0_i32, %c0_i32_0 : i32, i32
  }
  func.func @transform_3(%arg0: i32, %arg1: i32) -> (i32, i32) {
    %c0_i32 = arith.constant 0 : i32
    %c0_i32_0 = arith.constant 0 : i32
    return %arg0, %c0_i32 : i32, i32
  }
}

module attributes {stable_mosaic.version = 11 : i64} {
  func.func @_conv3x3_kernel(%arg0: i32, %arg1: memref<1x3x18x16x128xbf16, #tpu.memory_space<vmem>>, %arg2: memref<3x3x128x128xbf16, #tpu.memory_space<vmem>>, %arg3: memref<1x128xf32, #tpu.memory_space<vmem>>, %arg4: memref<1x256x128xbf16, #tpu.memory_space<vmem>>) attributes {dimension_semantics = [#tpu.dimension_semantics<parallel>], iteration_bounds = array<i64: 2>, scalar_prefetch = 0 : i64, scratch_operands = 0 : i64, tpu.core_type = #tpu.core_type<tc>, window_params = [{transform_indices = @transform_0, window_bounds = array<i64: 1, 3, 18, 16, 128>}, {pipeline_mode = #tpu.pipeline_mode<synchronous>, transform_indices = @transform_1, window_bounds = array<i64: 3, 3, 128, 128>}, {pipeline_mode = #tpu.pipeline_mode<synchronous>, transform_indices = @transform_2, window_bounds = array<i64: 1, 128>}, {transform_indices = @transform_3, window_bounds = array<i64: 1, 256, 128>}]} {
    %cst = arith.constant 0.000000e+00 : f32
    %0 = vector.broadcast %cst : f32 to vector<256x128xf32>
    %c0 = arith.constant 0 : index
    %c0_0 = arith.constant 0 : index
    %c0_1 = arith.constant 0 : index
    %c0_2 = arith.constant 0 : index
    %c0_3 = arith.constant 0 : index
    %1 = vector.load %arg1[%c0, %c0_0, %c0_1, %c0_2, %c0_3] : memref<1x3x18x16x128xbf16, #tpu.memory_space<vmem>>, vector<1x1x16x16x128xbf16>
    %2 = vector.shape_cast %1 : vector<1x1x16x16x128xbf16> to vector<16x16x128xbf16>
    %3 = arith.extf %2 : vector<16x16x128xbf16> to vector<16x16x128xf32>
    %4 = vector.shape_cast %3 : vector<16x16x128xf32> to vector<256x128xf32>
    %5 = arith.truncf %4 : vector<256x128xf32> to vector<256x128xbf16>
    %c0_4 = arith.constant 0 : index
    %c0_5 = arith.constant 0 : index
    %c0_6 = arith.constant 0 : index
    %c0_7 = arith.constant 0 : index
    %6 = vector.load %arg2[%c0_4, %c0_5, %c0_6, %c0_7] : memref<3x3x128x128xbf16, #tpu.memory_space<vmem>>, vector<1x1x128x128xbf16>
    %7 = vector.shape_cast %6 : vector<1x1x128x128xbf16> to vector<128x128xbf16>
    %cst_8 = arith.constant dense<0.000000e+00> : vector<256x128xf32>
    %8 = tpu.matmul %5, %7, %cst_8 {dimension_numbers = #tpu.dot_dimension_numbers<[1], [0], [0], [1], [0, 0, 1, 1], [], []>} : vector<256x128xbf16>, vector<128x128xbf16>, vector<256x128xf32> -> vector<256x128xf32>
    %9 = arith.addf %0, %8 : vector<256x128xf32>
    %c0_9 = arith.constant 0 : index
    %c0_10 = arith.constant 0 : index
    %c1 = arith.constant 1 : index
    %c0_11 = arith.constant 0 : index
    %c0_12 = arith.constant 0 : index
    %10 = vector.load %arg1[%c0_9, %c0_10, %c1, %c0_11, %c0_12] : memref<1x3x18x16x128xbf16, #tpu.memory_space<vmem>>, vector<1x1x16x16x128xbf16>
    %11 = vector.shape_cast %10 : vector<1x1x16x16x128xbf16> to vector<16x16x128xbf16>
    %12 = arith.extf %11 : vector<16x16x128xbf16> to vector<16x16x128xf32>
    %13 = vector.shape_cast %12 : vector<16x16x128xf32> to vector<256x128xf32>
    %14 = arith.truncf %13 : vector<256x128xf32> to vector<256x128xbf16>
    %c1_13 = arith.constant 1 : index
    %c0_14 = arith.constant 0 : index
    %c0_15 = arith.constant 0 : index
    %c0_16 = arith.constant 0 : index
    %15 = vector.load %arg2[%c1_13, %c0_14, %c0_15, %c0_16] : memref<3x3x128x128xbf16, #tpu.memory_space<vmem>>, vector<1x1x128x128xbf16>
    %16 = vector.shape_cast %15 : vector<1x1x128x128xbf16> to vector<128x128xbf16>
    %cst_17 = arith.constant dense<0.000000e+00> : vector<256x128xf32>
    %17 = tpu.matmul %14, %16, %cst_17 {dimension_numbers = #tpu.dot_dimension_numbers<[1], [0], [0], [1], [0, 0, 1, 1], [], []>} : vector<256x128xbf16>, vector<128x128xbf16>, vector<256x128xf32> -> vector<256x128xf32>
    %18 = arith.addf %9, %17 : vector<256x128xf32>
    %c0_18 = arith.constant 0 : index
    %c0_19 = arith.constant 0 : index
    %c2 = arith.constant 2 : index
    %c0_20 = arith.constant 0 : index
    %c0_21 = arith.constant 0 : index
    %19 = vector.load %arg1[%c0_18, %c0_19, %c2, %c0_20, %c0_21] : memref<1x3x18x16x128xbf16, #tpu.memory_space<vmem>>, vector<1x1x16x16x128xbf16>
    %20 = vector.shape_cast %19 : vector<1x1x16x16x128xbf16> to vector<16x16x128xbf16>
    %21 = arith.extf %20 : vector<16x16x128xbf16> to vector<16x16x128xf32>
    %22 = vector.shape_cast %21 : vector<16x16x128xf32> to vector<256x128xf32>
    %23 = arith.truncf %22 : vector<256x128xf32> to vector<256x128xbf16>
    %c2_22 = arith.constant 2 : index
    %c0_23 = arith.constant 0 : index
    %c0_24 = arith.constant 0 : index
    %c0_25 = arith.constant 0 : index
    %24 = vector.load %arg2[%c2_22, %c0_23, %c0_24, %c0_25] : memref<3x3x128x128xbf16, #tpu.memory_space<vmem>>, vector<1x1x128x128xbf16>
    %25 = vector.shape_cast %24 : vector<1x1x128x128xbf16> to vector<128x128xbf16>
    %cst_26 = arith.constant dense<0.000000e+00> : vector<256x128xf32>
    %26 = tpu.matmul %23, %25, %cst_26 {dimension_numbers = #tpu.dot_dimension_numbers<[1], [0], [0], [1], [0, 0, 1, 1], [], []>} : vector<256x128xbf16>, vector<128x128xbf16>, vector<256x128xf32> -> vector<256x128xf32>
    %27 = arith.addf %18, %26 : vector<256x128xf32>
    %c0_27 = arith.constant 0 : index
    %c1_28 = arith.constant 1 : index
    %c0_29 = arith.constant 0 : index
    %c0_30 = arith.constant 0 : index
    %c0_31 = arith.constant 0 : index
    %28 = vector.load %arg1[%c0_27, %c1_28, %c0_29, %c0_30, %c0_31] : memref<1x3x18x16x128xbf16, #tpu.memory_space<vmem>>, vector<1x1x16x16x128xbf16>
    %29 = vector.shape_cast %28 : vector<1x1x16x16x128xbf16> to vector<16x16x128xbf16>
    %30 = arith.extf %29 : vector<16x16x128xbf16> to vector<16x16x128xf32>
    %31 = vector.shape_cast %30 : vector<16x16x128xf32> to vector<256x128xf32>
    %32 = arith.truncf %31 : vector<256x128xf32> to vector<256x128xbf16>
    %c0_32 = arith.constant 0 : index
    %c1_33 = arith.constant 1 : index
    %c0_34 = arith.constant 0 : index
    %c0_35 = arith.constant 0 : index
    %33 = vector.load %arg2[%c0_32, %c1_33, %c0_34, %c0_35] : memref<3x3x128x128xbf16, #tpu.memory_space<vmem>>, vector<1x1x128x128xbf16>
    %34 = vector.shape_cast %33 : vector<1x1x128x128xbf16> to vector<128x128xbf16>
    %cst_36 = arith.constant dense<0.000000e+00> : vector<256x128xf32>
    %35 = tpu.matmul %32, %34, %cst_36 {dimension_numbers = #tpu.dot_dimension_numbers<[1], [0], [0], [1], [0, 0, 1, 1], [], []>} : vector<256x128xbf16>, vector<128x128xbf16>, vector<256x128xf32> -> vector<256x128xf32>
    %36 = arith.addf %27, %35 : vector<256x128xf32>
    %c0_37 = arith.constant 0 : index
    %c1_38 = arith.constant 1 : index
    %c1_39 = arith.constant 1 : index
    %c0_40 = arith.constant 0 : index
    %c0_41 = arith.constant 0 : index
    %37 = vector.load %arg1[%c0_37, %c1_38, %c1_39, %c0_40, %c0_41] : memref<1x3x18x16x128xbf16, #tpu.memory_space<vmem>>, vector<1x1x16x16x128xbf16>
    %38 = vector.shape_cast %37 : vector<1x1x16x16x128xbf16> to vector<16x16x128xbf16>
    %39 = arith.extf %38 : vector<16x16x128xbf16> to vector<16x16x128xf32>
    %40 = vector.shape_cast %39 : vector<16x16x128xf32> to vector<256x128xf32>
    %41 = arith.truncf %40 : vector<256x128xf32> to vector<256x128xbf16>
    %c1_42 = arith.constant 1 : index
    %c1_43 = arith.constant 1 : index
    %c0_44 = arith.constant 0 : index
    %c0_45 = arith.constant 0 : index
    %42 = vector.load %arg2[%c1_42, %c1_43, %c0_44, %c0_45] : memref<3x3x128x128xbf16, #tpu.memory_space<vmem>>, vector<1x1x128x128xbf16>
    %43 = vector.shape_cast %42 : vector<1x1x128x128xbf16> to vector<128x128xbf16>
    %cst_46 = arith.constant dense<0.000000e+00> : vector<256x128xf32>
    %44 = tpu.matmul %41, %43, %cst_46 {dimension_numbers = #tpu.dot_dimension_numbers<[1], [0], [0], [1], [0, 0, 1, 1], [], []>} : vector<256x128xbf16>, vector<128x128xbf16>, vector<256x128xf32> -> vector<256x128xf32>
    %45 = arith.addf %36, %44 : vector<256x128xf32>
    %c0_47 = arith.constant 0 : index
    %c1_48 = arith.constant 1 : index
    %c2_49 = arith.constant 2 : index
    %c0_50 = arith.constant 0 : index
    %c0_51 = arith.constant 0 : index
    %46 = vector.load %arg1[%c0_47, %c1_48, %c2_49, %c0_50, %c0_51] : memref<1x3x18x16x128xbf16, #tpu.memory_space<vmem>>, vector<1x1x16x16x128xbf16>
    %47 = vector.shape_cast %46 : vector<1x1x16x16x128xbf16> to vector<16x16x128xbf16>
    %48 = arith.extf %47 : vector<16x16x128xbf16> to vector<16x16x128xf32>
    %49 = vector.shape_cast %48 : vector<16x16x128xf32> to vector<256x128xf32>
    %50 = arith.truncf %49 : vector<256x128xf32> to vector<256x128xbf16>
    %c2_52 = arith.constant 2 : index
    %c1_53 = arith.constant 1 : index
    %c0_54 = arith.constant 0 : index
    %c0_55 = arith.constant 0 : index
    %51 = vector.load %arg2[%c2_52, %c1_53, %c0_54, %c0_55] : memref<3x3x128x128xbf16, #tpu.memory_space<vmem>>, vector<1x1x128x128xbf16>
    %52 = vector.shape_cast %51 : vector<1x1x128x128xbf16> to vector<128x128xbf16>
    %cst_56 = arith.constant dense<0.000000e+00> : vector<256x128xf32>
    %53 = tpu.matmul %50, %52, %cst_56 {dimension_numbers = #tpu.dot_dimension_numbers<[1], [0], [0], [1], [0, 0, 1, 1], [], []>} : vector<256x128xbf16>, vector<128x128xbf16>, vector<256x128xf32> -> vector<256x128xf32>
    %54 = arith.addf %45, %53 : vector<256x128xf32>
    %c0_57 = arith.constant 0 : index
    %c2_58 = arith.constant 2 : index
    %c0_59 = arith.constant 0 : index
    %c0_60 = arith.constant 0 : index
    %c0_61 = arith.constant 0 : index
    %55 = vector.load %arg1[%c0_57, %c2_58, %c0_59, %c0_60, %c0_61] : memref<1x3x18x16x128xbf16, #tpu.memory_space<vmem>>, vector<1x1x16x16x128xbf16>
    %56 = vector.shape_cast %55 : vector<1x1x16x16x128xbf16> to vector<16x16x128xbf16>
    %57 = arith.extf %56 : vector<16x16x128xbf16> to vector<16x16x128xf32>
    %58 = vector.shape_cast %57 : vector<16x16x128xf32> to vector<256x128xf32>
    %59 = arith.truncf %58 : vector<256x128xf32> to vector<256x128xbf16>
    %c0_62 = arith.constant 0 : index
    %c2_63 = arith.constant 2 : index
    %c0_64 = arith.constant 0 : index
    %c0_65 = arith.constant 0 : index
    %60 = vector.load %arg2[%c0_62, %c2_63, %c0_64, %c0_65] : memref<3x3x128x128xbf16, #tpu.memory_space<vmem>>, vector<1x1x128x128xbf16>
    %61 = vector.shape_cast %60 : vector<1x1x128x128xbf16> to vector<128x128xbf16>
    %cst_66 = arith.constant dense<0.000000e+00> : vector<256x128xf32>
    %62 = tpu.matmul %59, %61, %cst_66 {dimension_numbers = #tpu.dot_dimension_numbers<[1], [0], [0], [1], [0, 0, 1, 1], [], []>} : vector<256x128xbf16>, vector<128x128xbf16>, vector<256x128xf32> -> vector<256x128xf32>
    %63 = arith.addf %54, %62 : vector<256x128xf32>
    %c0_67 = arith.constant 0 : index
    %c2_68 = arith.constant 2 : index
    %c1_69 = arith.constant 1 : index
    %c0_70 = arith.constant 0 : index
    %c0_71 = arith.constant 0 : index
    %64 = vector.load %arg1[%c0_67, %c2_68, %c1_69, %c0_70, %c0_71] : memref<1x3x18x16x128xbf16, #tpu.memory_space<vmem>>, vector<1x1x16x16x128xbf16>
    %65 = vector.shape_cast %64 : vector<1x1x16x16x128xbf16> to vector<16x16x128xbf16>
    %66 = arith.extf %65 : vector<16x16x128xbf16> to vector<16x16x128xf32>
    %67 = vector.shape_cast %66 : vector<16x16x128xf32> to vector<256x128xf32>
    %68 = arith.truncf %67 : vector<256x128xf32> to vector<256x128xbf16>
    %c1_72 = arith.constant 1 : index
    %c2_73 = arith.constant 2 : index
    %c0_74 = arith.constant 0 : index
    %c0_75 = arith.constant 0 : index
    %69 = vector.load %arg2[%c1_72, %c2_73, %c0_74, %c0_75] : memref<3x3x128x128xbf16, #tpu.memory_space<vmem>>, vector<1x1x128x128xbf16>
    %70 = vector.shape_cast %69 : vector<1x1x128x128xbf16> to vector<128x128xbf16>
    %cst_76 = arith.constant dense<0.000000e+00> : vector<256x128xf32>
    %71 = tpu.matmul %68, %70, %cst_76 {dimension_numbers = #tpu.dot_dimension_numbers<[1], [0], [0], [1], [0, 0, 1, 1], [], []>} : vector<256x128xbf16>, vector<128x128xbf16>, vector<256x128xf32> -> vector<256x128xf32>
    %72 = arith.addf %63, %71 : vector<256x128xf32>
    %c0_77 = arith.constant 0 : index
    %c2_78 = arith.constant 2 : index
    %c2_79 = arith.constant 2 : index
    %c0_80 = arith.constant 0 : index
    %c0_81 = arith.constant 0 : index
    %73 = vector.load %arg1[%c0_77, %c2_78, %c2_79, %c0_80, %c0_81] : memref<1x3x18x16x128xbf16, #tpu.memory_space<vmem>>, vector<1x1x16x16x128xbf16>
    %74 = vector.shape_cast %73 : vector<1x1x16x16x128xbf16> to vector<16x16x128xbf16>
    %75 = arith.extf %74 : vector<16x16x128xbf16> to vector<16x16x128xf32>
    %76 = vector.shape_cast %75 : vector<16x16x128xf32> to vector<256x128xf32>
    %77 = arith.truncf %76 : vector<256x128xf32> to vector<256x128xbf16>
    %c2_82 = arith.constant 2 : index
    %c2_83 = arith.constant 2 : index
    %c0_84 = arith.constant 0 : index
    %c0_85 = arith.constant 0 : index
    %78 = vector.load %arg2[%c2_82, %c2_83, %c0_84, %c0_85] : memref<3x3x128x128xbf16, #tpu.memory_space<vmem>>, vector<1x1x128x128xbf16>
    %79 = vector.shape_cast %78 : vector<1x1x128x128xbf16> to vector<128x128xbf16>
    %cst_86 = arith.constant dense<0.000000e+00> : vector<256x128xf32>
    %80 = tpu.matmul %77, %79, %cst_86 {dimension_numbers = #tpu.dot_dimension_numbers<[1], [0], [0], [1], [0, 0, 1, 1], [], []>} : vector<256x128xbf16>, vector<128x128xbf16>, vector<256x128xf32> -> vector<256x128xf32>
    %81 = arith.addf %72, %80 : vector<256x128xf32>
    %c0_87 = arith.constant 0 : index
    %c0_88 = arith.constant 0 : index
    %82 = vector.load %arg3[%c0_87, %c0_88] : memref<1x128xf32, #tpu.memory_space<vmem>>, vector<1x128xf32>
    %83 = vector.broadcast %82 : vector<1x128xf32> to vector<256x128xf32>
    %84 = arith.addf %81, %83 : vector<256x128xf32>
    %cst_89 = arith.constant 0.000000e+00 : f32
    %85 = vector.broadcast %cst_89 : f32 to vector<256x128xf32>
    %86 = arith.maximumf %84, %85 : vector<256x128xf32>
    %87 = arith.truncf %86 : vector<256x128xf32> to vector<256x128xbf16>
    %c0_90 = arith.constant 0 : index
    %c0_91 = arith.constant 0 : index
    %c0_92 = arith.constant 0 : index
    %88 = vector.load %arg4[%c0_90, %c0_91, %c0_92] : memref<1x256x128xbf16, #tpu.memory_space<vmem>>, vector<1x256x128xbf16>
    %89 = vector.shape_cast %88 : vector<1x256x128xbf16> to vector<256x128xbf16>
    %90 = vector.shape_cast %87 : vector<256x128xbf16> to vector<1x256x128xbf16>
    tpu.vector_store %arg4[%c0_90, %c0_91, %c0_92], %90 {strides = array<i32>} : memref<1x256x128xbf16, #tpu.memory_space<vmem>>, vector<1x256x128xbf16>,
    return
  }
  func.func @transform_0(%arg0: i32) -> (i32, i32, i32, i32, i32) {
    %c0_i32 = arith.constant 0 : i32
    %c0_i32_0 = arith.constant 0 : i32
    %c0_i32_1 = arith.constant 0 : i32
    %c0_i32_2 = arith.constant 0 : i32
    %c0_i32_3 = arith.constant 0 : i32
    return %arg0, %c0_i32, %c0_i32_0, %c0_i32_1, %c0_i32_2 : i32, i32, i32, i32, i32
  }
  func.func @transform_1(%arg0: i32) -> (i32, i32, i32, i32) {
    %c0_i32 = arith.constant 0 : i32
    %c0_i32_0 = arith.constant 0 : i32
    %c0_i32_1 = arith.constant 0 : i32
    %c0_i32_2 = arith.constant 0 : i32
    %c0_i32_3 = arith.constant 0 : i32
    return %c0_i32, %c0_i32_0, %c0_i32_1, %c0_i32_2 : i32, i32, i32, i32
  }
  func.func @transform_2(%arg0: i32) -> (i32, i32) {
    %c0_i32 = arith.constant 0 : i32
    %c0_i32_0 = arith.constant 0 : i32
    %c0_i32_1 = arith.constant 0 : i32
    return %c0_i32, %c0_i32_0 : i32, i32
  }
  func.func @transform_3(%arg0: i32) -> (i32, i32, i32) {
    %c0_i32 = arith.constant 0 : i32
    %c0_i32_0 = arith.constant 0 : i32
    %c0_i32_1 = arith.constant 0 : i32
    return %arg0, %c0_i32, %c0_i32_0 : i32, i32, i32
  }
}

module attributes {stable_mosaic.version = 11 : i64} {
  func.func @_matmul_kernel(%arg0: i32, %arg1: i32, %arg2: memref<64x256xbf16, #tpu.memory_space<vmem>>, %arg3: memref<256x128xbf16, #tpu.memory_space<vmem>>, %arg4: memref<1x128xf32, #tpu.memory_space<vmem>>, %arg5: memref<64x128xbf16, #tpu.memory_space<vmem>>, %arg6: memref<64x128xf32, #tpu.memory_space<vmem>>) attributes {dimension_semantics = [#tpu.dimension_semantics<parallel>, #tpu.dimension_semantics<arbitrary>], iteration_bounds = array<i64: 2, 2>, scalar_prefetch = 0 : i64, scratch_operands = 1 : i64, tpu.core_type = #tpu.core_type<tc>, window_params = [{transform_indices = @transform_0, window_bounds = array<i64: 64, 256>}, {transform_indices = @transform_1, window_bounds = array<i64: 256, 128>}, {pipeline_mode = #tpu.pipeline_mode<synchronous>, transform_indices = @transform_2, window_bounds = array<i64: 1, 128>}, {transform_indices = @transform_3, window_bounds = array<i64: 64, 128>}]} {
    %c0_i32 = arith.constant 0 : i32
    %0 = arith.cmpi eq, %arg1, %c0_i32 : i32
    %1 = arith.extui %0 : i1 to i32
    %c0_i32_0 = arith.constant 0 : i32
    %2 = arith.cmpi ne, %1, %c0_i32_0 : i32
    scf.if %2 {
      %cst_9 = arith.constant 0.000000e+00 : f32
      %12 = vector.broadcast %cst_9 : f32 to vector<64x128xf32>
      %c0_10 = arith.constant 0 : index
      %c0_11 = arith.constant 0 : index
      %13 = vector.load %arg6[%c0_10, %c0_11] : memref<64x128xf32, #tpu.memory_space<vmem>>, vector<64x128xf32>
      tpu.vector_store %arg6[%c0_10, %c0_11], %12 {strides = array<i32>} : memref<64x128xf32, #tpu.memory_space<vmem>>, vector<64x128xf32>,
    } else {
    }
    %c0 = arith.constant 0 : index
    %c0_1 = arith.constant 0 : index
    %3 = vector.load %arg6[%c0, %c0_1] : memref<64x128xf32, #tpu.memory_space<vmem>>, vector<64x128xf32>
    %c0_2 = arith.constant 0 : index
    %c0_3 = arith.constant 0 : index
    %4 = vector.load %arg2[%c0_2, %c0_3] : memref<64x256xbf16, #tpu.memory_space<vmem>>, vector<64x256xbf16>
    %c0_4 = arith.constant 0 : index
    %c0_5 = arith.constant 0 : index
    %5 = vector.load %arg3[%c0_4, %c0_5] : memref<256x128xbf16, #tpu.memory_space<vmem>>, vector<256x128xbf16>
    %cst = arith.constant dense<0.000000e+00> : vector<64x128xf32>
    %6 = tpu.matmul %4, %5, %cst {dimension_numbers = #tpu.dot_dimension_numbers<[1], [0], [0], [1], [0, 0, 1, 1], [], []>} : vector<64x256xbf16>, vector<256x128xbf16>, vector<64x128xf32> -> vector<64x128xf32>
    %7 = arith.addf %3, %6 : vector<64x128xf32>
    %c0_6 = arith.constant 0 : index
    %c0_7 = arith.constant 0 : index
    %8 = vector.load %arg6[%c0_6, %c0_7] : memref<64x128xf32, #tpu.memory_space<vmem>>, vector<64x128xf32>
    tpu.vector_store %arg6[%c0_6, %c0_7], %7 {strides = array<i32>} : memref<64x128xf32, #tpu.memory_space<vmem>>, vector<64x128xf32>,
    %c1_i32 = arith.constant 1 : i32
    %9 = arith.cmpi eq, %arg1, %c1_i32 : i32
    %10 = arith.extui %9 : i1 to i32
    %c0_i32_8 = arith.constant 0 : i32
    %11 = arith.cmpi ne, %10, %c0_i32_8 : i32
    scf.if %11 {
      %c0_9 = arith.constant 0 : index
      %c0_10 = arith.constant 0 : index
      %12 = vector.load %arg6[%c0_9, %c0_10] : memref<64x128xf32, #tpu.memory_space<vmem>>, vector<64x128xf32>
      %c0_11 = arith.constant 0 : index
      %c0_12 = arith.constant 0 : index
      %13 = vector.load %arg4[%c0_11, %c0_12] : memref<1x128xf32, #tpu.memory_space<vmem>>, vector<1x128xf32>
      %14 = vector.broadcast %13 : vector<1x128xf32> to vector<64x128xf32>
      %15 = arith.addf %12, %14 : vector<64x128xf32>
      %cst_13 = arith.constant 0.000000e+00 : f32
      %16 = vector.broadcast %cst_13 : f32 to vector<64x128xf32>
      %17 = arith.maximumf %15, %16 : vector<64x128xf32>
      %18 = arith.truncf %17 : vector<64x128xf32> to vector<64x128xbf16>
      %c0_14 = arith.constant 0 : index
      %c0_15 = arith.constant 0 : index
      %19 = vector.load %arg5[%c0_14, %c0_15] : memref<64x128xbf16, #tpu.memory_space<vmem>>, vector<64x128xbf16>
      tpu.vector_store %arg5[%c0_14, %c0_15], %18 {strides = array<i32>} : memref<64x128xbf16, #tpu.memory_space<vmem>>, vector<64x128xbf16>,
    } else {
    }
    return
  }
  func.func @transform_0(%arg0: i32, %arg1: i32) -> (i32, i32) {
    %c0_i32 = arith.constant 0 : i32
    return %arg0, %arg1 : i32, i32
  }
  func.func @transform_1(%arg0: i32, %arg1: i32) -> (i32, i32) {
    %c0_i32 = arith.constant 0 : i32
    %c0_i32_0 = arith.constant 0 : i32
    return %arg1, %c0_i32 : i32, i32
  }
  func.func @transform_2(%arg0: i32, %arg1: i32) -> (i32, i32) {
    %c0_i32 = arith.constant 0 : i32
    %c0_i32_0 = arith.constant 0 : i32
    %c0_i32_1 = arith.constant 0 : i32
    return %c0_i32, %c0_i32_0 : i32, i32
  }
  func.func @transform_3(%arg0: i32, %arg1: i32) -> (i32, i32) {
    %c0_i32 = arith.constant 0 : i32
    %c0_i32_0 = arith.constant 0 : i32
    return %arg0, %c0_i32 : i32, i32
  }
}

module attributes {stable_mosaic.version = 11 : i64} {
  func.func @_matmul_kernel(%arg0: i32, %arg1: i32, %arg2: memref<64x256xbf16, #tpu.memory_space<vmem>>, %arg3: memref<256x128xbf16, #tpu.memory_space<vmem>>, %arg4: memref<1x128xf32, #tpu.memory_space<vmem>>, %arg5: memref<64x128xbf16, #tpu.memory_space<vmem>>, %arg6: memref<64x128xf32, #tpu.memory_space<vmem>>) attributes {dimension_semantics = [#tpu.dimension_semantics<parallel>, #tpu.dimension_semantics<arbitrary>], iteration_bounds = array<i64: 2, 2>, scalar_prefetch = 0 : i64, scratch_operands = 1 : i64, tpu.core_type = #tpu.core_type<tc>, window_params = [{transform_indices = @transform_0, window_bounds = array<i64: 64, 256>}, {transform_indices = @transform_1, window_bounds = array<i64: 256, 128>}, {pipeline_mode = #tpu.pipeline_mode<synchronous>, transform_indices = @transform_2, window_bounds = array<i64: 1, 128>}, {transform_indices = @transform_3, window_bounds = array<i64: 64, 128>}]} {
    %c0_i32 = arith.constant 0 : i32
    %0 = arith.cmpi eq, %arg1, %c0_i32 : i32
    %1 = arith.extui %0 : i1 to i32
    %c0_i32_0 = arith.constant 0 : i32
    %2 = arith.cmpi ne, %1, %c0_i32_0 : i32
    scf.if %2 {
      %cst_9 = arith.constant 0.000000e+00 : f32
      %12 = vector.broadcast %cst_9 : f32 to vector<64x128xf32>
      %c0_10 = arith.constant 0 : index
      %c0_11 = arith.constant 0 : index
      %13 = vector.load %arg6[%c0_10, %c0_11] : memref<64x128xf32, #tpu.memory_space<vmem>>, vector<64x128xf32>
      tpu.vector_store %arg6[%c0_10, %c0_11], %12 {strides = array<i32>} : memref<64x128xf32, #tpu.memory_space<vmem>>, vector<64x128xf32>,
    } else {
    }
    %c0 = arith.constant 0 : index
    %c0_1 = arith.constant 0 : index
    %3 = vector.load %arg6[%c0, %c0_1] : memref<64x128xf32, #tpu.memory_space<vmem>>, vector<64x128xf32>
    %c0_2 = arith.constant 0 : index
    %c0_3 = arith.constant 0 : index
    %4 = vector.load %arg2[%c0_2, %c0_3] : memref<64x256xbf16, #tpu.memory_space<vmem>>, vector<64x256xbf16>
    %c0_4 = arith.constant 0 : index
    %c0_5 = arith.constant 0 : index
    %5 = vector.load %arg3[%c0_4, %c0_5] : memref<256x128xbf16, #tpu.memory_space<vmem>>, vector<256x128xbf16>
    %cst = arith.constant dense<0.000000e+00> : vector<64x128xf32>
    %6 = tpu.matmul %4, %5, %cst {dimension_numbers = #tpu.dot_dimension_numbers<[1], [0], [0], [1], [0, 0, 1, 1], [], []>} : vector<64x256xbf16>, vector<256x128xbf16>, vector<64x128xf32> -> vector<64x128xf32>
    %7 = arith.addf %3, %6 : vector<64x128xf32>
    %c0_6 = arith.constant 0 : index
    %c0_7 = arith.constant 0 : index
    %8 = vector.load %arg6[%c0_6, %c0_7] : memref<64x128xf32, #tpu.memory_space<vmem>>, vector<64x128xf32>
    tpu.vector_store %arg6[%c0_6, %c0_7], %7 {strides = array<i32>} : memref<64x128xf32, #tpu.memory_space<vmem>>, vector<64x128xf32>,
    %c1_i32 = arith.constant 1 : i32
    %9 = arith.cmpi eq, %arg1, %c1_i32 : i32
    %10 = arith.extui %9 : i1 to i32
    %c0_i32_8 = arith.constant 0 : i32
    %11 = arith.cmpi ne, %10, %c0_i32_8 : i32
    scf.if %11 {
      %c0_9 = arith.constant 0 : index
      %c0_10 = arith.constant 0 : index
      %12 = vector.load %arg6[%c0_9, %c0_10] : memref<64x128xf32, #tpu.memory_space<vmem>>, vector<64x128xf32>
      %c0_11 = arith.constant 0 : index
      %c0_12 = arith.constant 0 : index
      %13 = vector.load %arg4[%c0_11, %c0_12] : memref<1x128xf32, #tpu.memory_space<vmem>>, vector<1x128xf32>
      %14 = vector.broadcast %13 : vector<1x128xf32> to vector<64x128xf32>
      %15 = arith.addf %12, %14 : vector<64x128xf32>
      %16 = arith.truncf %15 : vector<64x128xf32> to vector<64x128xbf16>
      %c0_13 = arith.constant 0 : index
      %c0_14 = arith.constant 0 : index
      %17 = vector.load %arg5[%c0_13, %c0_14] : memref<64x128xbf16, #tpu.memory_space<vmem>>, vector<64x128xbf16>
      tpu.vector_store %arg5[%c0_13, %c0_14], %16 {strides = array<i32>} : memref<64x128xbf16, #tpu.memory_space<vmem>>, vector<64x128xbf16>,
    } else {
    }
    return
  }
  func.func @transform_0(%arg0: i32, %arg1: i32) -> (i32, i32) {
    %c0_i32 = arith.constant 0 : i32
    return %arg0, %arg1 : i32, i32
  }
  func.func @transform_1(%arg0: i32, %arg1: i32) -> (i32, i32) {
    %c0_i32 = arith.constant 0 : i32
    %c0_i32_0 = arith.constant 0 : i32
    return %arg1, %c0_i32 : i32, i32
  }
  func.func @transform_2(%arg0: i32, %arg1: i32) -> (i32, i32) {
    %c0_i32 = arith.constant 0 : i32
    %c0_i32_0 = arith.constant 0 : i32
    %c0_i32_1 = arith.constant 0 : i32
    return %c0_i32, %c0_i32_0 : i32, i32
  }
  func.func @transform_3(%arg0: i32, %arg1: i32) -> (i32, i32) {
    %c0_i32 = arith.constant 0 : i32
    %c0_i32_0 = arith.constant 0 : i32
    return %arg0, %c0_i32 : i32, i32
  }
}

module attributes {stable_mosaic.version = 11 : i64} {
  func.func @_conv3x3_kernel(%arg0: i32, %arg1: memref<1x3x10x8x128xbf16, #tpu.memory_space<vmem>>, %arg2: memref<3x3x128x128xbf16, #tpu.memory_space<vmem>>, %arg3: memref<1x128xf32, #tpu.memory_space<vmem>>, %arg4: memref<1x64x128xbf16, #tpu.memory_space<vmem>>) attributes {dimension_semantics = [#tpu.dimension_semantics<parallel>], iteration_bounds = array<i64: 2>, scalar_prefetch = 0 : i64, scratch_operands = 0 : i64, tpu.core_type = #tpu.core_type<tc>, window_params = [{transform_indices = @transform_0, window_bounds = array<i64: 1, 3, 10, 8, 128>}, {pipeline_mode = #tpu.pipeline_mode<synchronous>, transform_indices = @transform_1, window_bounds = array<i64: 3, 3, 128, 128>}, {pipeline_mode = #tpu.pipeline_mode<synchronous>, transform_indices = @transform_2, window_bounds = array<i64: 1, 128>}, {transform_indices = @transform_3, window_bounds = array<i64: 1, 64, 128>}]} {
    %cst = arith.constant 0.000000e+00 : f32
    %0 = vector.broadcast %cst : f32 to vector<64x128xf32>
    %c0 = arith.constant 0 : index
    %c0_0 = arith.constant 0 : index
    %c0_1 = arith.constant 0 : index
    %c0_2 = arith.constant 0 : index
    %c0_3 = arith.constant 0 : index
    %1 = vector.load %arg1[%c0, %c0_0, %c0_1, %c0_2, %c0_3] : memref<1x3x10x8x128xbf16, #tpu.memory_space<vmem>>, vector<1x1x8x8x128xbf16>
    %2 = vector.shape_cast %1 : vector<1x1x8x8x128xbf16> to vector<8x8x128xbf16>
    %3 = arith.extf %2 : vector<8x8x128xbf16> to vector<8x8x128xf32>
    %4 = vector.shape_cast %3 : vector<8x8x128xf32> to vector<64x128xf32>
    %5 = arith.truncf %4 : vector<64x128xf32> to vector<64x128xbf16>
    %c0_4 = arith.constant 0 : index
    %c0_5 = arith.constant 0 : index
    %c0_6 = arith.constant 0 : index
    %c0_7 = arith.constant 0 : index
    %6 = vector.load %arg2[%c0_4, %c0_5, %c0_6, %c0_7] : memref<3x3x128x128xbf16, #tpu.memory_space<vmem>>, vector<1x1x128x128xbf16>
    %7 = vector.shape_cast %6 : vector<1x1x128x128xbf16> to vector<128x128xbf16>
    %cst_8 = arith.constant dense<0.000000e+00> : vector<64x128xf32>
    %8 = tpu.matmul %5, %7, %cst_8 {dimension_numbers = #tpu.dot_dimension_numbers<[1], [0], [0], [1], [0, 0, 1, 1], [], []>} : vector<64x128xbf16>, vector<128x128xbf16>, vector<64x128xf32> -> vector<64x128xf32>
    %9 = arith.addf %0, %8 : vector<64x128xf32>
    %c0_9 = arith.constant 0 : index
    %c0_10 = arith.constant 0 : index
    %c1 = arith.constant 1 : index
    %c0_11 = arith.constant 0 : index
    %c0_12 = arith.constant 0 : index
    %10 = vector.load %arg1[%c0_9, %c0_10, %c1, %c0_11, %c0_12] : memref<1x3x10x8x128xbf16, #tpu.memory_space<vmem>>, vector<1x1x8x8x128xbf16>
    %11 = vector.shape_cast %10 : vector<1x1x8x8x128xbf16> to vector<8x8x128xbf16>
    %12 = arith.extf %11 : vector<8x8x128xbf16> to vector<8x8x128xf32>
    %13 = vector.shape_cast %12 : vector<8x8x128xf32> to vector<64x128xf32>
    %14 = arith.truncf %13 : vector<64x128xf32> to vector<64x128xbf16>
    %c1_13 = arith.constant 1 : index
    %c0_14 = arith.constant 0 : index
    %c0_15 = arith.constant 0 : index
    %c0_16 = arith.constant 0 : index
    %15 = vector.load %arg2[%c1_13, %c0_14, %c0_15, %c0_16] : memref<3x3x128x128xbf16, #tpu.memory_space<vmem>>, vector<1x1x128x128xbf16>
    %16 = vector.shape_cast %15 : vector<1x1x128x128xbf16> to vector<128x128xbf16>
    %cst_17 = arith.constant dense<0.000000e+00> : vector<64x128xf32>
    %17 = tpu.matmul %14, %16, %cst_17 {dimension_numbers = #tpu.dot_dimension_numbers<[1], [0], [0], [1], [0, 0, 1, 1], [], []>} : vector<64x128xbf16>, vector<128x128xbf16>, vector<64x128xf32> -> vector<64x128xf32>
    %18 = arith.addf %9, %17 : vector<64x128xf32>
    %c0_18 = arith.constant 0 : index
    %c0_19 = arith.constant 0 : index
    %c2 = arith.constant 2 : index
    %c0_20 = arith.constant 0 : index
    %c0_21 = arith.constant 0 : index
    %19 = vector.load %arg1[%c0_18, %c0_19, %c2, %c0_20, %c0_21] : memref<1x3x10x8x128xbf16, #tpu.memory_space<vmem>>, vector<1x1x8x8x128xbf16>
    %20 = vector.shape_cast %19 : vector<1x1x8x8x128xbf16> to vector<8x8x128xbf16>
    %21 = arith.extf %20 : vector<8x8x128xbf16> to vector<8x8x128xf32>
    %22 = vector.shape_cast %21 : vector<8x8x128xf32> to vector<64x128xf32>
    %23 = arith.truncf %22 : vector<64x128xf32> to vector<64x128xbf16>
    %c2_22 = arith.constant 2 : index
    %c0_23 = arith.constant 0 : index
    %c0_24 = arith.constant 0 : index
    %c0_25 = arith.constant 0 : index
    %24 = vector.load %arg2[%c2_22, %c0_23, %c0_24, %c0_25] : memref<3x3x128x128xbf16, #tpu.memory_space<vmem>>, vector<1x1x128x128xbf16>
    %25 = vector.shape_cast %24 : vector<1x1x128x128xbf16> to vector<128x128xbf16>
    %cst_26 = arith.constant dense<0.000000e+00> : vector<64x128xf32>
    %26 = tpu.matmul %23, %25, %cst_26 {dimension_numbers = #tpu.dot_dimension_numbers<[1], [0], [0], [1], [0, 0, 1, 1], [], []>} : vector<64x128xbf16>, vector<128x128xbf16>, vector<64x128xf32> -> vector<64x128xf32>
    %27 = arith.addf %18, %26 : vector<64x128xf32>
    %c0_27 = arith.constant 0 : index
    %c1_28 = arith.constant 1 : index
    %c0_29 = arith.constant 0 : index
    %c0_30 = arith.constant 0 : index
    %c0_31 = arith.constant 0 : index
    %28 = vector.load %arg1[%c0_27, %c1_28, %c0_29, %c0_30, %c0_31] : memref<1x3x10x8x128xbf16, #tpu.memory_space<vmem>>, vector<1x1x8x8x128xbf16>
    %29 = vector.shape_cast %28 : vector<1x1x8x8x128xbf16> to vector<8x8x128xbf16>
    %30 = arith.extf %29 : vector<8x8x128xbf16> to vector<8x8x128xf32>
    %31 = vector.shape_cast %30 : vector<8x8x128xf32> to vector<64x128xf32>
    %32 = arith.truncf %31 : vector<64x128xf32> to vector<64x128xbf16>
    %c0_32 = arith.constant 0 : index
    %c1_33 = arith.constant 1 : index
    %c0_34 = arith.constant 0 : index
    %c0_35 = arith.constant 0 : index
    %33 = vector.load %arg2[%c0_32, %c1_33, %c0_34, %c0_35] : memref<3x3x128x128xbf16, #tpu.memory_space<vmem>>, vector<1x1x128x128xbf16>
    %34 = vector.shape_cast %33 : vector<1x1x128x128xbf16> to vector<128x128xbf16>
    %cst_36 = arith.constant dense<0.000000e+00> : vector<64x128xf32>
    %35 = tpu.matmul %32, %34, %cst_36 {dimension_numbers = #tpu.dot_dimension_numbers<[1], [0], [0], [1], [0, 0, 1, 1], [], []>} : vector<64x128xbf16>, vector<128x128xbf16>, vector<64x128xf32> -> vector<64x128xf32>
    %36 = arith.addf %27, %35 : vector<64x128xf32>
    %c0_37 = arith.constant 0 : index
    %c1_38 = arith.constant 1 : index
    %c1_39 = arith.constant 1 : index
    %c0_40 = arith.constant 0 : index
    %c0_41 = arith.constant 0 : index
    %37 = vector.load %arg1[%c0_37, %c1_38, %c1_39, %c0_40, %c0_41] : memref<1x3x10x8x128xbf16, #tpu.memory_space<vmem>>, vector<1x1x8x8x128xbf16>
    %38 = vector.shape_cast %37 : vector<1x1x8x8x128xbf16> to vector<8x8x128xbf16>
    %39 = arith.extf %38 : vector<8x8x128xbf16> to vector<8x8x128xf32>
    %40 = vector.shape_cast %39 : vector<8x8x128xf32> to vector<64x128xf32>
    %41 = arith.truncf %40 : vector<64x128xf32> to vector<64x128xbf16>
    %c1_42 = arith.constant 1 : index
    %c1_43 = arith.constant 1 : index
    %c0_44 = arith.constant 0 : index
    %c0_45 = arith.constant 0 : index
    %42 = vector.load %arg2[%c1_42, %c1_43, %c0_44, %c0_45] : memref<3x3x128x128xbf16, #tpu.memory_space<vmem>>, vector<1x1x128x128xbf16>
    %43 = vector.shape_cast %42 : vector<1x1x128x128xbf16> to vector<128x128xbf16>
    %cst_46 = arith.constant dense<0.000000e+00> : vector<64x128xf32>
    %44 = tpu.matmul %41, %43, %cst_46 {dimension_numbers = #tpu.dot_dimension_numbers<[1], [0], [0], [1], [0, 0, 1, 1], [], []>} : vector<64x128xbf16>, vector<128x128xbf16>, vector<64x128xf32> -> vector<64x128xf32>
    %45 = arith.addf %36, %44 : vector<64x128xf32>
    %c0_47 = arith.constant 0 : index
    %c1_48 = arith.constant 1 : index
    %c2_49 = arith.constant 2 : index
    %c0_50 = arith.constant 0 : index
    %c0_51 = arith.constant 0 : index
    %46 = vector.load %arg1[%c0_47, %c1_48, %c2_49, %c0_50, %c0_51] : memref<1x3x10x8x128xbf16, #tpu.memory_space<vmem>>, vector<1x1x8x8x128xbf16>
    %47 = vector.shape_cast %46 : vector<1x1x8x8x128xbf16> to vector<8x8x128xbf16>
    %48 = arith.extf %47 : vector<8x8x128xbf16> to vector<8x8x128xf32>
    %49 = vector.shape_cast %48 : vector<8x8x128xf32> to vector<64x128xf32>
    %50 = arith.truncf %49 : vector<64x128xf32> to vector<64x128xbf16>
    %c2_52 = arith.constant 2 : index
    %c1_53 = arith.constant 1 : index
    %c0_54 = arith.constant 0 : index
    %c0_55 = arith.constant 0 : index
    %51 = vector.load %arg2[%c2_52, %c1_53, %c0_54, %c0_55] : memref<3x3x128x128xbf16, #tpu.memory_space<vmem>>, vector<1x1x128x128xbf16>
    %52 = vector.shape_cast %51 : vector<1x1x128x128xbf16> to vector<128x128xbf16>
    %cst_56 = arith.constant dense<0.000000e+00> : vector<64x128xf32>
    %53 = tpu.matmul %50, %52, %cst_56 {dimension_numbers = #tpu.dot_dimension_numbers<[1], [0], [0], [1], [0, 0, 1, 1], [], []>} : vector<64x128xbf16>, vector<128x128xbf16>, vector<64x128xf32> -> vector<64x128xf32>
    %54 = arith.addf %45, %53 : vector<64x128xf32>
    %c0_57 = arith.constant 0 : index
    %c2_58 = arith.constant 2 : index
    %c0_59 = arith.constant 0 : index
    %c0_60 = arith.constant 0 : index
    %c0_61 = arith.constant 0 : index
    %55 = vector.load %arg1[%c0_57, %c2_58, %c0_59, %c0_60, %c0_61] : memref<1x3x10x8x128xbf16, #tpu.memory_space<vmem>>, vector<1x1x8x8x128xbf16>
    %56 = vector.shape_cast %55 : vector<1x1x8x8x128xbf16> to vector<8x8x128xbf16>
    %57 = arith.extf %56 : vector<8x8x128xbf16> to vector<8x8x128xf32>
    %58 = vector.shape_cast %57 : vector<8x8x128xf32> to vector<64x128xf32>
    %59 = arith.truncf %58 : vector<64x128xf32> to vector<64x128xbf16>
    %c0_62 = arith.constant 0 : index
    %c2_63 = arith.constant 2 : index
    %c0_64 = arith.constant 0 : index
    %c0_65 = arith.constant 0 : index
    %60 = vector.load %arg2[%c0_62, %c2_63, %c0_64, %c0_65] : memref<3x3x128x128xbf16, #tpu.memory_space<vmem>>, vector<1x1x128x128xbf16>
    %61 = vector.shape_cast %60 : vector<1x1x128x128xbf16> to vector<128x128xbf16>
    %cst_66 = arith.constant dense<0.000000e+00> : vector<64x128xf32>
    %62 = tpu.matmul %59, %61, %cst_66 {dimension_numbers = #tpu.dot_dimension_numbers<[1], [0], [0], [1], [0, 0, 1, 1], [], []>} : vector<64x128xbf16>, vector<128x128xbf16>, vector<64x128xf32> -> vector<64x128xf32>
    %63 = arith.addf %54, %62 : vector<64x128xf32>
    %c0_67 = arith.constant 0 : index
    %c2_68 = arith.constant 2 : index
    %c1_69 = arith.constant 1 : index
    %c0_70 = arith.constant 0 : index
    %c0_71 = arith.constant 0 : index
    %64 = vector.load %arg1[%c0_67, %c2_68, %c1_69, %c0_70, %c0_71] : memref<1x3x10x8x128xbf16, #tpu.memory_space<vmem>>, vector<1x1x8x8x128xbf16>
    %65 = vector.shape_cast %64 : vector<1x1x8x8x128xbf16> to vector<8x8x128xbf16>
    %66 = arith.extf %65 : vector<8x8x128xbf16> to vector<8x8x128xf32>
    %67 = vector.shape_cast %66 : vector<8x8x128xf32> to vector<64x128xf32>
    %68 = arith.truncf %67 : vector<64x128xf32> to vector<64x128xbf16>
    %c1_72 = arith.constant 1 : index
    %c2_73 = arith.constant 2 : index
    %c0_74 = arith.constant 0 : index
    %c0_75 = arith.constant 0 : index
    %69 = vector.load %arg2[%c1_72, %c2_73, %c0_74, %c0_75] : memref<3x3x128x128xbf16, #tpu.memory_space<vmem>>, vector<1x1x128x128xbf16>
    %70 = vector.shape_cast %69 : vector<1x1x128x128xbf16> to vector<128x128xbf16>
    %cst_76 = arith.constant dense<0.000000e+00> : vector<64x128xf32>
    %71 = tpu.matmul %68, %70, %cst_76 {dimension_numbers = #tpu.dot_dimension_numbers<[1], [0], [0], [1], [0, 0, 1, 1], [], []>} : vector<64x128xbf16>, vector<128x128xbf16>, vector<64x128xf32> -> vector<64x128xf32>
    %72 = arith.addf %63, %71 : vector<64x128xf32>
    %c0_77 = arith.constant 0 : index
    %c2_78 = arith.constant 2 : index
    %c2_79 = arith.constant 2 : index
    %c0_80 = arith.constant 0 : index
    %c0_81 = arith.constant 0 : index
    %73 = vector.load %arg1[%c0_77, %c2_78, %c2_79, %c0_80, %c0_81] : memref<1x3x10x8x128xbf16, #tpu.memory_space<vmem>>, vector<1x1x8x8x128xbf16>
    %74 = vector.shape_cast %73 : vector<1x1x8x8x128xbf16> to vector<8x8x128xbf16>
    %75 = arith.extf %74 : vector<8x8x128xbf16> to vector<8x8x128xf32>
    %76 = vector.shape_cast %75 : vector<8x8x128xf32> to vector<64x128xf32>
    %77 = arith.truncf %76 : vector<64x128xf32> to vector<64x128xbf16>
    %c2_82 = arith.constant 2 : index
    %c2_83 = arith.constant 2 : index
    %c0_84 = arith.constant 0 : index
    %c0_85 = arith.constant 0 : index
    %78 = vector.load %arg2[%c2_82, %c2_83, %c0_84, %c0_85] : memref<3x3x128x128xbf16, #tpu.memory_space<vmem>>, vector<1x1x128x128xbf16>
    %79 = vector.shape_cast %78 : vector<1x1x128x128xbf16> to vector<128x128xbf16>
    %cst_86 = arith.constant dense<0.000000e+00> : vector<64x128xf32>
    %80 = tpu.matmul %77, %79, %cst_86 {dimension_numbers = #tpu.dot_dimension_numbers<[1], [0], [0], [1], [0, 0, 1, 1], [], []>} : vector<64x128xbf16>, vector<128x128xbf16>, vector<64x128xf32> -> vector<64x128xf32>
    %81 = arith.addf %72, %80 : vector<64x128xf32>
    %c0_87 = arith.constant 0 : index
    %c0_88 = arith.constant 0 : index
    %82 = vector.load %arg3[%c0_87, %c0_88] : memref<1x128xf32, #tpu.memory_space<vmem>>, vector<1x128xf32>
    %83 = vector.broadcast %82 : vector<1x128xf32> to vector<64x128xf32>
    %84 = arith.addf %81, %83 : vector<64x128xf32>
    %cst_89 = arith.constant 0.000000e+00 : f32
    %85 = vector.broadcast %cst_89 : f32 to vector<64x128xf32>
    %86 = arith.maximumf %84, %85 : vector<64x128xf32>
    %87 = arith.truncf %86 : vector<64x128xf32> to vector<64x128xbf16>
    %c0_90 = arith.constant 0 : index
    %c0_91 = arith.constant 0 : index
    %c0_92 = arith.constant 0 : index
    %88 = vector.load %arg4[%c0_90, %c0_91, %c0_92] : memref<1x64x128xbf16, #tpu.memory_space<vmem>>, vector<1x64x128xbf16>
    %89 = vector.shape_cast %88 : vector<1x64x128xbf16> to vector<64x128xbf16>
    %90 = vector.shape_cast %87 : vector<64x128xbf16> to vector<1x64x128xbf16>
    tpu.vector_store %arg4[%c0_90, %c0_91, %c0_92], %90 {strides = array<i32>} : memref<1x64x128xbf16, #tpu.memory_space<vmem>>, vector<1x64x128xbf16>,
    return
  }
  func.func @transform_0(%arg0: i32) -> (i32, i32, i32, i32, i32) {
    %c0_i32 = arith.constant 0 : i32
    %c0_i32_0 = arith.constant 0 : i32
    %c0_i32_1 = arith.constant 0 : i32
    %c0_i32_2 = arith.constant 0 : i32
    %c0_i32_3 = arith.constant 0 : i32
    return %arg0, %c0_i32, %c0_i32_0, %c0_i32_1, %c0_i32_2 : i32, i32, i32, i32, i32
  }
  func.func @transform_1(%arg0: i32) -> (i32, i32, i32, i32) {
    %c0_i32 = arith.constant 0 : i32
    %c0_i32_0 = arith.constant 0 : i32
    %c0_i32_1 = arith.constant 0 : i32
    %c0_i32_2 = arith.constant 0 : i32
    %c0_i32_3 = arith.constant 0 : i32
    return %c0_i32, %c0_i32_0, %c0_i32_1, %c0_i32_2 : i32, i32, i32, i32
  }
  func.func @transform_2(%arg0: i32) -> (i32, i32) {
    %c0_i32 = arith.constant 0 : i32
    %c0_i32_0 = arith.constant 0 : i32
    %c0_i32_1 = arith.constant 0 : i32
    return %c0_i32, %c0_i32_0 : i32, i32
  }
  func.func @transform_3(%arg0: i32) -> (i32, i32, i32) {
    %c0_i32 = arith.constant 0 : i32
    %c0_i32_0 = arith.constant 0 : i32
    %c0_i32_1 = arith.constant 0 : i32
    return %arg0, %c0_i32, %c0_i32_0 : i32, i32, i32
  }
}

module attributes {stable_mosaic.version = 11 : i64} {
  func.func @_matmul_kernel(%arg0: i32, %arg1: i32, %arg2: memref<64x128xbf16, #tpu.memory_space<vmem>>, %arg3: memref<128x128xbf16, #tpu.memory_space<vmem>>, %arg4: memref<1x128xf32, #tpu.memory_space<vmem>>, %arg5: memref<64x128xbf16, #tpu.memory_space<vmem>>, %arg6: memref<64x128xbf16, #tpu.memory_space<vmem>>, %arg7: memref<64x128xf32, #tpu.memory_space<vmem>>) attributes {dimension_semantics = [#tpu.dimension_semantics<parallel>, #tpu.dimension_semantics<arbitrary>], iteration_bounds = array<i64: 2, 1>, scalar_prefetch = 0 : i64, scratch_operands = 1 : i64, tpu.core_type = #tpu.core_type<tc>, window_params = [{transform_indices = @transform_0, window_bounds = array<i64: 64, 128>}, {transform_indices = @transform_1, window_bounds = array<i64: 128, 128>}, {pipeline_mode = #tpu.pipeline_mode<synchronous>, transform_indices = @transform_2, window_bounds = array<i64: 1, 128>}, {transform_indices = @transform_3, window_bounds = array<i64: 64, 128>}, {transform_indices = @transform_4, window_bounds = array<i64: 64, 128>}]} {
    %c0_i32 = arith.constant 0 : i32
    %0 = arith.cmpi eq, %arg1, %c0_i32 : i32
    %1 = arith.extui %0 : i1 to i32
    %c0_i32_0 = arith.constant 0 : i32
    %2 = arith.cmpi ne, %1, %c0_i32_0 : i32
    scf.if %2 {
      %cst_10 = arith.constant 0.000000e+00 : f32
      %12 = vector.broadcast %cst_10 : f32 to vector<64x128xf32>
      %c0_11 = arith.constant 0 : index
      %c0_12 = arith.constant 0 : index
      %13 = vector.load %arg7[%c0_11, %c0_12] : memref<64x128xf32, #tpu.memory_space<vmem>>, vector<64x128xf32>
      tpu.vector_store %arg7[%c0_11, %c0_12], %12 {strides = array<i32>} : memref<64x128xf32, #tpu.memory_space<vmem>>, vector<64x128xf32>,
    } else {
    }
    %c0 = arith.constant 0 : index
    %c0_1 = arith.constant 0 : index
    %3 = vector.load %arg7[%c0, %c0_1] : memref<64x128xf32, #tpu.memory_space<vmem>>, vector<64x128xf32>
    %c0_2 = arith.constant 0 : index
    %c0_3 = arith.constant 0 : index
    %4 = vector.load %arg2[%c0_2, %c0_3] : memref<64x128xbf16, #tpu.memory_space<vmem>>, vector<64x128xbf16>
    %c0_4 = arith.constant 0 : index
    %c0_5 = arith.constant 0 : index
    %5 = vector.load %arg3[%c0_4, %c0_5] : memref<128x128xbf16, #tpu.memory_space<vmem>>, vector<128x128xbf16>
    %cst = arith.constant dense<0.000000e+00> : vector<64x128xf32>
    %6 = tpu.matmul %4, %5, %cst {dimension_numbers = #tpu.dot_dimension_numbers<[1], [0], [0], [1], [0, 0, 1, 1], [], []>} : vector<64x128xbf16>, vector<128x128xbf16>, vector<64x128xf32> -> vector<64x128xf32>
    %7 = arith.addf %3, %6 : vector<64x128xf32>
    %c0_6 = arith.constant 0 : index
    %c0_7 = arith.constant 0 : index
    %8 = vector.load %arg7[%c0_6, %c0_7] : memref<64x128xf32, #tpu.memory_space<vmem>>, vector<64x128xf32>
    tpu.vector_store %arg7[%c0_6, %c0_7], %7 {strides = array<i32>} : memref<64x128xf32, #tpu.memory_space<vmem>>, vector<64x128xf32>,
    %c0_i32_8 = arith.constant 0 : i32
    %9 = arith.cmpi eq, %arg1, %c0_i32_8 : i32
    %10 = arith.extui %9 : i1 to i32
    %c0_i32_9 = arith.constant 0 : i32
    %11 = arith.cmpi ne, %10, %c0_i32_9 : i32
    scf.if %11 {
      %c0_10 = arith.constant 0 : index
      %c0_11 = arith.constant 0 : index
      %12 = vector.load %arg7[%c0_10, %c0_11] : memref<64x128xf32, #tpu.memory_space<vmem>>, vector<64x128xf32>
      %c0_12 = arith.constant 0 : index
      %c0_13 = arith.constant 0 : index
      %13 = vector.load %arg4[%c0_12, %c0_13] : memref<1x128xf32, #tpu.memory_space<vmem>>, vector<1x128xf32>
      %14 = vector.broadcast %13 : vector<1x128xf32> to vector<64x128xf32>
      %15 = arith.addf %12, %14 : vector<64x128xf32>
      %c0_14 = arith.constant 0 : index
      %c0_15 = arith.constant 0 : index
      %16 = vector.load %arg5[%c0_14, %c0_15] : memref<64x128xbf16, #tpu.memory_space<vmem>>, vector<64x128xbf16>
      %17 = arith.extf %16 : vector<64x128xbf16> to vector<64x128xf32>
      %18 = arith.addf %15, %17 : vector<64x128xf32>
      %cst_16 = arith.constant 0.000000e+00 : f32
      %19 = vector.broadcast %cst_16 : f32 to vector<64x128xf32>
      %20 = arith.maximumf %18, %19 : vector<64x128xf32>
      %21 = arith.truncf %20 : vector<64x128xf32> to vector<64x128xbf16>
      %c0_17 = arith.constant 0 : index
      %c0_18 = arith.constant 0 : index
      %22 = vector.load %arg6[%c0_17, %c0_18] : memref<64x128xbf16, #tpu.memory_space<vmem>>, vector<64x128xbf16>
      tpu.vector_store %arg6[%c0_17, %c0_18], %21 {strides = array<i32>} : memref<64x128xbf16, #tpu.memory_space<vmem>>, vector<64x128xbf16>,
    } else {
    }
    return
  }
  func.func @transform_0(%arg0: i32, %arg1: i32) -> (i32, i32) {
    %c0_i32 = arith.constant 0 : i32
    return %arg0, %arg1 : i32, i32
  }
  func.func @transform_1(%arg0: i32, %arg1: i32) -> (i32, i32) {
    %c0_i32 = arith.constant 0 : i32
    %c0_i32_0 = arith.constant 0 : i32
    return %arg1, %c0_i32 : i32, i32
  }
  func.func @transform_2(%arg0: i32, %arg1: i32) -> (i32, i32) {
    %c0_i32 = arith.constant 0 : i32
    %c0_i32_0 = arith.constant 0 : i32
    %c0_i32_1 = arith.constant 0 : i32
    return %c0_i32, %c0_i32_0 : i32, i32
  }
  func.func @transform_3(%arg0: i32, %arg1: i32) -> (i32, i32) {
    %c0_i32 = arith.constant 0 : i32
    %c0_i32_0 = arith.constant 0 : i32
    return %arg0, %c0_i32 : i32, i32
  }
  func.func @transform_4(%arg0: i32, %arg1: i32) -> (i32, i32) {
    %c0_i32 = arith.constant 0 : i32
    %c0_i32_0 = arith.constant 0 : i32
    return %arg0, %c0_i32 : i32, i32
  }
}

module attributes {stable_mosaic.version = 11 : i64} {
  func.func @_attnpool_kernel(%arg0: i32, %arg1: memref<1x64x128xbf16, #tpu.memory_space<vmem>>, %arg2: memref<1x128xf32, #tpu.memory_space<vmem>>, %arg3: memref<64x128xf32, #tpu.memory_space<vmem>>, %arg4: memref<128x384xbf16, #tpu.memory_space<vmem>>, %arg5: memref<1x384xf32, #tpu.memory_space<vmem>>, %arg6: memref<128x128xbf16, #tpu.memory_space<vmem>>, %arg7: memref<1x128xf32, #tpu.memory_space<vmem>>, %arg8: memref<1x65x128xf32, #tpu.memory_space<vmem>>, %arg9: memref<65x128xf32, #tpu.memory_space<vmem>>) attributes {dimension_semantics = [#tpu.dimension_semantics<parallel>], iteration_bounds = array<i64: 2>, scalar_prefetch = 0 : i64, scratch_operands = 1 : i64, tpu.core_type = #tpu.core_type<tc>, window_params = [{transform_indices = @transform_0, window_bounds = array<i64: 1, 64, 128>}, {pipeline_mode = #tpu.pipeline_mode<synchronous>, transform_indices = @transform_1, window_bounds = array<i64: 1, 128>}, {pipeline_mode = #tpu.pipeline_mode<synchronous>, transform_indices = @transform_2, window_bounds = array<i64: 64, 128>}, {pipeline_mode = #tpu.pipeline_mode<synchronous>, transform_indices = @transform_3, window_bounds = array<i64: 128, 384>}, {pipeline_mode = #tpu.pipeline_mode<synchronous>, transform_indices = @transform_4, window_bounds = array<i64: 1, 384>}, {pipeline_mode = #tpu.pipeline_mode<synchronous>, transform_indices = @transform_5, window_bounds = array<i64: 128, 128>}, {pipeline_mode = #tpu.pipeline_mode<synchronous>, transform_indices = @transform_6, window_bounds = array<i64: 1, 128>}, {transform_indices = @transform_7, window_bounds = array<i64: 1, 65, 128>}]} {
    %c0 = arith.constant 0 : index
    %c0_0 = arith.constant 0 : index
    %c0_1 = arith.constant 0 : index
    %0 = vector.load %arg1[%c0, %c0_0, %c0_1] : memref<1x64x128xbf16, #tpu.memory_space<vmem>>, vector<1x64x128xbf16>
    %1 = vector.shape_cast %0 : vector<1x64x128xbf16> to vector<64x128xbf16>
    %2 = arith.extf %1 : vector<64x128xbf16> to vector<64x128xf32>
    %cst = arith.constant dense<0.000000e+00> : vector<128xf32>
    %3 = vector.multi_reduction <add>, %2, %cst [0] : vector<64x128xf32> to vector<128xf32>
    %4 = vector.shape_cast %3 : vector<128xf32> to vector<1x128xf32>
    %cst_2 = arith.constant 6.400000e+01 : f32
    %5 = vector.broadcast %cst_2 : f32 to vector<1x128xf32>
    %6 = arith.divf %4, %5 : vector<1x128xf32>
    %c0_3 = arith.constant 0 : index
    %c0_4 = arith.constant 0 : index
    %7 = vector.load %arg2[%c0_3, %c0_4] : memref<1x128xf32, #tpu.memory_space<vmem>>, vector<1x128xf32>
    %8 = arith.addf %6, %7 : vector<1x128xf32>
    %c0_5 = arith.constant 0 : index
    %c0_6 = arith.constant 0 : index
    %9 = vector.load %arg9[%c0_5, %c0_6] : memref<65x128xf32, #tpu.memory_space<vmem>>, vector<1x128xf32>
    tpu.vector_store %arg9[%c0_5, %c0_6], %8 {strides = array<i32>} : memref<65x128xf32, #tpu.memory_space<vmem>>, vector<1x128xf32>,
    %c0_7 = arith.constant 0 : index
    %c0_8 = arith.constant 0 : index
    %10 = vector.load %arg3[%c0_7, %c0_8] : memref<64x128xf32, #tpu.memory_space<vmem>>, vector<64x128xf32>
    %11 = arith.addf %2, %10 : vector<64x128xf32>
    %c1 = arith.constant 1 : index
    %c0_9 = arith.constant 0 : index
    %12 = vector.load %arg9[%c1, %c0_9] : memref<65x128xf32, #tpu.memory_space<vmem>>, vector<64x128xf32>
    tpu.vector_store %arg9[%c1, %c0_9], %11 {strides = array<i32>} : memref<65x128xf32, #tpu.memory_space<vmem>>, vector<64x128xf32>,
    %c0_10 = arith.constant 0 : index
    %c0_11 = arith.constant 0 : index
    %13 = vector.load %arg9[%c0_10, %c0_11] : memref<65x128xf32, #tpu.memory_space<vmem>>, vector<65x128xf32>
    %14 = arith.truncf %13 : vector<65x128xf32> to vector<65x128xbf16>
    %c0_12 = arith.constant 0 : index
    %c0_13 = arith.constant 0 : index
    %15 = vector.load %arg4[%c0_12, %c0_13] : memref<128x384xbf16, #tpu.memory_space<vmem>>, vector<128x384xbf16>
    %cst_14 = arith.constant dense<0.000000e+00> : vector<65x384xf32>
    %16 = tpu.matmul %14, %15, %cst_14 {dimension_numbers = #tpu.dot_dimension_numbers<[1], [0], [0], [1], [0, 0, 1, 1], [], []>} : vector<65x128xbf16>, vector<128x384xbf16>, vector<65x384xf32> -> vector<65x384xf32>
    %c0_15 = arith.constant 0 : index
    %c0_16 = arith.constant 0 : index
    %17 = vector.load %arg5[%c0_15, %c0_16] : memref<1x384xf32, #tpu.memory_space<vmem>>, vector<1x384xf32>
    %18 = vector.broadcast %17 : vector<1x384xf32> to vector<65x384xf32>
    %19 = arith.addf %16, %18 : vector<65x384xf32>
    %20 = vector.extract_strided_slice %19 {offsets = [0, 0], sizes = [65, 128], strides = [1, 1]} : vector<65x384xf32> to vector<65x128xf32>
    %21 = vector.extract_strided_slice %19 {offsets = [0, 128], sizes = [65, 128], strides = [1, 1]} : vector<65x384xf32> to vector<65x128xf32>
    %22 = vector.extract_strided_slice %19 {offsets = [0, 256], sizes = [65, 128], strides = [1, 1]} : vector<65x384xf32> to vector<65x128xf32>
    %23 = vector.extract_strided_slice %20 {offsets = [0, 0], sizes = [65, 32], strides = [1, 1]} : vector<65x128xf32> to vector<65x32xf32>
    %24 = arith.truncf %23 : vector<65x32xf32> to vector<65x32xbf16>
    %25 = vector.extract_strided_slice %21 {offsets = [0, 0], sizes = [65, 32], strides = [1, 1]} : vector<65x128xf32> to vector<65x32xf32>
    %26 = arith.truncf %25 : vector<65x32xf32> to vector<65x32xbf16>
    %27 = vector.extract_strided_slice %22 {offsets = [0, 0], sizes = [65, 32], strides = [1, 1]} : vector<65x128xf32> to vector<65x32xf32>
    %28 = arith.truncf %27 : vector<65x32xf32> to vector<65x32xbf16>
    %cst_17 = arith.constant dense<0.000000e+00> : vector<65x65xf32>
    %29 = tpu.matmul %24, %26, %cst_17 {dimension_numbers = #tpu.dot_dimension_numbers<[1], [1], [0], [0], [0, 0, 1, 0], [], []>} : vector<65x32xbf16>, vector<65x32xbf16>, vector<65x65xf32> -> vector<65x65xf32>
    %cst_18 = arith.constant dense<0xFF800000> : vector<65xf32>
    %30 = vector.multi_reduction <maximumf>, %29, %cst_18 [1] : vector<65x65xf32> to vector<65xf32>
    %31 = vector.shape_cast %30 : vector<65xf32> to vector<65x1xf32>
    %32 = vector.broadcast %31 : vector<65x1xf32> to vector<65x65xf32>
    %33 = arith.subf %29, %32 : vector<65x65xf32>
    %34 = math.exp %33 : vector<65x65xf32>
    %cst_19 = arith.constant dense<0.000000e+00> : vector<65xf32>
    %35 = vector.multi_reduction <add>, %34, %cst_19 [1] : vector<65x65xf32> to vector<65xf32>
    %36 = vector.shape_cast %35 : vector<65xf32> to vector<65x1xf32>
    %37 = tpu.reciprocal %36 {approx = true} : vector<65x1xf32> -> vector<65x1xf32>
    %38 = arith.truncf %34 : vector<65x65xf32> to vector<65x65xbf16>
    %cst_20 = arith.constant dense<0.000000e+00> : vector<65x32xf32>
    %39 = tpu.matmul %38, %28, %cst_20 {dimension_numbers = #tpu.dot_dimension_numbers<[1], [0], [0], [1], [0, 0, 1, 1], [], []>} : vector<65x65xbf16>, vector<65x32xbf16>, vector<65x32xf32> -> vector<65x32xf32>
    %40 = vector.broadcast %37 : vector<65x1xf32> to vector<65x32xf32>
    %41 = arith.mulf %39, %40 : vector<65x32xf32>
    %42 = vector.extract_strided_slice %20 {offsets = [0, 32], sizes = [65, 32], strides = [1, 1]} : vector<65x128xf32> to vector<65x32xf32>
    %43 = arith.truncf %42 : vector<65x32xf32> to vector<65x32xbf16>
    %44 = vector.extract_strided_slice %21 {offsets = [0, 32], sizes = [65, 32], strides = [1, 1]} : vector<65x128xf32> to vector<65x32xf32>
    %45 = arith.truncf %44 : vector<65x32xf32> to vector<65x32xbf16>
    %46 = vector.extract_strided_slice %22 {offsets = [0, 32], sizes = [65, 32], strides = [1, 1]} : vector<65x128xf32> to vector<65x32xf32>
    %47 = arith.truncf %46 : vector<65x32xf32> to vector<65x32xbf16>
    %cst_21 = arith.constant dense<0.000000e+00> : vector<65x65xf32>
    %48 = tpu.matmul %43, %45, %cst_21 {dimension_numbers = #tpu.dot_dimension_numbers<[1], [1], [0], [0], [0, 0, 1, 0], [], []>} : vector<65x32xbf16>, vector<65x32xbf16>, vector<65x65xf32> -> vector<65x65xf32>
    %cst_22 = arith.constant dense<0xFF800000> : vector<65xf32>
    %49 = vector.multi_reduction <maximumf>, %48, %cst_22 [1] : vector<65x65xf32> to vector<65xf32>
    %50 = vector.shape_cast %49 : vector<65xf32> to vector<65x1xf32>
    %51 = vector.broadcast %50 : vector<65x1xf32> to vector<65x65xf32>
    %52 = arith.subf %48, %51 : vector<65x65xf32>
    %53 = math.exp %52 : vector<65x65xf32>
    %cst_23 = arith.constant dense<0.000000e+00> : vector<65xf32>
    %54 = vector.multi_reduction <add>, %53, %cst_23 [1] : vector<65x65xf32> to vector<65xf32>
    %55 = vector.shape_cast %54 : vector<65xf32> to vector<65x1xf32>
    %56 = tpu.reciprocal %55 {approx = true} : vector<65x1xf32> -> vector<65x1xf32>
    %57 = arith.truncf %53 : vector<65x65xf32> to vector<65x65xbf16>
    %cst_24 = arith.constant dense<0.000000e+00> : vector<65x32xf32>
    %58 = tpu.matmul %57, %47, %cst_24 {dimension_numbers = #tpu.dot_dimension_numbers<[1], [0], [0], [1], [0, 0, 1, 1], [], []>} : vector<65x65xbf16>, vector<65x32xbf16>, vector<65x32xf32> -> vector<65x32xf32>
    %59 = vector.broadcast %56 : vector<65x1xf32> to vector<65x32xf32>
    %60 = arith.mulf %58, %59 : vector<65x32xf32>
    %61 = vector.extract_strided_slice %20 {offsets = [0, 64], sizes = [65, 32], strides = [1, 1]} : vector<65x128xf32> to vector<65x32xf32>
    %62 = arith.truncf %61 : vector<65x32xf32> to vector<65x32xbf16>
    %63 = vector.extract_strided_slice %21 {offsets = [0, 64], sizes = [65, 32], strides = [1, 1]} : vector<65x128xf32> to vector<65x32xf32>
    %64 = arith.truncf %63 : vector<65x32xf32> to vector<65x32xbf16>
    %65 = vector.extract_strided_slice %22 {offsets = [0, 64], sizes = [65, 32], strides = [1, 1]} : vector<65x128xf32> to vector<65x32xf32>
    %66 = arith.truncf %65 : vector<65x32xf32> to vector<65x32xbf16>
    %cst_25 = arith.constant dense<0.000000e+00> : vector<65x65xf32>
    %67 = tpu.matmul %62, %64, %cst_25 {dimension_numbers = #tpu.dot_dimension_numbers<[1], [1], [0], [0], [0, 0, 1, 0], [], []>} : vector<65x32xbf16>, vector<65x32xbf16>, vector<65x65xf32> -> vector<65x65xf32>
    %cst_26 = arith.constant dense<0xFF800000> : vector<65xf32>
    %68 = vector.multi_reduction <maximumf>, %67, %cst_26 [1] : vector<65x65xf32> to vector<65xf32>
    %69 = vector.shape_cast %68 : vector<65xf32> to vector<65x1xf32>
    %70 = vector.broadcast %69 : vector<65x1xf32> to vector<65x65xf32>
    %71 = arith.subf %67, %70 : vector<65x65xf32>
    %72 = math.exp %71 : vector<65x65xf32>
    %cst_27 = arith.constant dense<0.000000e+00> : vector<65xf32>
    %73 = vector.multi_reduction <add>, %72, %cst_27 [1] : vector<65x65xf32> to vector<65xf32>
    %74 = vector.shape_cast %73 : vector<65xf32> to vector<65x1xf32>
    %75 = tpu.reciprocal %74 {approx = true} : vector<65x1xf32> -> vector<65x1xf32>
    %76 = arith.truncf %72 : vector<65x65xf32> to vector<65x65xbf16>
    %cst_28 = arith.constant dense<0.000000e+00> : vector<65x32xf32>
    %77 = tpu.matmul %76, %66, %cst_28 {dimension_numbers = #tpu.dot_dimension_numbers<[1], [0], [0], [1], [0, 0, 1, 1], [], []>} : vector<65x65xbf16>, vector<65x32xbf16>, vector<65x32xf32> -> vector<65x32xf32>
    %78 = vector.broadcast %75 : vector<65x1xf32> to vector<65x32xf32>
    %79 = arith.mulf %77, %78 : vector<65x32xf32>
    %80 = vector.extract_strided_slice %20 {offsets = [0, 96], sizes = [65, 32], strides = [1, 1]} : vector<65x128xf32> to vector<65x32xf32>
    %81 = arith.truncf %80 : vector<65x32xf32> to vector<65x32xbf16>
    %82 = vector.extract_strided_slice %21 {offsets = [0, 96], sizes = [65, 32], strides = [1, 1]} : vector<65x128xf32> to vector<65x32xf32>
    %83 = arith.truncf %82 : vector<65x32xf32> to vector<65x32xbf16>
    %84 = vector.extract_strided_slice %22 {offsets = [0, 96], sizes = [65, 32], strides = [1, 1]} : vector<65x128xf32> to vector<65x32xf32>
    %85 = arith.truncf %84 : vector<65x32xf32> to vector<65x32xbf16>
    %cst_29 = arith.constant dense<0.000000e+00> : vector<65x65xf32>
    %86 = tpu.matmul %81, %83, %cst_29 {dimension_numbers = #tpu.dot_dimension_numbers<[1], [1], [0], [0], [0, 0, 1, 0], [], []>} : vector<65x32xbf16>, vector<65x32xbf16>, vector<65x65xf32> -> vector<65x65xf32>
    %cst_30 = arith.constant dense<0xFF800000> : vector<65xf32>
    %87 = vector.multi_reduction <maximumf>, %86, %cst_30 [1] : vector<65x65xf32> to vector<65xf32>
    %88 = vector.shape_cast %87 : vector<65xf32> to vector<65x1xf32>
    %89 = vector.broadcast %88 : vector<65x1xf32> to vector<65x65xf32>
    %90 = arith.subf %86, %89 : vector<65x65xf32>
    %91 = math.exp %90 : vector<65x65xf32>
    %cst_31 = arith.constant dense<0.000000e+00> : vector<65xf32>
    %92 = vector.multi_reduction <add>, %91, %cst_31 [1] : vector<65x65xf32> to vector<65xf32>
    %93 = vector.shape_cast %92 : vector<65xf32> to vector<65x1xf32>
    %94 = tpu.reciprocal %93 {approx = true} : vector<65x1xf32> -> vector<65x1xf32>
    %95 = arith.truncf %91 : vector<65x65xf32> to vector<65x65xbf16>
    %cst_32 = arith.constant dense<0.000000e+00> : vector<65x32xf32>
    %96 = tpu.matmul %95, %85, %cst_32 {dimension_numbers = #tpu.dot_dimension_numbers<[1], [0], [0], [1], [0, 0, 1, 1], [], []>} : vector<65x65xbf16>, vector<65x32xbf16>, vector<65x32xf32> -> vector<65x32xf32>
    %97 = vector.broadcast %94 : vector<65x1xf32> to vector<65x32xf32>
    %98 = arith.mulf %96, %97 : vector<65x32xf32>
    %99 = tpu.concatenate %41, %60, %79, %98 in 1 : vector<65x32xf32>, vector<65x32xf32>, vector<65x32xf32>, vector<65x32xf32> -> vector<65x128xf32>
    %100 = arith.truncf %99 : vector<65x128xf32> to vector<65x128xbf16>
    %c0_33 = arith.constant 0 : index
    %c0_34 = arith.constant 0 : index
    %101 = vector.load %arg6[%c0_33, %c0_34] : memref<128x128xbf16, #tpu.memory_space<vmem>>, vector<128x128xbf16>
    %cst_35 = arith.constant dense<0.000000e+00> : vector<65x128xf32>
    %102 = tpu.matmul %100, %101, %cst_35 {dimension_numbers = #tpu.dot_dimension_numbers<[1], [0], [0], [1], [0, 0, 1, 1], [], []>} : vector<65x128xbf16>, vector<128x128xbf16>, vector<65x128xf32> -> vector<65x128xf32>
    %c0_36 = arith.constant 0 : index
    %c0_37 = arith.constant 0 : index
    %103 = vector.load %arg7[%c0_36, %c0_37] : memref<1x128xf32, #tpu.memory_space<vmem>>, vector<1x128xf32>
    %104 = vector.broadcast %103 : vector<1x128xf32> to vector<65x128xf32>
    %105 = arith.addf %102, %104 : vector<65x128xf32>
    %c0_38 = arith.constant 0 : index
    %c0_39 = arith.constant 0 : index
    %c0_40 = arith.constant 0 : index
    %106 = vector.load %arg8[%c0_38, %c0_39, %c0_40] : memref<1x65x128xf32, #tpu.memory_space<vmem>>, vector<1x65x128xf32>
    %107 = vector.shape_cast %106 : vector<1x65x128xf32> to vector<65x128xf32>
    %108 = vector.shape_cast %105 : vector<65x128xf32> to vector<1x65x128xf32>
    tpu.vector_store %arg8[%c0_38, %c0_39, %c0_40], %108 {strides = array<i32>} : memref<1x65x128xf32, #tpu.memory_space<vmem>>, vector<1x65x128xf32>,
    return
  }
  func.func @transform_0(%arg0: i32) -> (i32, i32, i32) {
    %c0_i32 = arith.constant 0 : i32
    %c0_i32_0 = arith.constant 0 : i32
    %c0_i32_1 = arith.constant 0 : i32
    return %arg0, %c0_i32, %c0_i32_0 : i32, i32, i32
  }
  func.func @transform_1(%arg0: i32) -> (i32, i32) {
    %c0_i32 = arith.constant 0 : i32
    %c0_i32_0 = arith.constant 0 : i32
    %c0_i32_1 = arith.constant 0 : i32
    return %c0_i32, %c0_i32_0 : i32, i32
  }
  func.func @transform_2(%arg0: i32) -> (i32, i32) {
    %c0_i32 = arith.constant 0 : i32
    %c0_i32_0 = arith.constant 0 : i32
    %c0_i32_1 = arith.constant 0 : i32
    return %c0_i32, %c0_i32_0 : i32, i32
  }
  func.func @transform_3(%arg0: i32) -> (i32, i32) {
    %c0_i32 = arith.constant 0 : i32
    %c0_i32_0 = arith.constant 0 : i32
    %c0_i32_1 = arith.constant 0 : i32
    return %c0_i32, %c0_i32_0 : i32, i32
  }
  func.func @transform_4(%arg0: i32) -> (i32, i32) {
    %c0_i32 = arith.constant 0 : i32
    %c0_i32_0 = arith.constant 0 : i32
    %c0_i32_1 = arith.constant 0 : i32
    return %c0_i32, %c0_i32_0 : i32, i32
  }
  func.func @transform_5(%arg0: i32) -> (i32, i32) {
    %c0_i32 = arith.constant 0 : i32
    %c0_i32_0 = arith.constant 0 : i32
    %c0_i32_1 = arith.constant 0 : i32
    return %c0_i32, %c0_i32_0 : i32, i32
  }
  func.func @transform_6(%arg0: i32) -> (i32, i32) {
    %c0_i32 = arith.constant 0 : i32
    %c0_i32_0 = arith.constant 0 : i32
    %c0_i32_1 = arith.constant 0 : i32
    return %c0_i32, %c0_i32_0 : i32, i32
  }
  func.func @transform_7(%arg0: i32) -> (i32, i32, i32) {
    %c0_i32 = arith.constant 0 : i32
    %c0_i32_0 = arith.constant 0 : i32
    %c0_i32_1 = arith.constant 0 : i32
    return %arg0, %c0_i32, %c0_i32_0 : i32, i32, i32
  }
}

</mosaic_0001>

<llo_original>
// kernel: _lambda_.8
$region0: #{_lambda_.8}
  #allocation0 [shape = 'u32[]', space=smem, size = 0x4, offset = 0x4, fixed_abs, tag = 'smem constant byte address 0x4 - core index']
  #allocation1 [shape = 'u32[144,128]{1,0:T(1,128)}', space=vmem, size = 0x12000, scoped, tag = 'internal scratch']
  #allocation2 [shape = 'f32[256,128]{1,0:T(8,128)}', space=vmem, size = 0x20000, scoped, tag = 'scratch operand']
  %s0 = inlined_call_operand.vmem [shape: bf16[512,27], index: 0, kind: input, shape index: {}]
  %s1 = inlined_call_operand.vmem [shape: bf16[27,128], index: 1, kind: input, shape index: {}]
  %s2 = inlined_call_operand.vmem [shape: f32[1,128], index: 2, kind: input, shape index: {}]
  %s3 = inlined_call_operand.vmem [shape: bf16[512,128], index: 3, kind: output, shape index: {}]
  %s4 = sld [smem:[#allocation0]]
  $region53: #{_lambda_.8} parent=0
    _
  %s6 = ssub.s32 1, %s4
  %s7 = scalar_select 0, %s6, %s4
  loop: start=0, step=1, limit=4
  $region2: #{_lambda_.8} parent=0 // loop_pre_header
    _
  $region3: #{_lambda_.8} parent=0 // loop_header
    %s9 = sphi 0, %s13
    %p10 = scmp.ge.s32.totalorder %s9, 4
    %s16 = sphi 0, %s28
    %s17 = sphi 0, %s24
    %s18 = sphi 0, %s16
    %s19 = sphi 0, %s17
    %s20 = sphi 0, %s18
    %s21 = sphi 0, %s19
    %s33 = sphi 0, %s35
    %s36 = sphi 0, %s33
    %s37 = sphi 0, %s36
    %s53 = sphi 0, %s37
    %s59 = sphi 0, %s61
    %s62 = sphi 0, %s59
    %s63 = sphi 0, %s62
    %s79 = sphi 0, %s63
    %s83 = sphi 0, %s83
    %s85 = sphi 0, %s83
    %s86 = sphi 0, %s85
    %s100 = sphi 0, %s86
    %s106 = sphi 0, %s108
    %s109 = sphi 0, %s106
    %s110 = sphi 0, %s109
    %s126 = sphi 0, %s110
  $region4: #{_lambda_.8} parent=0 // loop_header_branch
    %12 = sbr.rel (%p10) target = $region8
  $region5: #{_lambda_.8} parent=0 // loop_body
    %s14 = ssub.s32 %s9, 1
    %s15 = ssub.s32 %s9, 2
    %s22 = sadd.s32 1, %s17
    %p23 = scmp.ge.s32.totalorder %s22, 1
    %s24 = scalar_select %p23, 0, %s22
    %s25 = sadd.s32 1, %s16
    %s26 = scalar_select %p23, %s25, %s16
    %p27 = scmp.ge.s32.totalorder %s26, 2
    %s28 = scalar_select %p27, 0, %s26
    %s29 = ssub.s32 %s16, %s28
    %s30 = ssub.s32 %s17, %s24
    %s31 = sor.u32 %s29, %s30
    %p32 = scmp.eq.s32.totalorder %s31, 0
    %s34 = sadd.s32 %s33, 1
    %s35 = scalar_select %p32, %s33, %s34
    %p38 = pneg %p32
    %p39 = scmp.eq.s32.totalorder %s9, 1
    %p40 = por %p38, %p39
    %p41 = scmp.ne.s32.totalorder %s33, %s36
    %p42 = scmp.eq.s32.totalorder %s9, 0
    %p43 = por %p41, %p42
    %p44 = scmp.ne.s32.totalorder %s33, %s36
    %p45 = scmp.eq.s32.totalorder %s14, 1
    %p46 = por %p44, %p45
    %p47 = scmp.ne.s32.totalorder %s36, %s37
    %p48 = scmp.eq.s32.totalorder %s14, 0
    %p49 = por %p47, %p48
    %p50 = scmp.ne.s32.totalorder %s36, %s37
    %p51 = scmp.eq.s32.totalorder %s15, 1
    %p52 = por %p50, %p51
    %p54 = scmp.ne.s32.totalorder %s37, %s53
    %p55 = scmp.eq.s32.totalorder %s15, 0
    %p56 = por %p54, %p55
    %s57 = ssub.s32 %s17, %s24
    %p58 = scmp.eq.s32.totalorder %s57, 0
    %s60 = sadd.s32 %s59, 1
    %s61 = scalar_select %p58, %s59, %s60
    %p64 = pneg %p58
    %p65 = scmp.eq.s32.totalorder %s9, 1
    %p66 = por %p64, %p65
    %p67 = scmp.ne.s32.totalorder %s59, %s62
    %p68 = scmp.eq.s32.totalorder %s9, 0
    %p69 = por %p67, %p68
    %p70 = scmp.ne.s32.totalorder %s59, %s62
    %p71 = scmp.eq.s32.totalorder %s14, 1
    %p72 = por %p70, %p71
    %p73 = scmp.ne.s32.totalorder %s62, %s63
    %p74 = scmp.eq.s32.totalorder %s14, 0
    %p75 = por %p73, %p74
    %p76 = scmp.ne.s32.totalorder %s62, %s63
    %p77 = scmp.eq.s32.totalorder %s15, 1
    %p78 = por %p76, %p77
    %p80 = scmp.ne.s32.totalorder %s63, %s79
    %p81 = scmp.eq.s32.totalorder %s15, 0
    %p82 = por %p80, %p81
    %s84 = sadd.s32 %s83, 1
    %p87 = scmp.eq.s32.totalorder %s9, 1
    %p88 = scmp.ne.s32.totalorder %s83, %s85
    %p89 = scmp.eq.s32.totalorder %s9, 0
    %p90 = por %p88, %p89
    %p91 = scmp.ne.s32.totalorder %s83, %s85
    %p92 = scmp.eq.s32.totalorder %s14, 1
    %p93 = por %p91, %p92
    %p94 = scmp.ne.s32.totalorder %s85, %s86
    %p95 = scmp.eq.s32.totalorder %s14, 0
    %p96 = por %p94, %p95
    %p97 = scmp.ne.s32.totalorder %s85, %s86
    %p98 = scmp.eq.s32.totalorder %s15, 1
    %p99 = por %p97, %p98
    %p101 = scmp.ne.s32.totalorder %s86, %s100
    %p102 = scmp.eq.s32.totalorder %s15, 0
    %p103 = por %p101, %p102
    %s104 = ssub.s32 %s16, %s28
    %p105 = scmp.eq.s32.totalorder %s104, 0
    %s107 = sadd.s32 %s106, 1
    %s108 = scalar_select %p105, %s106, %s107
    %p111 = pneg %p105
    %p112 = scmp.eq.s32.totalorder %s9, 1
    %p113 = por %p111, %p112
    %p114 = scmp.ne.s32.totalorder %s106, %s109
    %p115 = scmp.eq.s32.totalorder %s9, 0
    %p116 = por %p114, %p115
    %p117 = scmp.ne.s32.totalorder %s106, %s109
    %p118 = scmp.eq.s32.totalorder %s14, 1
    %p119 = por %p117, %p118
    %p120 = scmp.ne.s32.totalorder %s109, %s110
    %p121 = scmp.eq.s32.totalorder %s14, 0
    %p122 = por %p120, %p121
    %p123 = scmp.ne.s32.totalorder %s109, %s110
    %p124 = scmp.eq.s32.totalorder %s15, 1
    %p125 = por %p123, %p124
    %p127 = scmp.ne.s32.totalorder %s110, %s126
    %p128 = scmp.eq.s32.totalorder %s15, 0
    %p129 = por %p127, %p128
    %p130 = scmp.le.s32.totalorder 1, %s9
    %p131 = scmp.lt.s32.totalorder %s9, 3
    %p132 = pnand %p130, %p131
    %p133 = pneg %p132
    // Predicated region
    $region9: #{_lambda_.8} parent=5 // pred_check
      _
    $region10: #{_lambda_.8} parent=5 // pred_check_branch
      %135 = sbr.rel (%p132) target = $region12
    $region11: #{_lambda_.8} parent=5 // pred_region
      %s136 = ssub.s32 %s9, 1
      // Predicated region
      $region13: #{_lambda_.8} parent=11 // pred_check
        %p137 = pneg %p75
      $region14: #{_lambda_.8} parent=11 // pred_check_branch
        %139 = sbr.rel (%p137) target = $region16
      $region15: #{_lambda_.8} parent=11 // pred_region
        %s140 = smul.u32 4, %s19
        %p141 = scmp.lt.s32.totalorder %s140, 3
        %s142 = scalar_select %p141, %s140, 3
        %s143 = smul.addr %s142, 4
        %s144 = scalar_lea.vmem %s1, %s143
        %s145 = smul.u32 4, %s19
      $region16: #{_lambda_.8} parent=11 // pred_fallthru
        _
      // Predicated region
      $region17: #{_lambda_.8} parent=11 // pred_check
        %p146 = pneg %p96
      $region18: #{_lambda_.8} parent=11 // pred_check_branch
        %148 = sbr.rel (%p146) target = $region20
      $region19: #{_lambda_.8} parent=11 // pred_region
        _
      $region20: #{_lambda_.8} parent=11 // pred_fallthru
        _
    $region12: #{_lambda_.8} parent=5 // pred_fallthru
      _
    %p149 = scmp.lt.s32.totalorder %s9, 2
    // Predicated region
    $region21: #{_lambda_.8} parent=5 // pred_check
      %p150 = pneg %p149
    $region22: #{_lambda_.8} parent=5 // pred_check_branch
      %152 = sbr.rel (%p150) target = $region24
    $region23: #{_lambda_.8} parent=5 // pred_region
      // Predicated region
      $region25: #{_lambda_.8} parent=23 // pred_check
        %p153 = pneg %p43
      $region26: #{_lambda_.8} parent=23 // pred_check_branch
        %155 = sbr.rel (%p153) target = $region28
      $region27: #{_lambda_.8} parent=23 // pred_region
        %s156 = smul.u32 32, %s16
        %p157 = scmp.lt.s32.totalorder %s156, 63
        %s158 = scalar_select %p157, %s156, 63
        %p159 = scmp.lt.s32.totalorder %s17, 0
        %s160 = scalar_select %p159, %s17, 0
        %s161 = sadd.s32 %s160, %s158
        %s162 = smul.addr %s161, 4
        %s163 = scalar_lea.vmem %s0, %s162
        %s164 = smul.u32 32, %s16
      $region28: #{_lambda_.8} parent=23 // pred_fallthru
        _
    $region24: #{_lambda_.8} parent=5 // pred_fallthru
      _
    %p165 = scmp.le.s32.totalorder 1, %s9
    %p166 = scmp.lt.s32.totalorder %s9, 3
    %p167 = pnand %p165, %p166
    %p168 = pneg %p167
    // Predicated region
    $region29: #{_lambda_.8} parent=5 // pred_check
      _
    $region30: #{_lambda_.8} parent=5 // pred_check_branch
      %170 = sbr.rel (%p167) target = $region32
    $region31: #{_lambda_.8} parent=5 // pred_region
      %s171 = ssub.s32 %s9, 1
      %s172 = smul.u32 32, %s18
      %p173 = scmp.lt.s32.totalorder %s172, 63
      %s174 = scalar_select %p173, %s172, 63
      %p175 = scmp.lt.s32.totalorder %s19, 0
      %s176 = scalar_select %p175, %s19, 0
      %s177 = sadd.s32 %s176, %s174
      %s178 = smul.addr %s177, 4
      %s179 = scalar_lea.vmem %s0, %s178
      %p180 = pneg %p49
      %p181 = pneg %p46
      %s182 = smul.u32 4, %s19
      %p183 = scmp.lt.s32.totalorder %s182, 3
      %s184 = scalar_select %p183, %s182, 3
      %s185 = smul.addr %s184, 4
      %s186 = scalar_lea.vmem %s1, %s185
      %p187 = pneg %p75
      %p188 = pneg %p72
      %p189 = pneg %p96
      %p190 = pneg %p93
      %p191 = pneg %p122
      %p192 = pneg %p119
      %s193 = smul.u32 32, %s18
      %p194 = scmp.lt.s32.totalorder %s193, 63
      %s195 = scalar_select %p194, %s193, 63
      %s196 = smul.addr %s195, 4
      %s197 = scalar_lea.vmem %s3, %s196
      %s198 = smul.u32 32, %s18
      %p199 = scmp.lt.s32.totalorder %s198, 63
      %s200 = scalar_select %p199, %s198, 63
      %p201 = scmp.lt.s32.totalorder %s19, 0
      %s202 = scalar_select %p201, %s19, 0
      %s203 = sadd.s32 %s202, %s200
      %s204 = smul.addr %s203, 4
      %s205 = scalar_lea.vmem %s0, %s204
      %s206 = smul.u32 32, %s18
      %s207 = smul.u32 4, %s19
      %p208 = scmp.lt.s32.totalorder %s207, 3
      %s209 = scalar_select %p208, %s207, 3
      %s210 = smul.addr %s209, 4
      %s211 = scalar_lea.vmem %s1, %s210
      %s212 = smul.u32 4, %s19
      %s213 = smul.u32 32, %s18
      %p214 = scmp.lt.s32.totalorder %s213, 63
      %s215 = scalar_select %p214, %s213, 63
      %s216 = smul.addr %s215, 4
      %s217 = scalar_lea.vmem %s3, %s216
      %s218 = smul.u32 32, %s18
      %p220 = scmp.eq.s32.totalorder %s19, 0
      // Predicated region
      $region33: #{_lambda_.8} parent=31 // pred_check
        %p221 = pneg %p220
      $region34: #{_lambda_.8} parent=31 // pred_check_branch
        %223 = sbr.rel (%p221) target = $region36
      $region35: #{_lambda_.8} parent=31 // pred_region
        %224 = vst [vmem:[#allocation2] sm:$0xff] 0.0
        %225 = vst [vmem:[#allocation2 + $0x8] sm:$0xff] 0.0
        %226 = vst [vmem:[#allocation2 + $0x10] sm:$0xff] 0.0
        %227 = vst [vmem:[#allocation2 + $0x18] sm:$0xff] 0.0
        %228 = vst [vmem:[#allocation2 + $0x20] sm:$0xff] 0.0
        %229 = vst [vmem:[#allocation2 + $0x28] sm:$0xff] 0.0
        %230 = vst [vmem:[#allocation2 + $0x30] sm:$0xff] 0.0
        %231 = vst [vmem:[#allocation2 + $0x38] sm:$0xff] 0.0
        %232 = vst [vmem:[#allocation2 + $0x40] sm:$0xff] 0.0
        %233 = vst [vmem:[#allocation2 + $0x48] sm:$0xff] 0.0
        %234 = vst [vmem:[#allocation2 + $0x50] sm:$0xff] 0.0
        %235 = vst [vmem:[#allocation2 + $0x58] sm:$0xff] 0.0
        %236 = vst [vmem:[#allocation2 + $0x60] sm:$0xff] 0.0
        %237 = vst [vmem:[#allocation2 + $0x68] sm:$0xff] 0.0
        %238 = vst [vmem:[#allocation2 + $0x70] sm:$0xff] 0.0
        %239 = vst [vmem:[#allocation2 + $0x78] sm:$0xff] 0.0
        %240 = vst [vmem:[#allocation2 + $0x80] sm:$0xff] 0.0
        %241 = vst [vmem:[#allocation2 + $0x88] sm:$0xff] 0.0
        %242 = vst [vmem:[#allocation2 + $0x90] sm:$0xff] 0.0
        %243 = vst [vmem:[#allocation2 + $0x98] sm:$0xff] 0.0
        %244 = vst [vmem:[#allocation2 + $0xa0] sm:$0xff] 0.0
        %245 = vst [vmem:[#allocation2 + $0xa8] sm:$0xff] 0.0
        %246 = vst [vmem:[#allocation2 + $0xb0] sm:$0xff] 0.0
        %247 = vst [vmem:[#allocation2 + $0xb8] sm:$0xff] 0.0
        %248 = vst [vmem:[#allocation2 + $0xc0] sm:$0xff] 0.0
        %249 = vst [vmem:[#allocation2 + $0xc8] sm:$0xff] 0.0
        %250 = vst [vmem:[#allocation2 + $0xd0] sm:$0xff] 0.0
        %251 = vst [vmem:[#allocation2 + $0xd8] sm:$0xff] 0.0
        %252 = vst [vmem:[#allocation2 + $0xe0] sm:$0xff] 0.0
        %253 = vst [vmem:[#allocation2 + $0xe8] sm:$0xff] 0.0
        %254 = vst [vmem:[#allocation2 + $0xf0] sm:$0xff] 0.0
        %255 = vst [vmem:[#allocation2 + $0xf8] sm:$0xff] 0.0
      $region36: #{_lambda_.8} parent=31 // pred_fallthru
        _
      %v256 = vld [vmem:[#allocation2] sm:$0xff]
      %v257 = vld [vmem:[#allocation2 + $0x8] sm:$0xff]
      %v258 = vld [vmem:[#allocation2 + $0x10] sm:$0xff]
      %v259 = vld [vmem:[#allocation2 + $0x18] sm:$0xff]
      %v260 = vld [vmem:[#allocation2 + $0x20] sm:$0xff]
      %v261 = vld [vmem:[#allocation2 + $0x28] sm:$0xff]
      %v262 = vld [vmem:[#allocation2 + $0x30] sm:$0xff]
      %v263 = vld [vmem:[#allocation2 + $0x38] sm:$0xff]
      %v264 = vld [vmem:[#allocation2 + $0x40] sm:$0xff]
      %v265 = vld [vmem:[#allocation2 + $0x48] sm:$0xff]
      %v266 = vld [vmem:[#allocation2 + $0x50] sm:$0xff]
      %v267 = vld [vmem:[#allocation2 + $0x58] sm:$0xff]
      %v268 = vld [vmem:[#allocation2 + $0x60] sm:$0xff]
      %v269 = vld [vmem:[#allocation2 + $0x68] sm:$0xff]
      %v270 = vld [vmem:[#allocation2 + $0x70] sm:$0xff]
      %v271 = vld [vmem:[#allocation2 + $0x78] sm:$0xff]
      %v272 = vld [vmem:[#allocation2 + $0x80] sm:$0xff]
      %v273 = vld [vmem:[#allocation2 + $0x88] sm:$0xff]
      %v274 = vld [vmem:[#allocation2 + $0x90] sm:$0xff]
      %v275 = vld [vmem:[#allocation2 + $0x98] sm:$0xff]
      %v276 = vld [vmem:[#allocation2 + $0xa0] sm:$0xff]
      %v277 = vld [vmem:[#allocation2 + $0xa8] sm:$0xff]
      %v278 = vld [vmem:[#allocation2 + $0xb0] sm:$0xff]
      %v279 = vld [vmem:[#allocation2 + $0xb8] sm:$0xff]
      %v280 = vld [vmem:[#allocation2 + $0xc0] sm:$0xff]
      %v281 = vld [vmem:[#allocation2 + $0xc8] sm:$0xff]
      %v282 = vld [vmem:[#allocation2 + $0xd0] sm:$0xff]
      %v283 = vld [vmem:[#allocation2 + $0xd8] sm:$0xff]
      %v284 = vld [vmem:[#allocation2 + $0xe0] sm:$0xff]
      %v285 = vld [vmem:[#allocation2 + $0xe8] sm:$0xff]
      %v286 = vld [vmem:[#allocation2 + $0xf0] sm:$0xff]
      %v287 = vld [vmem:[#allocation2 + $0xf8] sm:$0xff]
      %v288 = vld [vmem:[%s205] sm:$0xf]
      %v289 = vld [vmem:[%s205 + $0x4] sm:$0xf]
      %v290 = vld [vmem:[%s205 + $0x8] sm:$0xf]
      %v291 = vld [vmem:[%s205 + $0xc] sm:$0xf]
      %v292 = vld [vmem:[%s205 + $0x10] sm:$0xf]
      %v293 = vld [vmem:[%s205 + $0x14] sm:$0xf]
      %v294 = vld [vmem:[%s205 + $0x18] sm:$0xf]
      %v295 = vld [vmem:[%s205 + $0x1c] sm:$0xf]
      %v296 = vld [vmem:[%s205 + $0x20] sm:$0xf]
      %v297 = vld [vmem:[%s205 + $0x24] sm:$0xf]
      %v298 = vld [vmem:[%s205 + $0x28] sm:$0xf]
      %v299 = vld [vmem:[%s205 + $0x2c] sm:$0xf]
      %v300 = vld [vmem:[%s205 + $0x30] sm:$0xf]
      %v301 = vld [vmem:[%s205 + $0x34] sm:$0xf]
      %v302 = vld [vmem:[%s205 + $0x38] sm:$0xf]
      %v303 = vld [vmem:[%s205 + $0x3c] sm:$0xf]
      %v304 = vld [vmem:[%s205 + $0x40] sm:$0xf]
      %v305 = vld [vmem:[%s205 + $0x44] sm:$0xf]
      %v306 = vld [vmem:[%s205 + $0x48] sm:$0xf]
      %v307 = vld [vmem:[%s205 + $0x4c] sm:$0xf]
      %v308 = vld [vmem:[%s205 + $0x50] sm:$0xf]
      %v309 = vld [vmem:[%s205 + $0x54] sm:$0xf]
      %v310 = vld [vmem:[%s205 + $0x58] sm:$0xf]
      %v311 = vld [vmem:[%s205 + $0x5c] sm:$0xf]
      %v312 = vld [vmem:[%s205 + $0x60] sm:$0xf]
      %v313 = vld [vmem:[%s205 + $0x64] sm:$0xf]
      %v314 = vld [vmem:[%s205 + $0x68] sm:$0xf]
      %v315 = vld [vmem:[%s205 + $0x6c] sm:$0xf]
      %v316 = vld [vmem:[%s205 + $0x70] sm:$0xf]
      %v317 = vld [vmem:[%s205 + $0x74] sm:$0xf]
      %v318 = vld [vmem:[%s205 + $0x78] sm:$0xf]
      %v319 = vld [vmem:[%s205 + $0x7c] sm:$0xf]
      %v320 = vld [vmem:[%s211] sm:$0xf]
      %v321 = vld [vmem:[%s211 + $0x4] sm:$0xf]
      %v322 = vld [vmem:[%s211 + $0x8] sm:$0xf]
      %v323 = vld [vmem:[%s211 + $0xc] sm:$0x3]
      %v356 = vunpack.c.l.b16 %v288
      %v357 = vunpack.c.l.b16 %v289
      %v358 = vunpack.c.l.b16 %v290
      %v359 = vunpack.c.l.b16 %v291
      %v360 = vunpack.c.l.b16 %v292
      %v361 = vunpack.c.l.b16 %v293
      %v362 = vunpack.c.l.b16 %v294
      %v363 = vunpack.c.l.b16 %v295
      %v364 = vunpack.c.l.b16 %v296
      %v365 = vunpack.c.l.b16 %v297
      %v366 = vunpack.c.l.b16 %v298
      %v367 = vunpack.c.l.b16 %v299
      %v368 = vunpack.c.l.b16 %v300
      %v369 = vunpack.c.l.b16 %v301
      %v370 = vunpack.c.l.b16 %v302
      %v371 = vunpack.c.l.b16 %v303
      %v372 = vunpack.c.l.b16 %v304
      %v373 = vunpack.c.l.b16 %v305
      %v374 = vunpack.c.l.b16 %v306
      %v375 = vunpack.c.l.b16 %v307
      %v376 = vunpack.c.l.b16 %v308
      %v377 = vunpack.c.l.b16 %v309
      %v378 = vunpack.c.l.b16 %v310
      %v379 = vunpack.c.l.b16 %v311
      %v380 = vunpack.c.l.b16 %v312
      %v381 = vunpack.c.l.b16 %v313
      %v382 = vunpack.c.l.b16 %v314
      %v383 = vunpack.c.l.b16 %v315
      %v384 = vunpack.c.l.b16 %v316
      %v385 = vunpack.c.l.b16 %v317
      %v386 = vunpack.c.l.b16 %v318
      %v387 = vunpack.c.l.b16 %v319
      %v388 = vpack.c.b16 %v357, %v356
      %v389 = vpack.c.b16 %v359, %v358
      %v390 = vpack.c.b16 %v361, %v360
      %v391 = vpack.c.b16 %v363, %v362
      %v392 = vpack.c.b16 %v365, %v364
      %v393 = vpack.c.b16 %v367, %v366
      %v394 = vpack.c.b16 %v369, %v368
      %v395 = vpack.c.b16 %v371, %v370
      %v396 = vpack.c.b16 %v373, %v372
      %v397 = vpack.c.b16 %v375, %v374
      %v398 = vpack.c.b16 %v377, %v376
      %v399 = vpack.c.b16 %v379, %v378
      %v400 = vpack.c.b16 %v381, %v380
      %v401 = vpack.c.b16 %v383, %v382
      %v402 = vpack.c.b16 %v385, %v384
      %v403 = vpack.c.b16 %v387, %v386
      %v408 = vunpack.c.l.b16 %v320
      %v409 = vunpack.c.l.b16 %v321
      %v410 = vunpack.c.l.b16 %v322
      %v411 = vunpack.c.l.b16 %v323
      %v412 = vpack.c.b16 %v409, %v408
      %v413 = vpack.c.b16 %v411, %v410
      %vm415 = vcmask 220160
      %v417 = vsel %vm415, %v388, 0
      %v420 = vsel %vm415, %v389, 0
      %v423 = vsel %vm415, %v390, 0
      %v426 = vsel %vm415, %v391, 0
      %v429 = vsel %vm415, %v392, 0
      %v432 = vsel %vm415, %v393, 0
      %v435 = vsel %vm415, %v394, 0
      %v438 = vsel %vm415, %v395, 0
      %v441 = vsel %vm415, %v396, 0
      %v444 = vsel %vm415, %v397, 0
      %v447 = vsel %vm415, %v398, 0
      %v450 = vsel %vm415, %v399, 0
      %v453 = vsel %vm415, %v400, 0
      %v456 = vsel %vm415, %v401, 0
      %v459 = vsel %vm415, %v402, 0
      %v462 = vsel %vm415, %v403, 0
      %vm464 = vcmask 1044480
      %vm465 = vcmask 1045504
      %v466 = vsel %vm464, 4294967295, 65535
      %v467 = vsel %vm465, %v466, 0
      %v469 = vand.u32 %v413, %v467
      %471 = vmatprep.subr.bf16.mxu0 0
      %472 = vmatpush1.bf16.msra.mxu0 %v412
      %473 = vmatprep.subr.bf16.mxu0 0
      %474 = vmatpush1.bf16.msra.mxu0 %v469
      %475 = vmatprep.subr.bf16.mxu0 0
      %476 = vmatpush1.bf16.msra.mxu0 0
      %477 = vmatprep.subr.bf16.mxu0 0
      %478 = vmatpush1.bf16.msra.mxu0 0
      %479 = vmatprep.subr.bf16.mxu0 0
      %480 = vmatpush1.bf16.msra.mxu0 0
      %481 = vmatprep.subr.bf16.mxu0 0
      %482 = vmatpush1.bf16.msra.mxu0 0
      %483 = vmatprep.subr.bf16.mxu0 0
      %484 = vmatpush1.bf16.msra.mxu0 0
      %485 = vmatprep.subr.bf16.mxu0 0
      %486 = vmatpush1.bf16.msra.mxu0 0
      %487 = vmatprep.subr.bf16.mxu0 0
      %488 = vmatpush1.bf16.msra.mxu0 0
      %489 = vmatprep.subr.bf16.mxu0 0
      %490 = vmatpush1.bf16.msra.mxu0 0
      %491 = vmatprep.subr.bf16.mxu0 0
      %492 = vmatpush1.bf16.msra.mxu0 0
      %493 = vmatprep.subr.bf16.mxu0 0
      %494 = vmatpush1.bf16.msra.mxu0 0
      %495 = vmatprep.subr.bf16.mxu0 0
      %496 = vmatpush1.bf16.msra.mxu0 0
      %497 = vmatprep.subr.bf16.mxu0 0
      %498 = vmatpush1.bf16.msra.mxu0 0
      %499 = vmatprep.subr.bf16.mxu0 0
      %500 = vmatpush1.bf16.msra.mxu0 0
      %501 = vmatprep.subr.bf16.mxu0 0
      %502 = vmatpush1.bf16.msra.mxu0 0
      %503 = vmatprep.mubr.bf16.mxu0 0
      %504 = vmatmul.mubr.bf16.gmra.mrb[0].mxu0 %v417
      %v505 = vpop.f32.mrb[0].mxu0
      %v506 = vadd.f32 0.0, %v505
      %v507 = vpop.f32.mrb[0].mxu0
      %v508 = vpop.f32.mrb[0].mxu0
      %v509 = vadd.f32 0.0, %v508
      %v510 = vpop.f32.mrb[0].mxu0
      %511 = vmatprep.mubr.bf16.mxu0 0
      %512 = vmatmul.mubr.bf16.gmra.mrb[0].mxu0 %v420
      %v513 = vpop.f32.mrb[0].mxu0
      %v514 = vadd.f32 0.0, %v513
      %v515 = vpop.f32.mrb[0].mxu0
      %v516 = vpop.f32.mrb[0].mxu0
      %v517 = vadd.f32 0.0, %v516
      %v518 = vpop.f32.mrb[0].mxu0
      %519 = vmatprep.mubr.bf16.mxu0 0
      %520 = vmatmul.mubr.bf16.gmra.mrb[0].mxu0 %v423
      %v521 = vpop.f32.mrb[0].mxu0
      %v522 = vadd.f32 0.0, %v521
      %v523 = vpop.f32.mrb[0].mxu0
      %v524 = vpop.f32.mrb[0].mxu0
      %v525 = vadd.f32 0.0, %v524
      %v526 = vpop.f32.mrb[0].mxu0
      %527 = vmatprep.mubr.bf16.mxu0 0
      %528 = vmatmul.mubr.bf16.gmra.mrb[0].mxu0 %v426
      %v529 = vpop.f32.mrb[0].mxu0
      %v530 = vadd.f32 0.0, %v529
      %v531 = vpop.f32.mrb[0].mxu0
      %v532 = vpop.f32.mrb[0].mxu0
      %v533 = vadd.f32 0.0, %v532
      %v534 = vpop.f32.mrb[0].mxu0
      %535 = vmatprep.mubr.bf16.mxu0 0
      %536 = vmatmul.mubr.bf16.gmra.mrb[0].mxu0 %v429
      %v537 = vpop.f32.mrb[0].mxu0
      %v538 = vadd.f32 0.0, %v537
      %v539 = vpop.f32.mrb[0].mxu0
      %v540 = vpop.f32.mrb[0].mxu0
      %v541 = vadd.f32 0.0, %v540
      %v542 = vpop.f32.mrb[0].mxu0
      %543 = vmatprep.mubr.bf16.mxu0 0
      %544 = vmatmul.mubr.bf16.gmra.mrb[0].mxu0 %v432
      %v545 = vpop.f32.mrb[0].mxu0
      %v546 = vadd.f32 0.0, %v545
      %v547 = vpop.f32.mrb[0].mxu0
      %v548 = vpop.f32.mrb[0].mxu0
      %v549 = vadd.f32 0.0, %v548
      %v550 = vpop.f32.mrb[0].mxu0
      %551 = vmatprep.mubr.bf16.mxu0 0
      %552 = vmatmul.mubr.bf16.gmra.mrb[0].mxu0 %v435
      %v553 = vpop.f32.mrb[0].mxu0
      %v554 = vadd.f32 0.0, %v553
      %v555 = vpop.f32.mrb[0].mxu0
      %v556 = vpop.f32.mrb[0].mxu0
      %v557 = vadd.f32 0.0, %v556
      %v558 = vpop.f32.mrb[0].mxu0
      %559 = vmatprep.mubr.bf16.mxu0 0
      %560 = vmatmul.mubr.bf16.gmra.mrb[0].mxu0 %v438
      %v561 = vpop.f32.mrb[0].mxu0
      %v562 = vadd.f32 0.0, %v561
      %v563 = vpop.f32.mrb[0].mxu0
      %v564 = vpop.f32.mrb[0].mxu0
      %v565 = vadd.f32 0.0, %v564
      %v566 = vpop.f32.mrb[0].mxu0
      %567 = vmatprep.mubr.bf16.mxu0 0
      %568 = vmatmul.mubr.bf16.gmra.mrb[0].mxu0 %v441
      %v569 = vpop.f32.mrb[0].mxu0
      %v570 = vadd.f32 0.0, %v569
      %v571 = vpop.f32.mrb[0].mxu0
      %v572 = vpop.f32.mrb[0].mxu0
      %v573 = vadd.f32 0.0, %v572
      %v574 = vpop.f32.mrb[0].mxu0
      %575 = vmatprep.mubr.bf16.mxu0 0
      %576 = vmatmul.mubr.bf16.gmra.mrb[0].mxu0 %v444
      %v577 = vpop.f32.mrb[0].mxu0
      %v578 = vadd.f32 0.0, %v577
      %v579 = vpop.f32.mrb[0].mxu0
      %v580 = vpop.f32.mrb[0].mxu0
      %v581 = vadd.f32 0.0, %v580
      %v582 = vpop.f32.mrb[0].mxu0
      %583 = vmatprep.mubr.bf16.mxu0 0
      %584 = vmatmul.mubr.bf16.gmra.mrb[0].mxu0 %v447
      %v585 = vpop.f32.mrb[0].mxu0
      %v586 = vadd.f32 0.0, %v585
      %v587 = vpop.f32.mrb[0].mxu0
      %v588 = vpop.f32.mrb[0].mxu0
      %v589 = vadd.f32 0.0, %v588
      %v590 = vpop.f32.mrb[0].mxu0
      %591 = vmatprep.mubr.bf16.mxu0 0
      %592 = vmatmul.mubr.bf16.gmra.mrb[0].mxu0 %v450
      %v593 = vpop.f32.mrb[0].mxu0
      %v594 = vadd.f32 0.0, %v593
      %v595 = vpop.f32.mrb[0].mxu0
      %v596 = vpop.f32.mrb[0].mxu0
      %v597 = vadd.f32 0.0, %v596
      %v598 = vpop.f32.mrb[0].mxu0
      %599 = vmatprep.mubr.bf16.mxu0 0
      %600 = vmatmul.mubr.bf16.gmra.mrb[0].mxu0 %v453
      %v601 = vpop.f32.mrb[0].mxu0
      %v602 = vadd.f32 0.0, %v601
      %v603 = vpop.f32.mrb[0].mxu0
      %v604 = vpop.f32.mrb[0].mxu0
      %v605 = vadd.f32 0.0, %v604
      %v606 = vpop.f32.mrb[0].mxu0
      %607 = vmatprep.mubr.bf16.mxu0 0
      %608 = vmatmul.mubr.bf16.gmra.mrb[0].mxu0 %v456
      %v609 = vpop.f32.mrb[0].mxu0
      %v610 = vadd.f32 0.0, %v609
      %v611 = vpop.f32.mrb[0].mxu0
      %v612 = vpop.f32.mrb[0].mxu0
      %v613 = vadd.f32 0.0, %v612
      %v614 = vpop.f32.mrb[0].mxu0
      %615 = vmatprep.mubr.bf16.mxu0 0
      %616 = vmatmul.mubr.bf16.gmra.mrb[0].mxu0 %v459
      %v617 = vpop.f32.mrb[0].mxu0
      %v618 = vadd.f32 0.0, %v617
      %v619 = vpop.f32.mrb[0].mxu0
      %v620 = vpop.f32.mrb[0].mxu0
      %v621 = vadd.f32 0.0, %v620
      %v622 = vpop.f32.mrb[0].mxu0
      %623 = vmatprep.mubr.bf16.mxu0 0
      %624 = vmatmul.mubr.bf16.gmra.mrb[0].mxu0 %v462
      %v625 = vpop.f32.mrb[0].mxu0
      %v626 = vadd.f32 0.0, %v625
      %v627 = vpop.f32.mrb[0].mxu0
      %v628 = vpop.f32.mrb[0].mxu0
      %v629 = vadd.f32 0.0, %v628
      %v630 = vpop.f32.mrb[0].mxu0
      %631 = vdwg.mxu0
      %v632 = vadd.f32 %v256, %v506
      %v633 = vadd.f32 %v257, %v509
      %v634 = vadd.f32 %v258, %v514
      %v635 = vadd.f32 %v259, %v517
      %v636 = vadd.f32 %v260, %v522
      %v637 = vadd.f32 %v261, %v525
      %v638 = vadd.f32 %v262, %v530
      %v639 = vadd.f32 %v263, %v533
      %v640 = vadd.f32 %v264, %v538
      %v641 = vadd.f32 %v265, %v541
      %v642 = vadd.f32 %v266, %v546
      %v643 = vadd.f32 %v267, %v549
      %v644 = vadd.f32 %v268, %v554
      %v645 = vadd.f32 %v269, %v557
      %v646 = vadd.f32 %v270, %v562
      %v647 = vadd.f32 %v271, %v565
      %v648 = vadd.f32 %v272, %v570
      %v649 = vadd.f32 %v273, %v573
      %v650 = vadd.f32 %v274, %v578
      %v651 = vadd.f32 %v275, %v581
      %v652 = vadd.f32 %v276, %v586
      %v653 = vadd.f32 %v277, %v589
      %v654 = vadd.f32 %v278, %v594
      %v655 = vadd.f32 %v279, %v597
      %v656 = vadd.f32 %v280, %v602
      %v657 = vadd.f32 %v281, %v605
      %v658 = vadd.f32 %v282, %v610
      %v659 = vadd.f32 %v283, %v613
      %v660 = vadd.f32 %v284, %v618
      %v661 = vadd.f32 %v285, %v621
      %v662 = vadd.f32 %v286, %v626
      %v663 = vadd.f32 %v287, %v629
      %664 = vst [vmem:[#allocation2] sm:$0xff] %v632
      %665 = vst [vmem:[#allocation2 + $0x8] sm:$0xff] %v633
      %666 = vst [vmem:[#allocation2 + $0x10] sm:$0xff] %v634
      %667 = vst [vmem:[#allocation2 + $0x18] sm:$0xff] %v635
      %668 = vst [vmem:[#allocation2 + $0x20] sm:$0xff] %v636
      %669 = vst [vmem:[#allocation2 + $0x28] sm:$0xff] %v637
      %670 = vst [vmem:[#allocation2 + $0x30] sm:$0xff] %v638
      %671 = vst [vmem:[#allocation2 + $0x38] sm:$0xff] %v639
      %672 = vst [vmem:[#allocation2 + $0x40] sm:$0xff] %v640
      %673 = vst [vmem:[#allocation2 + $0x48] sm:$0xff] %v641
      %674 = vst [vmem:[#allocation2 + $0x50] sm:$0xff] %v642
      %675 = vst [vmem:[#allocation2 + $0x58] sm:$0xff] %v643
      %676 = vst [vmem:[#allocation2 + $0x60] sm:$0xff] %v644
      %677 = vst [vmem:[#allocation2 + $0x68] sm:$0xff] %v645
      %678 = vst [vmem:[#allocation2 + $0x70] sm:$0xff] %v646
      %679 = vst [vmem:[#allocation2 + $0x78] sm:$0xff] %v647
      %680 = vst [vmem:[#allocation2 + $0x80] sm:$0xff] %v648
      %681 = vst [vmem:[#allocation2 + $0x88] sm:$0xff] %v649
      %682 = vst [vmem:[#allocation2 + $0x90] sm:$0xff] %v650
      %683 = vst [vmem:[#allocation2 + $0x98] sm:$0xff] %v651
      %684 = vst [vmem:[#allocation2 + $0xa0] sm:$0xff] %v652
      %685 = vst [vmem:[#allocation2 + $0xa8] sm:$0xff] %v653
      %686 = vst [vmem:[#allocation2 + $0xb0] sm:$0xff] %v654
      %687 = vst [vmem:[#allocation2 + $0xb8] sm:$0xff] %v655
      %688 = vst [vmem:[#allocation2 + $0xc0] sm:$0xff] %v656
      %689 = vst [vmem:[#allocation2 + $0xc8] sm:$0xff] %v657
      %690 = vst [vmem:[#allocation2 + $0xd0] sm:$0xff] %v658
      %691 = vst [vmem:[#allocation2 + $0xd8] sm:$0xff] %v659
      %692 = vst [vmem:[#allocation2 + $0xe0] sm:$0xff] %v660
      %693 = vst [vmem:[#allocation2 + $0xe8] sm:$0xff] %v661
      %694 = vst [vmem:[#allocation2 + $0xf0] sm:$0xff] %v662
      %695 = vst [vmem:[#allocation2 + $0xf8] sm:$0xff] %v663
      // Predicated region
      $region37: #{_lambda_.8} parent=31 // pred_check
        %p696 = pneg %p220
      $region38: #{_lambda_.8} parent=31 // pred_check_branch
        %698 = sbr.rel (%p696) target = $region40
      $region39: #{_lambda_.8} parent=31 // pred_region
        %v699 = vld [vmem:[#allocation2] sm:$0xff]
        %v700 = vld [vmem:[#allocation2 + $0x8] sm:$0xff]
        %v701 = vld [vmem:[#allocation2 + $0x10] sm:$0xff]
        %v702 = vld [vmem:[#allocation2 + $0x18] sm:$0xff]
        %v703 = vld [vmem:[#allocation2 + $0x20] sm:$0xff]
        %v704 = vld [vmem:[#allocation2 + $0x28] sm:$0xff]
        %v705 = vld [vmem:[#allocation2 + $0x30] sm:$0xff]
        %v706 = vld [vmem:[#allocation2 + $0x38] sm:$0xff]
        %v707 = vld [vmem:[#allocation2 + $0x40] sm:$0xff]
        %v708 = vld [vmem:[#allocation2 + $0x48] sm:$0xff]
        %v709 = vld [vmem:[#allocation2 + $0x50] sm:$0xff]
        %v710 = vld [vmem:[#allocation2 + $0x58] sm:$0xff]
        %v711 = vld [vmem:[#allocation2 + $0x60] sm:$0xff]
        %v712 = vld [vmem:[#allocation2 + $0x68] sm:$0xff]
        %v713 = vld [vmem:[#allocation2 + $0x70] sm:$0xff]
        %v714 = vld [vmem:[#allocation2 + $0x78] sm:$0xff]
        %v715 = vld [vmem:[#allocation2 + $0x80] sm:$0xff]
        %v716 = vld [vmem:[#allocation2 + $0x88] sm:$0xff]
        %v717 = vld [vmem:[#allocation2 + $0x90] sm:$0xff]
        %v718 = vld [vmem:[#allocation2 + $0x98] sm:$0xff]
        %v719 = vld [vmem:[#allocation2 + $0xa0] sm:$0xff]
        %v720 = vld [vmem:[#allocation2 + $0xa8] sm:$0xff]
        %v721 = vld [vmem:[#allocation2 + $0xb0] sm:$0xff]
        %v722 = vld [vmem:[#allocation2 + $0xb8] sm:$0xff]
        %v723 = vld [vmem:[#allocation2 + $0xc0] sm:$0xff]
        %v724 = vld [vmem:[#allocation2 + $0xc8] sm:$0xff]
        %v725 = vld [vmem:[#allocation2 + $0xd0] sm:$0xff]
        %v726 = vld [vmem:[#allocation2 + $0xd8] sm:$0xff]
        %v727 = vld [vmem:[#allocation2 + $0xe0] sm:$0xff]
        %v728 = vld [vmem:[#allocation2 + $0xe8] sm:$0xff]
        %v729 = vld [vmem:[#allocation2 + $0xf0] sm:$0xff]
        %v730 = vld [vmem:[#allocation2 + $0xf8] sm:$0xff]
        %v731 = vld [vmem:[%s2] sm:$0x1]
        %v733 = vlaneseq
        %v734 = vshrl.u32 %v733, 7
        %v735 = vsub.s32 0, %v734
        %v736 = vrot.slane %v731, %v735
        %v738 = vadd.f32 %v699, %v736
        %v739 = vadd.f32 %v700, %v736
        %v740 = vadd.f32 %v701, %v736
        %v741 = vadd.f32 %v702, %v736
        %v742 = vadd.f32 %v703, %v736
        %v743 = vadd.f32 %v704, %v736
        %v744 = vadd.f32 %v705, %v736
        %v745 = vadd.f32 %v706, %v736
        %v746 = vadd.f32 %v707, %v736
        %v747 = vadd.f32 %v708, %v736
        %v748 = vadd.f32 %v709, %v736
        %v749 = vadd.f32 %v710, %v736
        %v750 = vadd.f32 %v711, %v736
        %v751 = vadd.f32 %v712, %v736
        %v752 = vadd.f32 %v713, %v736
        %v753 = vadd.f32 %v714, %v736
        %v754 = vadd.f32 %v715, %v736
        %v755 = vadd.f32 %v716, %v736
        %v756 = vadd.f32 %v717, %v736
        %v757 = vadd.f32 %v718, %v736
        %v758 = vadd.f32 %v719, %v736
        %v759 = vadd.f32 %v720, %v736
        %v760 = vadd.f32 %v721, %v736
        %v761 = vadd.f32 %v722, %v736
        %v762 = vadd.f32 %v723, %v736
        %v763 = vadd.f32 %v724, %v736
        %v764 = vadd.f32 %v725, %v736
        %v765 = vadd.f32 %v726, %v736
        %v766 = vadd.f32 %v727, %v736
        %v767 = vadd.f32 %v728, %v736
        %v768 = vadd.f32 %v729, %v736
        %v769 = vadd.f32 %v730, %v736
        %v770 = vmax.f32 %v738, 0.0
        %v771 = vmax.f32 %v739, 0.0
        %v772 = vmax.f32 %v740, 0.0
        %v773 = vmax.f32 %v741, 0.0
        %v774 = vmax.f32 %v742, 0.0
        %v775 = vmax.f32 %v743, 0.0
        %v776 = vmax.f32 %v744, 0.0
        %v777 = vmax.f32 %v745, 0.0
        %v778 = vmax.f32 %v746, 0.0
        %v779 = vmax.f32 %v747, 0.0
        %v780 = vmax.f32 %v748, 0.0
        %v781 = vmax.f32 %v749, 0.0
        %v782 = vmax.f32 %v750, 0.0
        %v783 = vmax.f32 %v751, 0.0
        %v784 = vmax.f32 %v752, 0.0
        %v785 = vmax.f32 %v753, 0.0
        %v786 = vmax.f32 %v754, 0.0
        %v787 = vmax.f32 %v755, 0.0
        %v788 = vmax.f32 %v756, 0.0
        %v789 = vmax.f32 %v757, 0.0
        %v790 = vmax.f32 %v758, 0.0
        %v791 = vmax.f32 %v759, 0.0
        %v792 = vmax.f32 %v760, 0.0
        %v793 = vmax.f32 %v761, 0.0
        %v794 = vmax.f32 %v762, 0.0
        %v795 = vmax.f32 %v763, 0.0
        %v796 = vmax.f32 %v764, 0.0
        %v797 = vmax.f32 %v765, 0.0
        %v798 = vmax.f32 %v766, 0.0
        %v799 = vmax.f32 %v767, 0.0
        %v800 = vmax.f32 %v768, 0.0
        %v801 = vmax.f32 %v769, 0.0
        %v802 = vpack.c.bf16 %v771, %v770
        %v803 = vpack.c.bf16 %v773, %v772
        %v804 = vpack.c.bf16 %v775, %v774
        %v805 = vpack.c.bf16 %v777, %v776
        %v806 = vpack.c.bf16 %v779, %v778
        %v807 = vpack.c.bf16 %v781, %v780
        %v808 = vpack.c.bf16 %v783, %v782
        %v809 = vpack.c.bf16 %v785, %v784
        %v810 = vpack.c.bf16 %v787, %v786
        %v811 = vpack.c.bf16 %v789, %v788
        %v812 = vpack.c.bf16 %v791, %v790
        %v813 = vpack.c.bf16 %v793, %v792
        %v814 = vpack.c.bf16 %v795, %v794
        %v815 = vpack.c.bf16 %v797, %v796
        %v816 = vpack.c.bf16 %v799, %v798
        %v817 = vpack.c.bf16 %v801, %v800
        %v834 = vunpack.c.l.b16 %v802
        %v835 = vunpack.c.h.b16 %v802
        %v836 = vunpack.c.l.b16 %v803
        %v837 = vunpack.c.h.b16 %v803
        %v838 = vunpack.c.l.b16 %v804
        %v839 = vunpack.c.h.b16 %v804
        %v840 = vunpack.c.l.b16 %v805
        %v841 = vunpack.c.h.b16 %v805
        %v842 = vunpack.c.l.b16 %v806
        %v843 = vunpack.c.h.b16 %v806
        %v844 = vunpack.c.l.b16 %v807
        %v845 = vunpack.c.h.b16 %v807
        %v846 = vunpack.c.l.b16 %v808
        %v847 = vunpack.c.h.b16 %v808
        %v848 = vunpack.c.l.b16 %v809
        %v849 = vunpack.c.h.b16 %v809
        %v850 = vunpack.c.l.b16 %v810
        %v851 = vunpack.c.h.b16 %v810
        %v852 = vunpack.c.l.b16 %v811
        %v853 = vunpack.c.h.b16 %v811
        %v854 = vunpack.c.l.b16 %v812
        %v855 = vunpack.c.h.b16 %v812
        %v856 = vunpack.c.l.b16 %v813
        %v857 = vunpack.c.h.b16 %v813
        %v858 = vunpack.c.l.b16 %v814
        %v859 = vunpack.c.h.b16 %v814
        %v860 = vunpack.c.l.b16 %v815
        %v861 = vunpack.c.h.b16 %v815
        %v862 = vunpack.c.l.b16 %v816
        %v863 = vunpack.c.h.b16 %v816
        %v864 = vunpack.c.l.b16 %v817
        %v865 = vunpack.c.h.b16 %v817
        %v866 = vpack.c.b16 %v834, %v834
        %v867 = vpack.c.b16 %v835, %v835
        %v868 = vpack.c.b16 %v836, %v836
        %v869 = vpack.c.b16 %v837, %v837
        %v870 = vpack.c.b16 %v838, %v838
        %v871 = vpack.c.b16 %v839, %v839
        %v872 = vpack.c.b16 %v840, %v840
        %v873 = vpack.c.b16 %v841, %v841
        %v874 = vpack.c.b16 %v842, %v842
        %v875 = vpack.c.b16 %v843, %v843
        %v876 = vpack.c.b16 %v844, %v844
        %v877 = vpack.c.b16 %v845, %v845
        %v878 = vpack.c.b16 %v846, %v846
        %v879 = vpack.c.b16 %v847, %v847
        %v880 = vpack.c.b16 %v848, %v848
        %v881 = vpack.c.b16 %v849, %v849
        %v882 = vpack.c.b16 %v850, %v850
        %v883 = vpack.c.b16 %v851, %v851
        %v884 = vpack.c.b16 %v852, %v852
        %v885 = vpack.c.b16 %v853, %v853
        %v886 = vpack.c.b16 %v854, %v854
        %v887 = vpack.c.b16 %v855, %v855
        %v888 = vpack.c.b16 %v856, %v856
        %v889 = vpack.c.b16 %v857, %v857
        %v890 = vpack.c.b16 %v858, %v858
        %v891 = vpack.c.b16 %v859, %v859
        %v892 = vpack.c.b16 %v860, %v860
        %v893 = vpack.c.b16 %v861, %v861
        %v894 = vpack.c.b16 %v862, %v862
        %v895 = vpack.c.b16 %v863, %v863
        %v896 = vpack.c.b16 %v864, %v864
        %v897 = vpack.c.b16 %v865, %v865
        %930 = vst [vmem:[%s217] sm:$0xf] %v866
        %931 = vst [vmem:[%s217 + $0x4] sm:$0xf] %v867
        %932 = vst [vmem:[%s217 + $0x8] sm:$0xf] %v868
        %933 = vst [vmem:[%s217 + $0xc] sm:$0xf] %v869
        %934 = vst [vmem:[%s217 + $0x10] sm:$0xf] %v870
        %935 = vst [vmem:[%s217 + $0x14] sm:$0xf] %v871
        %936 = vst [vmem:[%s217 + $0x18] sm:$0xf] %v872
        %937 = vst [vmem:[%s217 + $0x1c] sm:$0xf] %v873
        %938 = vst [vmem:[%s217 + $0x20] sm:$0xf] %v874
        %939 = vst [vmem:[%s217 + $0x24] sm:$0xf] %v875
        %940 = vst [vmem:[%s217 + $0x28] sm:$0xf] %v876
        %941 = vst [vmem:[%s217 + $0x2c] sm:$0xf] %v877
        %942 = vst [vmem:[%s217 + $0x30] sm:$0xf] %v878
        %943 = vst [vmem:[%s217 + $0x34] sm:$0xf] %v879
        %944 = vst [vmem:[%s217 + $0x38] sm:$0xf] %v880
        %945 = vst [vmem:[%s217 + $0x3c] sm:$0xf] %v881
        %946 = vst [vmem:[%s217 + $0x40] sm:$0xf] %v882
        %947 = vst [vmem:[%s217 + $0x44] sm:$0xf] %v883
        %948 = vst [vmem:[%s217 + $0x48] sm:$0xf] %v884
        %949 = vst [vmem:[%s217 + $0x4c] sm:$0xf] %v885
        %950 = vst [vmem:[%s217 + $0x50] sm:$0xf] %v886
        %951 = vst [vmem:[%s217 + $0x54] sm:$0xf] %v887
        %952 = vst [vmem:[%s217 + $0x58] sm:$0xf] %v888
        %953 = vst [vmem:[%s217 + $0x5c] sm:$0xf] %v889
        %954 = vst [vmem:[%s217 + $0x60] sm:$0xf] %v890
        %955 = vst [vmem:[%s217 + $0x64] sm:$0xf] %v891
        %956 = vst [vmem:[%s217 + $0x68] sm:$0xf] %v892
        %957 = vst [vmem:[%s217 + $0x6c] sm:$0xf] %v893
        %958 = vst [vmem:[%s217 + $0x70] sm:$0xf] %v894
        %959 = vst [vmem:[%s217 + $0x74] sm:$0xf] %v895
        %960 = vst [vmem:[%s217 + $0x78] sm:$0xf] %v896
        %961 = vst [vmem:[%s217 + $0x7c] sm:$0xf] %v897
      $region40: #{_lambda_.8} parent=31 // pred_fallthru
        _
      %s962 = smul.u32 32, %s18
      %p963 = scmp.lt.s32.totalorder %s962, 63
      %s964 = scalar_select %p963, %s962, 63
      %s965 = smul.addr %s964, 4
      %s966 = scalar_lea.vmem %s3, %s965
      // Predicated region
      $region41: #{_lambda_.8} parent=31 // pred_check
        %p967 = pneg %p119
      $region42: #{_lambda_.8} parent=31 // pred_check_branch
        %969 = sbr.rel (%p967) target = $region44
      $region43: #{_lambda_.8} parent=31 // pred_region
        %s970 = smul.u32 32, %s18
      $region44: #{_lambda_.8} parent=31 // pred_fallthru
        _
    $region32: #{_lambda_.8} parent=5 // pred_fallthru
      _
    %p971 = scmp.le.s32.totalorder 2, %s9
    // Predicated region
    $region45: #{_lambda_.8} parent=5 // pred_check
      %p972 = pneg %p971
    $region46: #{_lambda_.8} parent=5 // pred_check_branch
      %974 = sbr.rel (%p972) target = $region48
    $region47: #{_lambda_.8} parent=5 // pred_region
      %s975 = ssub.s32 %s9, 2
      // Predicated region
      $region49: #{_lambda_.8} parent=47 // pred_check
        %p976 = pneg %p125
      $region50: #{_lambda_.8} parent=47 // pred_check_branch
        %978 = sbr.rel (%p976) target = $region52
      $region51: #{_lambda_.8} parent=47 // pred_region
        %s979 = smul.u32 32, %s20
        %p980 = scmp.lt.s32.totalorder %s979, 63
        %s981 = scalar_select %p980, %s979, 63
        %s982 = smul.addr %s981, 4
        %s983 = scalar_lea.vmem %s3, %s982
      $region52: #{_lambda_.8} parent=47 // pred_fallthru
        _
    $region48: #{_lambda_.8} parent=5 // pred_fallthru
      _
  $region6: #{_lambda_.8} parent=0 // loop_footer
    %s13 = sadd.s32 1, %s9
  $region7: #{_lambda_.8} parent=0 // loop_footer_branch
    %8 = sbr.rel target = $region3
  $region8: #{_lambda_.8} parent=0 // loop_exit
    _

// kernel: _lambda_.11
$region0: #{_lambda_.11}
  #allocation0 [shape = 'u32[]', space=smem, size = 0x4, offset = 0x4, fixed_abs, tag = 'smem constant byte address 0x4 - core index']
  #allocation1 [shape = 'u32[144,128]{1,0:T(1,128)}', space=vmem, size = 0x12000, scoped, tag = 'internal scratch']
  #allocation2 [shape = 'f32[64,128]{1,0:T(8,128)}', space=vmem, size = 0x8000, scoped, tag = 'scratch operand']
  %s0 = inlined_call_operand.vmem [shape: bf16[128,512], index: 0, kind: input, shape index: {}]
  %s1 = inlined_call_operand.vmem [shape: bf16[512,128], index: 1, kind: input, shape index: {}]
  %s2 = inlined_call_operand.vmem [shape: f32[1,128], index: 2, kind: input, shape index: {}]
  %s3 = inlined_call_operand.vmem [shape: bf16[128,128], index: 3, kind: output, shape index: {}]
  %s4 = sld [smem:[#allocation0]]
  $region91: #{_lambda_.11} parent=0
    _
  %s6 = ssub.s32 1, %s4
  %s7 = scalar_select 0, %s6, %s4
  $region1: #{_lambda_.11} parent=0
    #allocation3 [shape = 'u8[65536]{0}', space=vmem, size = 0x10000, scoped, tag = 'input window, operand 0']
    loop: start=0, step=1, limit=6
    $region2: #{_lambda_.11} parent=1 // loop_pre_header
      _
    $region3: #{_lambda_.11} parent=1 // loop_header
      %s9 = sphi 0, %s13
      %p10 = scmp.ge.s32.totalorder %s9, 6
      %s16 = sphi 0, %s28
      %s17 = sphi 0, %s24
      %s18 = sphi 0, %s16
      %s19 = sphi 0, %s17
      %s20 = sphi 0, %s18
      %s21 = sphi 0, %s19
      %s33 = sphi 0, %s35
      %s36 = sphi 0, %s33
      %s37 = sphi 0, %s36
      %s53 = sphi 0, %s37
      %s59 = sphi 0, %s61
      %s62 = sphi 0, %s59
      %s63 = sphi 0, %s62
      %s79 = sphi 0, %s63
      %s83 = sphi 0, %s83
      %s85 = sphi 0, %s83
      %s86 = sphi 0, %s85
      %s100 = sphi 0, %s86
      %s106 = sphi 0, %s108
      %s109 = sphi 0, %s106
      %s110 = sphi 0, %s109
      %s126 = sphi 0, %s110
    $region4: #{_lambda_.11} parent=1 // loop_header_branch
      %12 = sbr.rel (%p10) target = $region8
    $region5: #{_lambda_.11} parent=1 // loop_body
      %s14 = ssub.s32 %s9, 1
      %s15 = ssub.s32 %s9, 2
      %s22 = sadd.s32 1, %s17
      %p23 = scmp.ge.s32.totalorder %s22, 2
      %s24 = scalar_select %p23, 0, %s22
      %s25 = sadd.s32 1, %s16
      %s26 = scalar_select %p23, %s25, %s16
      %p27 = scmp.ge.s32.totalorder %s26, 2
      %s28 = scalar_select %p27, 0, %s26
      %s29 = ssub.s32 %s16, %s28
      %s30 = ssub.s32 %s17, %s24
      %s31 = sor.u32 %s29, %s30
      %p32 = scmp.eq.s32.totalorder %s31, 0
      %s34 = sadd.s32 %s33, 1
      %s35 = scalar_select %p32, %s33, %s34
      %p38 = pneg %p32
      %p39 = scmp.eq.s32.totalorder %s9, 3
      %p40 = por %p38, %p39
      %p41 = scmp.ne.s32.totalorder %s33, %s36
      %p42 = scmp.eq.s32.totalorder %s9, 0
      %p43 = por %p41, %p42
      %p44 = scmp.ne.s32.totalorder %s33, %s36
      %p45 = scmp.eq.s32.totalorder %s14, 3
      %p46 = por %p44, %p45
      %p47 = scmp.ne.s32.totalorder %s36, %s37
      %p48 = scmp.eq.s32.totalorder %s14, 0
      %p49 = por %p47, %p48
      %p50 = scmp.ne.s32.totalorder %s36, %s37
      %p51 = scmp.eq.s32.totalorder %s15, 3
      %p52 = por %p50, %p51
      %p54 = scmp.ne.s32.totalorder %s37, %s53
      %p55 = scmp.eq.s32.totalorder %s15, 0
      %p56 = por %p54, %p55
      %s57 = ssub.s32 %s17, %s24
      %p58 = scmp.eq.s32.totalorder %s57, 0
      %s60 = sadd.s32 %s59, 1
      %s61 = scalar_select %p58, %s59, %s60
      %p64 = pneg %p58
      %p65 = scmp.eq.s32.totalorder %s9, 3
      %p66 = por %p64, %p65
      %p67 = scmp.ne.s32.totalorder %s59, %s62
      %p68 = scmp.eq.s32.totalorder %s9, 0
      %p69 = por %p67, %p68
      %p70 = scmp.ne.s32.totalorder %s59, %s62
      %p71 = scmp.eq.s32.totalorder %s14, 3
      %p72 = por %p70, %p71
      %p73 = scmp.ne.s32.totalorder %s62, %s63
      %p74 = scmp.eq.s32.totalorder %s14, 0
      %p75 = por %p73, %p74
      %p76 = scmp.ne.s32.totalorder %s62, %s63
      %p77 = scmp.eq.s32.totalorder %s15, 3
      %p78 = por %p76, %p77
      %p80 = scmp.ne.s32.totalorder %s63, %s79
      %p81 = scmp.eq.s32.totalorder %s15, 0
      %p82 = por %p80, %p81
      %s84 = sadd.s32 %s83, 1
      %p87 = scmp.eq.s32.totalorder %s9, 3
      %p88 = scmp.ne.s32.totalorder %s83, %s85
      %p89 = scmp.eq.s32.totalorder %s9, 0
      %p90 = por %p88, %p89
      %p91 = scmp.ne.s32.totalorder %s83, %s85
      %p92 = scmp.eq.s32.totalorder %s14, 3
      %p93 = por %p91, %p92
      %p94 = scmp.ne.s32.totalorder %s85, %s86
      %p95 = scmp.eq.s32.totalorder %s14, 0
      %p96 = por %p94, %p95
      %p97 = scmp.ne.s32.totalorder %s85, %s86
      %p98 = scmp.eq.s32.totalorder %s15, 3
      %p99 = por %p97, %p98
      %p101 = scmp.ne.s32.totalorder %s86, %s100
      %p102 = scmp.eq.s32.totalorder %s15, 0
      %p103 = por %p101, %p102
      %s104 = ssub.s32 %s16, %s28
      %p105 = scmp.eq.s32.totalorder %s104, 0
      %s107 = sadd.s32 %s106, 1
      %s108 = scalar_select %p105, %s106, %s107
      %p111 = pneg %p105
      %p112 = scmp.eq.s32.totalorder %s9, 3
      %p113 = por %p111, %p112
      %p114 = scmp.ne.s32.totalorder %s106, %s109
      %p115 = scmp.eq.s32.totalorder %s9, 0
      %p116 = por %p114, %p115
      %p117 = scmp.ne.s32.totalorder %s106, %s109
      %p118 = scmp.eq.s32.totalorder %s14, 3
      %p119 = por %p117, %p118
      %p120 = scmp.ne.s32.totalorder %s109, %s110
      %p121 = scmp.eq.s32.totalorder %s14, 0
      %p122 = por %p120, %p121
      %p123 = scmp.ne.s32.totalorder %s109, %s110
      %p124 = scmp.eq.s32.totalorder %s15, 3
      %p125 = por %p123, %p124
      %p127 = scmp.ne.s32.totalorder %s110, %s126
      %p128 = scmp.eq.s32.totalorder %s15, 0
      %p129 = por %p127, %p128
      %p130 = scmp.le.s32.totalorder 1, %s9
      %p131 = scmp.lt.s32.totalorder %s9, 5
      %p132 = pnand %p130, %p131
      %p133 = pneg %p132
      // Predicated region
      $region9: #{_lambda_.11} parent=5 // pred_check
        _
      $region10: #{_lambda_.11} parent=5 // pred_check_branch
        %135 = sbr.rel (%p132) target = $region12
      $region11: #{_lambda_.11} parent=5 // pred_region
        %s136 = ssub.s32 %s9, 1
        // Predicated region
        $region13: #{_lambda_.11} parent=11 // pred_check
          %p137 = pneg %p96
        $region14: #{_lambda_.11} parent=11 // pred_check_branch
          %139 = sbr.rel (%p137) target = $region16
        $region15: #{_lambda_.11} parent=11 // pred_region
          _
        $region16: #{_lambda_.11} parent=11 // pred_fallthru
          _
      $region12: #{_lambda_.11} parent=5 // pred_fallthru
        _
      %p140 = scmp.lt.s32.totalorder %s9, 4
      // Predicated region
      $region17: #{_lambda_.11} parent=5 // pred_check
        %p141 = pneg %p140
      $region18: #{_lambda_.11} parent=5 // pred_check_branch
        %143 = sbr.rel (%p141) target = $region20
      $region19: #{_lambda_.11} parent=5 // pred_region
        // Predicated region
        $region21: #{_lambda_.11} parent=19 // pred_check
          %p144 = pneg %p43
        $region22: #{_lambda_.11} parent=19 // pred_check_branch
          %146 = sbr.rel (%p144) target = $region24
        $region23: #{_lambda_.11} parent=19 // pred_region
          %s147 = sand.u32 %s33, 1
          %s148 = sand.u32 %s33, 1
          %s149 = smul.addr %s148, 64
          %s150 = scalar_lea.vmem [#allocation3], %s149
          %s151 = smul.u32 8, %s16
          %s152 = smul.u32 2, %s17
          %s153 = smul.addr %s151, 4
          %s154 = sadd.s32 %s152, %s153
          %s155 = smul.addr %s154, 4
          %s156 = scalar_lea.vmem %s0, %s155
          // Predicated region
          $region25: #{_lambda_.11} parent=23 // pred_check
            _
          $region26: #{_lambda_.11} parent=23 // pred_check_branch
            %158 = sbr.rel (0) target = $region28
          $region27: #{_lambda_.11} parent=23 // pred_region
            // Predicated region
            $region29: #{_lambda_.11} parent=27 // pred_check
              _
            $region30: #{_lambda_.11} parent=27 // pred_check_branch
              %160 = sbr.rel (0) target = $region32
            $region31: #{_lambda_.11} parent=27 // pred_region
              // Predicated region
              $region44: #{_lambda_.11} parent=31 // pred_check
                _
              $region45: #{_lambda_.11} parent=31 // pred_check_branch
                %189 = sbr.rel (0) target = $region47
              $region46: #{_lambda_.11} parent=31 // pred_region
                loop: start=0, step=1, limit=1
                $region48: #{_lambda_.11} parent=46 // loop_pre_header
                  _
                $region49: #{_lambda_.11} parent=46 // loop_header
                  %s191 = sphi 0, %s195
                  %p192 = scmp.ge.s32.totalorder %s191, 1
                  %s196 = sphi %s156, %s156
                  %s197 = sphi %s150, %s150
                $region50: #{_lambda_.11} parent=46 // loop_header_branch
                  %194 = sbr.rel (%p192) target = $region54
                $region51: #{_lambda_.11} parent=46 // loop_body
                  %v198 = vld [vmem:[%s196] sm:$0xff]
                  %199 = vst [vmem:[%s197] sm:$0xff] %v198
                  %v200 = vld [vmem:[%s196 + $0x10] sm:$0xff]
                  %201 = vst [vmem:[%s197 + $0x8] sm:$0xff] %v200
                  %v202 = vld [vmem:[%s196 + $0x20] sm:$0xff]
                  %203 = vst [vmem:[%s197 + $0x10] sm:$0xff] %v202
                  %v204 = vld [vmem:[%s196 + $0x30] sm:$0xff]
                  %205 = vst [vmem:[%s197 + $0x18] sm:$0xff] %v204
                  %v206 = vld [vmem:[%s196 + $0x40] sm:$0xff]
                  %207 = vst [vmem:[%s197 + $0x20] sm:$0xff] %v206
                  %v208 = vld [vmem:[%s196 + $0x50] sm:$0xff]
                  %209 = vst [vmem:[%s197 + $0x28] sm:$0xff] %v208
                  %v210 = vld [vmem:[%s196 + $0x60] sm:$0xff]
                  %211 = vst [vmem:[%s197 + $0x30] sm:$0xff] %v210
                  %v212 = vld [vmem:[%s196 + $0x70] sm:$0xff]
                  %213 = vst [vmem:[%s197 + $0x38] sm:$0xff] %v212
                $region52: #{_lambda_.11} parent=46 // loop_footer
                  %s195 = sadd.s32 1, %s191
                $region53: #{_lambda_.11} parent=46 // loop_footer_branch
                  %190 = sbr.rel target = $region49
                $region54: #{_lambda_.11} parent=46 // loop_exit
                  _
              $region47: #{_lambda_.11} parent=31 // pred_fallthru
                _
              // Predicated region
              $region55: #{_lambda_.11} parent=31 // pred_check
                _
              $region56: #{_lambda_.11} parent=31 // pred_check_branch
                %215 = sbr.rel target = $region58
              $region57: #{_lambda_.11} parent=31 // pred_region
                _
              $region58: #{_lambda_.11} parent=31 // pred_fallthru
                _
            $region32: #{_lambda_.11} parent=27 // pred_fallthru
              _
            // Predicated region
            $region33: #{_lambda_.11} parent=27 // pred_check
              _
            $region34: #{_lambda_.11} parent=27 // pred_check_branch
              %162 = sbr.rel target = $region36
            $region35: #{_lambda_.11} parent=27 // pred_region
              loop: start=0, step=1, limit=1
              $region37: #{_lambda_.11} parent=35 // loop_pre_header
                _
              $region38: #{_lambda_.11} parent=35 // loop_header
                %s165 = sphi 0, %s169
                %p166 = scmp.ge.s32.totalorder %s165, 1
                %s170 = sphi %s156, %s156
                %s171 = sphi %s150, %s150
              $region39: #{_lambda_.11} parent=35 // loop_header_branch
                %168 = sbr.rel (%p166) target = $region43
              $region40: #{_lambda_.11} parent=35 // loop_body
                %v172 = vld [vmem:[%s170] sm:$0xff]
                %173 = vst [vmem:[%s171] sm:$0xff] %v172
                %v174 = vld [vmem:[%s170 + $0x10] sm:$0xff]
                %175 = vst [vmem:[%s171 + $0x8] sm:$0xff] %v174
                %v176 = vld [vmem:[%s170 + $0x20] sm:$0xff]
                %177 = vst [vmem:[%s171 + $0x10] sm:$0xff] %v176
                %v178 = vld [vmem:[%s170 + $0x30] sm:$0xff]
                %179 = vst [vmem:[%s171 + $0x18] sm:$0xff] %v178
                %v180 = vld [vmem:[%s170 + $0x40] sm:$0xff]
                %181 = vst [vmem:[%s171 + $0x20] sm:$0xff] %v180
                %v182 = vld [vmem:[%s170 + $0x50] sm:$0xff]
                %183 = vst [vmem:[%s171 + $0x28] sm:$0xff] %v182
                %v184 = vld [vmem:[%s170 + $0x60] sm:$0xff]
                %185 = vst [vmem:[%s171 + $0x30] sm:$0xff] %v184
                %v186 = vld [vmem:[%s170 + $0x70] sm:$0xff]
                %187 = vst [vmem:[%s171 + $0x38] sm:$0xff] %v186
              $region41: #{_lambda_.11} parent=35 // loop_footer
                %s169 = sadd.s32 1, %s165
              $region42: #{_lambda_.11} parent=35 // loop_footer_branch
                %164 = sbr.rel target = $region38
              $region43: #{_lambda_.11} parent=35 // loop_exit
                _
            $region36: #{_lambda_.11} parent=27 // pred_fallthru
              _
          $region28: #{_lambda_.11} parent=23 // pred_fallthru
            _
          %216 = vnop
        $region24: #{_lambda_.11} parent=19 // pred_fallthru
          _
        // Predicated region
        $region59: #{_lambda_.11} parent=19 // pred_check
          %p217 = pneg %p69
        $region60: #{_lambda_.11} parent=19 // pred_check_branch
          %219 = sbr.rel (%p217) target = $region62
        $region61: #{_lambda_.11} parent=19 // pred_region
          %s220 = smul.u32 32, %s17
          %p221 = scmp.lt.s32.totalorder %s220, 63
          %s222 = scalar_select %p221, %s220, 63
          %s223 = smul.addr %s222, 4
          %s224 = scalar_lea.vmem %s1, %s223
          %s225 = smul.u32 32, %s17
        $region62: #{_lambda_.11} parent=19 // pred_fallthru
          _
      $region20: #{_lambda_.11} parent=5 // pred_fallthru
        _
      %p226 = scmp.le.s32.totalorder 1, %s9
      %p227 = scmp.lt.s32.totalorder %s9, 5
      %p228 = pnand %p226, %p227
      %p229 = pneg %p228
      // Predicated region
      $region63: #{_lambda_.11} parent=5 // pred_check
        _
      $region64: #{_lambda_.11} parent=5 // pred_check_branch
        %231 = sbr.rel (%p228) target = $region66
      $region65: #{_lambda_.11} parent=5 // pred_region
        %s232 = ssub.s32 %s9, 1
        %s233 = sand.u32 %s36, 1
        %s234 = sand.u32 %s36, 1
        %s235 = smul.addr %s234, 64
        %s236 = scalar_lea.vmem [#allocation3], %s235
        // Predicated region
        $region67: #{_lambda_.11} parent=65 // pred_check
          %p237 = pneg %p49
        $region68: #{_lambda_.11} parent=65 // pred_check_branch
          %239 = sbr.rel (%p237) target = $region70
        $region69: #{_lambda_.11} parent=65 // pred_region
          _
        $region70: #{_lambda_.11} parent=65 // pred_fallthru
          _
        %s240 = sand.u32 %s36, 1
        %s241 = sand.u32 %s36, 1
        %s242 = smul.addr %s241, 64
        %s243 = scalar_lea.vmem [#allocation3], %s242
        %p244 = pneg %p49
        %p245 = pneg %p46
        %s246 = smul.u32 32, %s19
        %p247 = scmp.lt.s32.totalorder %s246, 63
        %s248 = scalar_select %p247, %s246, 63
        %s249 = smul.addr %s248, 4
        %s250 = scalar_lea.vmem %s1, %s249
        %p251 = pneg %p75
        %p252 = pneg %p72
        %p253 = pneg %p96
        %p254 = pneg %p93
        %p255 = pneg %p122
        %p256 = pneg %p119
        %s257 = smul.u32 8, %s18
        %p258 = scmp.lt.s32.totalorder %s257, 15
        %s259 = scalar_select %p258, %s257, 15
        %s260 = smul.addr %s259, 4
        %s261 = scalar_lea.vmem %s3, %s260
        %s262 = smul.u32 8, %s18
        %s263 = smul.u32 2, %s19
        %s264 = smul.u32 32, %s19
        %p265 = scmp.lt.s32.totalorder %s264, 63
        %s266 = scalar_select %p265, %s264, 63
        %s267 = smul.addr %s266, 4
        %s268 = scalar_lea.vmem %s1, %s267
        %s269 = smul.u32 32, %s19
        %s270 = smul.u32 8, %s18
        %p271 = scmp.lt.s32.totalorder %s270, 15
        %s272 = scalar_select %p271, %s270, 15
        %s273 = smul.addr %s272, 4
        %s274 = scalar_lea.vmem %s3, %s273
        %s275 = smul.u32 8, %s18
        %p277 = scmp.eq.s32.totalorder %s19, 0
        // Predicated region
        $region71: #{_lambda_.11} parent=65 // pred_check
          %p278 = pneg %p277
        $region72: #{_lambda_.11} parent=65 // pred_check_branch
          %280 = sbr.rel (%p278) target = $region74
        $region73: #{_lambda_.11} parent=65 // pred_region
          %281 = vst [vmem:[#allocation2] sm:$0xff] 0.0
          %282 = vst [vmem:[#allocation2 + $0x8] sm:$0xff] 0.0
          %283 = vst [vmem:[#allocation2 + $0x10] sm:$0xff] 0.0
          %284 = vst [vmem:[#allocation2 + $0x18] sm:$0xff] 0.0
          %285 = vst [vmem:[#allocation2 + $0x20] sm:$0xff] 0.0
          %286 = vst [vmem:[#allocation2 + $0x28] sm:$0xff] 0.0
          %287 = vst [vmem:[#allocation2 + $0x30] sm:$0xff] 0.0
          %288 = vst [vmem:[#allocation2 + $0x38] sm:$0xff] 0.0
        $region74: #{_lambda_.11} parent=65 // pred_fallthru
          _
        %v289 = vld [vmem:[#allocation2] sm:$0xff]
        %v290 = vld [vmem:[#allocation2 + $0x8] sm:$0xff]
        %v291 = vld [vmem:[#allocation2 + $0x10] sm:$0xff]
        %v292 = vld [vmem:[#allocation2 + $0x18] sm:$0xff]
        %v293 = vld [vmem:[#allocation2 + $0x20] sm:$0xff]
        %v294 = vld [vmem:[#allocation2 + $0x28] sm:$0xff]
        %v295 = vld [vmem:[#allocation2 + $0x30] sm:$0xff]
        %v296 = vld [vmem:[#allocation2 + $0x38] sm:$0xff]
        %v297 = vld [vmem:[%s236] sm:$0xff]
        %v298 = vld [vmem:[%s236 + $0x8] sm:$0xff]
        %v299 = vld [vmem:[%s236 + $0x10] sm:$0xff]
        %v300 = vld [vmem:[%s236 + $0x18] sm:$0xff]
        %v301 = vld [vmem:[%s236 + $0x20] sm:$0xff]
        %v302 = vld [vmem:[%s236 + $0x28] sm:$0xff]
        %v303 = vld [vmem:[%s236 + $0x30] sm:$0xff]
        %v304 = vld [vmem:[%s236 + $0x38] sm:$0xff]
        %v305 = vld [vmem:[%s268] sm:$0xf]
        %v306 = vld [vmem:[%s268 + $0x4] sm:$0xf]
        %v307 = vld [vmem:[%s268 + $0x8] sm:$0xf]
        %v308 = vld [vmem:[%s268 + $0xc] sm:$0xf]
        %v309 = vld [vmem:[%s268 + $0x10] sm:$0xf]
        %v310 = vld [vmem:[%s268 + $0x14] sm:$0xf]
        %v311 = vld [vmem:[%s268 + $0x18] sm:$0xf]
        %v312 = vld [vmem:[%s268 + $0x1c] sm:$0xf]
        %v313 = vld [vmem:[%s268 + $0x20] sm:$0xf]
        %v314 = vld [vmem:[%s268 + $0x24] sm:$0xf]
        %v315 = vld [vmem:[%s268 + $0x28] sm:$0xf]
        %v316 = vld [vmem:[%s268 + $0x2c] sm:$0xf]
        %v317 = vld [vmem:[%s268 + $0x30] sm:$0xf]
        %v318 = vld [vmem:[%s268 + $0x34] sm:$0xf]
        %v319 = vld [vmem:[%s268 + $0x38] sm:$0xf]
        %v320 = vld [vmem:[%s268 + $0x3c] sm:$0xf]
        %v321 = vld [vmem:[%s268 + $0x40] sm:$0xf]
        %v322 = vld [vmem:[%s268 + $0x44] sm:$0xf]
        %v323 = vld [vmem:[%s268 + $0x48] sm:$0xf]
        %v324 = vld [vmem:[%s268 + $0x4c] sm:$0xf]
        %v325 = vld [vmem:[%s268 + $0x50] sm:$0xf]
        %v326 = vld [vmem:[%s268 + $0x54] sm:$0xf]
        %v327 = vld [vmem:[%s268 + $0x58] sm:$0xf]
        %v328 = vld [vmem:[%s268 + $0x5c] sm:$0xf]
        %v329 = vld [vmem:[%s268 + $0x60] sm:$0xf]
        %v330 = vld [vmem:[%s268 + $0x64] sm:$0xf]
        %v331 = vld [vmem:[%s268 + $0x68] sm:$0xf]
        %v332 = vld [vmem:[%s268 + $0x6c] sm:$0xf]
        %v333 = vld [vmem:[%s268 + $0x70] sm:$0xf]
        %v334 = vld [vmem:[%s268 + $0x74] sm:$0xf]
        %v335 = vld [vmem:[%s268 + $0x78] sm:$0xf]
        %v336 = vld [vmem:[%s268 + $0x7c] sm:$0xf]
        %v345 = vunpack.c.l.b16 %v297
        %v346 = vunpack.c.h.b16 %v297
        %v347 = vunpack.c.l.b16 %v298
        %v348 = vunpack.c.h.b16 %v298
        %v349 = vunpack.c.l.b16 %v299
        %v350 = vunpack.c.h.b16 %v299
        %v351 = vunpack.c.l.b16 %v300
        %v352 = vunpack.c.h.b16 %v300
        %v353 = vunpack.c.l.b16 %v301
        %v354 = vunpack.c.h.b16 %v301
        %v355 = vunpack.c.l.b16 %v302
        %v356 = vunpack.c.h.b16 %v302
        %v357 = vunpack.c.l.b16 %v303
        %v358 = vunpack.c.h.b16 %v303
        %v359 = vunpack.c.l.b16 %v304
        %v360 = vunpack.c.h.b16 %v304
        %v361 = vpack.c.b16 %v347, %v345
        %v362 = vpack.c.b16 %v348, %v346
        %v363 = vpack.c.b16 %v351, %v349
        %v364 = vpack.c.b16 %v352, %v350
        %v365 = vpack.c.b16 %v355, %v353
        %v366 = vpack.c.b16 %v356, %v354
        %v367 = vpack.c.b16 %v359, %v357
        %v368 = vpack.c.b16 %v360, %v358
        %v409 = vunpack.c.l.b16 %v305
        %v410 = vunpack.c.l.b16 %v306
        %v411 = vunpack.c.l.b16 %v307
        %v412 = vunpack.c.l.b16 %v308
        %v413 = vunpack.c.l.b16 %v309
        %v414 = vunpack.c.l.b16 %v310
        %v415 = vunpack.c.l.b16 %v311
        %v416 = vunpack.c.l.b16 %v312
        %v417 = vunpack.c.l.b16 %v313
        %v418 = vunpack.c.l.b16 %v314
        %v419 = vunpack.c.l.b16 %v315
        %v420 = vunpack.c.l.b16 %v316
        %v421 = vunpack.c.l.b16 %v317
        %v422 = vunpack.c.l.b16 %v318
        %v423 = vunpack.c.l.b16 %v319
        %v424 = vunpack.c.l.b16 %v320
        %v425 = vunpack.c.l.b16 %v321
        %v426 = vunpack.c.l.b16 %v322
        %v427 = vunpack.c.l.b16 %v323
        %v428 = vunpack.c.l.b16 %v324
        %v429 = vunpack.c.l.b16 %v325
        %v430 = vunpack.c.l.b16 %v326
        %v431 = vunpack.c.l.b16 %v327
        %v432 = vunpack.c.l.b16 %v328
        %v433 = vunpack.c.l.b16 %v329
        %v434 = vunpack.c.l.b16 %v330
        %v435 = vunpack.c.l.b16 %v331
        %v436 = vunpack.c.l.b16 %v332
        %v437 = vunpack.c.l.b16 %v333
        %v438 = vunpack.c.l.b16 %v334
        %v439 = vunpack.c.l.b16 %v335
        %v440 = vunpack.c.l.b16 %v336
        %v441 = vpack.c.b16 %v410, %v409
        %v442 = vpack.c.b16 %v412, %v411
        %v443 = vpack.c.b16 %v414, %v413
        %v444 = vpack.c.b16 %v416, %v415
        %v445 = vpack.c.b16 %v418, %v417
        %v446 = vpack.c.b16 %v420, %v419
        %v447 = vpack.c.b16 %v422, %v421
        %v448 = vpack.c.b16 %v424, %v423
        %v449 = vpack.c.b16 %v426, %v425
        %v450 = vpack.c.b16 %v428, %v427
        %v451 = vpack.c.b16 %v430, %v429
        %v452 = vpack.c.b16 %v432, %v431
        %v453 = vpack.c.b16 %v434, %v433
        %v454 = vpack.c.b16 %v436, %v435
        %v455 = vpack.c.b16 %v438, %v437
        %v456 = vpack.c.b16 %v440, %v439
        %473 = vmatprep.subr.bf16.mxu0 0
        %474 = vmatpush1.bf16.msra.mxu0 %v441
        %475 = vmatprep.subr.bf16.mxu0 0
        %476 = vmatpush1.bf16.msra.mxu0 %v442
        %477 = vmatprep.subr.bf16.mxu0 0
        %478 = vmatpush1.bf16.msra.mxu0 %v443
        %479 = vmatprep.subr.bf16.mxu0 0
        %480 = vmatpush1.bf16.msra.mxu0 %v444
        %481 = vmatprep.subr.bf16.mxu0 0
        %482 = vmatpush1.bf16.msra.mxu0 %v445
        %483 = vmatprep.subr.bf16.mxu0 0
        %484 = vmatpush1.bf16.msra.mxu0 %v446
        %485 = vmatprep.subr.bf16.mxu0 0
        %486 = vmatpush1.bf16.msra.mxu0 %v447
        %487 = vmatprep.subr.bf16.mxu0 0
        %488 = vmatpush1.bf16.msra.mxu0 %v448
        %489 = vmatprep.subr.bf16.mxu0 0
        %490 = vmatpush1.bf16.msra.mxu0 %v449
        %491 = vmatprep.subr.bf16.mxu0 0
        %492 = vmatpush1.bf16.msra.mxu0 %v450
        %493 = vmatprep.subr.bf16.mxu0 0
        %494 = vmatpush1.bf16.msra.mxu0 %v451
        %495 = vmatprep.subr.bf16.mxu0 0
        %496 = vmatpush1.bf16.msra.mxu0 %v452
        %497 = vmatprep.subr.bf16.mxu0 0
        %498 = vmatpush1.bf16.msra.mxu0 %v453
        %499 = vmatprep.subr.bf16.mxu0 0
        %500 = vmatpush1.bf16.msra.mxu0 %v454
        %501 = vmatprep.subr.bf16.mxu0 0
        %502 = vmatpush1.bf16.msra.mxu0 %v455
        %503 = vmatprep.subr.bf16.mxu0 0
        %504 = vmatpush1.bf16.msra.mxu0 %v456
        %505 = vmatprep.mubr.bf16.mxu0 %v362
        %506 = vmatmul.mubr.bf16.gmra.mrb[0].mxu0 %v361
        %v507 = vpop.f32.mrb[0].mxu0
        %v508 = vadd.f32 0.0, %v507
        %v509 = vpop.f32.mrb[0].mxu0
        %v510 = vpop.f32.mrb[0].mxu0
        %v511 = vadd.f32 0.0, %v510
        %v512 = vpop.f32.mrb[0].mxu0
        %513 = vmatprep.mubr.bf16.mxu0 %v364
        %514 = vmatmul.mubr.bf16.gmra.mrb[0].mxu0 %v363
        %v515 = vpop.f32.mrb[0].mxu0
        %v516 = vadd.f32 0.0, %v515
        %v517 = vpop.f32.mrb[0].mxu0
        %v518 = vpop.f32.mrb[0].mxu0
        %v519 = vadd.f32 0.0, %v518
        %v520 = vpop.f32.mrb[0].mxu0
        %521 = vmatprep.mubr.bf16.mxu0 %v366
        %522 = vmatmul.mubr.bf16.gmra.mrb[0].mxu0 %v365
        %v523 = vpop.f32.mrb[0].mxu0
        %v524 = vadd.f32 0.0, %v523
        %v525 = vpop.f32.mrb[0].mxu0
        %v526 = vpop.f32.mrb[0].mxu0
        %v527 = vadd.f32 0.0, %v526
        %v528 = vpop.f32.mrb[0].mxu0
        %529 = vmatprep.mubr.bf16.mxu0 %v368
        %530 = vmatmul.mubr.bf16.gmra.mrb[0].mxu0 %v367
        %v531 = vpop.f32.mrb[0].mxu0
        %v532 = vadd.f32 0.0, %v531
        %v533 = vpop.f32.mrb[0].mxu0
        %v534 = vpop.f32.mrb[0].mxu0
        %v535 = vadd.f32 0.0, %v534
        %v536 = vpop.f32.mrb[0].mxu0
        %537 = vdwg.mxu0
        %v538 = vadd.f32 %v289, %v508
        %v539 = vadd.f32 %v290, %v511
        %v540 = vadd.f32 %v291, %v516
        %v541 = vadd.f32 %v292, %v519
        %v542 = vadd.f32 %v293, %v524
        %v543 = vadd.f32 %v294, %v527
        %v544 = vadd.f32 %v295, %v532
        %v545 = vadd.f32 %v296, %v535
        %546 = vst [vmem:[#allocation2] sm:$0xff] %v538
        %547 = vst [vmem:[#allocation2 + $0x8] sm:$0xff] %v539
        %548 = vst [vmem:[#allocation2 + $0x10] sm:$0xff] %v540
        %549 = vst [vmem:[#allocation2 + $0x18] sm:$0xff] %v541
        %550 = vst [vmem:[#allocation2 + $0x20] sm:$0xff] %v542
        %551 = vst [vmem:[#allocation2 + $0x28] sm:$0xff] %v543
        %552 = vst [vmem:[#allocation2 + $0x30] sm:$0xff] %v544
        %553 = vst [vmem:[#allocation2 + $0x38] sm:$0xff] %v545
        %p554 = scmp.eq.s32.totalorder %s19, 1
        // Predicated region
        $region75: #{_lambda_.11} parent=65 // pred_check
          %p555 = pneg %p554
        $region76: #{_lambda_.11} parent=65 // pred_check_branch
          %557 = sbr.rel (%p555) target = $region78
        $region77: #{_lambda_.11} parent=65 // pred_region
          %v558 = vld [vmem:[#allocation2] sm:$0xff]
          %v559 = vld [vmem:[#allocation2 + $0x8] sm:$0xff]
          %v560 = vld [vmem:[#allocation2 + $0x10] sm:$0xff]
          %v561 = vld [vmem:[#allocation2 + $0x18] sm:$0xff]
          %v562 = vld [vmem:[#allocation2 + $0x20] sm:$0xff]
          %v563 = vld [vmem:[#allocation2 + $0x28] sm:$0xff]
          %v564 = vld [vmem:[#allocation2 + $0x30] sm:$0xff]
          %v565 = vld [vmem:[#allocation2 + $0x38] sm:$0xff]
          %v566 = vld [vmem:[%s2] sm:$0x1]
          %v568 = vlaneseq
          %v569 = vshrl.u32 %v568, 7
          %v570 = vsub.s32 0, %v569
          %v571 = vrot.slane %v566, %v570
          %v573 = vadd.f32 %v558, %v571
          %v574 = vadd.f32 %v559, %v571
          %v575 = vadd.f32 %v560, %v571
          %v576 = vadd.f32 %v561, %v571
          %v577 = vadd.f32 %v562, %v571
          %v578 = vadd.f32 %v563, %v571
          %v579 = vadd.f32 %v564, %v571
          %v580 = vadd.f32 %v565, %v571
          %v581 = vmax.f32 %v573, 0.0
          %v582 = vmax.f32 %v574, 0.0
          %v583 = vmax.f32 %v575, 0.0
          %v584 = vmax.f32 %v576, 0.0
          %v585 = vmax.f32 %v577, 0.0
          %v586 = vmax.f32 %v578, 0.0
          %v587 = vmax.f32 %v579, 0.0
          %v588 = vmax.f32 %v580, 0.0
          %v589 = vpack.c.bf16 %v582, %v581
          %v590 = vpack.c.bf16 %v584, %v583
          %v591 = vpack.c.bf16 %v586, %v585
          %v592 = vpack.c.bf16 %v588, %v587
          %v597 = vunpack.c.l.b16 %v589
          %v598 = vunpack.c.h.b16 %v589
          %v599 = vunpack.c.l.b16 %v590
          %v600 = vunpack.c.h.b16 %v590
          %v601 = vunpack.c.l.b16 %v591
          %v602 = vunpack.c.h.b16 %v591
          %v603 = vunpack.c.l.b16 %v592
          %v604 = vunpack.c.h.b16 %v592
          %v605 = vpack.c.b16 %v597, %v597
          %v606 = vpack.c.b16 %v598, %v598
          %v607 = vpack.c.b16 %v599, %v599
          %v608 = vpack.c.b16 %v600, %v600
          %v609 = vpack.c.b16 %v601, %v601
          %v610 = vpack.c.b16 %v602, %v602
          %v611 = vpack.c.b16 %v603, %v603
          %v612 = vpack.c.b16 %v604, %v604
          %621 = vst [vmem:[%s274] sm:$0xf] %v605
          %622 = vst [vmem:[%s274 + $0x4] sm:$0xf] %v606
          %623 = vst [vmem:[%s274 + $0x8] sm:$0xf] %v607
          %624 = vst [vmem:[%s274 + $0xc] sm:$0xf] %v608
          %625 = vst [vmem:[%s274 + $0x10] sm:$0xf] %v609
          %626 = vst [vmem:[%s274 + $0x14] sm:$0xf] %v610
          %627 = vst [vmem:[%s274 + $0x18] sm:$0xf] %v611
          %628 = vst [vmem:[%s274 + $0x1c] sm:$0xf] %v612
        $region78: #{_lambda_.11} parent=65 // pred_fallthru
          _
        %s629 = smul.u32 8, %s18
        %p630 = scmp.lt.s32.totalorder %s629, 15
        %s631 = scalar_select %p630, %s629, 15
        %s632 = smul.addr %s631, 4
        %s633 = scalar_lea.vmem %s3, %s632
        // Predicated region
        $region79: #{_lambda_.11} parent=65 // pred_check
          %p634 = pneg %p119
        $region80: #{_lambda_.11} parent=65 // pred_check_branch
          %636 = sbr.rel (%p634) target = $region82
        $region81: #{_lambda_.11} parent=65 // pred_region
          %s637 = smul.u32 8, %s18
        $region82: #{_lambda_.11} parent=65 // pred_fallthru
          _
      $region66: #{_lambda_.11} parent=5 // pred_fallthru
        _
      %p638 = scmp.le.s32.totalorder 2, %s9
      // Predicated region
      $region83: #{_lambda_.11} parent=5 // pred_check
        %p639 = pneg %p638
      $region84: #{_lambda_.11} parent=5 // pred_check_branch
        %641 = sbr.rel (%p639) target = $region86
      $region85: #{_lambda_.11} parent=5 // pred_region
        %s642 = ssub.s32 %s9, 2
        // Predicated region
        $region87: #{_lambda_.11} parent=85 // pred_check
          %p643 = pneg %p125
        $region88: #{_lambda_.11} parent=85 // pred_check_branch
          %645 = sbr.rel (%p643) target = $region90
        $region89: #{_lambda_.11} parent=85 // pred_region
          %s646 = smul.u32 8, %s20
          %p647 = scmp.lt.s32.totalorder %s646, 15
          %s648 = scalar_select %p647, %s646, 15
          %s649 = smul.addr %s648, 4
          %s650 = scalar_lea.vmem %s3, %s649
        $region90: #{_lambda_.11} parent=85 // pred_fallthru
          _
      $region86: #{_lambda_.11} parent=5 // pred_fallthru
        _
    $region6: #{_lambda_.11} parent=1 // loop_footer
      %s13 = sadd.s32 1, %s9
    $region7: #{_lambda_.11} parent=1 // loop_footer_branch
      %8 = sbr.rel target = $region3
    $region8: #{_lambda_.11} parent=1 // loop_exit
      _

// kernel: _lambda_.12
$region0: #{_lambda_.12}
  #allocation0 [shape = 'u32[]', space=smem, size = 0x4, offset = 0x4, fixed_abs, tag = 'smem constant byte address 0x4 - core index']
  #allocation1 [shape = 'u32[144,128]{1,0:T(1,128)}', space=vmem, size = 0x12000, scoped, tag = 'internal scratch']
  #allocation2 [shape = 'f32[64,128]{1,0:T(8,128)}', space=vmem, size = 0x8000, scoped, tag = 'scratch operand']
  %s0 = inlined_call_operand.vmem [shape: bf16[128,512], index: 0, kind: input, shape index: {}]
  %s1 = inlined_call_operand.vmem [shape: bf16[512,128], index: 1, kind: input, shape index: {}]
  %s2 = inlined_call_operand.vmem [shape: f32[1,128], index: 2, kind: input, shape index: {}]
  %s3 = inlined_call_operand.vmem [shape: bf16[128,128], index: 3, kind: output, shape index: {}]
  %s4 = sld [smem:[#allocation0]]
  $region91: #{_lambda_.12} parent=0
    _
  %s6 = ssub.s32 1, %s4
  %s7 = scalar_select 0, %s6, %s4
  $region1: #{_lambda_.12} parent=0
    #allocation3 [shape = 'u8[65536]{0}', space=vmem, size = 0x10000, scoped, tag = 'input window, operand 0']
    loop: start=0, step=1, limit=6
    $region2: #{_lambda_.12} parent=1 // loop_pre_header
      _
    $region3: #{_lambda_.12} parent=1 // loop_header
      %s9 = sphi 0, %s13
      %p10 = scmp.ge.s32.totalorder %s9, 6
      %s16 = sphi 0, %s28
      %s17 = sphi 0, %s24
      %s18 = sphi 0, %s16
      %s19 = sphi 0, %s17
      %s20 = sphi 0, %s18
      %s21 = sphi 0, %s19
      %s33 = sphi 0, %s35
      %s36 = sphi 0, %s33
      %s37 = sphi 0, %s36
      %s53 = sphi 0, %s37
      %s59 = sphi 0, %s61
      %s62 = sphi 0, %s59
      %s63 = sphi 0, %s62
      %s79 = sphi 0, %s63
      %s83 = sphi 0, %s83
      %s85 = sphi 0, %s83
      %s86 = sphi 0, %s85
      %s100 = sphi 0, %s86
      %s106 = sphi 0, %s108
      %s109 = sphi 0, %s106
      %s110 = sphi 0, %s109
      %s126 = sphi 0, %s110
    $region4: #{_lambda_.12} parent=1 // loop_header_branch
      %12 = sbr.rel (%p10) target = $region8
    $region5: #{_lambda_.12} parent=1 // loop_body
      %s14 = ssub.s32 %s9, 1
      %s15 = ssub.s32 %s9, 2
      %s22 = sadd.s32 1, %s17
      %p23 = scmp.ge.s32.totalorder %s22, 2
      %s24 = scalar_select %p23, 0, %s22
      %s25 = sadd.s32 1, %s16
      %s26 = scalar_select %p23, %s25, %s16
      %p27 = scmp.ge.s32.totalorder %s26, 2
      %s28 = scalar_select %p27, 0, %s26
      %s29 = ssub.s32 %s16, %s28
      %s30 = ssub.s32 %s17, %s24
      %s31 = sor.u32 %s29, %s30
      %p32 = scmp.eq.s32.totalorder %s31, 0
      %s34 = sadd.s32 %s33, 1
      %s35 = scalar_select %p32, %s33, %s34
      %p38 = pneg %p32
      %p39 = scmp.eq.s32.totalorder %s9, 3
      %p40 = por %p38, %p39
      %p41 = scmp.ne.s32.totalorder %s33, %s36
      %p42 = scmp.eq.s32.totalorder %s9, 0
      %p43 = por %p41, %p42
      %p44 = scmp.ne.s32.totalorder %s33, %s36
      %p45 = scmp.eq.s32.totalorder %s14, 3
      %p46 = por %p44, %p45
      %p47 = scmp.ne.s32.totalorder %s36, %s37
      %p48 = scmp.eq.s32.totalorder %s14, 0
      %p49 = por %p47, %p48
      %p50 = scmp.ne.s32.totalorder %s36, %s37
      %p51 = scmp.eq.s32.totalorder %s15, 3
      %p52 = por %p50, %p51
      %p54 = scmp.ne.s32.totalorder %s37, %s53
      %p55 = scmp.eq.s32.totalorder %s15, 0
      %p56 = por %p54, %p55
      %s57 = ssub.s32 %s17, %s24
      %p58 = scmp.eq.s32.totalorder %s57, 0
      %s60 = sadd.s32 %s59, 1
      %s61 = scalar_select %p58, %s59, %s60
      %p64 = pneg %p58
      %p65 = scmp.eq.s32.totalorder %s9, 3
      %p66 = por %p64, %p65
      %p67 = scmp.ne.s32.totalorder %s59, %s62
      %p68 = scmp.eq.s32.totalorder %s9, 0
      %p69 = por %p67, %p68
      %p70 = scmp.ne.s32.totalorder %s59, %s62
      %p71 = scmp.eq.s32.totalorder %s14, 3
      %p72 = por %p70, %p71
      %p73 = scmp.ne.s32.totalorder %s62, %s63
      %p74 = scmp.eq.s32.totalorder %s14, 0
      %p75 = por %p73, %p74
      %p76 = scmp.ne.s32.totalorder %s62, %s63
      %p77 = scmp.eq.s32.totalorder %s15, 3
      %p78 = por %p76, %p77
      %p80 = scmp.ne.s32.totalorder %s63, %s79
      %p81 = scmp.eq.s32.totalorder %s15, 0
      %p82 = por %p80, %p81
      %s84 = sadd.s32 %s83, 1
      %p87 = scmp.eq.s32.totalorder %s9, 3
      %p88 = scmp.ne.s32.totalorder %s83, %s85
      %p89 = scmp.eq.s32.totalorder %s9, 0
      %p90 = por %p88, %p89
      %p91 = scmp.ne.s32.totalorder %s83, %s85
      %p92 = scmp.eq.s32.totalorder %s14, 3
      %p93 = por %p91, %p92
      %p94 = scmp.ne.s32.totalorder %s85, %s86
      %p95 = scmp.eq.s32.totalorder %s14, 0
      %p96 = por %p94, %p95
      %p97 = scmp.ne.s32.totalorder %s85, %s86
      %p98 = scmp.eq.s32.totalorder %s15, 3
      %p99 = por %p97, %p98
      %p101 = scmp.ne.s32.totalorder %s86, %s100
      %p102 = scmp.eq.s32.totalorder %s15, 0
      %p103 = por %p101, %p102
      %s104 = ssub.s32 %s16, %s28
      %p105 = scmp.eq.s32.totalorder %s104, 0
      %s107 = sadd.s32 %s106, 1
      %s108 = scalar_select %p105, %s106, %s107
      %p111 = pneg %p105
      %p112 = scmp.eq.s32.totalorder %s9, 3
      %p113 = por %p111, %p112
      %p114 = scmp.ne.s32.totalorder %s106, %s109
      %p115 = scmp.eq.s32.totalorder %s9, 0
      %p116 = por %p114, %p115
      %p117 = scmp.ne.s32.totalorder %s106, %s109
      %p118 = scmp.eq.s32.totalorder %s14, 3
      %p119 = por %p117, %p118
      %p120 = scmp.ne.s32.totalorder %s109, %s110
      %p121 = scmp.eq.s32.totalorder %s14, 0
      %p122 = por %p120, %p121
      %p123 = scmp.ne.s32.totalorder %s109, %s110
      %p124 = scmp.eq.s32.totalorder %s15, 3
      %p125 = por %p123, %p124
      %p127 = scmp.ne.s32.totalorder %s110, %s126
      %p128 = scmp.eq.s32.totalorder %s15, 0
      %p129 = por %p127, %p128
      %p130 = scmp.le.s32.totalorder 1, %s9
      %p131 = scmp.lt.s32.totalorder %s9, 5
      %p132 = pnand %p130, %p131
      %p133 = pneg %p132
      // Predicated region
      $region9: #{_lambda_.12} parent=5 // pred_check
        _
      $region10: #{_lambda_.12} parent=5 // pred_check_branch
        %135 = sbr.rel (%p132) target = $region12
      $region11: #{_lambda_.12} parent=5 // pred_region
        %s136 = ssub.s32 %s9, 1
        // Predicated region
        $region13: #{_lambda_.12} parent=11 // pred_check
          %p137 = pneg %p96
        $region14: #{_lambda_.12} parent=11 // pred_check_branch
          %139 = sbr.rel (%p137) target = $region16
        $region15: #{_lambda_.12} parent=11 // pred_region
          _
        $region16: #{_lambda_.12} parent=11 // pred_fallthru
          _
      $region12: #{_lambda_.12} parent=5 // pred_fallthru
        _
      %p140 = scmp.lt.s32.totalorder %s9, 4
      // Predicated region
      $region17: #{_lambda_.12} parent=5 // pred_check
        %p141 = pneg %p140
      $region18: #{_lambda_.12} parent=5 // pred_check_branch
        %143 = sbr.rel (%p141) target = $region20
      $region19: #{_lambda_.12} parent=5 // pred_region
        // Predicated region
        $region21: #{_lambda_.12} parent=19 // pred_check
          %p144 = pneg %p43
        $region22: #{_lambda_.12} parent=19 // pred_check_branch
          %146 = sbr.rel (%p144) target = $region24
        $region23: #{_lambda_.12} parent=19 // pred_region
          %s147 = sand.u32 %s33, 1
          %s148 = sand.u32 %s33, 1
          %s149 = smul.addr %s148, 64
          %s150 = scalar_lea.vmem [#allocation3], %s149
          %s151 = smul.u32 8, %s16
          %s152 = smul.u32 2, %s17
          %s153 = smul.addr %s151, 4
          %s154 = sadd.s32 %s152, %s153
          %s155 = smul.addr %s154, 4
          %s156 = scalar_lea.vmem %s0, %s155
          // Predicated region
          $region25: #{_lambda_.12} parent=23 // pred_check
            _
          $region26: #{_lambda_.12} parent=23 // pred_check_branch
            %158 = sbr.rel (0) target = $region28
          $region27: #{_lambda_.12} parent=23 // pred_region
            // Predicated region
            $region29: #{_lambda_.12} parent=27 // pred_check
              _
            $region30: #{_lambda_.12} parent=27 // pred_check_branch
              %160 = sbr.rel (0) target = $region32
            $region31: #{_lambda_.12} parent=27 // pred_region
              // Predicated region
              $region44: #{_lambda_.12} parent=31 // pred_check
                _
              $region45: #{_lambda_.12} parent=31 // pred_check_branch
                %189 = sbr.rel (0) target = $region47
              $region46: #{_lambda_.12} parent=31 // pred_region
                loop: start=0, step=1, limit=1
                $region48: #{_lambda_.12} parent=46 // loop_pre_header
                  _
                $region49: #{_lambda_.12} parent=46 // loop_header
                  %s191 = sphi 0, %s195
                  %p192 = scmp.ge.s32.totalorder %s191, 1
                  %s196 = sphi %s156, %s156
                  %s197 = sphi %s150, %s150
                $region50: #{_lambda_.12} parent=46 // loop_header_branch
                  %194 = sbr.rel (%p192) target = $region54
                $region51: #{_lambda_.12} parent=46 // loop_body
                  %v198 = vld [vmem:[%s196] sm:$0xff]
                  %199 = vst [vmem:[%s197] sm:$0xff] %v198
                  %v200 = vld [vmem:[%s196 + $0x10] sm:$0xff]
                  %201 = vst [vmem:[%s197 + $0x8] sm:$0xff] %v200
                  %v202 = vld [vmem:[%s196 + $0x20] sm:$0xff]
                  %203 = vst [vmem:[%s197 + $0x10] sm:$0xff] %v202
                  %v204 = vld [vmem:[%s196 + $0x30] sm:$0xff]
                  %205 = vst [vmem:[%s197 + $0x18] sm:$0xff] %v204
                  %v206 = vld [vmem:[%s196 + $0x40] sm:$0xff]
                  %207 = vst [vmem:[%s197 + $0x20] sm:$0xff] %v206
                  %v208 = vld [vmem:[%s196 + $0x50] sm:$0xff]
                  %209 = vst [vmem:[%s197 + $0x28] sm:$0xff] %v208
                  %v210 = vld [vmem:[%s196 + $0x60] sm:$0xff]
                  %211 = vst [vmem:[%s197 + $0x30] sm:$0xff] %v210
                  %v212 = vld [vmem:[%s196 + $0x70] sm:$0xff]
                  %213 = vst [vmem:[%s197 + $0x38] sm:$0xff] %v212
                $region52: #{_lambda_.12} parent=46 // loop_footer
                  %s195 = sadd.s32 1, %s191
                $region53: #{_lambda_.12} parent=46 // loop_footer_branch
                  %190 = sbr.rel target = $region49
                $region54: #{_lambda_.12} parent=46 // loop_exit
                  _
              $region47: #{_lambda_.12} parent=31 // pred_fallthru
                _
              // Predicated region
              $region55: #{_lambda_.12} parent=31 // pred_check
                _
              $region56: #{_lambda_.12} parent=31 // pred_check_branch
                %215 = sbr.rel target = $region58
              $region57: #{_lambda_.12} parent=31 // pred_region
                _
              $region58: #{_lambda_.12} parent=31 // pred_fallthru
                _
            $region32: #{_lambda_.12} parent=27 // pred_fallthru
              _
            // Predicated region
            $region33: #{_lambda_.12} parent=27 // pred_check
              _
            $region34: #{_lambda_.12} parent=27 // pred_check_branch
              %162 = sbr.rel target = $region36
            $region35: #{_lambda_.12} parent=27 // pred_region
              loop: start=0, step=1, limit=1
              $region37: #{_lambda_.12} parent=35 // loop_pre_header
                _
              $region38: #{_lambda_.12} parent=35 // loop_header
                %s165 = sphi 0, %s169
                %p166 = scmp.ge.s32.totalorder %s165, 1
                %s170 = sphi %s156, %s156
                %s171 = sphi %s150, %s150
              $region39: #{_lambda_.12} parent=35 // loop_header_branch
                %168 = sbr.rel (%p166) target = $region43
              $region40: #{_lambda_.12} parent=35 // loop_body
                %v172 = vld [vmem:[%s170] sm:$0xff]
                %173 = vst [vmem:[%s171] sm:$0xff] %v172
                %v174 = vld [vmem:[%s170 + $0x10] sm:$0xff]
                %175 = vst [vmem:[%s171 + $0x8] sm:$0xff] %v174
                %v176 = vld [vmem:[%s170 + $0x20] sm:$0xff]
                %177 = vst [vmem:[%s171 + $0x10] sm:$0xff] %v176
                %v178 = vld [vmem:[%s170 + $0x30] sm:$0xff]
                %179 = vst [vmem:[%s171 + $0x18] sm:$0xff] %v178
                %v180 = vld [vmem:[%s170 + $0x40] sm:$0xff]
                %181 = vst [vmem:[%s171 + $0x20] sm:$0xff] %v180
                %v182 = vld [vmem:[%s170 + $0x50] sm:$0xff]
                %183 = vst [vmem:[%s171 + $0x28] sm:$0xff] %v182
                %v184 = vld [vmem:[%s170 + $0x60] sm:$0xff]
                %185 = vst [vmem:[%s171 + $0x30] sm:$0xff] %v184
                %v186 = vld [vmem:[%s170 + $0x70] sm:$0xff]
                %187 = vst [vmem:[%s171 + $0x38] sm:$0xff] %v186
              $region41: #{_lambda_.12} parent=35 // loop_footer
                %s169 = sadd.s32 1, %s165
              $region42: #{_lambda_.12} parent=35 // loop_footer_branch
                %164 = sbr.rel target = $region38
              $region43: #{_lambda_.12} parent=35 // loop_exit
                _
            $region36: #{_lambda_.12} parent=27 // pred_fallthru
              _
          $region28: #{_lambda_.12} parent=23 // pred_fallthru
            _
          %216 = vnop
        $region24: #{_lambda_.12} parent=19 // pred_fallthru
          _
        // Predicated region
        $region59: #{_lambda_.12} parent=19 // pred_check
          %p217 = pneg %p69
        $region60: #{_lambda_.12} parent=19 // pred_check_branch
          %219 = sbr.rel (%p217) target = $region62
        $region61: #{_lambda_.12} parent=19 // pred_region
          %s220 = smul.u32 32, %s17
          %p221 = scmp.lt.s32.totalorder %s220, 63
          %s222 = scalar_select %p221, %s220, 63
          %s223 = smul.addr %s222, 4
          %s224 = scalar_lea.vmem %s1, %s223
          %s225 = smul.u32 32, %s17
        $region62: #{_lambda_.12} parent=19 // pred_fallthru
          _
      $region20: #{_lambda_.12} parent=5 // pred_fallthru
        _
      %p226 = scmp.le.s32.totalorder 1, %s9
      %p227 = scmp.lt.s32.totalorder %s9, 5
      %p228 = pnand %p226, %p227
      %p229 = pneg %p228
      // Predicated region
      $region63: #{_lambda_.12} parent=5 // pred_check
        _
      $region64: #{_lambda_.12} parent=5 // pred_check_branch
        %231 = sbr.rel (%p228) target = $region66
      $region65: #{_lambda_.12} parent=5 // pred_region
        %s232 = ssub.s32 %s9, 1
        %s233 = sand.u32 %s36, 1
        %s234 = sand.u32 %s36, 1
        %s235 = smul.addr %s234, 64
        %s236 = scalar_lea.vmem [#allocation3], %s235
        // Predicated region
        $region67: #{_lambda_.12} parent=65 // pred_check
          %p237 = pneg %p49
        $region68: #{_lambda_.12} parent=65 // pred_check_branch
          %239 = sbr.rel (%p237) target = $region70
        $region69: #{_lambda_.12} parent=65 // pred_region
          _
        $region70: #{_lambda_.12} parent=65 // pred_fallthru
          _
        %s240 = sand.u32 %s36, 1
        %s241 = sand.u32 %s36, 1
        %s242 = smul.addr %s241, 64
        %s243 = scalar_lea.vmem [#allocation3], %s242
        %p244 = pneg %p49
        %p245 = pneg %p46
        %s246 = smul.u32 32, %s19
        %p247 = scmp.lt.s32.totalorder %s246, 63
        %s248 = scalar_select %p247, %s246, 63
        %s249 = smul.addr %s248, 4
        %s250 = scalar_lea.vmem %s1, %s249
        %p251 = pneg %p75
        %p252 = pneg %p72
        %p253 = pneg %p96
        %p254 = pneg %p93
        %p255 = pneg %p122
        %p256 = pneg %p119
        %s257 = smul.u32 8, %s18
        %p258 = scmp.lt.s32.totalorder %s257, 15
        %s259 = scalar_select %p258, %s257, 15
        %s260 = smul.addr %s259, 4
        %s261 = scalar_lea.vmem %s3, %s260
        %s262 = smul.u32 8, %s18
        %s263 = smul.u32 2, %s19
        %s264 = smul.u32 32, %s19
        %p265 = scmp.lt.s32.totalorder %s264, 63
        %s266 = scalar_select %p265, %s264, 63
        %s267 = smul.addr %s266, 4
        %s268 = scalar_lea.vmem %s1, %s267
        %s269 = smul.u32 32, %s19
        %s270 = smul.u32 8, %s18
        %p271 = scmp.lt.s32.totalorder %s270, 15
        %s272 = scalar_select %p271, %s270, 15
        %s273 = smul.addr %s272, 4
        %s274 = scalar_lea.vmem %s3, %s273
        %s275 = smul.u32 8, %s18
        %p277 = scmp.eq.s32.totalorder %s19, 0
        // Predicated region
        $region71: #{_lambda_.12} parent=65 // pred_check
          %p278 = pneg %p277
        $region72: #{_lambda_.12} parent=65 // pred_check_branch
          %280 = sbr.rel (%p278) target = $region74
        $region73: #{_lambda_.12} parent=65 // pred_region
          %281 = vst [vmem:[#allocation2] sm:$0xff] 0.0
          %282 = vst [vmem:[#allocation2 + $0x8] sm:$0xff] 0.0
          %283 = vst [vmem:[#allocation2 + $0x10] sm:$0xff] 0.0
          %284 = vst [vmem:[#allocation2 + $0x18] sm:$0xff] 0.0
          %285 = vst [vmem:[#allocation2 + $0x20] sm:$0xff] 0.0
          %286 = vst [vmem:[#allocation2 + $0x28] sm:$0xff] 0.0
          %287 = vst [vmem:[#allocation2 + $0x30] sm:$0xff] 0.0
          %288 = vst [vmem:[#allocation2 + $0x38] sm:$0xff] 0.0
        $region74: #{_lambda_.12} parent=65 // pred_fallthru
          _
        %v289 = vld [vmem:[#allocation2] sm:$0xff]
        %v290 = vld [vmem:[#allocation2 + $0x8] sm:$0xff]
        %v291 = vld [vmem:[#allocation2 + $0x10] sm:$0xff]
        %v292 = vld [vmem:[#allocation2 + $0x18] sm:$0xff]
        %v293 = vld [vmem:[#allocation2 + $0x20] sm:$0xff]
        %v294 = vld [vmem:[#allocation2 + $0x28] sm:$0xff]
        %v295 = vld [vmem:[#allocation2 + $0x30] sm:$0xff]
        %v296 = vld [vmem:[#allocation2 + $0x38] sm:$0xff]
        %v297 = vld [vmem:[%s236] sm:$0xff]
        %v298 = vld [vmem:[%s236 + $0x8] sm:$0xff]
        %v299 = vld [vmem:[%s236 + $0x10] sm:$0xff]
        %v300 = vld [vmem:[%s236 + $0x18] sm:$0xff]
        %v301 = vld [vmem:[%s236 + $0x20] sm:$0xff]
        %v302 = vld [vmem:[%s236 + $0x28] sm:$0xff]
        %v303 = vld [vmem:[%s236 + $0x30] sm:$0xff]
        %v304 = vld [vmem:[%s236 + $0x38] sm:$0xff]
        %v305 = vld [vmem:[%s268] sm:$0xf]
        %v306 = vld [vmem:[%s268 + $0x4] sm:$0xf]
        %v307 = vld [vmem:[%s268 + $0x8] sm:$0xf]
        %v308 = vld [vmem:[%s268 + $0xc] sm:$0xf]
        %v309 = vld [vmem:[%s268 + $0x10] sm:$0xf]
        %v310 = vld [vmem:[%s268 + $0x14] sm:$0xf]
        %v311 = vld [vmem:[%s268 + $0x18] sm:$0xf]
        %v312 = vld [vmem:[%s268 + $0x1c] sm:$0xf]
        %v313 = vld [vmem:[%s268 + $0x20] sm:$0xf]
        %v314 = vld [vmem:[%s268 + $0x24] sm:$0xf]
        %v315 = vld [vmem:[%s268 + $0x28] sm:$0xf]
        %v316 = vld [vmem:[%s268 + $0x2c] sm:$0xf]
        %v317 = vld [vmem:[%s268 + $0x30] sm:$0xf]
        %v318 = vld [vmem:[%s268 + $0x34] sm:$0xf]
        %v319 = vld [vmem:[%s268 + $0x38] sm:$0xf]
        %v320 = vld [vmem:[%s268 + $0x3c] sm:$0xf]
        %v321 = vld [vmem:[%s268 + $0x40] sm:$0xf]
        %v322 = vld [vmem:[%s268 + $0x44] sm:$0xf]
        %v323 = vld [vmem:[%s268 + $0x48] sm:$0xf]
        %v324 = vld [vmem:[%s268 + $0x4c] sm:$0xf]
        %v325 = vld [vmem:[%s268 + $0x50] sm:$0xf]
        %v326 = vld [vmem:[%s268 + $0x54] sm:$0xf]
        %v327 = vld [vmem:[%s268 + $0x58] sm:$0xf]
        %v328 = vld [vmem:[%s268 + $0x5c] sm:$0xf]
        %v329 = vld [vmem:[%s268 + $0x60] sm:$0xf]
        %v330 = vld [vmem:[%s268 + $0x64] sm:$0xf]
        %v331 = vld [vmem:[%s268 + $0x68] sm:$0xf]
        %v332 = vld [vmem:[%s268 + $0x6c] sm:$0xf]
        %v333 = vld [vmem:[%s268 + $0x70] sm:$0xf]
        %v334 = vld [vmem:[%s268 + $0x74] sm:$0xf]
        %v335 = vld [vmem:[%s268 + $0x78] sm:$0xf]
        %v336 = vld [vmem:[%s268 + $0x7c] sm:$0xf]
        %v345 = vunpack.c.l.b16 %v297
        %v346 = vunpack.c.h.b16 %v297
        %v347 = vunpack.c.l.b16 %v298
        %v348 = vunpack.c.h.b16 %v298
        %v349 = vunpack.c.l.b16 %v299
        %v350 = vunpack.c.h.b16 %v299
        %v351 = vunpack.c.l.b16 %v300
        %v352 = vunpack.c.h.b16 %v300
        %v353 = vunpack.c.l.b16 %v301
        %v354 = vunpack.c.h.b16 %v301
        %v355 = vunpack.c.l.b16 %v302
        %v356 = vunpack.c.h.b16 %v302
        %v357 = vunpack.c.l.b16 %v303
        %v358 = vunpack.c.h.b16 %v303
        %v359 = vunpack.c.l.b16 %v304
        %v360 = vunpack.c.h.b16 %v304
        %v361 = vpack.c.b16 %v347, %v345
        %v362 = vpack.c.b16 %v348, %v346
        %v363 = vpack.c.b16 %v351, %v349
        %v364 = vpack.c.b16 %v352, %v350
        %v365 = vpack.c.b16 %v355, %v353
        %v366 = vpack.c.b16 %v356, %v354
        %v367 = vpack.c.b16 %v359, %v357
        %v368 = vpack.c.b16 %v360, %v358
        %v409 = vunpack.c.l.b16 %v305
        %v410 = vunpack.c.l.b16 %v306
        %v411 = vunpack.c.l.b16 %v307
        %v412 = vunpack.c.l.b16 %v308
        %v413 = vunpack.c.l.b16 %v309
        %v414 = vunpack.c.l.b16 %v310
        %v415 = vunpack.c.l.b16 %v311
        %v416 = vunpack.c.l.b16 %v312
        %v417 = vunpack.c.l.b16 %v313
        %v418 = vunpack.c.l.b16 %v314
        %v419 = vunpack.c.l.b16 %v315
        %v420 = vunpack.c.l.b16 %v316
        %v421 = vunpack.c.l.b16 %v317
        %v422 = vunpack.c.l.b16 %v318
        %v423 = vunpack.c.l.b16 %v319
        %v424 = vunpack.c.l.b16 %v320
        %v425 = vunpack.c.l.b16 %v321
        %v426 = vunpack.c.l.b16 %v322
        %v427 = vunpack.c.l.b16 %v323
        %v428 = vunpack.c.l.b16 %v324
        %v429 = vunpack.c.l.b16 %v325
        %v430 = vunpack.c.l.b16 %v326
        %v431 = vunpack.c.l.b16 %v327
        %v432 = vunpack.c.l.b16 %v328
        %v433 = vunpack.c.l.b16 %v329
        %v434 = vunpack.c.l.b16 %v330
        %v435 = vunpack.c.l.b16 %v331
        %v436 = vunpack.c.l.b16 %v332
        %v437 = vunpack.c.l.b16 %v333
        %v438 = vunpack.c.l.b16 %v334
        %v439 = vunpack.c.l.b16 %v335
        %v440 = vunpack.c.l.b16 %v336
        %v441 = vpack.c.b16 %v410, %v409
        %v442 = vpack.c.b16 %v412, %v411
        %v443 = vpack.c.b16 %v414, %v413
        %v444 = vpack.c.b16 %v416, %v415
        %v445 = vpack.c.b16 %v418, %v417
        %v446 = vpack.c.b16 %v420, %v419
        %v447 = vpack.c.b16 %v422, %v421
        %v448 = vpack.c.b16 %v424, %v423
        %v449 = vpack.c.b16 %v426, %v425
        %v450 = vpack.c.b16 %v428, %v427
        %v451 = vpack.c.b16 %v430, %v429
        %v452 = vpack.c.b16 %v432, %v431
        %v453 = vpack.c.b16 %v434, %v433
        %v454 = vpack.c.b16 %v436, %v435
        %v455 = vpack.c.b16 %v438, %v437
        %v456 = vpack.c.b16 %v440, %v439
        %473 = vmatprep.subr.bf16.mxu0 0
        %474 = vmatpush1.bf16.msra.mxu0 %v441
        %475 = vmatprep.subr.bf16.mxu0 0
        %476 = vmatpush1.bf16.msra.mxu0 %v442
        %477 = vmatprep.subr.bf16.mxu0 0
        %478 = vmatpush1.bf16.msra.mxu0 %v443
        %479 = vmatprep.subr.bf16.mxu0 0
        %480 = vmatpush1.bf16.msra.mxu0 %v444
        %481 = vmatprep.subr.bf16.mxu0 0
        %482 = vmatpush1.bf16.msra.mxu0 %v445
        %483 = vmatprep.subr.bf16.mxu0 0
        %484 = vmatpush1.bf16.msra.mxu0 %v446
        %485 = vmatprep.subr.bf16.mxu0 0
        %486 = vmatpush1.bf16.msra.mxu0 %v447
        %487 = vmatprep.subr.bf16.mxu0 0
        %488 = vmatpush1.bf16.msra.mxu0 %v448
        %489 = vmatprep.subr.bf16.mxu0 0
        %490 = vmatpush1.bf16.msra.mxu0 %v449
        %491 = vmatprep.subr.bf16.mxu0 0
        %492 = vmatpush1.bf16.msra.mxu0 %v450
        %493 = vmatprep.subr.bf16.mxu0 0
        %494 = vmatpush1.bf16.msra.mxu0 %v451
        %495 = vmatprep.subr.bf16.mxu0 0
        %496 = vmatpush1.bf16.msra.mxu0 %v452
        %497 = vmatprep.subr.bf16.mxu0 0
        %498 = vmatpush1.bf16.msra.mxu0 %v453
        %499 = vmatprep.subr.bf16.mxu0 0
        %500 = vmatpush1.bf16.msra.mxu0 %v454
        %501 = vmatprep.subr.bf16.mxu0 0
        %502 = vmatpush1.bf16.msra.mxu0 %v455
        %503 = vmatprep.subr.bf16.mxu0 0
        %504 = vmatpush1.bf16.msra.mxu0 %v456
        %505 = vmatprep.mubr.bf16.mxu0 %v362
        %506 = vmatmul.mubr.bf16.gmra.mrb[0].mxu0 %v361
        %v507 = vpop.f32.mrb[0].mxu0
        %v508 = vadd.f32 0.0, %v507
        %v509 = vpop.f32.mrb[0].mxu0
        %v510 = vpop.f32.mrb[0].mxu0
        %v511 = vadd.f32 0.0, %v510
        %v512 = vpop.f32.mrb[0].mxu0
        %513 = vmatprep.mubr.bf16.mxu0 %v364
        %514 = vmatmul.mubr.bf16.gmra.mrb[0].mxu0 %v363
        %v515 = vpop.f32.mrb[0].mxu0
        %v516 = vadd.f32 0.0, %v515
        %v517 = vpop.f32.mrb[0].mxu0
        %v518 = vpop.f32.mrb[0].mxu0
        %v519 = vadd.f32 0.0, %v518
        %v520 = vpop.f32.mrb[0].mxu0
        %521 = vmatprep.mubr.bf16.mxu0 %v366
        %522 = vmatmul.mubr.bf16.gmra.mrb[0].mxu0 %v365
        %v523 = vpop.f32.mrb[0].mxu0
        %v524 = vadd.f32 0.0, %v523
        %v525 = vpop.f32.mrb[0].mxu0
        %v526 = vpop.f32.mrb[0].mxu0
        %v527 = vadd.f32 0.0, %v526
        %v528 = vpop.f32.mrb[0].mxu0
        %529 = vmatprep.mubr.bf16.mxu0 %v368
        %530 = vmatmul.mubr.bf16.gmra.mrb[0].mxu0 %v367
        %v531 = vpop.f32.mrb[0].mxu0
        %v532 = vadd.f32 0.0, %v531
        %v533 = vpop.f32.mrb[0].mxu0
        %v534 = vpop.f32.mrb[0].mxu0
        %v535 = vadd.f32 0.0, %v534
        %v536 = vpop.f32.mrb[0].mxu0
        %537 = vdwg.mxu0
        %v538 = vadd.f32 %v289, %v508
        %v539 = vadd.f32 %v290, %v511
        %v540 = vadd.f32 %v291, %v516
        %v541 = vadd.f32 %v292, %v519
        %v542 = vadd.f32 %v293, %v524
        %v543 = vadd.f32 %v294, %v527
        %v544 = vadd.f32 %v295, %v532
        %v545 = vadd.f32 %v296, %v535
        %546 = vst [vmem:[#allocation2] sm:$0xff] %v538
        %547 = vst [vmem:[#allocation2 + $0x8] sm:$0xff] %v539
        %548 = vst [vmem:[#allocation2 + $0x10] sm:$0xff] %v540
        %549 = vst [vmem:[#allocation2 + $0x18] sm:$0xff] %v541
        %550 = vst [vmem:[#allocation2 + $0x20] sm:$0xff] %v542
        %551 = vst [vmem:[#allocation2 + $0x28] sm:$0xff] %v543
        %552 = vst [vmem:[#allocation2 + $0x30] sm:$0xff] %v544
        %553 = vst [vmem:[#allocation2 + $0x38] sm:$0xff] %v545
        %p554 = scmp.eq.s32.totalorder %s19, 1
        // Predicated region
        $region75: #{_lambda_.12} parent=65 // pred_check
          %p555 = pneg %p554
        $region76: #{_lambda_.12} parent=65 // pred_check_branch
          %557 = sbr.rel (%p555) target = $region78
        $region77: #{_lambda_.12} parent=65 // pred_region
          %v558 = vld [vmem:[#allocation2] sm:$0xff]
          %v559 = vld [vmem:[#allocation2 + $0x8] sm:$0xff]
          %v560 = vld [vmem:[#allocation2 + $0x10] sm:$0xff]
          %v561 = vld [vmem:[#allocation2 + $0x18] sm:$0xff]
          %v562 = vld [vmem:[#allocation2 + $0x20] sm:$0xff]
          %v563 = vld [vmem:[#allocation2 + $0x28] sm:$0xff]
          %v564 = vld [vmem:[#allocation2 + $0x30] sm:$0xff]
          %v565 = vld [vmem:[#allocation2 + $0x38] sm:$0xff]
          %v566 = vld [vmem:[%s2] sm:$0x1]
          %v568 = vlaneseq
          %v569 = vshrl.u32 %v568, 7
          %v570 = vsub.s32 0, %v569
          %v571 = vrot.slane %v566, %v570
          %v573 = vadd.f32 %v558, %v571
          %v574 = vadd.f32 %v559, %v571
          %v575 = vadd.f32 %v560, %v571
          %v576 = vadd.f32 %v561, %v571
          %v577 = vadd.f32 %v562, %v571
          %v578 = vadd.f32 %v563, %v571
          %v579 = vadd.f32 %v564, %v571
          %v580 = vadd.f32 %v565, %v571
          %v581 = vpack.c.bf16 %v574, %v573
          %v582 = vpack.c.bf16 %v576, %v575
          %v583 = vpack.c.bf16 %v578, %v577
          %v584 = vpack.c.bf16 %v580, %v579
          %v589 = vunpack.c.l.b16 %v581
          %v590 = vunpack.c.h.b16 %v581
          %v591 = vunpack.c.l.b16 %v582
          %v592 = vunpack.c.h.b16 %v582
          %v593 = vunpack.c.l.b16 %v583
          %v594 = vunpack.c.h.b16 %v583
          %v595 = vunpack.c.l.b16 %v584
          %v596 = vunpack.c.h.b16 %v584
          %v597 = vpack.c.b16 %v589, %v589
          %v598 = vpack.c.b16 %v590, %v590
          %v599 = vpack.c.b16 %v591, %v591
          %v600 = vpack.c.b16 %v592, %v592
          %v601 = vpack.c.b16 %v593, %v593
          %v602 = vpack.c.b16 %v594, %v594
          %v603 = vpack.c.b16 %v595, %v595
          %v604 = vpack.c.b16 %v596, %v596
          %613 = vst [vmem:[%s274] sm:$0xf] %v597
          %614 = vst [vmem:[%s274 + $0x4] sm:$0xf] %v598
          %615 = vst [vmem:[%s274 + $0x8] sm:$0xf] %v599
          %616 = vst [vmem:[%s274 + $0xc] sm:$0xf] %v600
          %617 = vst [vmem:[%s274 + $0x10] sm:$0xf] %v601
          %618 = vst [vmem:[%s274 + $0x14] sm:$0xf] %v602
          %619 = vst [vmem:[%s274 + $0x18] sm:$0xf] %v603
          %620 = vst [vmem:[%s274 + $0x1c] sm:$0xf] %v604
        $region78: #{_lambda_.12} parent=65 // pred_fallthru
          _
        %s621 = smul.u32 8, %s18
        %p622 = scmp.lt.s32.totalorder %s621, 15
        %s623 = scalar_select %p622, %s621, 15
        %s624 = smul.addr %s623, 4
        %s625 = scalar_lea.vmem %s3, %s624
        // Predicated region
        $region79: #{_lambda_.12} parent=65 // pred_check
          %p626 = pneg %p119
        $region80: #{_lambda_.12} parent=65 // pred_check_branch
          %628 = sbr.rel (%p626) target = $region82
        $region81: #{_lambda_.12} parent=65 // pred_region
          %s629 = smul.u32 8, %s18
        $region82: #{_lambda_.12} parent=65 // pred_fallthru
          _
      $region66: #{_lambda_.12} parent=5 // pred_fallthru
        _
      %p630 = scmp.le.s32.totalorder 2, %s9
      // Predicated region
      $region83: #{_lambda_.12} parent=5 // pred_check
        %p631 = pneg %p630
      $region84: #{_lambda_.12} parent=5 // pred_check_branch
        %633 = sbr.rel (%p631) target = $region86
      $region85: #{_lambda_.12} parent=5 // pred_region
        %s634 = ssub.s32 %s9, 2
        // Predicated region
        $region87: #{_lambda_.12} parent=85 // pred_check
          %p635 = pneg %p125
        $region88: #{_lambda_.12} parent=85 // pred_check_branch
          %637 = sbr.rel (%p635) target = $region90
        $region89: #{_lambda_.12} parent=85 // pred_region
          %s638 = smul.u32 8, %s20
          %p639 = scmp.lt.s32.totalorder %s638, 15
          %s640 = scalar_select %p639, %s638, 15
          %s641 = smul.addr %s640, 4
          %s642 = scalar_lea.vmem %s3, %s641
        $region90: #{_lambda_.12} parent=85 // pred_fallthru
          _
      $region86: #{_lambda_.12} parent=5 // pred_fallthru
        _
    $region6: #{_lambda_.12} parent=1 // loop_footer
      %s13 = sadd.s32 1, %s9
    $region7: #{_lambda_.12} parent=1 // loop_footer_branch
      %8 = sbr.rel target = $region3
    $region8: #{_lambda_.12} parent=1 // loop_exit
      _

// kernel: _lambda_.14
$region0: #{_lambda_.14}
  #allocation0 [shape = 'u32[]', space=smem, size = 0x4, offset = 0x4, fixed_abs, tag = 'smem constant byte address 0x4 - core index']
  #allocation1 [shape = 'u32[144,128]{1,0:T(1,128)}', space=vmem, size = 0x12000, scoped, tag = 'internal scratch']
  #allocation2 [shape = 'f32[64,128]{1,0:T(8,128)}', space=vmem, size = 0x8000, scoped, tag = 'scratch operand']
  %s0 = inlined_call_operand.vmem [shape: bf16[128,128], index: 0, kind: input, shape index: {}]
  %s1 = inlined_call_operand.vmem [shape: bf16[128,128], index: 1, kind: input, shape index: {}]
  %s2 = inlined_call_operand.vmem [shape: f32[1,128], index: 2, kind: input, shape index: {}]
  %s3 = inlined_call_operand.vmem [shape: bf16[128,128], index: 3, kind: input, shape index: {}]
  %s4 = inlined_call_operand.vmem [shape: bf16[128,128], index: 4, kind: output, shape index: {}]
  %s5 = sld [smem:[#allocation0]]
  $region57: #{_lambda_.14} parent=0
    _
  %s7 = ssub.s32 1, %s5
  %s8 = scalar_select 0, %s7, %s5
  loop: start=0, step=1, limit=4
  $region2: #{_lambda_.14} parent=0 // loop_pre_header
    _
  $region3: #{_lambda_.14} parent=0 // loop_header
    %s10 = sphi 0, %s14
    %p11 = scmp.ge.s32.totalorder %s10, 4
    %s17 = sphi 0, %s29
    %s18 = sphi 0, %s25
    %s19 = sphi 0, %s17
    %s20 = sphi 0, %s18
    %s21 = sphi 0, %s19
    %s22 = sphi 0, %s20
    %s34 = sphi 0, %s36
    %s37 = sphi 0, %s34
    %s38 = sphi 0, %s37
    %s54 = sphi 0, %s38
    %s60 = sphi 0, %s62
    %s63 = sphi 0, %s60
    %s64 = sphi 0, %s63
    %s80 = sphi 0, %s64
    %s84 = sphi 0, %s84
    %s86 = sphi 0, %s84
    %s87 = sphi 0, %s86
    %s101 = sphi 0, %s87
    %s107 = sphi 0, %s109
    %s110 = sphi 0, %s107
    %s111 = sphi 0, %s110
    %s127 = sphi 0, %s111
    %s133 = sphi 0, %s135
    %s136 = sphi 0, %s133
    %s137 = sphi 0, %s136
    %s153 = sphi 0, %s137
  $region4: #{_lambda_.14} parent=0 // loop_header_branch
    %13 = sbr.rel (%p11) target = $region8
  $region5: #{_lambda_.14} parent=0 // loop_body
    %s15 = ssub.s32 %s10, 1
    %s16 = ssub.s32 %s10, 2
    %s23 = sadd.s32 1, %s18
    %p24 = scmp.ge.s32.totalorder %s23, 1
    %s25 = scalar_select %p24, 0, %s23
    %s26 = sadd.s32 1, %s17
    %s27 = scalar_select %p24, %s26, %s17
    %p28 = scmp.ge.s32.totalorder %s27, 2
    %s29 = scalar_select %p28, 0, %s27
    %s30 = ssub.s32 %s17, %s29
    %s31 = ssub.s32 %s18, %s25
    %s32 = sor.u32 %s30, %s31
    %p33 = scmp.eq.s32.totalorder %s32, 0
    %s35 = sadd.s32 %s34, 1
    %s36 = scalar_select %p33, %s34, %s35
    %p39 = pneg %p33
    %p40 = scmp.eq.s32.totalorder %s10, 1
    %p41 = por %p39, %p40
    %p42 = scmp.ne.s32.totalorder %s34, %s37
    %p43 = scmp.eq.s32.totalorder %s10, 0
    %p44 = por %p42, %p43
    %p45 = scmp.ne.s32.totalorder %s34, %s37
    %p46 = scmp.eq.s32.totalorder %s15, 1
    %p47 = por %p45, %p46
    %p48 = scmp.ne.s32.totalorder %s37, %s38
    %p49 = scmp.eq.s32.totalorder %s15, 0
    %p50 = por %p48, %p49
    %p51 = scmp.ne.s32.totalorder %s37, %s38
    %p52 = scmp.eq.s32.totalorder %s16, 1
    %p53 = por %p51, %p52
    %p55 = scmp.ne.s32.totalorder %s38, %s54
    %p56 = scmp.eq.s32.totalorder %s16, 0
    %p57 = por %p55, %p56
    %s58 = ssub.s32 %s18, %s25
    %p59 = scmp.eq.s32.totalorder %s58, 0
    %s61 = sadd.s32 %s60, 1
    %s62 = scalar_select %p59, %s60, %s61
    %p65 = pneg %p59
    %p66 = scmp.eq.s32.totalorder %s10, 1
    %p67 = por %p65, %p66
    %p68 = scmp.ne.s32.totalorder %s60, %s63
    %p69 = scmp.eq.s32.totalorder %s10, 0
    %p70 = por %p68, %p69
    %p71 = scmp.ne.s32.totalorder %s60, %s63
    %p72 = scmp.eq.s32.totalorder %s15, 1
    %p73 = por %p71, %p72
    %p74 = scmp.ne.s32.totalorder %s63, %s64
    %p75 = scmp.eq.s32.totalorder %s15, 0
    %p76 = por %p74, %p75
    %p77 = scmp.ne.s32.totalorder %s63, %s64
    %p78 = scmp.eq.s32.totalorder %s16, 1
    %p79 = por %p77, %p78
    %p81 = scmp.ne.s32.totalorder %s64, %s80
    %p82 = scmp.eq.s32.totalorder %s16, 0
    %p83 = por %p81, %p82
    %s85 = sadd.s32 %s84, 1
    %p88 = scmp.eq.s32.totalorder %s10, 1
    %p89 = scmp.ne.s32.totalorder %s84, %s86
    %p90 = scmp.eq.s32.totalorder %s10, 0
    %p91 = por %p89, %p90
    %p92 = scmp.ne.s32.totalorder %s84, %s86
    %p93 = scmp.eq.s32.totalorder %s15, 1
    %p94 = por %p92, %p93
    %p95 = scmp.ne.s32.totalorder %s86, %s87
    %p96 = scmp.eq.s32.totalorder %s15, 0
    %p97 = por %p95, %p96
    %p98 = scmp.ne.s32.totalorder %s86, %s87
    %p99 = scmp.eq.s32.totalorder %s16, 1
    %p100 = por %p98, %p99
    %p102 = scmp.ne.s32.totalorder %s87, %s101
    %p103 = scmp.eq.s32.totalorder %s16, 0
    %p104 = por %p102, %p103
    %s105 = ssub.s32 %s17, %s29
    %p106 = scmp.eq.s32.totalorder %s105, 0
    %s108 = sadd.s32 %s107, 1
    %s109 = scalar_select %p106, %s107, %s108
    %p112 = pneg %p106
    %p113 = scmp.eq.s32.totalorder %s10, 1
    %p114 = por %p112, %p113
    %p115 = scmp.ne.s32.totalorder %s107, %s110
    %p116 = scmp.eq.s32.totalorder %s10, 0
    %p117 = por %p115, %p116
    %p118 = scmp.ne.s32.totalorder %s107, %s110
    %p119 = scmp.eq.s32.totalorder %s15, 1
    %p120 = por %p118, %p119
    %p121 = scmp.ne.s32.totalorder %s110, %s111
    %p122 = scmp.eq.s32.totalorder %s15, 0
    %p123 = por %p121, %p122
    %p124 = scmp.ne.s32.totalorder %s110, %s111
    %p125 = scmp.eq.s32.totalorder %s16, 1
    %p126 = por %p124, %p125
    %p128 = scmp.ne.s32.totalorder %s111, %s127
    %p129 = scmp.eq.s32.totalorder %s16, 0
    %p130 = por %p128, %p129
    %s131 = ssub.s32 %s17, %s29
    %p132 = scmp.eq.s32.totalorder %s131, 0
    %s134 = sadd.s32 %s133, 1
    %s135 = scalar_select %p132, %s133, %s134
    %p138 = pneg %p132
    %p139 = scmp.eq.s32.totalorder %s10, 1
    %p140 = por %p138, %p139
    %p141 = scmp.ne.s32.totalorder %s133, %s136
    %p142 = scmp.eq.s32.totalorder %s10, 0
    %p143 = por %p141, %p142
    %p144 = scmp.ne.s32.totalorder %s133, %s136
    %p145 = scmp.eq.s32.totalorder %s15, 1
    %p146 = por %p144, %p145
    %p147 = scmp.ne.s32.totalorder %s136, %s137
    %p148 = scmp.eq.s32.totalorder %s15, 0
    %p149 = por %p147, %p148
    %p150 = scmp.ne.s32.totalorder %s136, %s137
    %p151 = scmp.eq.s32.totalorder %s16, 1
    %p152 = por %p150, %p151
    %p154 = scmp.ne.s32.totalorder %s137, %s153
    %p155 = scmp.eq.s32.totalorder %s16, 0
    %p156 = por %p154, %p155
    %p157 = scmp.le.s32.totalorder 1, %s10
    %p158 = scmp.lt.s32.totalorder %s10, 3
    %p159 = pnand %p157, %p158
    %p160 = pneg %p159
    // Predicated region
    $region9: #{_lambda_.14} parent=5 // pred_check
      _
    $region10: #{_lambda_.14} parent=5 // pred_check_branch
      %162 = sbr.rel (%p159) target = $region12
    $region11: #{_lambda_.14} parent=5 // pred_region
      %s163 = ssub.s32 %s10, 1
      // Predicated region
      $region13: #{_lambda_.14} parent=11 // pred_check
        %p164 = pneg %p76
      $region14: #{_lambda_.14} parent=11 // pred_check_branch
        %166 = sbr.rel (%p164) target = $region16
      $region15: #{_lambda_.14} parent=11 // pred_region
        %s167 = smul.u32 16, %s20
        %p168 = scmp.lt.s32.totalorder %s167, 15
        %s169 = scalar_select %p168, %s167, 15
        %s170 = smul.addr %s169, 4
        %s171 = scalar_lea.vmem %s1, %s170
        %s172 = smul.u32 16, %s20
      $region16: #{_lambda_.14} parent=11 // pred_fallthru
        _
      // Predicated region
      $region17: #{_lambda_.14} parent=11 // pred_check
        %p173 = pneg %p97
      $region18: #{_lambda_.14} parent=11 // pred_check_branch
        %175 = sbr.rel (%p173) target = $region20
      $region19: #{_lambda_.14} parent=11 // pred_region
        _
      $region20: #{_lambda_.14} parent=11 // pred_fallthru
        _
    $region12: #{_lambda_.14} parent=5 // pred_fallthru
      _
    %p176 = scmp.lt.s32.totalorder %s10, 2
    // Predicated region
    $region21: #{_lambda_.14} parent=5 // pred_check
      %p177 = pneg %p176
    $region22: #{_lambda_.14} parent=5 // pred_check_branch
      %179 = sbr.rel (%p177) target = $region24
    $region23: #{_lambda_.14} parent=5 // pred_region
      // Predicated region
      $region25: #{_lambda_.14} parent=23 // pred_check
        %p180 = pneg %p44
      $region26: #{_lambda_.14} parent=23 // pred_check_branch
        %182 = sbr.rel (%p180) target = $region28
      $region27: #{_lambda_.14} parent=23 // pred_region
        %s183 = smul.u32 8, %s17
        %p184 = scmp.lt.s32.totalorder %s183, 15
        %s185 = scalar_select %p184, %s183, 15
        %p186 = scmp.lt.s32.totalorder %s18, 0
        %s187 = scalar_select %p186, %s18, 0
        %s188 = sadd.s32 %s187, %s185
        %s189 = smul.addr %s188, 4
        %s190 = scalar_lea.vmem %s0, %s189
        %s191 = smul.u32 8, %s17
      $region28: #{_lambda_.14} parent=23 // pred_fallthru
        _
      // Predicated region
      $region29: #{_lambda_.14} parent=23 // pred_check
        %p192 = pneg %p117
      $region30: #{_lambda_.14} parent=23 // pred_check_branch
        %194 = sbr.rel (%p192) target = $region32
      $region31: #{_lambda_.14} parent=23 // pred_region
        %s195 = smul.u32 8, %s17
        %p196 = scmp.lt.s32.totalorder %s195, 15
        %s197 = scalar_select %p196, %s195, 15
        %s198 = smul.addr %s197, 4
        %s199 = scalar_lea.vmem %s3, %s198
        %s200 = smul.u32 8, %s17
      $region32: #{_lambda_.14} parent=23 // pred_fallthru
        _
    $region24: #{_lambda_.14} parent=5 // pred_fallthru
      _
    %p201 = scmp.le.s32.totalorder 1, %s10
    %p202 = scmp.lt.s32.totalorder %s10, 3
    %p203 = pnand %p201, %p202
    %p204 = pneg %p203
    // Predicated region
    $region33: #{_lambda_.14} parent=5 // pred_check
      _
    $region34: #{_lambda_.14} parent=5 // pred_check_branch
      %206 = sbr.rel (%p203) target = $region36
    $region35: #{_lambda_.14} parent=5 // pred_region
      %s207 = ssub.s32 %s10, 1
      %s208 = smul.u32 8, %s19
      %p209 = scmp.lt.s32.totalorder %s208, 15
      %s210 = scalar_select %p209, %s208, 15
      %p211 = scmp.lt.s32.totalorder %s20, 0
      %s212 = scalar_select %p211, %s20, 0
      %s213 = sadd.s32 %s212, %s210
      %s214 = smul.addr %s213, 4
      %s215 = scalar_lea.vmem %s0, %s214
      %p216 = pneg %p50
      %p217 = pneg %p47
      %s218 = smul.u32 16, %s20
      %p219 = scmp.lt.s32.totalorder %s218, 15
      %s220 = scalar_select %p219, %s218, 15
      %s221 = smul.addr %s220, 4
      %s222 = scalar_lea.vmem %s1, %s221
      %p223 = pneg %p76
      %p224 = pneg %p73
      %p225 = pneg %p97
      %p226 = pneg %p94
      %s227 = smul.u32 8, %s19
      %p228 = scmp.lt.s32.totalorder %s227, 15
      %s229 = scalar_select %p228, %s227, 15
      %s230 = smul.addr %s229, 4
      %s231 = scalar_lea.vmem %s3, %s230
      %p232 = pneg %p123
      %p233 = pneg %p120
      %p234 = pneg %p149
      %p235 = pneg %p146
      %s236 = smul.u32 8, %s19
      %p237 = scmp.lt.s32.totalorder %s236, 15
      %s238 = scalar_select %p237, %s236, 15
      %s239 = smul.addr %s238, 4
      %s240 = scalar_lea.vmem %s4, %s239
      %s241 = smul.u32 8, %s19
      %p242 = scmp.lt.s32.totalorder %s241, 15
      %s243 = scalar_select %p242, %s241, 15
      %p244 = scmp.lt.s32.totalorder %s20, 0
      %s245 = scalar_select %p244, %s20, 0
      %s246 = sadd.s32 %s245, %s243
      %s247 = smul.addr %s246, 4
      %s248 = scalar_lea.vmem %s0, %s247
      %s249 = smul.u32 8, %s19
      %s250 = smul.u32 16, %s20
      %p251 = scmp.lt.s32.totalorder %s250, 15
      %s252 = scalar_select %p251, %s250, 15
      %s253 = smul.addr %s252, 4
      %s254 = scalar_lea.vmem %s1, %s253
      %s255 = smul.u32 16, %s20
      %s256 = smul.u32 8, %s19
      %p257 = scmp.lt.s32.totalorder %s256, 15
      %s258 = scalar_select %p257, %s256, 15
      %s259 = smul.addr %s258, 4
      %s260 = scalar_lea.vmem %s3, %s259
      %s261 = smul.u32 8, %s19
      %s262 = smul.u32 8, %s19
      %p263 = scmp.lt.s32.totalorder %s262, 15
      %s264 = scalar_select %p263, %s262, 15
      %s265 = smul.addr %s264, 4
      %s266 = scalar_lea.vmem %s4, %s265
      %s267 = smul.u32 8, %s19
      %p269 = scmp.eq.s32.totalorder %s20, 0
      // Predicated region
      $region37: #{_lambda_.14} parent=35 // pred_check
        %p270 = pneg %p269
      $region38: #{_lambda_.14} parent=35 // pred_check_branch
        %272 = sbr.rel (%p270) target = $region40
      $region39: #{_lambda_.14} parent=35 // pred_region
        %273 = vst [vmem:[#allocation2] sm:$0xff] 0.0
        %274 = vst [vmem:[#allocation2 + $0x8] sm:$0xff] 0.0
        %275 = vst [vmem:[#allocation2 + $0x10] sm:$0xff] 0.0
        %276 = vst [vmem:[#allocation2 + $0x18] sm:$0xff] 0.0
        %277 = vst [vmem:[#allocation2 + $0x20] sm:$0xff] 0.0
        %278 = vst [vmem:[#allocation2 + $0x28] sm:$0xff] 0.0
        %279 = vst [vmem:[#allocation2 + $0x30] sm:$0xff] 0.0
        %280 = vst [vmem:[#allocation2 + $0x38] sm:$0xff] 0.0
      $region40: #{_lambda_.14} parent=35 // pred_fallthru
        _
      %v281 = vld [vmem:[#allocation2] sm:$0xff]
      %v282 = vld [vmem:[#allocation2 + $0x8] sm:$0xff]
      %v283 = vld [vmem:[#allocation2 + $0x10] sm:$0xff]
      %v284 = vld [vmem:[#allocation2 + $0x18] sm:$0xff]
      %v285 = vld [vmem:[#allocation2 + $0x20] sm:$0xff]
      %v286 = vld [vmem:[#allocation2 + $0x28] sm:$0xff]
      %v287 = vld [vmem:[#allocation2 + $0x30] sm:$0xff]
      %v288 = vld [vmem:[#allocation2 + $0x38] sm:$0xff]
      %v289 = vld [vmem:[%s248] sm:$0xf]
      %v290 = vld [vmem:[%s248 + $0x4] sm:$0xf]
      %v291 = vld [vmem:[%s248 + $0x8] sm:$0xf]
      %v292 = vld [vmem:[%s248 + $0xc] sm:$0xf]
      %v293 = vld [vmem:[%s248 + $0x10] sm:$0xf]
      %v294 = vld [vmem:[%s248 + $0x14] sm:$0xf]
      %v295 = vld [vmem:[%s248 + $0x18] sm:$0xf]
      %v296 = vld [vmem:[%s248 + $0x1c] sm:$0xf]
      %v297 = vld [vmem:[%s254] sm:$0xf]
      %v298 = vld [vmem:[%s254 + $0x4] sm:$0xf]
      %v299 = vld [vmem:[%s254 + $0x8] sm:$0xf]
      %v300 = vld [vmem:[%s254 + $0xc] sm:$0xf]
      %v301 = vld [vmem:[%s254 + $0x10] sm:$0xf]
      %v302 = vld [vmem:[%s254 + $0x14] sm:$0xf]
      %v303 = vld [vmem:[%s254 + $0x18] sm:$0xf]
      %v304 = vld [vmem:[%s254 + $0x1c] sm:$0xf]
      %v305 = vld [vmem:[%s254 + $0x20] sm:$0xf]
      %v306 = vld [vmem:[%s254 + $0x24] sm:$0xf]
      %v307 = vld [vmem:[%s254 + $0x28] sm:$0xf]
      %v308 = vld [vmem:[%s254 + $0x2c] sm:$0xf]
      %v309 = vld [vmem:[%s254 + $0x30] sm:$0xf]
      %v310 = vld [vmem:[%s254 + $0x34] sm:$0xf]
      %v311 = vld [vmem:[%s254 + $0x38] sm:$0xf]
      %v312 = vld [vmem:[%s254 + $0x3c] sm:$0xf]
      %v321 = vunpack.c.l.b16 %v289
      %v322 = vunpack.c.l.b16 %v290
      %v323 = vunpack.c.l.b16 %v291
      %v324 = vunpack.c.l.b16 %v292
      %v325 = vunpack.c.l.b16 %v293
      %v326 = vunpack.c.l.b16 %v294
      %v327 = vunpack.c.l.b16 %v295
      %v328 = vunpack.c.l.b16 %v296
      %v329 = vpack.c.b16 %v322, %v321
      %v330 = vpack.c.b16 %v324, %v323
      %v331 = vpack.c.b16 %v326, %v325
      %v332 = vpack.c.b16 %v328, %v327
      %v353 = vunpack.c.l.b16 %v297
      %v354 = vunpack.c.l.b16 %v298
      %v355 = vunpack.c.l.b16 %v299
      %v356 = vunpack.c.l.b16 %v300
      %v357 = vunpack.c.l.b16 %v301
      %v358 = vunpack.c.l.b16 %v302
      %v359 = vunpack.c.l.b16 %v303
      %v360 = vunpack.c.l.b16 %v304
      %v361 = vunpack.c.l.b16 %v305
      %v362 = vunpack.c.l.b16 %v306
      %v363 = vunpack.c.l.b16 %v307
      %v364 = vunpack.c.l.b16 %v308
      %v365 = vunpack.c.l.b16 %v309
      %v366 = vunpack.c.l.b16 %v310
      %v367 = vunpack.c.l.b16 %v311
      %v368 = vunpack.c.l.b16 %v312
      %v369 = vpack.c.b16 %v354, %v353
      %v370 = vpack.c.b16 %v356, %v355
      %v371 = vpack.c.b16 %v358, %v357
      %v372 = vpack.c.b16 %v360, %v359
      %v373 = vpack.c.b16 %v362, %v361
      %v374 = vpack.c.b16 %v364, %v363
      %v375 = vpack.c.b16 %v366, %v365
      %v376 = vpack.c.b16 %v368, %v367
      %385 = vmatprep.subr.bf16.mxu0 0
      %386 = vmatpush1.bf16.msra.mxu0 %v369
      %387 = vmatprep.subr.bf16.mxu0 0
      %388 = vmatpush1.bf16.msra.mxu0 %v370
      %389 = vmatprep.subr.bf16.mxu0 0
      %390 = vmatpush1.bf16.msra.mxu0 %v371
      %391 = vmatprep.subr.bf16.mxu0 0
      %392 = vmatpush1.bf16.msra.mxu0 %v372
      %393 = vmatprep.subr.bf16.mxu0 0
      %394 = vmatpush1.bf16.msra.mxu0 %v373
      %395 = vmatprep.subr.bf16.mxu0 0
      %396 = vmatpush1.bf16.msra.mxu0 %v374
      %397 = vmatprep.subr.bf16.mxu0 0
      %398 = vmatpush1.bf16.msra.mxu0 %v375
      %399 = vmatprep.subr.bf16.mxu0 0
      %400 = vmatpush1.bf16.msra.mxu0 %v376
      %401 = vmatprep.subr.bf16.mxu0 0
      %402 = vmatpush1.bf16.msra.mxu0 0
      %403 = vmatprep.subr.bf16.mxu0 0
      %404 = vmatpush1.bf16.msra.mxu0 0
      %405 = vmatprep.subr.bf16.mxu0 0
      %406 = vmatpush1.bf16.msra.mxu0 0
      %407 = vmatprep.subr.bf16.mxu0 0
      %408 = vmatpush1.bf16.msra.mxu0 0
      %409 = vmatprep.subr.bf16.mxu0 0
      %410 = vmatpush1.bf16.msra.mxu0 0
      %411 = vmatprep.subr.bf16.mxu0 0
      %412 = vmatpush1.bf16.msra.mxu0 0
      %413 = vmatprep.subr.bf16.mxu0 0
      %414 = vmatpush1.bf16.msra.mxu0 0
      %415 = vmatprep.subr.bf16.mxu0 0
      %416 = vmatpush1.bf16.msra.mxu0 0
      %417 = vmatprep.mubr.bf16.mxu0 0
      %418 = vmatmul.mubr.bf16.gmra.mrb[0].mxu0 %v329
      %v419 = vpop.f32.mrb[0].mxu0
      %v420 = vadd.f32 0.0, %v419
      %v421 = vpop.f32.mrb[0].mxu0
      %v422 = vpop.f32.mrb[0].mxu0
      %v423 = vadd.f32 0.0, %v422
      %v424 = vpop.f32.mrb[0].mxu0
      %425 = vmatprep.mubr.bf16.mxu0 0
      %426 = vmatmul.mubr.bf16.gmra.mrb[0].mxu0 %v330
      %v427 = vpop.f32.mrb[0].mxu0
      %v428 = vadd.f32 0.0, %v427
      %v429 = vpop.f32.mrb[0].mxu0
      %v430 = vpop.f32.mrb[0].mxu0
      %v431 = vadd.f32 0.0, %v430
      %v432 = vpop.f32.mrb[0].mxu0
      %433 = vmatprep.mubr.bf16.mxu0 0
      %434 = vmatmul.mubr.bf16.gmra.mrb[0].mxu0 %v331
      %v435 = vpop.f32.mrb[0].mxu0
      %v436 = vadd.f32 0.0, %v435
      %v437 = vpop.f32.mrb[0].mxu0
      %v438 = vpop.f32.mrb[0].mxu0
      %v439 = vadd.f32 0.0, %v438
      %v440 = vpop.f32.mrb[0].mxu0
      %441 = vmatprep.mubr.bf16.mxu0 0
      %442 = vmatmul.mubr.bf16.gmra.mrb[0].mxu0 %v332
      %v443 = vpop.f32.mrb[0].mxu0
      %v444 = vadd.f32 0.0, %v443
      %v445 = vpop.f32.mrb[0].mxu0
      %v446 = vpop.f32.mrb[0].mxu0
      %v447 = vadd.f32 0.0, %v446
      %v448 = vpop.f32.mrb[0].mxu0
      %449 = vdwg.mxu0
      %v450 = vadd.f32 %v281, %v420
      %v451 = vadd.f32 %v282, %v423
      %v452 = vadd.f32 %v283, %v428
      %v453 = vadd.f32 %v284, %v431
      %v454 = vadd.f32 %v285, %v436
      %v455 = vadd.f32 %v286, %v439
      %v456 = vadd.f32 %v287, %v444
      %v457 = vadd.f32 %v288, %v447
      %458 = vst [vmem:[#allocation2] sm:$0xff] %v450
      %459 = vst [vmem:[#allocation2 + $0x8] sm:$0xff] %v451
      %460 = vst [vmem:[#allocation2 + $0x10] sm:$0xff] %v452
      %461 = vst [vmem:[#allocation2 + $0x18] sm:$0xff] %v453
      %462 = vst [vmem:[#allocation2 + $0x20] sm:$0xff] %v454
      %463 = vst [vmem:[#allocation2 + $0x28] sm:$0xff] %v455
      %464 = vst [vmem:[#allocation2 + $0x30] sm:$0xff] %v456
      %465 = vst [vmem:[#allocation2 + $0x38] sm:$0xff] %v457
      // Predicated region
      $region41: #{_lambda_.14} parent=35 // pred_check
        %p466 = pneg %p269
      $region42: #{_lambda_.14} parent=35 // pred_check_branch
        %468 = sbr.rel (%p466) target = $region44
      $region43: #{_lambda_.14} parent=35 // pred_region
        %v469 = vld [vmem:[#allocation2] sm:$0xff]
        %v470 = vld [vmem:[#allocation2 + $0x8] sm:$0xff]
        %v471 = vld [vmem:[#allocation2 + $0x10] sm:$0xff]
        %v472 = vld [vmem:[#allocation2 + $0x18] sm:$0xff]
        %v473 = vld [vmem:[#allocation2 + $0x20] sm:$0xff]
        %v474 = vld [vmem:[#allocation2 + $0x28] sm:$0xff]
        %v475 = vld [vmem:[#allocation2 + $0x30] sm:$0xff]
        %v476 = vld [vmem:[#allocation2 + $0x38] sm:$0xff]
        %v477 = vld [vmem:[%s2] sm:$0x1]
        %v479 = vlaneseq
        %v480 = vshrl.u32 %v479, 7
        %v481 = vsub.s32 0, %v480
        %v482 = vrot.slane %v477, %v481
        %v484 = vadd.f32 %v469, %v482
        %v485 = vadd.f32 %v470, %v482
        %v486 = vadd.f32 %v471, %v482
        %v487 = vadd.f32 %v472, %v482
        %v488 = vadd.f32 %v473, %v482
        %v489 = vadd.f32 %v474, %v482
        %v490 = vadd.f32 %v475, %v482
        %v491 = vadd.f32 %v476, %v482
        %v492 = vld [vmem:[%s260] sm:$0xf]
        %v493 = vld [vmem:[%s260 + $0x4] sm:$0xf]
        %v494 = vld [vmem:[%s260 + $0x8] sm:$0xf]
        %v495 = vld [vmem:[%s260 + $0xc] sm:$0xf]
        %v496 = vld [vmem:[%s260 + $0x10] sm:$0xf]
        %v497 = vld [vmem:[%s260 + $0x14] sm:$0xf]
        %v498 = vld [vmem:[%s260 + $0x18] sm:$0xf]
        %v499 = vld [vmem:[%s260 + $0x1c] sm:$0xf]
        %v500 = vunpack.c.l.bf16 %v492
        %v501 = vunpack.c.l.bf16 %v493
        %v502 = vunpack.c.l.bf16 %v494
        %v503 = vunpack.c.l.bf16 %v495
        %v504 = vunpack.c.l.bf16 %v496
        %v505 = vunpack.c.l.bf16 %v497
        %v506 = vunpack.c.l.bf16 %v498
        %v507 = vunpack.c.l.bf16 %v499
        %v508 = vadd.f32 %v484, %v500
        %v509 = vadd.f32 %v485, %v501
        %v510 = vadd.f32 %v486, %v502
        %v511 = vadd.f32 %v487, %v503
        %v512 = vadd.f32 %v488, %v504
        %v513 = vadd.f32 %v489, %v505
        %v514 = vadd.f32 %v490, %v506
        %v515 = vadd.f32 %v491, %v507
        %v516 = vmax.f32 %v508, 0.0
        %v517 = vmax.f32 %v509, 0.0
        %v518 = vmax.f32 %v510, 0.0
        %v519 = vmax.f32 %v511, 0.0
        %v520 = vmax.f32 %v512, 0.0
        %v521 = vmax.f32 %v513, 0.0
        %v522 = vmax.f32 %v514, 0.0
        %v523 = vmax.f32 %v515, 0.0
        %v524 = vpack.c.bf16 %v517, %v516
        %v525 = vpack.c.bf16 %v519, %v518
        %v526 = vpack.c.bf16 %v521, %v520
        %v527 = vpack.c.bf16 %v523, %v522
        %v532 = vunpack.c.l.b16 %v524
        %v533 = vunpack.c.h.b16 %v524
        %v534 = vunpack.c.l.b16 %v525
        %v535 = vunpack.c.h.b16 %v525
        %v536 = vunpack.c.l.b16 %v526
        %v537 = vunpack.c.h.b16 %v526
        %v538 = vunpack.c.l.b16 %v527
        %v539 = vunpack.c.h.b16 %v527
        %v540 = vpack.c.b16 %v532, %v532
        %v541 = vpack.c.b16 %v533, %v533
        %v542 = vpack.c.b16 %v534, %v534
        %v543 = vpack.c.b16 %v535, %v535
        %v544 = vpack.c.b16 %v536, %v536
        %v545 = vpack.c.b16 %v537, %v537
        %v546 = vpack.c.b16 %v538, %v538
        %v547 = vpack.c.b16 %v539, %v539
        %556 = vst [vmem:[%s266] sm:$0xf] %v540
        %557 = vst [vmem:[%s266 + $0x4] sm:$0xf] %v541
        %558 = vst [vmem:[%s266 + $0x8] sm:$0xf] %v542
        %559 = vst [vmem:[%s266 + $0xc] sm:$0xf] %v543
        %560 = vst [vmem:[%s266 + $0x10] sm:$0xf] %v544
        %561 = vst [vmem:[%s266 + $0x14] sm:$0xf] %v545
        %562 = vst [vmem:[%s266 + $0x18] sm:$0xf] %v546
        %563 = vst [vmem:[%s266 + $0x1c] sm:$0xf] %v547
      $region44: #{_lambda_.14} parent=35 // pred_fallthru
        _
      %s564 = smul.u32 8, %s19
      %p565 = scmp.lt.s32.totalorder %s564, 15
      %s566 = scalar_select %p565, %s564, 15
      %s567 = smul.addr %s566, 4
      %s568 = scalar_lea.vmem %s4, %s567
      // Predicated region
      $region45: #{_lambda_.14} parent=35 // pred_check
        %p569 = pneg %p146
      $region46: #{_lambda_.14} parent=35 // pred_check_branch
        %571 = sbr.rel (%p569) target = $region48
      $region47: #{_lambda_.14} parent=35 // pred_region
        %s572 = smul.u32 8, %s19
      $region48: #{_lambda_.14} parent=35 // pred_fallthru
        _
    $region36: #{_lambda_.14} parent=5 // pred_fallthru
      _
    %p573 = scmp.le.s32.totalorder 2, %s10
    // Predicated region
    $region49: #{_lambda_.14} parent=5 // pred_check
      %p574 = pneg %p573
    $region50: #{_lambda_.14} parent=5 // pred_check_branch
      %576 = sbr.rel (%p574) target = $region52
    $region51: #{_lambda_.14} parent=5 // pred_region
      %s577 = ssub.s32 %s10, 2
      // Predicated region
      $region53: #{_lambda_.14} parent=51 // pred_check
        %p578 = pneg %p152
      $region54: #{_lambda_.14} parent=51 // pred_check_branch
        %580 = sbr.rel (%p578) target = $region56
      $region55: #{_lambda_.14} parent=51 // pred_region
        %s581 = smul.u32 8, %s21
        %p582 = scmp.lt.s32.totalorder %s581, 15
        %s583 = scalar_select %p582, %s581, 15
        %s584 = smul.addr %s583, 4
        %s585 = scalar_lea.vmem %s4, %s584
      $region56: #{_lambda_.14} parent=51 // pred_fallthru
        _
    $region52: #{_lambda_.14} parent=5 // pred_fallthru
      _
  $region6: #{_lambda_.14} parent=0 // loop_footer
    %s14 = sadd.s32 1, %s10
  $region7: #{_lambda_.14} parent=0 // loop_footer_branch
    %9 = sbr.rel target = $region3
  $region8: #{_lambda_.14} parent=0 // loop_exit
    _

// kernel: _lambda_.9
$region0: #{_lambda_.9}
  #allocation0 [shape = 'u32[]', space=smem, size = 0x4, offset = 0x4, fixed_abs, tag = 'smem constant byte address 0x4 - core index']
  #allocation1 [shape = 'u32[144,128]{1,0:T(1,128)}', space=vmem, size = 0x12000, scoped, tag = 'internal scratch']
  %s0 = inlined_call_operand.vmem [shape: bf16[2,3,18,16,128], index: 0, kind: input, shape index: {}]
  %s1 = inlined_call_operand.vmem [shape: bf16[3,3,128,128], index: 1, kind: input, shape index: {}]
  %s2 = inlined_call_operand.vmem [shape: f32[1,128], index: 2, kind: input, shape index: {}]
  %s3 = inlined_call_operand.vmem [shape: bf16[2,256,128], index: 3, kind: output, shape index: {}]
  %s4 = sld [smem:[#allocation0]]
  $region45: #{_lambda_.9} parent=0
    _
  %s6 = ssub.s32 1, %s4
  %s7 = scalar_select 0, %s6, %s4
  loop: start=0, step=1, limit=4
  $region2: #{_lambda_.9} parent=0 // loop_pre_header
    _
  $region3: #{_lambda_.9} parent=0 // loop_header
    %s9 = sphi 0, %s13
    %p10 = scmp.ge.s32.totalorder %s9, 4
    %s19 = sphi 0, %s21
    %s22 = sphi 0, %s19
    %s23 = sphi 0, %s22
    %s39 = sphi 0, %s23
    %s43 = sphi 0, %s43
    %s45 = sphi 0, %s43
    %s46 = sphi 0, %s45
    %s60 = sphi 0, %s46
    %s64 = sphi 0, %s64
    %s66 = sphi 0, %s64
    %s67 = sphi 0, %s66
    %s81 = sphi 0, %s67
    %s87 = sphi 0, %s89
    %s90 = sphi 0, %s87
    %s91 = sphi 0, %s90
    %s107 = sphi 0, %s91
  $region4: #{_lambda_.9} parent=0 // loop_header_branch
    %12 = sbr.rel (%p10) target = $region8
  $region5: #{_lambda_.9} parent=0 // loop_body
    %s14 = ssub.s32 %s9, 1
    %s15 = ssub.s32 %s9, 2
    %s16 = sadd.s32 %s9, 1
    %s17 = ssub.s32 %s9, %s16
    %p18 = scmp.eq.s32.totalorder %s17, 0
    %s20 = sadd.s32 %s19, 1
    %s21 = scalar_select %p18, %s19, %s20
    %p24 = pneg %p18
    %p25 = scmp.eq.s32.totalorder %s9, 1
    %p26 = por %p24, %p25
    %p27 = scmp.ne.s32.totalorder %s19, %s22
    %p28 = scmp.eq.s32.totalorder %s9, 0
    %p29 = por %p27, %p28
    %p30 = scmp.ne.s32.totalorder %s19, %s22
    %p31 = scmp.eq.s32.totalorder %s14, 1
    %p32 = por %p30, %p31
    %p33 = scmp.ne.s32.totalorder %s22, %s23
    %p34 = scmp.eq.s32.totalorder %s14, 0
    %p35 = por %p33, %p34
    %p36 = scmp.ne.s32.totalorder %s22, %s23
    %p37 = scmp.eq.s32.totalorder %s15, 1
    %p38 = por %p36, %p37
    %p40 = scmp.ne.s32.totalorder %s23, %s39
    %p41 = scmp.eq.s32.totalorder %s15, 0
    %p42 = por %p40, %p41
    %s44 = sadd.s32 %s43, 1
    %p47 = scmp.eq.s32.totalorder %s9, 1
    %p48 = scmp.ne.s32.totalorder %s43, %s45
    %p49 = scmp.eq.s32.totalorder %s9, 0
    %p50 = por %p48, %p49
    %p51 = scmp.ne.s32.totalorder %s43, %s45
    %p52 = scmp.eq.s32.totalorder %s14, 1
    %p53 = por %p51, %p52
    %p54 = scmp.ne.s32.totalorder %s45, %s46
    %p55 = scmp.eq.s32.totalorder %s14, 0
    %p56 = por %p54, %p55
    %p57 = scmp.ne.s32.totalorder %s45, %s46
    %p58 = scmp.eq.s32.totalorder %s15, 1
    %p59 = por %p57, %p58
    %p61 = scmp.ne.s32.totalorder %s46, %s60
    %p62 = scmp.eq.s32.totalorder %s15, 0
    %p63 = por %p61, %p62
    %s65 = sadd.s32 %s64, 1
    %p68 = scmp.eq.s32.totalorder %s9, 1
    %p69 = scmp.ne.s32.totalorder %s64, %s66
    %p70 = scmp.eq.s32.totalorder %s9, 0
    %p71 = por %p69, %p70
    %p72 = scmp.ne.s32.totalorder %s64, %s66
    %p73 = scmp.eq.s32.totalorder %s14, 1
    %p74 = por %p72, %p73
    %p75 = scmp.ne.s32.totalorder %s66, %s67
    %p76 = scmp.eq.s32.totalorder %s14, 0
    %p77 = por %p75, %p76
    %p78 = scmp.ne.s32.totalorder %s66, %s67
    %p79 = scmp.eq.s32.totalorder %s15, 1
    %p80 = por %p78, %p79
    %p82 = scmp.ne.s32.totalorder %s67, %s81
    %p83 = scmp.eq.s32.totalorder %s15, 0
    %p84 = por %p82, %p83
    %s85 = ssub.s32 %s9, %s16
    %p86 = scmp.eq.s32.totalorder %s85, 0
    %s88 = sadd.s32 %s87, 1
    %s89 = scalar_select %p86, %s87, %s88
    %p92 = pneg %p86
    %p93 = scmp.eq.s32.totalorder %s9, 1
    %p94 = por %p92, %p93
    %p95 = scmp.ne.s32.totalorder %s87, %s90
    %p96 = scmp.eq.s32.totalorder %s9, 0
    %p97 = por %p95, %p96
    %p98 = scmp.ne.s32.totalorder %s87, %s90
    %p99 = scmp.eq.s32.totalorder %s14, 1
    %p100 = por %p98, %p99
    %p101 = scmp.ne.s32.totalorder %s90, %s91
    %p102 = scmp.eq.s32.totalorder %s14, 0
    %p103 = por %p101, %p102
    %p104 = scmp.ne.s32.totalorder %s90, %s91
    %p105 = scmp.eq.s32.totalorder %s15, 1
    %p106 = por %p104, %p105
    %p108 = scmp.ne.s32.totalorder %s91, %s107
    %p109 = scmp.eq.s32.totalorder %s15, 0
    %p110 = por %p108, %p109
    %p111 = scmp.le.s32.totalorder 1, %s9
    %p112 = scmp.lt.s32.totalorder %s9, 3
    %p113 = pnand %p111, %p112
    %p114 = pneg %p113
    // Predicated region
    $region9: #{_lambda_.9} parent=5 // pred_check
      _
    $region10: #{_lambda_.9} parent=5 // pred_check_branch
      %116 = sbr.rel (%p113) target = $region12
    $region11: #{_lambda_.9} parent=5 // pred_region
      %s117 = ssub.s32 %s9, 1
      // Predicated region
      $region13: #{_lambda_.9} parent=11 // pred_check
        %p118 = pneg %p56
      $region14: #{_lambda_.9} parent=11 // pred_check_branch
        %120 = sbr.rel (%p118) target = $region16
      $region15: #{_lambda_.9} parent=11 // pred_region
        _
      $region16: #{_lambda_.9} parent=11 // pred_fallthru
        _
      // Predicated region
      $region17: #{_lambda_.9} parent=11 // pred_check
        %p121 = pneg %p77
      $region18: #{_lambda_.9} parent=11 // pred_check_branch
        %123 = sbr.rel (%p121) target = $region20
      $region19: #{_lambda_.9} parent=11 // pred_region
        _
      $region20: #{_lambda_.9} parent=11 // pred_fallthru
        _
    $region12: #{_lambda_.9} parent=5 // pred_fallthru
      _
    %p124 = scmp.lt.s32.totalorder %s9, 2
    // Predicated region
    $region21: #{_lambda_.9} parent=5 // pred_check
      %p125 = pneg %p124
    $region22: #{_lambda_.9} parent=5 // pred_check_branch
      %127 = sbr.rel (%p125) target = $region24
    $region23: #{_lambda_.9} parent=5 // pred_region
      // Predicated region
      $region25: #{_lambda_.9} parent=23 // pred_check
        %p128 = pneg %p29
      $region26: #{_lambda_.9} parent=23 // pred_check_branch
        %130 = sbr.rel (%p128) target = $region28
      $region27: #{_lambda_.9} parent=23 // pred_region
        %p131 = scmp.lt.s32.totalorder %s9, 1
        %s132 = scalar_select %p131, %s9, 1
        %s133 = smul.addr %s132, 108
        %s134 = smul.addr %s133, 4
        %s135 = scalar_lea.vmem %s0, %s134
      $region28: #{_lambda_.9} parent=23 // pred_fallthru
        _
    $region24: #{_lambda_.9} parent=5 // pred_fallthru
      _
    %p136 = scmp.le.s32.totalorder 1, %s9
    %p137 = scmp.lt.s32.totalorder %s9, 3
    %p138 = pnand %p136, %p137
    %p139 = pneg %p138
    // Predicated region
    $region29: #{_lambda_.9} parent=5 // pred_check
      _
    $region30: #{_lambda_.9} parent=5 // pred_check_branch
      %141 = sbr.rel (%p138) target = $region32
    $region31: #{_lambda_.9} parent=5 // pred_region
      %s142 = ssub.s32 %s9, 1
      %p143 = scmp.lt.s32.totalorder %s14, 1
      %s144 = scalar_select %p143, %s14, 1
      %s145 = smul.addr %s144, 108
      %s146 = smul.addr %s145, 4
      %s147 = scalar_lea.vmem %s0, %s146
      %p148 = pneg %p35
      %p149 = pneg %p32
      %p150 = pneg %p56
      %p151 = pneg %p53
      %p152 = pneg %p77
      %p153 = pneg %p74
      %p154 = pneg %p103
      %p155 = pneg %p100
      %p156 = scmp.lt.s32.totalorder %s14, 1
      %s157 = scalar_select %p156, %s14, 1
      %s158 = smul.addr %s157, 32
      %s159 = smul.addr %s158, 4
      %s160 = scalar_lea.vmem %s3, %s159
      %p161 = scmp.lt.s32.totalorder %s14, 1
      %s162 = scalar_select %p161, %s14, 1
      %s163 = smul.addr %s162, 108
      %s164 = smul.addr %s163, 4
      %s165 = scalar_lea.vmem %s0, %s164
      %p166 = scmp.lt.s32.totalorder %s14, 1
      %s167 = scalar_select %p166, %s14, 1
      %s168 = smul.addr %s167, 32
      %s169 = smul.addr %s168, 4
      %s170 = scalar_lea.vmem %s3, %s169
      %v172 = vld [vmem:[%s165] sm:$0xf]
      %v173 = vld [vmem:[%s165 + $0x4] sm:$0xf]
      %v174 = vld [vmem:[%s165 + $0x8] sm:$0xf]
      %v175 = vld [vmem:[%s165 + $0xc] sm:$0xf]
      %v176 = vld [vmem:[%s165 + $0x10] sm:$0xf]
      %v177 = vld [vmem:[%s165 + $0x14] sm:$0xf]
      %v178 = vld [vmem:[%s165 + $0x18] sm:$0xf]
      %v179 = vld [vmem:[%s165 + $0x1c] sm:$0xf]
      %v180 = vld [vmem:[%s165 + $0x20] sm:$0xf]
      %v181 = vld [vmem:[%s165 + $0x24] sm:$0xf]
      %v182 = vld [vmem:[%s165 + $0x28] sm:$0xf]
      %v183 = vld [vmem:[%s165 + $0x2c] sm:$0xf]
      %v184 = vld [vmem:[%s165 + $0x30] sm:$0xf]
      %v185 = vld [vmem:[%s165 + $0x34] sm:$0xf]
      %v186 = vld [vmem:[%s165 + $0x38] sm:$0xf]
      %v187 = vld [vmem:[%s165 + $0x3c] sm:$0xf]
      %v188 = vld [vmem:[%s165 + $0x40] sm:$0xf]
      %v189 = vld [vmem:[%s165 + $0x44] sm:$0xf]
      %v190 = vld [vmem:[%s165 + $0x48] sm:$0xf]
      %v191 = vld [vmem:[%s165 + $0x4c] sm:$0xf]
      %v192 = vld [vmem:[%s165 + $0x50] sm:$0xf]
      %v193 = vld [vmem:[%s165 + $0x54] sm:$0xf]
      %v194 = vld [vmem:[%s165 + $0x58] sm:$0xf]
      %v195 = vld [vmem:[%s165 + $0x5c] sm:$0xf]
      %v196 = vld [vmem:[%s165 + $0x60] sm:$0xf]
      %v197 = vld [vmem:[%s165 + $0x64] sm:$0xf]
      %v198 = vld [vmem:[%s165 + $0x68] sm:$0xf]
      %v199 = vld [vmem:[%s165 + $0x6c] sm:$0xf]
      %v200 = vld [vmem:[%s165 + $0x70] sm:$0xf]
      %v201 = vld [vmem:[%s165 + $0x74] sm:$0xf]
      %v202 = vld [vmem:[%s165 + $0x78] sm:$0xf]
      %v203 = vld [vmem:[%s165 + $0x7c] sm:$0xf]
      %v204 = vunpack.c.l.bf16 %v172
      %v205 = vunpack.c.l.bf16 %v173
      %v206 = vunpack.c.l.bf16 %v174
      %v207 = vunpack.c.l.bf16 %v175
      %v208 = vunpack.c.l.bf16 %v176
      %v209 = vunpack.c.l.bf16 %v177
      %v210 = vunpack.c.l.bf16 %v178
      %v211 = vunpack.c.l.bf16 %v179
      %v212 = vunpack.c.l.bf16 %v180
      %v213 = vunpack.c.l.bf16 %v181
      %v214 = vunpack.c.l.bf16 %v182
      %v215 = vunpack.c.l.bf16 %v183
      %v216 = vunpack.c.l.bf16 %v184
      %v217 = vunpack.c.l.bf16 %v185
      %v218 = vunpack.c.l.bf16 %v186
      %v219 = vunpack.c.l.bf16 %v187
      %v220 = vunpack.c.l.bf16 %v188
      %v221 = vunpack.c.l.bf16 %v189
      %v222 = vunpack.c.l.bf16 %v190
      %v223 = vunpack.c.l.bf16 %v191
      %v224 = vunpack.c.l.bf16 %v192
      %v225 = vunpack.c.l.bf16 %v193
      %v226 = vunpack.c.l.bf16 %v194
      %v227 = vunpack.c.l.bf16 %v195
      %v228 = vunpack.c.l.bf16 %v196
      %v229 = vunpack.c.l.bf16 %v197
      %v230 = vunpack.c.l.bf16 %v198
      %v231 = vunpack.c.l.bf16 %v199
      %v232 = vunpack.c.l.bf16 %v200
      %v233 = vunpack.c.l.bf16 %v201
      %v234 = vunpack.c.l.bf16 %v202
      %v235 = vunpack.c.l.bf16 %v203
      %v236 = vpack.c.bf16 %v205, %v204
      %v237 = vpack.c.bf16 %v207, %v206
      %v238 = vpack.c.bf16 %v209, %v208
      %v239 = vpack.c.bf16 %v211, %v210
      %v240 = vpack.c.bf16 %v213, %v212
      %v241 = vpack.c.bf16 %v215, %v214
      %v242 = vpack.c.bf16 %v217, %v216
      %v243 = vpack.c.bf16 %v219, %v218
      %v244 = vpack.c.bf16 %v221, %v220
      %v245 = vpack.c.bf16 %v223, %v222
      %v246 = vpack.c.bf16 %v225, %v224
      %v247 = vpack.c.bf16 %v227, %v226
      %v248 = vpack.c.bf16 %v229, %v228
      %v249 = vpack.c.bf16 %v231, %v230
      %v250 = vpack.c.bf16 %v233, %v232
      %v251 = vpack.c.bf16 %v235, %v234
      %v252 = vld [vmem:[%s1] sm:$0xf]
      %v253 = vld [vmem:[%s1 + $0x4] sm:$0xf]
      %v254 = vld [vmem:[%s1 + $0x8] sm:$0xf]
      %v255 = vld [vmem:[%s1 + $0xc] sm:$0xf]
      %v256 = vld [vmem:[%s1 + $0x10] sm:$0xf]
      %v257 = vld [vmem:[%s1 + $0x14] sm:$0xf]
      %v258 = vld [vmem:[%s1 + $0x18] sm:$0xf]
      %v259 = vld [vmem:[%s1 + $0x1c] sm:$0xf]
      %v260 = vld [vmem:[%s1 + $0x20] sm:$0xf]
      %v261 = vld [vmem:[%s1 + $0x24] sm:$0xf]
      %v262 = vld [vmem:[%s1 + $0x28] sm:$0xf]
      %v263 = vld [vmem:[%s1 + $0x2c] sm:$0xf]
      %v264 = vld [vmem:[%s1 + $0x30] sm:$0xf]
      %v265 = vld [vmem:[%s1 + $0x34] sm:$0xf]
      %v266 = vld [vmem:[%s1 + $0x38] sm:$0xf]
      %v267 = vld [vmem:[%s1 + $0x3c] sm:$0xf]
      %s268 = scalar_lea.vmem %s165, 8
      %v269 = vld [vmem:[%s268] sm:$0xf]
      %v270 = vld [vmem:[%s268 + $0x4] sm:$0xf]
      %v271 = vld [vmem:[%s268 + $0x8] sm:$0xf]
      %v272 = vld [vmem:[%s268 + $0xc] sm:$0xf]
      %v273 = vld [vmem:[%s268 + $0x10] sm:$0xf]
      %v274 = vld [vmem:[%s268 + $0x14] sm:$0xf]
      %v275 = vld [vmem:[%s268 + $0x18] sm:$0xf]
      %v276 = vld [vmem:[%s268 + $0x1c] sm:$0xf]
      %v277 = vld [vmem:[%s268 + $0x20] sm:$0xf]
      %v278 = vld [vmem:[%s268 + $0x24] sm:$0xf]
      %v279 = vld [vmem:[%s268 + $0x28] sm:$0xf]
      %v280 = vld [vmem:[%s268 + $0x2c] sm:$0xf]
      %v281 = vld [vmem:[%s268 + $0x30] sm:$0xf]
      %v282 = vld [vmem:[%s268 + $0x34] sm:$0xf]
      %v283 = vld [vmem:[%s268 + $0x38] sm:$0xf]
      %v284 = vld [vmem:[%s268 + $0x3c] sm:$0xf]
      %v285 = vld [vmem:[%s268 + $0x40] sm:$0xf]
      %v286 = vld [vmem:[%s268 + $0x44] sm:$0xf]
      %v287 = vld [vmem:[%s268 + $0x48] sm:$0xf]
      %v288 = vld [vmem:[%s268 + $0x4c] sm:$0xf]
      %v289 = vld [vmem:[%s268 + $0x50] sm:$0xf]
      %v290 = vld [vmem:[%s268 + $0x54] sm:$0xf]
      %v291 = vld [vmem:[%s268 + $0x58] sm:$0xf]
      %v292 = vld [vmem:[%s268 + $0x5c] sm:$0xf]
      %v293 = vld [vmem:[%s268 + $0x60] sm:$0xf]
      %v294 = vld [vmem:[%s268 + $0x64] sm:$0xf]
      %v295 = vld [vmem:[%s268 + $0x68] sm:$0xf]
      %v296 = vld [vmem:[%s268 + $0x6c] sm:$0xf]
      %v297 = vld [vmem:[%s268 + $0x70] sm:$0xf]
      %v298 = vld [vmem:[%s268 + $0x74] sm:$0xf]
      %v299 = vld [vmem:[%s268 + $0x78] sm:$0xf]
      %v300 = vld [vmem:[%s268 + $0x7c] sm:$0xf]
      %v301 = vunpack.c.l.bf16 %v269
      %v302 = vunpack.c.l.bf16 %v270
      %v303 = vunpack.c.l.bf16 %v271
      %v304 = vunpack.c.l.bf16 %v272
      %v305 = vunpack.c.l.bf16 %v273
      %v306 = vunpack.c.l.bf16 %v274
      %v307 = vunpack.c.l.bf16 %v275
      %v308 = vunpack.c.l.bf16 %v276
      %v309 = vunpack.c.l.bf16 %v277
      %v310 = vunpack.c.l.bf16 %v278
      %v311 = vunpack.c.l.bf16 %v279
      %v312 = vunpack.c.l.bf16 %v280
      %v313 = vunpack.c.l.bf16 %v281
      %v314 = vunpack.c.l.bf16 %v282
      %v315 = vunpack.c.l.bf16 %v283
      %v316 = vunpack.c.l.bf16 %v284
      %v317 = vunpack.c.l.bf16 %v285
      %v318 = vunpack.c.l.bf16 %v286
      %v319 = vunpack.c.l.bf16 %v287
      %v320 = vunpack.c.l.bf16 %v288
      %v321 = vunpack.c.l.bf16 %v289
      %v322 = vunpack.c.l.bf16 %v290
      %v323 = vunpack.c.l.bf16 %v291
      %v324 = vunpack.c.l.bf16 %v292
      %v325 = vunpack.c.l.bf16 %v293
      %v326 = vunpack.c.l.bf16 %v294
      %v327 = vunpack.c.l.bf16 %v295
      %v328 = vunpack.c.l.bf16 %v296
      %v329 = vunpack.c.l.bf16 %v297
      %v330 = vunpack.c.l.bf16 %v298
      %v331 = vunpack.c.l.bf16 %v299
      %v332 = vunpack.c.l.bf16 %v300
      %v333 = vpack.c.bf16 %v302, %v301
      %v334 = vpack.c.bf16 %v304, %v303
      %v335 = vpack.c.bf16 %v306, %v305
      %v336 = vpack.c.bf16 %v308, %v307
      %v337 = vpack.c.bf16 %v310, %v309
      %v338 = vpack.c.bf16 %v312, %v311
      %v339 = vpack.c.bf16 %v314, %v313
      %v340 = vpack.c.bf16 %v316, %v315
      %v341 = vpack.c.bf16 %v318, %v317
      %v342 = vpack.c.bf16 %v320, %v319
      %v343 = vpack.c.bf16 %v322, %v321
      %v344 = vpack.c.bf16 %v324, %v323
      %v345 = vpack.c.bf16 %v326, %v325
      %v346 = vpack.c.bf16 %v328, %v327
      %v347 = vpack.c.bf16 %v330, %v329
      %v348 = vpack.c.bf16 %v332, %v331
      %s349 = scalar_lea.vmem %s1, 192
      %v350 = vld [vmem:[%s349] sm:$0xf]
      %v351 = vld [vmem:[%s349 + $0x4] sm:$0xf]
      %v352 = vld [vmem:[%s349 + $0x8] sm:$0xf]
      %v353 = vld [vmem:[%s349 + $0xc] sm:$0xf]
      %v354 = vld [vmem:[%s349 + $0x10] sm:$0xf]
      %v355 = vld [vmem:[%s349 + $0x14] sm:$0xf]
      %v356 = vld [vmem:[%s349 + $0x18] sm:$0xf]
      %v357 = vld [vmem:[%s349 + $0x1c] sm:$0xf]
      %v358 = vld [vmem:[%s349 + $0x20] sm:$0xf]
      %v359 = vld [vmem:[%s349 + $0x24] sm:$0xf]
      %v360 = vld [vmem:[%s349 + $0x28] sm:$0xf]
      %v361 = vld [vmem:[%s349 + $0x2c] sm:$0xf]
      %v362 = vld [vmem:[%s349 + $0x30] sm:$0xf]
      %v363 = vld [vmem:[%s349 + $0x34] sm:$0xf]
      %v364 = vld [vmem:[%s349 + $0x38] sm:$0xf]
      %v365 = vld [vmem:[%s349 + $0x3c] sm:$0xf]
      %v382 = vunpack.c.l.b16 %v350
      %v383 = vunpack.c.l.b16 %v351
      %v384 = vunpack.c.l.b16 %v352
      %v385 = vunpack.c.l.b16 %v353
      %v386 = vunpack.c.l.b16 %v354
      %v387 = vunpack.c.l.b16 %v355
      %v388 = vunpack.c.l.b16 %v356
      %v389 = vunpack.c.l.b16 %v357
      %v390 = vunpack.c.l.b16 %v358
      %v391 = vunpack.c.l.b16 %v359
      %v392 = vunpack.c.l.b16 %v360
      %v393 = vunpack.c.l.b16 %v361
      %v394 = vunpack.c.l.b16 %v362
      %v395 = vunpack.c.l.b16 %v363
      %v396 = vunpack.c.l.b16 %v364
      %v397 = vunpack.c.l.b16 %v365
      %v398 = vpack.c.b16 %v383, %v382
      %v399 = vpack.c.b16 %v385, %v384
      %v400 = vpack.c.b16 %v387, %v386
      %v401 = vpack.c.b16 %v389, %v388
      %v402 = vpack.c.b16 %v391, %v390
      %v403 = vpack.c.b16 %v393, %v392
      %v404 = vpack.c.b16 %v395, %v394
      %v405 = vpack.c.b16 %v397, %v396
      %414 = vmatprep.subr.bf16.mxu0 0
      %415 = vmatpush1.bf16.msra.mxu0 %v398
      %416 = vmatprep.subr.bf16.mxu0 0
      %417 = vmatpush1.bf16.msra.mxu0 %v399
      %418 = vmatprep.subr.bf16.mxu0 0
      %419 = vmatpush1.bf16.msra.mxu0 %v400
      %420 = vmatprep.subr.bf16.mxu0 0
      %421 = vmatpush1.bf16.msra.mxu0 %v401
      %422 = vmatprep.subr.bf16.mxu0 0
      %423 = vmatpush1.bf16.msra.mxu0 %v402
      %424 = vmatprep.subr.bf16.mxu0 0
      %425 = vmatpush1.bf16.msra.mxu0 %v403
      %426 = vmatprep.subr.bf16.mxu0 0
      %427 = vmatpush1.bf16.msra.mxu0 %v404
      %428 = vmatprep.subr.bf16.mxu0 0
      %429 = vmatpush1.bf16.msra.mxu0 %v405
      %430 = vmatprep.subr.bf16.mxu0 0
      %431 = vmatpush1.bf16.msra.mxu0 0
      %432 = vmatprep.subr.bf16.mxu0 0
      %433 = vmatpush1.bf16.msra.mxu0 0
      %434 = vmatprep.subr.bf16.mxu0 0
      %435 = vmatpush1.bf16.msra.mxu0 0
      %436 = vmatprep.subr.bf16.mxu0 0
      %437 = vmatpush1.bf16.msra.mxu0 0
      %438 = vmatprep.subr.bf16.mxu0 0
      %439 = vmatpush1.bf16.msra.mxu0 0
      %440 = vmatprep.subr.bf16.mxu0 0
      %441 = vmatpush1.bf16.msra.mxu0 0
      %442 = vmatprep.subr.bf16.mxu0 0
      %443 = vmatpush1.bf16.msra.mxu0 0
      %444 = vmatprep.subr.bf16.mxu0 0
      %445 = vmatpush1.bf16.msra.mxu0 0
      %446 = vmatprep.mubr.bf16.mxu0 0
      %447 = vmatmul.mubr.bf16.gmra.mrb[0].mxu0 %v333
      %v448 = vpop.f32.mrb[0].mxu0
      %v449 = vadd.f32 0.0, %v448
      %v450 = vpop.f32.mrb[0].mxu0
      %v451 = vpop.f32.mrb[0].mxu0
      %v452 = vadd.f32 0.0, %v451
      %v453 = vpop.f32.mrb[0].mxu0
      %454 = vmatprep.mubr.bf16.mxu0 0
      %455 = vmatmul.mubr.bf16.gmra.mrb[0].mxu0 %v334
      %v456 = vpop.f32.mrb[0].mxu0
      %v457 = vadd.f32 0.0, %v456
      %v458 = vpop.f32.mrb[0].mxu0
      %v459 = vpop.f32.mrb[0].mxu0
      %v460 = vadd.f32 0.0, %v459
      %v461 = vpop.f32.mrb[0].mxu0
      %462 = vmatprep.mubr.bf16.mxu0 0
      %463 = vmatmul.mubr.bf16.gmra.mrb[0].mxu0 %v335
      %v464 = vpop.f32.mrb[0].mxu0
      %v465 = vadd.f32 0.0, %v464
      %v466 = vpop.f32.mrb[0].mxu0
      %v467 = vpop.f32.mrb[0].mxu0
      %v468 = vadd.f32 0.0, %v467
      %v469 = vpop.f32.mrb[0].mxu0
      %470 = vmatprep.mubr.bf16.mxu0 0
      %471 = vmatmul.mubr.bf16.gmra.mrb[0].mxu0 %v336
      %v472 = vpop.f32.mrb[0].mxu0
      %v473 = vadd.f32 0.0, %v472
      %v474 = vpop.f32.mrb[0].mxu0
      %v475 = vpop.f32.mrb[0].mxu0
      %v476 = vadd.f32 0.0, %v475
      %v477 = vpop.f32.mrb[0].mxu0
      %478 = vmatprep.mubr.bf16.mxu0 0
      %479 = vmatmul.mubr.bf16.gmra.mrb[0].mxu0 %v337
      %v480 = vpop.f32.mrb[0].mxu0
      %v481 = vadd.f32 0.0, %v480
      %v482 = vpop.f32.mrb[0].mxu0
      %v483 = vpop.f32.mrb[0].mxu0
      %v484 = vadd.f32 0.0, %v483
      %v485 = vpop.f32.mrb[0].mxu0
      %486 = vmatprep.mubr.bf16.mxu0 0
      %487 = vmatmul.mubr.bf16.gmra.mrb[0].mxu0 %v338
      %v488 = vpop.f32.mrb[0].mxu0
      %v489 = vadd.f32 0.0, %v488
      %v490 = vpop.f32.mrb[0].mxu0
      %v491 = vpop.f32.mrb[0].mxu0
      %v492 = vadd.f32 0.0, %v491
      %v493 = vpop.f32.mrb[0].mxu0
      %494 = vmatprep.mubr.bf16.mxu0 0
      %495 = vmatmul.mubr.bf16.gmra.mrb[0].mxu0 %v339
      %v496 = vpop.f32.mrb[0].mxu0
      %v497 = vadd.f32 0.0, %v496
      %v498 = vpop.f32.mrb[0].mxu0
      %v499 = vpop.f32.mrb[0].mxu0
      %v500 = vadd.f32 0.0, %v499
      %v501 = vpop.f32.mrb[0].mxu0
      %502 = vmatprep.mubr.bf16.mxu0 0
      %503 = vmatmul.mubr.bf16.gmra.mrb[0].mxu0 %v340
      %v504 = vpop.f32.mrb[0].mxu0
      %v505 = vadd.f32 0.0, %v504
      %v506 = vpop.f32.mrb[0].mxu0
      %v507 = vpop.f32.mrb[0].mxu0
      %v508 = vadd.f32 0.0, %v507
      %v509 = vpop.f32.mrb[0].mxu0
      %510 = vmatprep.mubr.bf16.mxu0 0
      %511 = vmatmul.mubr.bf16.gmra.mrb[0].mxu0 %v341
      %v512 = vpop.f32.mrb[0].mxu0
      %v513 = vadd.f32 0.0, %v512
      %v514 = vpop.f32.mrb[0].mxu0
      %v515 = vpop.f32.mrb[0].mxu0
      %v516 = vadd.f32 0.0, %v515
      %v517 = vpop.f32.mrb[0].mxu0
      %518 = vmatprep.mubr.bf16.mxu0 0
      %519 = vmatmul.mubr.bf16.gmra.mrb[0].mxu0 %v342
      %v520 = vpop.f32.mrb[0].mxu0
      %v521 = vadd.f32 0.0, %v520
      %v522 = vpop.f32.mrb[0].mxu0
      %v523 = vpop.f32.mrb[0].mxu0
      %v524 = vadd.f32 0.0, %v523
      %v525 = vpop.f32.mrb[0].mxu0
      %526 = vmatprep.mubr.bf16.mxu0 0
      %527 = vmatmul.mubr.bf16.gmra.mrb[0].mxu0 %v343
      %v528 = vpop.f32.mrb[0].mxu0
      %v529 = vadd.f32 0.0, %v528
      %v530 = vpop.f32.mrb[0].mxu0
      %v531 = vpop.f32.mrb[0].mxu0
      %v532 = vadd.f32 0.0, %v531
      %v533 = vpop.f32.mrb[0].mxu0
      %534 = vmatprep.mubr.bf16.mxu0 0
      %535 = vmatmul.mubr.bf16.gmra.mrb[0].mxu0 %v344
      %v536 = vpop.f32.mrb[0].mxu0
      %v537 = vadd.f32 0.0, %v536
      %v538 = vpop.f32.mrb[0].mxu0
      %v539 = vpop.f32.mrb[0].mxu0
      %v540 = vadd.f32 0.0, %v539
      %v541 = vpop.f32.mrb[0].mxu0
      %542 = vmatprep.mubr.bf16.mxu0 0
      %543 = vmatmul.mubr.bf16.gmra.mrb[0].mxu0 %v345
      %v544 = vpop.f32.mrb[0].mxu0
      %v545 = vadd.f32 0.0, %v544
      %v546 = vpop.f32.mrb[0].mxu0
      %v547 = vpop.f32.mrb[0].mxu0
      %v548 = vadd.f32 0.0, %v547
      %v549 = vpop.f32.mrb[0].mxu0
      %550 = vmatprep.mubr.bf16.mxu0 0
      %551 = vmatmul.mubr.bf16.gmra.mrb[0].mxu0 %v346
      %v552 = vpop.f32.mrb[0].mxu0
      %v553 = vadd.f32 0.0, %v552
      %v554 = vpop.f32.mrb[0].mxu0
      %v555 = vpop.f32.mrb[0].mxu0
      %v556 = vadd.f32 0.0, %v555
      %v557 = vpop.f32.mrb[0].mxu0
      %558 = vmatprep.mubr.bf16.mxu0 0
      %559 = vmatmul.mubr.bf16.gmra.mrb[0].mxu0 %v347
      %v560 = vpop.f32.mrb[0].mxu0
      %v561 = vadd.f32 0.0, %v560
      %v562 = vpop.f32.mrb[0].mxu0
      %v563 = vpop.f32.mrb[0].mxu0
      %v564 = vadd.f32 0.0, %v563
      %v565 = vpop.f32.mrb[0].mxu0
      %566 = vmatprep.mubr.bf16.mxu0 0
      %567 = vmatmul.mubr.bf16.gmra.mrb[0].mxu0 %v348
      %v568 = vpop.f32.mrb[0].mxu0
      %v569 = vadd.f32 0.0, %v568
      %v570 = vpop.f32.mrb[0].mxu0
      %v571 = vpop.f32.mrb[0].mxu0
      %v572 = vadd.f32 0.0, %v571
      %v573 = vpop.f32.mrb[0].mxu0
      %574 = vdwg.mxu0
      %v591 = vunpack.c.l.b16 %v252
      %v592 = vunpack.c.l.b16 %v253
      %v593 = vunpack.c.l.b16 %v254
      %v594 = vunpack.c.l.b16 %v255
      %v595 = vunpack.c.l.b16 %v256
      %v596 = vunpack.c.l.b16 %v257
      %v597 = vunpack.c.l.b16 %v258
      %v598 = vunpack.c.l.b16 %v259
      %v599 = vunpack.c.l.b16 %v260
      %v600 = vunpack.c.l.b16 %v261
      %v601 = vunpack.c.l.b16 %v262
      %v602 = vunpack.c.l.b16 %v263
      %v603 = vunpack.c.l.b16 %v264
      %v604 = vunpack.c.l.b16 %v265
      %v605 = vunpack.c.l.b16 %v266
      %v606 = vunpack.c.l.b16 %v267
      %v607 = vpack.c.b16 %v592, %v591
      %v608 = vpack.c.b16 %v594, %v593
      %v609 = vpack.c.b16 %v596, %v595
      %v610 = vpack.c.b16 %v598, %v597
      %v611 = vpack.c.b16 %v600, %v599
      %v612 = vpack.c.b16 %v602, %v601
      %v613 = vpack.c.b16 %v604, %v603
      %v614 = vpack.c.b16 %v606, %v605
      %623 = vmatprep.subr.bf16.mxu0 0
      %624 = vmatpush1.bf16.msra.mxu0 %v607
      %625 = vmatprep.subr.bf16.mxu0 0
      %626 = vmatpush1.bf16.msra.mxu0 %v608
      %627 = vmatprep.subr.bf16.mxu0 0
      %628 = vmatpush1.bf16.msra.mxu0 %v609
      %629 = vmatprep.subr.bf16.mxu0 0
      %630 = vmatpush1.bf16.msra.mxu0 %v610
      %631 = vmatprep.subr.bf16.mxu0 0
      %632 = vmatpush1.bf16.msra.mxu0 %v611
      %633 = vmatprep.subr.bf16.mxu0 0
      %634 = vmatpush1.bf16.msra.mxu0 %v612
      %635 = vmatprep.subr.bf16.mxu0 0
      %636 = vmatpush1.bf16.msra.mxu0 %v613
      %637 = vmatprep.subr.bf16.mxu0 0
      %638 = vmatpush1.bf16.msra.mxu0 %v614
      %639 = vmatprep.subr.bf16.mxu0 0
      %640 = vmatpush1.bf16.msra.mxu0 0
      %641 = vmatprep.subr.bf16.mxu0 0
      %642 = vmatpush1.bf16.msra.mxu0 0
      %643 = vmatprep.subr.bf16.mxu0 0
      %644 = vmatpush1.bf16.msra.mxu0 0
      %645 = vmatprep.subr.bf16.mxu0 0
      %646 = vmatpush1.bf16.msra.mxu0 0
      %647 = vmatprep.subr.bf16.mxu0 0
      %648 = vmatpush1.bf16.msra.mxu0 0
      %649 = vmatprep.subr.bf16.mxu0 0
      %650 = vmatpush1.bf16.msra.mxu0 0
      %651 = vmatprep.subr.bf16.mxu0 0
      %652 = vmatpush1.bf16.msra.mxu0 0
      %653 = vmatprep.subr.bf16.mxu0 0
      %654 = vmatpush1.bf16.msra.mxu0 0
      %655 = vmatprep.mubr.bf16.mxu0 0
      %656 = vmatmul.mubr.bf16.gmra.mrb[0].mxu0 %v236
      %v657 = vpop.f32.mrb[0].mxu0
      %v658 = vadd.f32 %v449, %v657
      %v659 = vpop.f32.mrb[0].mxu0
      %v660 = vpop.f32.mrb[0].mxu0
      %v661 = vadd.f32 %v452, %v660
      %v662 = vpop.f32.mrb[0].mxu0
      %663 = vmatprep.mubr.bf16.mxu0 0
      %664 = vmatmul.mubr.bf16.gmra.mrb[0].mxu0 %v237
      %v665 = vpop.f32.mrb[0].mxu0
      %v666 = vadd.f32 %v457, %v665
      %v667 = vpop.f32.mrb[0].mxu0
      %v668 = vpop.f32.mrb[0].mxu0
      %v669 = vadd.f32 %v460, %v668
      %v670 = vpop.f32.mrb[0].mxu0
      %671 = vmatprep.mubr.bf16.mxu0 0
      %672 = vmatmul.mubr.bf16.gmra.mrb[0].mxu0 %v238
      %v673 = vpop.f32.mrb[0].mxu0
      %v674 = vadd.f32 %v465, %v673
      %v675 = vpop.f32.mrb[0].mxu0
      %v676 = vpop.f32.mrb[0].mxu0
      %v677 = vadd.f32 %v468, %v676
      %v678 = vpop.f32.mrb[0].mxu0
      %679 = vmatprep.mubr.bf16.mxu0 0
      %680 = vmatmul.mubr.bf16.gmra.mrb[0].mxu0 %v239
      %v681 = vpop.f32.mrb[0].mxu0
      %v682 = vadd.f32 %v473, %v681
      %v683 = vpop.f32.mrb[0].mxu0
      %v684 = vpop.f32.mrb[0].mxu0
      %v685 = vadd.f32 %v476, %v684
      %v686 = vpop.f32.mrb[0].mxu0
      %687 = vmatprep.mubr.bf16.mxu0 0
      %688 = vmatmul.mubr.bf16.gmra.mrb[0].mxu0 %v240
      %v689 = vpop.f32.mrb[0].mxu0
      %v690 = vadd.f32 %v481, %v689
      %v691 = vpop.f32.mrb[0].mxu0
      %v692 = vpop.f32.mrb[0].mxu0
      %v693 = vadd.f32 %v484, %v692
      %v694 = vpop.f32.mrb[0].mxu0
      %695 = vmatprep.mubr.bf16.mxu0 0
      %696 = vmatmul.mubr.bf16.gmra.mrb[0].mxu0 %v241
      %v697 = vpop.f32.mrb[0].mxu0
      %v698 = vadd.f32 %v489, %v697
      %v699 = vpop.f32.mrb[0].mxu0
      %v700 = vpop.f32.mrb[0].mxu0
      %v701 = vadd.f32 %v492, %v700
      %v702 = vpop.f32.mrb[0].mxu0
      %703 = vmatprep.mubr.bf16.mxu0 0
      %704 = vmatmul.mubr.bf16.gmra.mrb[0].mxu0 %v242
      %v705 = vpop.f32.mrb[0].mxu0
      %v706 = vadd.f32 %v497, %v705
      %v707 = vpop.f32.mrb[0].mxu0
      %v708 = vpop.f32.mrb[0].mxu0
      %v709 = vadd.f32 %v500, %v708
      %v710 = vpop.f32.mrb[0].mxu0
      %711 = vmatprep.mubr.bf16.mxu0 0
      %712 = vmatmul.mubr.bf16.gmra.mrb[0].mxu0 %v243
      %v713 = vpop.f32.mrb[0].mxu0
      %v714 = vadd.f32 %v505, %v713
      %v715 = vpop.f32.mrb[0].mxu0
      %v716 = vpop.f32.mrb[0].mxu0
      %v717 = vadd.f32 %v508, %v716
      %v718 = vpop.f32.mrb[0].mxu0
      %719 = vmatprep.mubr.bf16.mxu0 0
      %720 = vmatmul.mubr.bf16.gmra.mrb[0].mxu0 %v244
      %v721 = vpop.f32.mrb[0].mxu0
      %v722 = vadd.f32 %v513, %v721
      %v723 = vpop.f32.mrb[0].mxu0
      %v724 = vpop.f32.mrb[0].mxu0
      %v725 = vadd.f32 %v516, %v724
      %v726 = vpop.f32.mrb[0].mxu0
      %727 = vmatprep.mubr.bf16.mxu0 0
      %728 = vmatmul.mubr.bf16.gmra.mrb[0].mxu0 %v245
      %v729 = vpop.f32.mrb[0].mxu0
      %v730 = vadd.f32 %v521, %v729
      %v731 = vpop.f32.mrb[0].mxu0
      %v732 = vpop.f32.mrb[0].mxu0
      %v733 = vadd.f32 %v524, %v732
      %v734 = vpop.f32.mrb[0].mxu0
      %735 = vmatprep.mubr.bf16.mxu0 0
      %736 = vmatmul.mubr.bf16.gmra.mrb[0].mxu0 %v246
      %v737 = vpop.f32.mrb[0].mxu0
      %v738 = vadd.f32 %v529, %v737
      %v739 = vpop.f32.mrb[0].mxu0
      %v740 = vpop.f32.mrb[0].mxu0
      %v741 = vadd.f32 %v532, %v740
      %v742 = vpop.f32.mrb[0].mxu0
      %743 = vmatprep.mubr.bf16.mxu0 0
      %744 = vmatmul.mubr.bf16.gmra.mrb[0].mxu0 %v247
      %v745 = vpop.f32.mrb[0].mxu0
      %v746 = vadd.f32 %v537, %v745
      %v747 = vpop.f32.mrb[0].mxu0
      %v748 = vpop.f32.mrb[0].mxu0
      %v749 = vadd.f32 %v540, %v748
      %v750 = vpop.f32.mrb[0].mxu0
      %751 = vmatprep.mubr.bf16.mxu0 0
      %752 = vmatmul.mubr.bf16.gmra.mrb[0].mxu0 %v248
      %v753 = vpop.f32.mrb[0].mxu0
      %v754 = vadd.f32 %v545, %v753
      %v755 = vpop.f32.mrb[0].mxu0
      %v756 = vpop.f32.mrb[0].mxu0
      %v757 = vadd.f32 %v548, %v756
      %v758 = vpop.f32.mrb[0].mxu0
      %759 = vmatprep.mubr.bf16.mxu0 0
      %760 = vmatmul.mubr.bf16.gmra.mrb[0].mxu0 %v249
      %v761 = vpop.f32.mrb[0].mxu0
      %v762 = vadd.f32 %v553, %v761
      %v763 = vpop.f32.mrb[0].mxu0
      %v764 = vpop.f32.mrb[0].mxu0
      %v765 = vadd.f32 %v556, %v764
      %v766 = vpop.f32.mrb[0].mxu0
      %767 = vmatprep.mubr.bf16.mxu0 0
      %768 = vmatmul.mubr.bf16.gmra.mrb[0].mxu0 %v250
      %v769 = vpop.f32.mrb[0].mxu0
      %v770 = vadd.f32 %v561, %v769
      %v771 = vpop.f32.mrb[0].mxu0
      %v772 = vpop.f32.mrb[0].mxu0
      %v773 = vadd.f32 %v564, %v772
      %v774 = vpop.f32.mrb[0].mxu0
      %775 = vmatprep.mubr.bf16.mxu0 0
      %776 = vmatmul.mubr.bf16.gmra.mrb[0].mxu0 %v251
      %v777 = vpop.f32.mrb[0].mxu0
      %v778 = vadd.f32 %v569, %v777
      %v779 = vpop.f32.mrb[0].mxu0
      %v780 = vpop.f32.mrb[0].mxu0
      %v781 = vadd.f32 %v572, %v780
      %v782 = vpop.f32.mrb[0].mxu0
      %783 = vdwg.mxu0
      %s784 = scalar_lea.vmem %s165, 16
      %v785 = vld [vmem:[%s784] sm:$0xf]
      %v786 = vld [vmem:[%s784 + $0x4] sm:$0xf]
      %v787 = vld [vmem:[%s784 + $0x8] sm:$0xf]
      %v788 = vld [vmem:[%s784 + $0xc] sm:$0xf]
      %v789 = vld [vmem:[%s784 + $0x10] sm:$0xf]
      %v790 = vld [vmem:[%s784 + $0x14] sm:$0xf]
      %v791 = vld [vmem:[%s784 + $0x18] sm:$0xf]
      %v792 = vld [vmem:[%s784 + $0x1c] sm:$0xf]
      %v793 = vld [vmem:[%s784 + $0x20] sm:$0xf]
      %v794 = vld [vmem:[%s784 + $0x24] sm:$0xf]
      %v795 = vld [vmem:[%s784 + $0x28] sm:$0xf]
      %v796 = vld [vmem:[%s784 + $0x2c] sm:$0xf]
      %v797 = vld [vmem:[%s784 + $0x30] sm:$0xf]
      %v798 = vld [vmem:[%s784 + $0x34] sm:$0xf]
      %v799 = vld [vmem:[%s784 + $0x38] sm:$0xf]
      %v800 = vld [vmem:[%s784 + $0x3c] sm:$0xf]
      %v801 = vld [vmem:[%s784 + $0x40] sm:$0xf]
      %v802 = vld [vmem:[%s784 + $0x44] sm:$0xf]
      %v803 = vld [vmem:[%s784 + $0x48] sm:$0xf]
      %v804 = vld [vmem:[%s784 + $0x4c] sm:$0xf]
      %v805 = vld [vmem:[%s784 + $0x50] sm:$0xf]
      %v806 = vld [vmem:[%s784 + $0x54] sm:$0xf]
      %v807 = vld [vmem:[%s784 + $0x58] sm:$0xf]
      %v808 = vld [vmem:[%s784 + $0x5c] sm:$0xf]
      %v809 = vld [vmem:[%s784 + $0x60] sm:$0xf]
      %v810 = vld [vmem:[%s784 + $0x64] sm:$0xf]
      %v811 = vld [vmem:[%s784 + $0x68] sm:$0xf]
      %v812 = vld [vmem:[%s784 + $0x6c] sm:$0xf]
      %v813 = vld [vmem:[%s784 + $0x70] sm:$0xf]
      %v814 = vld [vmem:[%s784 + $0x74] sm:$0xf]
      %v815 = vld [vmem:[%s784 + $0x78] sm:$0xf]
      %v816 = vld [vmem:[%s784 + $0x7c] sm:$0xf]
      %v817 = vunpack.c.l.bf16 %v785
      %v818 = vunpack.c.l.bf16 %v786
      %v819 = vunpack.c.l.bf16 %v787
      %v820 = vunpack.c.l.bf16 %v788
      %v821 = vunpack.c.l.bf16 %v789
      %v822 = vunpack.c.l.bf16 %v790
      %v823 = vunpack.c.l.bf16 %v791
      %v824 = vunpack.c.l.bf16 %v792
      %v825 = vunpack.c.l.bf16 %v793
      %v826 = vunpack.c.l.bf16 %v794
      %v827 = vunpack.c.l.bf16 %v795
      %v828 = vunpack.c.l.bf16 %v796
      %v829 = vunpack.c.l.bf16 %v797
      %v830 = vunpack.c.l.bf16 %v798
      %v831 = vunpack.c.l.bf16 %v799
      %v832 = vunpack.c.l.bf16 %v800
      %v833 = vunpack.c.l.bf16 %v801
      %v834 = vunpack.c.l.bf16 %v802
      %v835 = vunpack.c.l.bf16 %v803
      %v836 = vunpack.c.l.bf16 %v804
      %v837 = vunpack.c.l.bf16 %v805
      %v838 = vunpack.c.l.bf16 %v806
      %v839 = vunpack.c.l.bf16 %v807
      %v840 = vunpack.c.l.bf16 %v808
      %v841 = vunpack.c.l.bf16 %v809
      %v842 = vunpack.c.l.bf16 %v810
      %v843 = vunpack.c.l.bf16 %v811
      %v844 = vunpack.c.l.bf16 %v812
      %v845 = vunpack.c.l.bf16 %v813
      %v846 = vunpack.c.l.bf16 %v814
      %v847 = vunpack.c.l.bf16 %v815
      %v848 = vunpack.c.l.bf16 %v816
      %v849 = vpack.c.bf16 %v818, %v817
      %v850 = vpack.c.bf16 %v820, %v819
      %v851 = vpack.c.bf16 %v822, %v821
      %v852 = vpack.c.bf16 %v824, %v823
      %v853 = vpack.c.bf16 %v826, %v825
      %v854 = vpack.c.bf16 %v828, %v827
      %v855 = vpack.c.bf16 %v830, %v829
      %v856 = vpack.c.bf16 %v832, %v831
      %v857 = vpack.c.bf16 %v834, %v833
      %v858 = vpack.c.bf16 %v836, %v835
      %v859 = vpack.c.bf16 %v838, %v837
      %v860 = vpack.c.bf16 %v840, %v839
      %v861 = vpack.c.bf16 %v842, %v841
      %v862 = vpack.c.bf16 %v844, %v843
      %v863 = vpack.c.bf16 %v846, %v845
      %v864 = vpack.c.bf16 %v848, %v847
      %s865 = scalar_lea.vmem %s1, 384
      %v866 = vld [vmem:[%s865] sm:$0xf]
      %v867 = vld [vmem:[%s865 + $0x4] sm:$0xf]
      %v868 = vld [vmem:[%s865 + $0x8] sm:$0xf]
      %v869 = vld [vmem:[%s865 + $0xc] sm:$0xf]
      %v870 = vld [vmem:[%s865 + $0x10] sm:$0xf]
      %v871 = vld [vmem:[%s865 + $0x14] sm:$0xf]
      %v872 = vld [vmem:[%s865 + $0x18] sm:$0xf]
      %v873 = vld [vmem:[%s865 + $0x1c] sm:$0xf]
      %v874 = vld [vmem:[%s865 + $0x20] sm:$0xf]
      %v875 = vld [vmem:[%s865 + $0x24] sm:$0xf]
      %v876 = vld [vmem:[%s865 + $0x28] sm:$0xf]
      %v877 = vld [vmem:[%s865 + $0x2c] sm:$0xf]
      %v878 = vld [vmem:[%s865 + $0x30] sm:$0xf]
      %v879 = vld [vmem:[%s865 + $0x34] sm:$0xf]
      %v880 = vld [vmem:[%s865 + $0x38] sm:$0xf]
      %v881 = vld [vmem:[%s865 + $0x3c] sm:$0xf]
      %v898 = vunpack.c.l.b16 %v866
      %v899 = vunpack.c.l.b16 %v867
      %v900 = vunpack.c.l.b16 %v868
      %v901 = vunpack.c.l.b16 %v869
      %v902 = vunpack.c.l.b16 %v870
      %v903 = vunpack.c.l.b16 %v871
      %v904 = vunpack.c.l.b16 %v872
      %v905 = vunpack.c.l.b16 %v873
      %v906 = vunpack.c.l.b16 %v874
      %v907 = vunpack.c.l.b16 %v875
      %v908 = vunpack.c.l.b16 %v876
      %v909 = vunpack.c.l.b16 %v877
      %v910 = vunpack.c.l.b16 %v878
      %v911 = vunpack.c.l.b16 %v879
      %v912 = vunpack.c.l.b16 %v880
      %v913 = vunpack.c.l.b16 %v881
      %v914 = vpack.c.b16 %v899, %v898
      %v915 = vpack.c.b16 %v901, %v900
      %v916 = vpack.c.b16 %v903, %v902
      %v917 = vpack.c.b16 %v905, %v904
      %v918 = vpack.c.b16 %v907, %v906
      %v919 = vpack.c.b16 %v909, %v908
      %v920 = vpack.c.b16 %v911, %v910
      %v921 = vpack.c.b16 %v913, %v912
      %930 = vmatprep.subr.bf16.mxu0 0
      %931 = vmatpush1.bf16.msra.mxu0 %v914
      %932 = vmatprep.subr.bf16.mxu0 0
      %933 = vmatpush1.bf16.msra.mxu0 %v915
      %934 = vmatprep.subr.bf16.mxu0 0
      %935 = vmatpush1.bf16.msra.mxu0 %v916
      %936 = vmatprep.subr.bf16.mxu0 0
      %937 = vmatpush1.bf16.msra.mxu0 %v917
      %938 = vmatprep.subr.bf16.mxu0 0
      %939 = vmatpush1.bf16.msra.mxu0 %v918
      %940 = vmatprep.subr.bf16.mxu0 0
      %941 = vmatpush1.bf16.msra.mxu0 %v919
      %942 = vmatprep.subr.bf16.mxu0 0
      %943 = vmatpush1.bf16.msra.mxu0 %v920
      %944 = vmatprep.subr.bf16.mxu0 0
      %945 = vmatpush1.bf16.msra.mxu0 %v921
      %946 = vmatprep.subr.bf16.mxu0 0
      %947 = vmatpush1.bf16.msra.mxu0 0
      %948 = vmatprep.subr.bf16.mxu0 0
      %949 = vmatpush1.bf16.msra.mxu0 0
      %950 = vmatprep.subr.bf16.mxu0 0
      %951 = vmatpush1.bf16.msra.mxu0 0
      %952 = vmatprep.subr.bf16.mxu0 0
      %953 = vmatpush1.bf16.msra.mxu0 0
      %954 = vmatprep.subr.bf16.mxu0 0
      %955 = vmatpush1.bf16.msra.mxu0 0
      %956 = vmatprep.subr.bf16.mxu0 0
      %957 = vmatpush1.bf16.msra.mxu0 0
      %958 = vmatprep.subr.bf16.mxu0 0
      %959 = vmatpush1.bf16.msra.mxu0 0
      %960 = vmatprep.subr.bf16.mxu0 0
      %961 = vmatpush1.bf16.msra.mxu0 0
      %962 = vmatprep.mubr.bf16.mxu0 0
      %963 = vmatmul.mubr.bf16.gmra.mrb[0].mxu0 %v849
      %v964 = vpop.f32.mrb[0].mxu0
      %v965 = vadd.f32 0.0, %v964
      %v966 = vpop.f32.mrb[0].mxu0
      %v967 = vpop.f32.mrb[0].mxu0
      %v968 = vadd.f32 0.0, %v967
      %v969 = vpop.f32.mrb[0].mxu0
      %970 = vmatprep.mubr.bf16.mxu0 0
      %971 = vmatmul.mubr.bf16.gmra.mrb[0].mxu0 %v850
      %v972 = vpop.f32.mrb[0].mxu0
      %v973 = vadd.f32 0.0, %v972
      %v974 = vpop.f32.mrb[0].mxu0
      %v975 = vpop.f32.mrb[0].mxu0
      %v976 = vadd.f32 0.0, %v975
      %v977 = vpop.f32.mrb[0].mxu0
      %978 = vmatprep.mubr.bf16.mxu0 0
      %979 = vmatmul.mubr.bf16.gmra.mrb[0].mxu0 %v851
      %v980 = vpop.f32.mrb[0].mxu0
      %v981 = vadd.f32 0.0, %v980
      %v982 = vpop.f32.mrb[0].mxu0
      %v983 = vpop.f32.mrb[0].mxu0
      %v984 = vadd.f32 0.0, %v983
      %v985 = vpop.f32.mrb[0].mxu0
      %986 = vmatprep.mubr.bf16.mxu0 0
      %987 = vmatmul.mubr.bf16.gmra.mrb[0].mxu0 %v852
      %v988 = vpop.f32.mrb[0].mxu0
      %v989 = vadd.f32 0.0, %v988
      %v990 = vpop.f32.mrb[0].mxu0
      %v991 = vpop.f32.mrb[0].mxu0
      %v992 = vadd.f32 0.0, %v991
      %v993 = vpop.f32.mrb[0].mxu0
      %994 = vmatprep.mubr.bf16.mxu0 0
      %995 = vmatmul.mubr.bf16.gmra.mrb[0].mxu0 %v853
      %v996 = vpop.f32.mrb[0].mxu0
      %v997 = vadd.f32 0.0, %v996
      %v998 = vpop.f32.mrb[0].mxu0
      %v999 = vpop.f32.mrb[0].mxu0
      %v1000 = vadd.f32 0.0, %v999
      %v1001 = vpop.f32.mrb[0].mxu0
      %1002 = vmatprep.mubr.bf16.mxu0 0
      %1003 = vmatmul.mubr.bf16.gmra.mrb[0].mxu0 %v854
      %v1004 = vpop.f32.mrb[0].mxu0
      %v1005 = vadd.f32 0.0, %v1004
      %v1006 = vpop.f32.mrb[0].mxu0
      %v1007 = vpop.f32.mrb[0].mxu0
      %v1008 = vadd.f32 0.0, %v1007
      %v1009 = vpop.f32.mrb[0].mxu0
      %1010 = vmatprep.mubr.bf16.mxu0 0
      %1011 = vmatmul.mubr.bf16.gmra.mrb[0].mxu0 %v855
      %v1012 = vpop.f32.mrb[0].mxu0
      %v1013 = vadd.f32 0.0, %v1012
      %v1014 = vpop.f32.mrb[0].mxu0
      %v1015 = vpop.f32.mrb[0].mxu0
      %v1016 = vadd.f32 0.0, %v1015
      %v1017 = vpop.f32.mrb[0].mxu0
      %1018 = vmatprep.mubr.bf16.mxu0 0
      %1019 = vmatmul.mubr.bf16.gmra.mrb[0].mxu0 %v856
      %v1020 = vpop.f32.mrb[0].mxu0
      %v1021 = vadd.f32 0.0, %v1020
      %v1022 = vpop.f32.mrb[0].mxu0
      %v1023 = vpop.f32.mrb[0].mxu0
      %v1024 = vadd.f32 0.0, %v1023
      %v1025 = vpop.f32.mrb[0].mxu0
      %1026 = vmatprep.mubr.bf16.mxu0 0
      %1027 = vmatmul.mubr.bf16.gmra.mrb[0].mxu0 %v857
      %v1028 = vpop.f32.mrb[0].mxu0
      %v1029 = vadd.f32 0.0, %v1028
      %v1030 = vpop.f32.mrb[0].mxu0
      %v1031 = vpop.f32.mrb[0].mxu0
      %v1032 = vadd.f32 0.0, %v1031
      %v1033 = vpop.f32.mrb[0].mxu0
      %1034 = vmatprep.mubr.bf16.mxu0 0
      %1035 = vmatmul.mubr.bf16.gmra.mrb[0].mxu0 %v858
      %v1036 = vpop.f32.mrb[0].mxu0
      %v1037 = vadd.f32 0.0, %v1036
      %v1038 = vpop.f32.mrb[0].mxu0
      %v1039 = vpop.f32.mrb[0].mxu0
      %v1040 = vadd.f32 0.0, %v1039
      %v1041 = vpop.f32.mrb[0].mxu0
      %1042 = vmatprep.mubr.bf16.mxu0 0
      %1043 = vmatmul.mubr.bf16.gmra.mrb[0].mxu0 %v859
      %v1044 = vpop.f32.mrb[0].mxu0
      %v1045 = vadd.f32 0.0, %v1044
      %v1046 = vpop.f32.mrb[0].mxu0
      %v1047 = vpop.f32.mrb[0].mxu0
      %v1048 = vadd.f32 0.0, %v1047
      %v1049 = vpop.f32.mrb[0].mxu0
      %1050 = vmatprep.mubr.bf16.mxu0 0
      %1051 = vmatmul.mubr.bf16.gmra.mrb[0].mxu0 %v860
      %v1052 = vpop.f32.mrb[0].mxu0
      %v1053 = vadd.f32 0.0, %v1052
      %v1054 = vpop.f32.mrb[0].mxu0
      %v1055 = vpop.f32.mrb[0].mxu0
      %v1056 = vadd.f32 0.0, %v1055
      %v1057 = vpop.f32.mrb[0].mxu0
      %1058 = vmatprep.mubr.bf16.mxu0 0
      %1059 = vmatmul.mubr.bf16.gmra.mrb[0].mxu0 %v861
      %v1060 = vpop.f32.mrb[0].mxu0
      %v1061 = vadd.f32 0.0, %v1060
      %v1062 = vpop.f32.mrb[0].mxu0
      %v1063 = vpop.f32.mrb[0].mxu0
      %v1064 = vadd.f32 0.0, %v1063
      %v1065 = vpop.f32.mrb[0].mxu0
      %1066 = vmatprep.mubr.bf16.mxu0 0
      %1067 = vmatmul.mubr.bf16.gmra.mrb[0].mxu0 %v862
      %v1068 = vpop.f32.mrb[0].mxu0
      %v1069 = vadd.f32 0.0, %v1068
      %v1070 = vpop.f32.mrb[0].mxu0
      %v1071 = vpop.f32.mrb[0].mxu0
      %v1072 = vadd.f32 0.0, %v1071
      %v1073 = vpop.f32.mrb[0].mxu0
      %1074 = vmatprep.mubr.bf16.mxu0 0
      %1075 = vmatmul.mubr.bf16.gmra.mrb[0].mxu0 %v863
      %v1076 = vpop.f32.mrb[0].mxu0
      %v1077 = vadd.f32 0.0, %v1076
      %v1078 = vpop.f32.mrb[0].mxu0
      %v1079 = vpop.f32.mrb[0].mxu0
      %v1080 = vadd.f32 0.0, %v1079
      %v1081 = vpop.f32.mrb[0].mxu0
      %1082 = vmatprep.mubr.bf16.mxu0 0
      %1083 = vmatmul.mubr.bf16.gmra.mrb[0].mxu0 %v864
      %v1084 = vpop.f32.mrb[0].mxu0
      %v1085 = vadd.f32 0.0, %v1084
      %v1086 = vpop.f32.mrb[0].mxu0
      %v1087 = vpop.f32.mrb[0].mxu0
      %v1088 = vadd.f32 0.0, %v1087
      %v1089 = vpop.f32.mrb[0].mxu0
      %1090 = vdwg.mxu0
      %v1091 = vadd.f32 %v658, %v965
      %v1092 = vadd.f32 %v661, %v968
      %v1093 = vadd.f32 %v666, %v973
      %v1094 = vadd.f32 %v669, %v976
      %v1095 = vadd.f32 %v674, %v981
      %v1096 = vadd.f32 %v677, %v984
      %v1097 = vadd.f32 %v682, %v989
      %v1098 = vadd.f32 %v685, %v992
      %v1099 = vadd.f32 %v690, %v997
      %v1100 = vadd.f32 %v693, %v1000
      %v1101 = vadd.f32 %v698, %v1005
      %v1102 = vadd.f32 %v701, %v1008
      %v1103 = vadd.f32 %v706, %v1013
      %v1104 = vadd.f32 %v709, %v1016
      %v1105 = vadd.f32 %v714, %v1021
      %v1106 = vadd.f32 %v717, %v1024
      %v1107 = vadd.f32 %v722, %v1029
      %v1108 = vadd.f32 %v725, %v1032
      %v1109 = vadd.f32 %v730, %v1037
      %v1110 = vadd.f32 %v733, %v1040
      %v1111 = vadd.f32 %v738, %v1045
      %v1112 = vadd.f32 %v741, %v1048
      %v1113 = vadd.f32 %v746, %v1053
      %v1114 = vadd.f32 %v749, %v1056
      %v1115 = vadd.f32 %v754, %v1061
      %v1116 = vadd.f32 %v757, %v1064
      %v1117 = vadd.f32 %v762, %v1069
      %v1118 = vadd.f32 %v765, %v1072
      %v1119 = vadd.f32 %v770, %v1077
      %v1120 = vadd.f32 %v773, %v1080
      %v1121 = vadd.f32 %v778, %v1085
      %v1122 = vadd.f32 %v781, %v1088
      %s1123 = scalar_lea.vmem %s165, 144
      %v1124 = vld [vmem:[%s1123] sm:$0xf]
      %v1125 = vld [vmem:[%s1123 + $0x4] sm:$0xf]
      %v1126 = vld [vmem:[%s1123 + $0x8] sm:$0xf]
      %v1127 = vld [vmem:[%s1123 + $0xc] sm:$0xf]
      %v1128 = vld [vmem:[%s1123 + $0x10] sm:$0xf]
      %v1129 = vld [vmem:[%s1123 + $0x14] sm:$0xf]
      %v1130 = vld [vmem:[%s1123 + $0x18] sm:$0xf]
      %v1131 = vld [vmem:[%s1123 + $0x1c] sm:$0xf]
      %v1132 = vld [vmem:[%s1123 + $0x20] sm:$0xf]
      %v1133 = vld [vmem:[%s1123 + $0x24] sm:$0xf]
      %v1134 = vld [vmem:[%s1123 + $0x28] sm:$0xf]
      %v1135 = vld [vmem:[%s1123 + $0x2c] sm:$0xf]
      %v1136 = vld [vmem:[%s1123 + $0x30] sm:$0xf]
      %v1137 = vld [vmem:[%s1123 + $0x34] sm:$0xf]
      %v1138 = vld [vmem:[%s1123 + $0x38] sm:$0xf]
      %v1139 = vld [vmem:[%s1123 + $0x3c] sm:$0xf]
      %v1140 = vld [vmem:[%s1123 + $0x40] sm:$0xf]
      %v1141 = vld [vmem:[%s1123 + $0x44] sm:$0xf]
      %v1142 = vld [vmem:[%s1123 + $0x48] sm:$0xf]
      %v1143 = vld [vmem:[%s1123 + $0x4c] sm:$0xf]
      %v1144 = vld [vmem:[%s1123 + $0x50] sm:$0xf]
      %v1145 = vld [vmem:[%s1123 + $0x54] sm:$0xf]
      %v1146 = vld [vmem:[%s1123 + $0x58] sm:$0xf]
      %v1147 = vld [vmem:[%s1123 + $0x5c] sm:$0xf]
      %v1148 = vld [vmem:[%s1123 + $0x60] sm:$0xf]
      %v1149 = vld [vmem:[%s1123 + $0x64] sm:$0xf]
      %v1150 = vld [vmem:[%s1123 + $0x68] sm:$0xf]
      %v1151 = vld [vmem:[%s1123 + $0x6c] sm:$0xf]
      %v1152 = vld [vmem:[%s1123 + $0x70] sm:$0xf]
      %v1153 = vld [vmem:[%s1123 + $0x74] sm:$0xf]
      %v1154 = vld [vmem:[%s1123 + $0x78] sm:$0xf]
      %v1155 = vld [vmem:[%s1123 + $0x7c] sm:$0xf]
      %v1156 = vunpack.c.l.bf16 %v1124
      %v1157 = vunpack.c.l.bf16 %v1125
      %v1158 = vunpack.c.l.bf16 %v1126
      %v1159 = vunpack.c.l.bf16 %v1127
      %v1160 = vunpack.c.l.bf16 %v1128
      %v1161 = vunpack.c.l.bf16 %v1129
      %v1162 = vunpack.c.l.bf16 %v1130
      %v1163 = vunpack.c.l.bf16 %v1131
      %v1164 = vunpack.c.l.bf16 %v1132
      %v1165 = vunpack.c.l.bf16 %v1133
      %v1166 = vunpack.c.l.bf16 %v1134
      %v1167 = vunpack.c.l.bf16 %v1135
      %v1168 = vunpack.c.l.bf16 %v1136
      %v1169 = vunpack.c.l.bf16 %v1137
      %v1170 = vunpack.c.l.bf16 %v1138
      %v1171 = vunpack.c.l.bf16 %v1139
      %v1172 = vunpack.c.l.bf16 %v1140
      %v1173 = vunpack.c.l.bf16 %v1141
      %v1174 = vunpack.c.l.bf16 %v1142
      %v1175 = vunpack.c.l.bf16 %v1143
      %v1176 = vunpack.c.l.bf16 %v1144
      %v1177 = vunpack.c.l.bf16 %v1145
      %v1178 = vunpack.c.l.bf16 %v1146
      %v1179 = vunpack.c.l.bf16 %v1147
      %v1180 = vunpack.c.l.bf16 %v1148
      %v1181 = vunpack.c.l.bf16 %v1149
      %v1182 = vunpack.c.l.bf16 %v1150
      %v1183 = vunpack.c.l.bf16 %v1151
      %v1184 = vunpack.c.l.bf16 %v1152
      %v1185 = vunpack.c.l.bf16 %v1153
      %v1186 = vunpack.c.l.bf16 %v1154
      %v1187 = vunpack.c.l.bf16 %v1155
      %v1188 = vpack.c.bf16 %v1157, %v1156
      %v1189 = vpack.c.bf16 %v1159, %v1158
      %v1190 = vpack.c.bf16 %v1161, %v1160
      %v1191 = vpack.c.bf16 %v1163, %v1162
      %v1192 = vpack.c.bf16 %v1165, %v1164
      %v1193 = vpack.c.bf16 %v1167, %v1166
      %v1194 = vpack.c.bf16 %v1169, %v1168
      %v1195 = vpack.c.bf16 %v1171, %v1170
      %v1196 = vpack.c.bf16 %v1173, %v1172
      %v1197 = vpack.c.bf16 %v1175, %v1174
      %v1198 = vpack.c.bf16 %v1177, %v1176
      %v1199 = vpack.c.bf16 %v1179, %v1178
      %v1200 = vpack.c.bf16 %v1181, %v1180
      %v1201 = vpack.c.bf16 %v1183, %v1182
      %v1202 = vpack.c.bf16 %v1185, %v1184
      %v1203 = vpack.c.bf16 %v1187, %v1186
      %s1204 = scalar_lea.vmem %s1, 64
      %v1205 = vld [vmem:[%s1204] sm:$0xf]
      %v1206 = vld [vmem:[%s1204 + $0x4] sm:$0xf]
      %v1207 = vld [vmem:[%s1204 + $0x8] sm:$0xf]
      %v1208 = vld [vmem:[%s1204 + $0xc] sm:$0xf]
      %v1209 = vld [vmem:[%s1204 + $0x10] sm:$0xf]
      %v1210 = vld [vmem:[%s1204 + $0x14] sm:$0xf]
      %v1211 = vld [vmem:[%s1204 + $0x18] sm:$0xf]
      %v1212 = vld [vmem:[%s1204 + $0x1c] sm:$0xf]
      %v1213 = vld [vmem:[%s1204 + $0x20] sm:$0xf]
      %v1214 = vld [vmem:[%s1204 + $0x24] sm:$0xf]
      %v1215 = vld [vmem:[%s1204 + $0x28] sm:$0xf]
      %v1216 = vld [vmem:[%s1204 + $0x2c] sm:$0xf]
      %v1217 = vld [vmem:[%s1204 + $0x30] sm:$0xf]
      %v1218 = vld [vmem:[%s1204 + $0x34] sm:$0xf]
      %v1219 = vld [vmem:[%s1204 + $0x38] sm:$0xf]
      %v1220 = vld [vmem:[%s1204 + $0x3c] sm:$0xf]
      %v1237 = vunpack.c.l.b16 %v1205
      %v1238 = vunpack.c.l.b16 %v1206
      %v1239 = vunpack.c.l.b16 %v1207
      %v1240 = vunpack.c.l.b16 %v1208
      %v1241 = vunpack.c.l.b16 %v1209
      %v1242 = vunpack.c.l.b16 %v1210
      %v1243 = vunpack.c.l.b16 %v1211
      %v1244 = vunpack.c.l.b16 %v1212
      %v1245 = vunpack.c.l.b16 %v1213
      %v1246 = vunpack.c.l.b16 %v1214
      %v1247 = vunpack.c.l.b16 %v1215
      %v1248 = vunpack.c.l.b16 %v1216
      %v1249 = vunpack.c.l.b16 %v1217
      %v1250 = vunpack.c.l.b16 %v1218
      %v1251 = vunpack.c.l.b16 %v1219
      %v1252 = vunpack.c.l.b16 %v1220
      %v1253 = vpack.c.b16 %v1238, %v1237
      %v1254 = vpack.c.b16 %v1240, %v1239
      %v1255 = vpack.c.b16 %v1242, %v1241
      %v1256 = vpack.c.b16 %v1244, %v1243
      %v1257 = vpack.c.b16 %v1246, %v1245
      %v1258 = vpack.c.b16 %v1248, %v1247
      %v1259 = vpack.c.b16 %v1250, %v1249
      %v1260 = vpack.c.b16 %v1252, %v1251
      %1269 = vmatprep.subr.bf16.mxu0 0
      %1270 = vmatpush1.bf16.msra.mxu0 %v1253
      %1271 = vmatprep.subr.bf16.mxu0 0
      %1272 = vmatpush1.bf16.msra.mxu0 %v1254
      %1273 = vmatprep.subr.bf16.mxu0 0
      %1274 = vmatpush1.bf16.msra.mxu0 %v1255
      %1275 = vmatprep.subr.bf16.mxu0 0
      %1276 = vmatpush1.bf16.msra.mxu0 %v1256
      %1277 = vmatprep.subr.bf16.mxu0 0
      %1278 = vmatpush1.bf16.msra.mxu0 %v1257
      %1279 = vmatprep.subr.bf16.mxu0 0
      %1280 = vmatpush1.bf16.msra.mxu0 %v1258
      %1281 = vmatprep.subr.bf16.mxu0 0
      %1282 = vmatpush1.bf16.msra.mxu0 %v1259
      %1283 = vmatprep.subr.bf16.mxu0 0
      %1284 = vmatpush1.bf16.msra.mxu0 %v1260
      %1285 = vmatprep.subr.bf16.mxu0 0
      %1286 = vmatpush1.bf16.msra.mxu0 0
      %1287 = vmatprep.subr.bf16.mxu0 0
      %1288 = vmatpush1.bf16.msra.mxu0 0
      %1289 = vmatprep.subr.bf16.mxu0 0
      %1290 = vmatpush1.bf16.msra.mxu0 0
      %1291 = vmatprep.subr.bf16.mxu0 0
      %1292 = vmatpush1.bf16.msra.mxu0 0
      %1293 = vmatprep.subr.bf16.mxu0 0
      %1294 = vmatpush1.bf16.msra.mxu0 0
      %1295 = vmatprep.subr.bf16.mxu0 0
      %1296 = vmatpush1.bf16.msra.mxu0 0
      %1297 = vmatprep.subr.bf16.mxu0 0
      %1298 = vmatpush1.bf16.msra.mxu0 0
      %1299 = vmatprep.subr.bf16.mxu0 0
      %1300 = vmatpush1.bf16.msra.mxu0 0
      %1301 = vmatprep.mubr.bf16.mxu0 0
      %1302 = vmatmul.mubr.bf16.gmra.mrb[0].mxu0 %v1188
      %v1303 = vpop.f32.mrb[0].mxu0
      %v1304 = vadd.f32 0.0, %v1303
      %v1305 = vpop.f32.mrb[0].mxu0
      %v1306 = vpop.f32.mrb[0].mxu0
      %v1307 = vadd.f32 0.0, %v1306
      %v1308 = vpop.f32.mrb[0].mxu0
      %1309 = vmatprep.mubr.bf16.mxu0 0
      %1310 = vmatmul.mubr.bf16.gmra.mrb[0].mxu0 %v1189
      %v1311 = vpop.f32.mrb[0].mxu0
      %v1312 = vadd.f32 0.0, %v1311
      %v1313 = vpop.f32.mrb[0].mxu0
      %v1314 = vpop.f32.mrb[0].mxu0
      %v1315 = vadd.f32 0.0, %v1314
      %v1316 = vpop.f32.mrb[0].mxu0
      %1317 = vmatprep.mubr.bf16.mxu0 0
      %1318 = vmatmul.mubr.bf16.gmra.mrb[0].mxu0 %v1190
      %v1319 = vpop.f32.mrb[0].mxu0
      %v1320 = vadd.f32 0.0, %v1319
      %v1321 = vpop.f32.mrb[0].mxu0
      %v1322 = vpop.f32.mrb[0].mxu0
      %v1323 = vadd.f32 0.0, %v1322
      %v1324 = vpop.f32.mrb[0].mxu0
      %1325 = vmatprep.mubr.bf16.mxu0 0
      %1326 = vmatmul.mubr.bf16.gmra.mrb[0].mxu0 %v1191
      %v1327 = vpop.f32.mrb[0].mxu0
      %v1328 = vadd.f32 0.0, %v1327
      %v1329 = vpop.f32.mrb[0].mxu0
      %v1330 = vpop.f32.mrb[0].mxu0
      %v1331 = vadd.f32 0.0, %v1330
      %v1332 = vpop.f32.mrb[0].mxu0
      %1333 = vmatprep.mubr.bf16.mxu0 0
      %1334 = vmatmul.mubr.bf16.gmra.mrb[0].mxu0 %v1192
      %v1335 = vpop.f32.mrb[0].mxu0
      %v1336 = vadd.f32 0.0, %v1335
      %v1337 = vpop.f32.mrb[0].mxu0
      %v1338 = vpop.f32.mrb[0].mxu0
      %v1339 = vadd.f32 0.0, %v1338
      %v1340 = vpop.f32.mrb[0].mxu0
      %1341 = vmatprep.mubr.bf16.mxu0 0
      %1342 = vmatmul.mubr.bf16.gmra.mrb[0].mxu0 %v1193
      %v1343 = vpop.f32.mrb[0].mxu0
      %v1344 = vadd.f32 0.0, %v1343
      %v1345 = vpop.f32.mrb[0].mxu0
      %v1346 = vpop.f32.mrb[0].mxu0
      %v1347 = vadd.f32 0.0, %v1346
      %v1348 = vpop.f32.mrb[0].mxu0
      %1349 = vmatprep.mubr.bf16.mxu0 0
      %1350 = vmatmul.mubr.bf16.gmra.mrb[0].mxu0 %v1194
      %v1351 = vpop.f32.mrb[0].mxu0
      %v1352 = vadd.f32 0.0, %v1351
      %v1353 = vpop.f32.mrb[0].mxu0
      %v1354 = vpop.f32.mrb[0].mxu0
      %v1355 = vadd.f32 0.0, %v1354
      %v1356 = vpop.f32.mrb[0].mxu0
      %1357 = vmatprep.mubr.bf16.mxu0 0
      %1358 = vmatmul.mubr.bf16.gmra.mrb[0].mxu0 %v1195
      %v1359 = vpop.f32.mrb[0].mxu0
      %v1360 = vadd.f32 0.0, %v1359
      %v1361 = vpop.f32.mrb[0].mxu0
      %v1362 = vpop.f32.mrb[0].mxu0
      %v1363 = vadd.f32 0.0, %v1362
      %v1364 = vpop.f32.mrb[0].mxu0
      %1365 = vmatprep.mubr.bf16.mxu0 0
      %1366 = vmatmul.mubr.bf16.gmra.mrb[0].mxu0 %v1196
      %v1367 = vpop.f32.mrb[0].mxu0
      %v1368 = vadd.f32 0.0, %v1367
      %v1369 = vpop.f32.mrb[0].mxu0
      %v1370 = vpop.f32.mrb[0].mxu0
      %v1371 = vadd.f32 0.0, %v1370
      %v1372 = vpop.f32.mrb[0].mxu0
      %1373 = vmatprep.mubr.bf16.mxu0 0
      %1374 = vmatmul.mubr.bf16.gmra.mrb[0].mxu0 %v1197
      %v1375 = vpop.f32.mrb[0].mxu0
      %v1376 = vadd.f32 0.0, %v1375
      %v1377 = vpop.f32.mrb[0].mxu0
      %v1378 = vpop.f32.mrb[0].mxu0
      %v1379 = vadd.f32 0.0, %v1378
      %v1380 = vpop.f32.mrb[0].mxu0
      %1381 = vmatprep.mubr.bf16.mxu0 0
      %1382 = vmatmul.mubr.bf16.gmra.mrb[0].mxu0 %v1198
      %v1383 = vpop.f32.mrb[0].mxu0
      %v1384 = vadd.f32 0.0, %v1383
      %v1385 = vpop.f32.mrb[0].mxu0
      %v1386 = vpop.f32.mrb[0].mxu0
      %v1387 = vadd.f32 0.0, %v1386
      %v1388 = vpop.f32.mrb[0].mxu0
      %1389 = vmatprep.mubr.bf16.mxu0 0
      %1390 = vmatmul.mubr.bf16.gmra.mrb[0].mxu0 %v1199
      %v1391 = vpop.f32.mrb[0].mxu0
      %v1392 = vadd.f32 0.0, %v1391
      %v1393 = vpop.f32.mrb[0].mxu0
      %v1394 = vpop.f32.mrb[0].mxu0
      %v1395 = vadd.f32 0.0, %v1394
      %v1396 = vpop.f32.mrb[0].mxu0
      %1397 = vmatprep.mubr.bf16.mxu0 0
      %1398 = vmatmul.mubr.bf16.gmra.mrb[0].mxu0 %v1200
      %v1399 = vpop.f32.mrb[0].mxu0
      %v1400 = vadd.f32 0.0, %v1399
      %v1401 = vpop.f32.mrb[0].mxu0
      %v1402 = vpop.f32.mrb[0].mxu0
      %v1403 = vadd.f32 0.0, %v1402
      %v1404 = vpop.f32.mrb[0].mxu0
      %1405 = vmatprep.mubr.bf16.mxu0 0
      %1406 = vmatmul.mubr.bf16.gmra.mrb[0].mxu0 %v1201
      %v1407 = vpop.f32.mrb[0].mxu0
      %v1408 = vadd.f32 0.0, %v1407
      %v1409 = vpop.f32.mrb[0].mxu0
      %v1410 = vpop.f32.mrb[0].mxu0
      %v1411 = vadd.f32 0.0, %v1410
      %v1412 = vpop.f32.mrb[0].mxu0
      %1413 = vmatprep.mubr.bf16.mxu0 0
      %1414 = vmatmul.mubr.bf16.gmra.mrb[0].mxu0 %v1202
      %v1415 = vpop.f32.mrb[0].mxu0
      %v1416 = vadd.f32 0.0, %v1415
      %v1417 = vpop.f32.mrb[0].mxu0
      %v1418 = vpop.f32.mrb[0].mxu0
      %v1419 = vadd.f32 0.0, %v1418
      %v1420 = vpop.f32.mrb[0].mxu0
      %1421 = vmatprep.mubr.bf16.mxu0 0
      %1422 = vmatmul.mubr.bf16.gmra.mrb[0].mxu0 %v1203
      %v1423 = vpop.f32.mrb[0].mxu0
      %v1424 = vadd.f32 0.0, %v1423
      %v1425 = vpop.f32.mrb[0].mxu0
      %v1426 = vpop.f32.mrb[0].mxu0
      %v1427 = vadd.f32 0.0, %v1426
      %v1428 = vpop.f32.mrb[0].mxu0
      %1429 = vdwg.mxu0
      %v1430 = vadd.f32 %v1091, %v1304
      %v1431 = vadd.f32 %v1092, %v1307
      %v1432 = vadd.f32 %v1093, %v1312
      %v1433 = vadd.f32 %v1094, %v1315
      %v1434 = vadd.f32 %v1095, %v1320
      %v1435 = vadd.f32 %v1096, %v1323
      %v1436 = vadd.f32 %v1097, %v1328
      %v1437 = vadd.f32 %v1098, %v1331
      %v1438 = vadd.f32 %v1099, %v1336
      %v1439 = vadd.f32 %v1100, %v1339
      %v1440 = vadd.f32 %v1101, %v1344
      %v1441 = vadd.f32 %v1102, %v1347
      %v1442 = vadd.f32 %v1103, %v1352
      %v1443 = vadd.f32 %v1104, %v1355
      %v1444 = vadd.f32 %v1105, %v1360
      %v1445 = vadd.f32 %v1106, %v1363
      %v1446 = vadd.f32 %v1107, %v1368
      %v1447 = vadd.f32 %v1108, %v1371
      %v1448 = vadd.f32 %v1109, %v1376
      %v1449 = vadd.f32 %v1110, %v1379
      %v1450 = vadd.f32 %v1111, %v1384
      %v1451 = vadd.f32 %v1112, %v1387
      %v1452 = vadd.f32 %v1113, %v1392
      %v1453 = vadd.f32 %v1114, %v1395
      %v1454 = vadd.f32 %v1115, %v1400
      %v1455 = vadd.f32 %v1116, %v1403
      %v1456 = vadd.f32 %v1117, %v1408
      %v1457 = vadd.f32 %v1118, %v1411
      %v1458 = vadd.f32 %v1119, %v1416
      %v1459 = vadd.f32 %v1120, %v1419
      %v1460 = vadd.f32 %v1121, %v1424
      %v1461 = vadd.f32 %v1122, %v1427
      %s1462 = scalar_lea.vmem %s165, 152
      %v1463 = vld [vmem:[%s1462] sm:$0xf]
      %v1464 = vld [vmem:[%s1462 + $0x4] sm:$0xf]
      %v1465 = vld [vmem:[%s1462 + $0x8] sm:$0xf]
      %v1466 = vld [vmem:[%s1462 + $0xc] sm:$0xf]
      %v1467 = vld [vmem:[%s1462 + $0x10] sm:$0xf]
      %v1468 = vld [vmem:[%s1462 + $0x14] sm:$0xf]
      %v1469 = vld [vmem:[%s1462 + $0x18] sm:$0xf]
      %v1470 = vld [vmem:[%s1462 + $0x1c] sm:$0xf]
      %v1471 = vld [vmem:[%s1462 + $0x20] sm:$0xf]
      %v1472 = vld [vmem:[%s1462 + $0x24] sm:$0xf]
      %v1473 = vld [vmem:[%s1462 + $0x28] sm:$0xf]
      %v1474 = vld [vmem:[%s1462 + $0x2c] sm:$0xf]
      %v1475 = vld [vmem:[%s1462 + $0x30] sm:$0xf]
      %v1476 = vld [vmem:[%s1462 + $0x34] sm:$0xf]
      %v1477 = vld [vmem:[%s1462 + $0x38] sm:$0xf]
      %v1478 = vld [vmem:[%s1462 + $0x3c] sm:$0xf]
      %v1479 = vld [vmem:[%s1462 + $0x40] sm:$0xf]
      %v1480 = vld [vmem:[%s1462 + $0x44] sm:$0xf]
      %v1481 = vld [vmem:[%s1462 + $0x48] sm:$0xf]
      %v1482 = vld [vmem:[%s1462 + $0x4c] sm:$0xf]
      %v1483 = vld [vmem:[%s1462 + $0x50] sm:$0xf]
      %v1484 = vld [vmem:[%s1462 + $0x54] sm:$0xf]
      %v1485 = vld [vmem:[%s1462 + $0x58] sm:$0xf]
      %v1486 = vld [vmem:[%s1462 + $0x5c] sm:$0xf]
      %v1487 = vld [vmem:[%s1462 + $0x60] sm:$0xf]
      %v1488 = vld [vmem:[%s1462 + $0x64] sm:$0xf]
      %v1489 = vld [vmem:[%s1462 + $0x68] sm:$0xf]
      %v1490 = vld [vmem:[%s1462 + $0x6c] sm:$0xf]
      %v1491 = vld [vmem:[%s1462 + $0x70] sm:$0xf]
      %v1492 = vld [vmem:[%s1462 + $0x74] sm:$0xf]
      %v1493 = vld [vmem:[%s1462 + $0x78] sm:$0xf]
      %v1494 = vld [vmem:[%s1462 + $0x7c] sm:$0xf]
      %v1495 = vunpack.c.l.bf16 %v1463
      %v1496 = vunpack.c.l.bf16 %v1464
      %v1497 = vunpack.c.l.bf16 %v1465
      %v1498 = vunpack.c.l.bf16 %v1466
      %v1499 = vunpack.c.l.bf16 %v1467
      %v1500 = vunpack.c.l.bf16 %v1468
      %v1501 = vunpack.c.l.bf16 %v1469
      %v1502 = vunpack.c.l.bf16 %v1470
      %v1503 = vunpack.c.l.bf16 %v1471
      %v1504 = vunpack.c.l.bf16 %v1472
      %v1505 = vunpack.c.l.bf16 %v1473
      %v1506 = vunpack.c.l.bf16 %v1474
      %v1507 = vunpack.c.l.bf16 %v1475
      %v1508 = vunpack.c.l.bf16 %v1476
      %v1509 = vunpack.c.l.bf16 %v1477
      %v1510 = vunpack.c.l.bf16 %v1478
      %v1511 = vunpack.c.l.bf16 %v1479
      %v1512 = vunpack.c.l.bf16 %v1480
      %v1513 = vunpack.c.l.bf16 %v1481
      %v1514 = vunpack.c.l.bf16 %v1482
      %v1515 = vunpack.c.l.bf16 %v1483
      %v1516 = vunpack.c.l.bf16 %v1484
      %v1517 = vunpack.c.l.bf16 %v1485
      %v1518 = vunpack.c.l.bf16 %v1486
      %v1519 = vunpack.c.l.bf16 %v1487
      %v1520 = vunpack.c.l.bf16 %v1488
      %v1521 = vunpack.c.l.bf16 %v1489
      %v1522 = vunpack.c.l.bf16 %v1490
      %v1523 = vunpack.c.l.bf16 %v1491
      %v1524 = vunpack.c.l.bf16 %v1492
      %v1525 = vunpack.c.l.bf16 %v1493
      %v1526 = vunpack.c.l.bf16 %v1494
      %v1527 = vpack.c.bf16 %v1496, %v1495
      %v1528 = vpack.c.bf16 %v1498, %v1497
      %v1529 = vpack.c.bf16 %v1500, %v1499
      %v1530 = vpack.c.bf16 %v1502, %v1501
      %v1531 = vpack.c.bf16 %v1504, %v1503
      %v1532 = vpack.c.bf16 %v1506, %v1505
      %v1533 = vpack.c.bf16 %v1508, %v1507
      %v1534 = vpack.c.bf16 %v1510, %v1509
      %v1535 = vpack.c.bf16 %v1512, %v1511
      %v1536 = vpack.c.bf16 %v1514, %v1513
      %v1537 = vpack.c.bf16 %v1516, %v1515
      %v1538 = vpack.c.bf16 %v1518, %v1517
      %v1539 = vpack.c.bf16 %v1520, %v1519
      %v1540 = vpack.c.bf16 %v1522, %v1521
      %v1541 = vpack.c.bf16 %v1524, %v1523
      %v1542 = vpack.c.bf16 %v1526, %v1525
      %s1543 = scalar_lea.vmem %s1, 256
      %v1544 = vld [vmem:[%s1543] sm:$0xf]
      %v1545 = vld [vmem:[%s1543 + $0x4] sm:$0xf]
      %v1546 = vld [vmem:[%s1543 + $0x8] sm:$0xf]
      %v1547 = vld [vmem:[%s1543 + $0xc] sm:$0xf]
      %v1548 = vld [vmem:[%s1543 + $0x10] sm:$0xf]
      %v1549 = vld [vmem:[%s1543 + $0x14] sm:$0xf]
      %v1550 = vld [vmem:[%s1543 + $0x18] sm:$0xf]
      %v1551 = vld [vmem:[%s1543 + $0x1c] sm:$0xf]
      %v1552 = vld [vmem:[%s1543 + $0x20] sm:$0xf]
      %v1553 = vld [vmem:[%s1543 + $0x24] sm:$0xf]
      %v1554 = vld [vmem:[%s1543 + $0x28] sm:$0xf]
      %v1555 = vld [vmem:[%s1543 + $0x2c] sm:$0xf]
      %v1556 = vld [vmem:[%s1543 + $0x30] sm:$0xf]
      %v1557 = vld [vmem:[%s1543 + $0x34] sm:$0xf]
      %v1558 = vld [vmem:[%s1543 + $0x38] sm:$0xf]
      %v1559 = vld [vmem:[%s1543 + $0x3c] sm:$0xf]
      %v1576 = vunpack.c.l.b16 %v1544
      %v1577 = vunpack.c.l.b16 %v1545
      %v1578 = vunpack.c.l.b16 %v1546
      %v1579 = vunpack.c.l.b16 %v1547
      %v1580 = vunpack.c.l.b16 %v1548
      %v1581 = vunpack.c.l.b16 %v1549
      %v1582 = vunpack.c.l.b16 %v1550
      %v1583 = vunpack.c.l.b16 %v1551
      %v1584 = vunpack.c.l.b16 %v1552
      %v1585 = vunpack.c.l.b16 %v1553
      %v1586 = vunpack.c.l.b16 %v1554
      %v1587 = vunpack.c.l.b16 %v1555
      %v1588 = vunpack.c.l.b16 %v1556
      %v1589 = vunpack.c.l.b16 %v1557
      %v1590 = vunpack.c.l.b16 %v1558
      %v1591 = vunpack.c.l.b16 %v1559
      %v1592 = vpack.c.b16 %v1577, %v1576
      %v1593 = vpack.c.b16 %v1579, %v1578
      %v1594 = vpack.c.b16 %v1581, %v1580
      %v1595 = vpack.c.b16 %v1583, %v1582
      %v1596 = vpack.c.b16 %v1585, %v1584
      %v1597 = vpack.c.b16 %v1587, %v1586
      %v1598 = vpack.c.b16 %v1589, %v1588
      %v1599 = vpack.c.b16 %v1591, %v1590
      %1608 = vmatprep.subr.bf16.mxu0 0
      %1609 = vmatpush1.bf16.msra.mxu0 %v1592
      %1610 = vmatprep.subr.bf16.mxu0 0
      %1611 = vmatpush1.bf16.msra.mxu0 %v1593
      %1612 = vmatprep.subr.bf16.mxu0 0
      %1613 = vmatpush1.bf16.msra.mxu0 %v1594
      %1614 = vmatprep.subr.bf16.mxu0 0
      %1615 = vmatpush1.bf16.msra.mxu0 %v1595
      %1616 = vmatprep.subr.bf16.mxu0 0
      %1617 = vmatpush1.bf16.msra.mxu0 %v1596
      %1618 = vmatprep.subr.bf16.mxu0 0
      %1619 = vmatpush1.bf16.msra.mxu0 %v1597
      %1620 = vmatprep.subr.bf16.mxu0 0
      %1621 = vmatpush1.bf16.msra.mxu0 %v1598
      %1622 = vmatprep.subr.bf16.mxu0 0
      %1623 = vmatpush1.bf16.msra.mxu0 %v1599
      %1624 = vmatprep.subr.bf16.mxu0 0
      %1625 = vmatpush1.bf16.msra.mxu0 0
      %1626 = vmatprep.subr.bf16.mxu0 0
      %1627 = vmatpush1.bf16.msra.mxu0 0
      %1628 = vmatprep.subr.bf16.mxu0 0
      %1629 = vmatpush1.bf16.msra.mxu0 0
      %1630 = vmatprep.subr.bf16.mxu0 0
      %1631 = vmatpush1.bf16.msra.mxu0 0
      %1632 = vmatprep.subr.bf16.mxu0 0
      %1633 = vmatpush1.bf16.msra.mxu0 0
      %1634 = vmatprep.subr.bf16.mxu0 0
      %1635 = vmatpush1.bf16.msra.mxu0 0
      %1636 = vmatprep.subr.bf16.mxu0 0
      %1637 = vmatpush1.bf16.msra.mxu0 0
      %1638 = vmatprep.subr.bf16.mxu0 0
      %1639 = vmatpush1.bf16.msra.mxu0 0
      %1640 = vmatprep.mubr.bf16.mxu0 0
      %1641 = vmatmul.mubr.bf16.gmra.mrb[0].mxu0 %v1527
      %v1642 = vpop.f32.mrb[0].mxu0
      %v1643 = vadd.f32 0.0, %v1642
      %v1644 = vpop.f32.mrb[0].mxu0
      %v1645 = vpop.f32.mrb[0].mxu0
      %v1646 = vadd.f32 0.0, %v1645
      %v1647 = vpop.f32.mrb[0].mxu0
      %1648 = vmatprep.mubr.bf16.mxu0 0
      %1649 = vmatmul.mubr.bf16.gmra.mrb[0].mxu0 %v1528
      %v1650 = vpop.f32.mrb[0].mxu0
      %v1651 = vadd.f32 0.0, %v1650
      %v1652 = vpop.f32.mrb[0].mxu0
      %v1653 = vpop.f32.mrb[0].mxu0
      %v1654 = vadd.f32 0.0, %v1653
      %v1655 = vpop.f32.mrb[0].mxu0
      %1656 = vmatprep.mubr.bf16.mxu0 0
      %1657 = vmatmul.mubr.bf16.gmra.mrb[0].mxu0 %v1529
      %v1658 = vpop.f32.mrb[0].mxu0
      %v1659 = vadd.f32 0.0, %v1658
      %v1660 = vpop.f32.mrb[0].mxu0
      %v1661 = vpop.f32.mrb[0].mxu0
      %v1662 = vadd.f32 0.0, %v1661
      %v1663 = vpop.f32.mrb[0].mxu0
      %1664 = vmatprep.mubr.bf16.mxu0 0
      %1665 = vmatmul.mubr.bf16.gmra.mrb[0].mxu0 %v1530
      %v1666 = vpop.f32.mrb[0].mxu0
      %v1667 = vadd.f32 0.0, %v1666
      %v1668 = vpop.f32.mrb[0].mxu0
      %v1669 = vpop.f32.mrb[0].mxu0
      %v1670 = vadd.f32 0.0, %v1669
      %v1671 = vpop.f32.mrb[0].mxu0
      %1672 = vmatprep.mubr.bf16.mxu0 0
      %1673 = vmatmul.mubr.bf16.gmra.mrb[0].mxu0 %v1531
      %v1674 = vpop.f32.mrb[0].mxu0
      %v1675 = vadd.f32 0.0, %v1674
      %v1676 = vpop.f32.mrb[0].mxu0
      %v1677 = vpop.f32.mrb[0].mxu0
      %v1678 = vadd.f32 0.0, %v1677
      %v1679 = vpop.f32.mrb[0].mxu0
      %1680 = vmatprep.mubr.bf16.mxu0 0
      %1681 = vmatmul.mubr.bf16.gmra.mrb[0].mxu0 %v1532
      %v1682 = vpop.f32.mrb[0].mxu0
      %v1683 = vadd.f32 0.0, %v1682
      %v1684 = vpop.f32.mrb[0].mxu0
      %v1685 = vpop.f32.mrb[0].mxu0
      %v1686 = vadd.f32 0.0, %v1685
      %v1687 = vpop.f32.mrb[0].mxu0
      %1688 = vmatprep.mubr.bf16.mxu0 0
      %1689 = vmatmul.mubr.bf16.gmra.mrb[0].mxu0 %v1533
      %v1690 = vpop.f32.mrb[0].mxu0
      %v1691 = vadd.f32 0.0, %v1690
      %v1692 = vpop.f32.mrb[0].mxu0
      %v1693 = vpop.f32.mrb[0].mxu0
      %v1694 = vadd.f32 0.0, %v1693
      %v1695 = vpop.f32.mrb[0].mxu0
      %1696 = vmatprep.mubr.bf16.mxu0 0
      %1697 = vmatmul.mubr.bf16.gmra.mrb[0].mxu0 %v1534
      %v1698 = vpop.f32.mrb[0].mxu0
      %v1699 = vadd.f32 0.0, %v1698
      %v1700 = vpop.f32.mrb[0].mxu0
      %v1701 = vpop.f32.mrb[0].mxu0
      %v1702 = vadd.f32 0.0, %v1701
      %v1703 = vpop.f32.mrb[0].mxu0
      %1704 = vmatprep.mubr.bf16.mxu0 0
      %1705 = vmatmul.mubr.bf16.gmra.mrb[0].mxu0 %v1535
      %v1706 = vpop.f32.mrb[0].mxu0
      %v1707 = vadd.f32 0.0, %v1706
      %v1708 = vpop.f32.mrb[0].mxu0
      %v1709 = vpop.f32.mrb[0].mxu0
      %v1710 = vadd.f32 0.0, %v1709
      %v1711 = vpop.f32.mrb[0].mxu0
      %1712 = vmatprep.mubr.bf16.mxu0 0
      %1713 = vmatmul.mubr.bf16.gmra.mrb[0].mxu0 %v1536
      %v1714 = vpop.f32.mrb[0].mxu0
      %v1715 = vadd.f32 0.0, %v1714
      %v1716 = vpop.f32.mrb[0].mxu0
      %v1717 = vpop.f32.mrb[0].mxu0
      %v1718 = vadd.f32 0.0, %v1717
      %v1719 = vpop.f32.mrb[0].mxu0
      %1720 = vmatprep.mubr.bf16.mxu0 0
      %1721 = vmatmul.mubr.bf16.gmra.mrb[0].mxu0 %v1537
      %v1722 = vpop.f32.mrb[0].mxu0
      %v1723 = vadd.f32 0.0, %v1722
      %v1724 = vpop.f32.mrb[0].mxu0
      %v1725 = vpop.f32.mrb[0].mxu0
      %v1726 = vadd.f32 0.0, %v1725
      %v1727 = vpop.f32.mrb[0].mxu0
      %1728 = vmatprep.mubr.bf16.mxu0 0
      %1729 = vmatmul.mubr.bf16.gmra.mrb[0].mxu0 %v1538
      %v1730 = vpop.f32.mrb[0].mxu0
      %v1731 = vadd.f32 0.0, %v1730
      %v1732 = vpop.f32.mrb[0].mxu0
      %v1733 = vpop.f32.mrb[0].mxu0
      %v1734 = vadd.f32 0.0, %v1733
      %v1735 = vpop.f32.mrb[0].mxu0
      %1736 = vmatprep.mubr.bf16.mxu0 0
      %1737 = vmatmul.mubr.bf16.gmra.mrb[0].mxu0 %v1539
      %v1738 = vpop.f32.mrb[0].mxu0
      %v1739 = vadd.f32 0.0, %v1738
      %v1740 = vpop.f32.mrb[0].mxu0
      %v1741 = vpop.f32.mrb[0].mxu0
      %v1742 = vadd.f32 0.0, %v1741
      %v1743 = vpop.f32.mrb[0].mxu0
      %1744 = vmatprep.mubr.bf16.mxu0 0
      %1745 = vmatmul.mubr.bf16.gmra.mrb[0].mxu0 %v1540
      %v1746 = vpop.f32.mrb[0].mxu0
      %v1747 = vadd.f32 0.0, %v1746
      %v1748 = vpop.f32.mrb[0].mxu0
      %v1749 = vpop.f32.mrb[0].mxu0
      %v1750 = vadd.f32 0.0, %v1749
      %v1751 = vpop.f32.mrb[0].mxu0
      %1752 = vmatprep.mubr.bf16.mxu0 0
      %1753 = vmatmul.mubr.bf16.gmra.mrb[0].mxu0 %v1541
      %v1754 = vpop.f32.mrb[0].mxu0
      %v1755 = vadd.f32 0.0, %v1754
      %v1756 = vpop.f32.mrb[0].mxu0
      %v1757 = vpop.f32.mrb[0].mxu0
      %v1758 = vadd.f32 0.0, %v1757
      %v1759 = vpop.f32.mrb[0].mxu0
      %1760 = vmatprep.mubr.bf16.mxu0 0
      %1761 = vmatmul.mubr.bf16.gmra.mrb[0].mxu0 %v1542
      %v1762 = vpop.f32.mrb[0].mxu0
      %v1763 = vadd.f32 0.0, %v1762
      %v1764 = vpop.f32.mrb[0].mxu0
      %v1765 = vpop.f32.mrb[0].mxu0
      %v1766 = vadd.f32 0.0, %v1765
      %v1767 = vpop.f32.mrb[0].mxu0
      %1768 = vdwg.mxu0
      %v1769 = vadd.f32 %v1430, %v1643
      %v1770 = vadd.f32 %v1431, %v1646
      %v1771 = vadd.f32 %v1432, %v1651
      %v1772 = vadd.f32 %v1433, %v1654
      %v1773 = vadd.f32 %v1434, %v1659
      %v1774 = vadd.f32 %v1435, %v1662
      %v1775 = vadd.f32 %v1436, %v1667
      %v1776 = vadd.f32 %v1437, %v1670
      %v1777 = vadd.f32 %v1438, %v1675
      %v1778 = vadd.f32 %v1439, %v1678
      %v1779 = vadd.f32 %v1440, %v1683
      %v1780 = vadd.f32 %v1441, %v1686
      %v1781 = vadd.f32 %v1442, %v1691
      %v1782 = vadd.f32 %v1443, %v1694
      %v1783 = vadd.f32 %v1444, %v1699
      %v1784 = vadd.f32 %v1445, %v1702
      %v1785 = vadd.f32 %v1446, %v1707
      %v1786 = vadd.f32 %v1447, %v1710
      %v1787 = vadd.f32 %v1448, %v1715
      %v1788 = vadd.f32 %v1449, %v1718
      %v1789 = vadd.f32 %v1450, %v1723
      %v1790 = vadd.f32 %v1451, %v1726
      %v1791 = vadd.f32 %v1452, %v1731
      %v1792 = vadd.f32 %v1453, %v1734
      %v1793 = vadd.f32 %v1454, %v1739
      %v1794 = vadd.f32 %v1455, %v1742
      %v1795 = vadd.f32 %v1456, %v1747
      %v1796 = vadd.f32 %v1457, %v1750
      %v1797 = vadd.f32 %v1458, %v1755
      %v1798 = vadd.f32 %v1459, %v1758
      %v1799 = vadd.f32 %v1460, %v1763
      %v1800 = vadd.f32 %v1461, %v1766
      %s1801 = scalar_lea.vmem %s165, 160
      %v1802 = vld [vmem:[%s1801] sm:$0xf]
      %v1803 = vld [vmem:[%s1801 + $0x4] sm:$0xf]
      %v1804 = vld [vmem:[%s1801 + $0x8] sm:$0xf]
      %v1805 = vld [vmem:[%s1801 + $0xc] sm:$0xf]
      %v1806 = vld [vmem:[%s1801 + $0x10] sm:$0xf]
      %v1807 = vld [vmem:[%s1801 + $0x14] sm:$0xf]
      %v1808 = vld [vmem:[%s1801 + $0x18] sm:$0xf]
      %v1809 = vld [vmem:[%s1801 + $0x1c] sm:$0xf]
      %v1810 = vld [vmem:[%s1801 + $0x20] sm:$0xf]
      %v1811 = vld [vmem:[%s1801 + $0x24] sm:$0xf]
      %v1812 = vld [vmem:[%s1801 + $0x28] sm:$0xf]
      %v1813 = vld [vmem:[%s1801 + $0x2c] sm:$0xf]
      %v1814 = vld [vmem:[%s1801 + $0x30] sm:$0xf]
      %v1815 = vld [vmem:[%s1801 + $0x34] sm:$0xf]
      %v1816 = vld [vmem:[%s1801 + $0x38] sm:$0xf]
      %v1817 = vld [vmem:[%s1801 + $0x3c] sm:$0xf]
      %v1818 = vld [vmem:[%s1801 + $0x40] sm:$0xf]
      %v1819 = vld [vmem:[%s1801 + $0x44] sm:$0xf]
      %v1820 = vld [vmem:[%s1801 + $0x48] sm:$0xf]
      %v1821 = vld [vmem:[%s1801 + $0x4c] sm:$0xf]
      %v1822 = vld [vmem:[%s1801 + $0x50] sm:$0xf]
      %v1823 = vld [vmem:[%s1801 + $0x54] sm:$0xf]
      %v1824 = vld [vmem:[%s1801 + $0x58] sm:$0xf]
      %v1825 = vld [vmem:[%s1801 + $0x5c] sm:$0xf]
      %v1826 = vld [vmem:[%s1801 + $0x60] sm:$0xf]
      %v1827 = vld [vmem:[%s1801 + $0x64] sm:$0xf]
      %v1828 = vld [vmem:[%s1801 + $0x68] sm:$0xf]
      %v1829 = vld [vmem:[%s1801 + $0x6c] sm:$0xf]
      %v1830 = vld [vmem:[%s1801 + $0x70] sm:$0xf]
      %v1831 = vld [vmem:[%s1801 + $0x74] sm:$0xf]
      %v1832 = vld [vmem:[%s1801 + $0x78] sm:$0xf]
      %v1833 = vld [vmem:[%s1801 + $0x7c] sm:$0xf]
      %v1834 = vunpack.c.l.bf16 %v1802
      %v1835 = vunpack.c.l.bf16 %v1803
      %v1836 = vunpack.c.l.bf16 %v1804
      %v1837 = vunpack.c.l.bf16 %v1805
      %v1838 = vunpack.c.l.bf16 %v1806
      %v1839 = vunpack.c.l.bf16 %v1807
      %v1840 = vunpack.c.l.bf16 %v1808
      %v1841 = vunpack.c.l.bf16 %v1809
      %v1842 = vunpack.c.l.bf16 %v1810
      %v1843 = vunpack.c.l.bf16 %v1811
      %v1844 = vunpack.c.l.bf16 %v1812
      %v1845 = vunpack.c.l.bf16 %v1813
      %v1846 = vunpack.c.l.bf16 %v1814
      %v1847 = vunpack.c.l.bf16 %v1815
      %v1848 = vunpack.c.l.bf16 %v1816
      %v1849 = vunpack.c.l.bf16 %v1817
      %v1850 = vunpack.c.l.bf16 %v1818
      %v1851 = vunpack.c.l.bf16 %v1819
      %v1852 = vunpack.c.l.bf16 %v1820
      %v1853 = vunpack.c.l.bf16 %v1821
      %v1854 = vunpack.c.l.bf16 %v1822
      %v1855 = vunpack.c.l.bf16 %v1823
      %v1856 = vunpack.c.l.bf16 %v1824
      %v1857 = vunpack.c.l.bf16 %v1825
      %v1858 = vunpack.c.l.bf16 %v1826
      %v1859 = vunpack.c.l.bf16 %v1827
      %v1860 = vunpack.c.l.bf16 %v1828
      %v1861 = vunpack.c.l.bf16 %v1829
      %v1862 = vunpack.c.l.bf16 %v1830
      %v1863 = vunpack.c.l.bf16 %v1831
      %v1864 = vunpack.c.l.bf16 %v1832
      %v1865 = vunpack.c.l.bf16 %v1833
      %v1866 = vpack.c.bf16 %v1835, %v1834
      %v1867 = vpack.c.bf16 %v1837, %v1836
      %v1868 = vpack.c.bf16 %v1839, %v1838
      %v1869 = vpack.c.bf16 %v1841, %v1840
      %v1870 = vpack.c.bf16 %v1843, %v1842
      %v1871 = vpack.c.bf16 %v1845, %v1844
      %v1872 = vpack.c.bf16 %v1847, %v1846
      %v1873 = vpack.c.bf16 %v1849, %v1848
      %v1874 = vpack.c.bf16 %v1851, %v1850
      %v1875 = vpack.c.bf16 %v1853, %v1852
      %v1876 = vpack.c.bf16 %v1855, %v1854
      %v1877 = vpack.c.bf16 %v1857, %v1856
      %v1878 = vpack.c.bf16 %v1859, %v1858
      %v1879 = vpack.c.bf16 %v1861, %v1860
      %v1880 = vpack.c.bf16 %v1863, %v1862
      %v1881 = vpack.c.bf16 %v1865, %v1864
      %s1882 = scalar_lea.vmem %s1, 448
      %v1883 = vld [vmem:[%s1882] sm:$0xf]
      %v1884 = vld [vmem:[%s1882 + $0x4] sm:$0xf]
      %v1885 = vld [vmem:[%s1882 + $0x8] sm:$0xf]
      %v1886 = vld [vmem:[%s1882 + $0xc] sm:$0xf]
      %v1887 = vld [vmem:[%s1882 + $0x10] sm:$0xf]
      %v1888 = vld [vmem:[%s1882 + $0x14] sm:$0xf]
      %v1889 = vld [vmem:[%s1882 + $0x18] sm:$0xf]
      %v1890 = vld [vmem:[%s1882 + $0x1c] sm:$0xf]
      %v1891 = vld [vmem:[%s1882 + $0x20] sm:$0xf]
      %v1892 = vld [vmem:[%s1882 + $0x24] sm:$0xf]
      %v1893 = vld [vmem:[%s1882 + $0x28] sm:$0xf]
      %v1894 = vld [vmem:[%s1882 + $0x2c] sm:$0xf]
      %v1895 = vld [vmem:[%s1882 + $0x30] sm:$0xf]
      %v1896 = vld [vmem:[%s1882 + $0x34] sm:$0xf]
      %v1897 = vld [vmem:[%s1882 + $0x38] sm:$0xf]
      %v1898 = vld [vmem:[%s1882 + $0x3c] sm:$0xf]
      %v1915 = vunpack.c.l.b16 %v1883
      %v1916 = vunpack.c.l.b16 %v1884
      %v1917 = vunpack.c.l.b16 %v1885
      %v1918 = vunpack.c.l.b16 %v1886
      %v1919 = vunpack.c.l.b16 %v1887
      %v1920 = vunpack.c.l.b16 %v1888
      %v1921 = vunpack.c.l.b16 %v1889
      %v1922 = vunpack.c.l.b16 %v1890
      %v1923 = vunpack.c.l.b16 %v1891
      %v1924 = vunpack.c.l.b16 %v1892
      %v1925 = vunpack.c.l.b16 %v1893
      %v1926 = vunpack.c.l.b16 %v1894
      %v1927 = vunpack.c.l.b16 %v1895
      %v1928 = vunpack.c.l.b16 %v1896
      %v1929 = vunpack.c.l.b16 %v1897
      %v1930 = vunpack.c.l.b16 %v1898
      %v1931 = vpack.c.b16 %v1916, %v1915
      %v1932 = vpack.c.b16 %v1918, %v1917
      %v1933 = vpack.c.b16 %v1920, %v1919
      %v1934 = vpack.c.b16 %v1922, %v1921
      %v1935 = vpack.c.b16 %v1924, %v1923
      %v1936 = vpack.c.b16 %v1926, %v1925
      %v1937 = vpack.c.b16 %v1928, %v1927
      %v1938 = vpack.c.b16 %v1930, %v1929
      %1947 = vmatprep.subr.bf16.mxu0 0
      %1948 = vmatpush1.bf16.msra.mxu0 %v1931
      %1949 = vmatprep.subr.bf16.mxu0 0
      %1950 = vmatpush1.bf16.msra.mxu0 %v1932
      %1951 = vmatprep.subr.bf16.mxu0 0
      %1952 = vmatpush1.bf16.msra.mxu0 %v1933
      %1953 = vmatprep.subr.bf16.mxu0 0
      %1954 = vmatpush1.bf16.msra.mxu0 %v1934
      %1955 = vmatprep.subr.bf16.mxu0 0
      %1956 = vmatpush1.bf16.msra.mxu0 %v1935
      %1957 = vmatprep.subr.bf16.mxu0 0
      %1958 = vmatpush1.bf16.msra.mxu0 %v1936
      %1959 = vmatprep.subr.bf16.mxu0 0
      %1960 = vmatpush1.bf16.msra.mxu0 %v1937
      %1961 = vmatprep.subr.bf16.mxu0 0
      %1962 = vmatpush1.bf16.msra.mxu0 %v1938
      %1963 = vmatprep.subr.bf16.mxu0 0
      %1964 = vmatpush1.bf16.msra.mxu0 0
      %1965 = vmatprep.subr.bf16.mxu0 0
      %1966 = vmatpush1.bf16.msra.mxu0 0
      %1967 = vmatprep.subr.bf16.mxu0 0
      %1968 = vmatpush1.bf16.msra.mxu0 0
      %1969 = vmatprep.subr.bf16.mxu0 0
      %1970 = vmatpush1.bf16.msra.mxu0 0
      %1971 = vmatprep.subr.bf16.mxu0 0
      %1972 = vmatpush1.bf16.msra.mxu0 0
      %1973 = vmatprep.subr.bf16.mxu0 0
      %1974 = vmatpush1.bf16.msra.mxu0 0
      %1975 = vmatprep.subr.bf16.mxu0 0
      %1976 = vmatpush1.bf16.msra.mxu0 0
      %1977 = vmatprep.subr.bf16.mxu0 0
      %1978 = vmatpush1.bf16.msra.mxu0 0
      %1979 = vmatprep.mubr.bf16.mxu0 0
      %1980 = vmatmul.mubr.bf16.gmra.mrb[0].mxu0 %v1866
      %v1981 = vpop.f32.mrb[0].mxu0
      %v1982 = vadd.f32 0.0, %v1981
      %v1983 = vpop.f32.mrb[0].mxu0
      %v1984 = vpop.f32.mrb[0].mxu0
      %v1985 = vadd.f32 0.0, %v1984
      %v1986 = vpop.f32.mrb[0].mxu0
      %1987 = vmatprep.mubr.bf16.mxu0 0
      %1988 = vmatmul.mubr.bf16.gmra.mrb[0].mxu0 %v1867
      %v1989 = vpop.f32.mrb[0].mxu0
      %v1990 = vadd.f32 0.0, %v1989
      %v1991 = vpop.f32.mrb[0].mxu0
      %v1992 = vpop.f32.mrb[0].mxu0
      %v1993 = vadd.f32 0.0, %v1992
      %v1994 = vpop.f32.mrb[0].mxu0
      %1995 = vmatprep.mubr.bf16.mxu0 0
      %1996 = vmatmul.mubr.bf16.gmra.mrb[0].mxu0 %v1868
      %v1997 = vpop.f32.mrb[0].mxu0
      %v1998 = vadd.f32 0.0, %v1997
      %v1999 = vpop.f32.mrb[0].mxu0
      %v2000 = vpop.f32.mrb[0].mxu0
      %v2001 = vadd.f32 0.0, %v2000
      %v2002 = vpop.f32.mrb[0].mxu0
      %2003 = vmatprep.mubr.bf16.mxu0 0
      %2004 = vmatmul.mubr.bf16.gmra.mrb[0].mxu0 %v1869
      %v2005 = vpop.f32.mrb[0].mxu0
      %v2006 = vadd.f32 0.0, %v2005
      %v2007 = vpop.f32.mrb[0].mxu0
      %v2008 = vpop.f32.mrb[0].mxu0
      %v2009 = vadd.f32 0.0, %v2008
      %v2010 = vpop.f32.mrb[0].mxu0
      %2011 = vmatprep.mubr.bf16.mxu0 0
      %2012 = vmatmul.mubr.bf16.gmra.mrb[0].mxu0 %v1870
      %v2013 = vpop.f32.mrb[0].mxu0
      %v2014 = vadd.f32 0.0, %v2013
      %v2015 = vpop.f32.mrb[0].mxu0
      %v2016 = vpop.f32.mrb[0].mxu0
      %v2017 = vadd.f32 0.0, %v2016
      %v2018 = vpop.f32.mrb[0].mxu0
      %2019 = vmatprep.mubr.bf16.mxu0 0
      %2020 = vmatmul.mubr.bf16.gmra.mrb[0].mxu0 %v1871
      %v2021 = vpop.f32.mrb[0].mxu0
      %v2022 = vadd.f32 0.0, %v2021
      %v2023 = vpop.f32.mrb[0].mxu0
      %v2024 = vpop.f32.mrb[0].mxu0
      %v2025 = vadd.f32 0.0, %v2024
      %v2026 = vpop.f32.mrb[0].mxu0
      %2027 = vmatprep.mubr.bf16.mxu0 0
      %2028 = vmatmul.mubr.bf16.gmra.mrb[0].mxu0 %v1872
      %v2029 = vpop.f32.mrb[0].mxu0
      %v2030 = vadd.f32 0.0, %v2029
      %v2031 = vpop.f32.mrb[0].mxu0
      %v2032 = vpop.f32.mrb[0].mxu0
      %v2033 = vadd.f32 0.0, %v2032
      %v2034 = vpop.f32.mrb[0].mxu0
      %2035 = vmatprep.mubr.bf16.mxu0 0
      %2036 = vmatmul.mubr.bf16.gmra.mrb[0].mxu0 %v1873
      %v2037 = vpop.f32.mrb[0].mxu0
      %v2038 = vadd.f32 0.0, %v2037
      %v2039 = vpop.f32.mrb[0].mxu0
      %v2040 = vpop.f32.mrb[0].mxu0
      %v2041 = vadd.f32 0.0, %v2040
      %v2042 = vpop.f32.mrb[0].mxu0
      %2043 = vmatprep.mubr.bf16.mxu0 0
      %2044 = vmatmul.mubr.bf16.gmra.mrb[0].mxu0 %v1874
      %v2045 = vpop.f32.mrb[0].mxu0
      %v2046 = vadd.f32 0.0, %v2045
      %v2047 = vpop.f32.mrb[0].mxu0
      %v2048 = vpop.f32.mrb[0].mxu0
      %v2049 = vadd.f32 0.0, %v2048
      %v2050 = vpop.f32.mrb[0].mxu0
      %2051 = vmatprep.mubr.bf16.mxu0 0
      %2052 = vmatmul.mubr.bf16.gmra.mrb[0].mxu0 %v1875
      %v2053 = vpop.f32.mrb[0].mxu0
      %v2054 = vadd.f32 0.0, %v2053
      %v2055 = vpop.f32.mrb[0].mxu0
      %v2056 = vpop.f32.mrb[0].mxu0
      %v2057 = vadd.f32 0.0, %v2056
      %v2058 = vpop.f32.mrb[0].mxu0
      %2059 = vmatprep.mubr.bf16.mxu0 0
      %2060 = vmatmul.mubr.bf16.gmra.mrb[0].mxu0 %v1876
      %v2061 = vpop.f32.mrb[0].mxu0
      %v2062 = vadd.f32 0.0, %v2061
      %v2063 = vpop.f32.mrb[0].mxu0
      %v2064 = vpop.f32.mrb[0].mxu0
      %v2065 = vadd.f32 0.0, %v2064
      %v2066 = vpop.f32.mrb[0].mxu0
      %2067 = vmatprep.mubr.bf16.mxu0 0
      %2068 = vmatmul.mubr.bf16.gmra.mrb[0].mxu0 %v1877
      %v2069 = vpop.f32.mrb[0].mxu0
      %v2070 = vadd.f32 0.0, %v2069
      %v2071 = vpop.f32.mrb[0].mxu0
      %v2072 = vpop.f32.mrb[0].mxu0
      %v2073 = vadd.f32 0.0, %v2072
      %v2074 = vpop.f32.mrb[0].mxu0
      %2075 = vmatprep.mubr.bf16.mxu0 0
      %2076 = vmatmul.mubr.bf16.gmra.mrb[0].mxu0 %v1878
      %v2077 = vpop.f32.mrb[0].mxu0
      %v2078 = vadd.f32 0.0, %v2077
      %v2079 = vpop.f32.mrb[0].mxu0
      %v2080 = vpop.f32.mrb[0].mxu0
      %v2081 = vadd.f32 0.0, %v2080
      %v2082 = vpop.f32.mrb[0].mxu0
      %2083 = vmatprep.mubr.bf16.mxu0 0
      %2084 = vmatmul.mubr.bf16.gmra.mrb[0].mxu0 %v1879
      %v2085 = vpop.f32.mrb[0].mxu0
      %v2086 = vadd.f32 0.0, %v2085
      %v2087 = vpop.f32.mrb[0].mxu0
      %v2088 = vpop.f32.mrb[0].mxu0
      %v2089 = vadd.f32 0.0, %v2088
      %v2090 = vpop.f32.mrb[0].mxu0
      %2091 = vmatprep.mubr.bf16.mxu0 0
      %2092 = vmatmul.mubr.bf16.gmra.mrb[0].mxu0 %v1880
      %v2093 = vpop.f32.mrb[0].mxu0
      %v2094 = vadd.f32 0.0, %v2093
      %v2095 = vpop.f32.mrb[0].mxu0
      %v2096 = vpop.f32.mrb[0].mxu0
      %v2097 = vadd.f32 0.0, %v2096
      %v2098 = vpop.f32.mrb[0].mxu0
      %2099 = vmatprep.mubr.bf16.mxu0 0
      %2100 = vmatmul.mubr.bf16.gmra.mrb[0].mxu0 %v1881
      %v2101 = vpop.f32.mrb[0].mxu0
      %v2102 = vadd.f32 0.0, %v2101
      %v2103 = vpop.f32.mrb[0].mxu0
      %v2104 = vpop.f32.mrb[0].mxu0
      %v2105 = vadd.f32 0.0, %v2104
      %v2106 = vpop.f32.mrb[0].mxu0
      %2107 = vdwg.mxu0
      %v2108 = vadd.f32 %v1769, %v1982
      %v2109 = vadd.f32 %v1770, %v1985
      %v2110 = vadd.f32 %v1771, %v1990
      %v2111 = vadd.f32 %v1772, %v1993
      %v2112 = vadd.f32 %v1773, %v1998
      %v2113 = vadd.f32 %v1774, %v2001
      %v2114 = vadd.f32 %v1775, %v2006
      %v2115 = vadd.f32 %v1776, %v2009
      %v2116 = vadd.f32 %v1777, %v2014
      %v2117 = vadd.f32 %v1778, %v2017
      %v2118 = vadd.f32 %v1779, %v2022
      %v2119 = vadd.f32 %v1780, %v2025
      %v2120 = vadd.f32 %v1781, %v2030
      %v2121 = vadd.f32 %v1782, %v2033
      %v2122 = vadd.f32 %v1783, %v2038
      %v2123 = vadd.f32 %v1784, %v2041
      %v2124 = vadd.f32 %v1785, %v2046
      %v2125 = vadd.f32 %v1786, %v2049
      %v2126 = vadd.f32 %v1787, %v2054
      %v2127 = vadd.f32 %v1788, %v2057
      %v2128 = vadd.f32 %v1789, %v2062
      %v2129 = vadd.f32 %v1790, %v2065
      %v2130 = vadd.f32 %v1791, %v2070
      %v2131 = vadd.f32 %v1792, %v2073
      %v2132 = vadd.f32 %v1793, %v2078
      %v2133 = vadd.f32 %v1794, %v2081
      %v2134 = vadd.f32 %v1795, %v2086
      %v2135 = vadd.f32 %v1796, %v2089
      %v2136 = vadd.f32 %v1797, %v2094
      %v2137 = vadd.f32 %v1798, %v2097
      %v2138 = vadd.f32 %v1799, %v2102
      %v2139 = vadd.f32 %v1800, %v2105
      %s2140 = scalar_lea.vmem %s165, 288
      %v2141 = vld [vmem:[%s2140] sm:$0xf]
      %v2142 = vld [vmem:[%s2140 + $0x4] sm:$0xf]
      %v2143 = vld [vmem:[%s2140 + $0x8] sm:$0xf]
      %v2144 = vld [vmem:[%s2140 + $0xc] sm:$0xf]
      %v2145 = vld [vmem:[%s2140 + $0x10] sm:$0xf]
      %v2146 = vld [vmem:[%s2140 + $0x14] sm:$0xf]
      %v2147 = vld [vmem:[%s2140 + $0x18] sm:$0xf]
      %v2148 = vld [vmem:[%s2140 + $0x1c] sm:$0xf]
      %v2149 = vld [vmem:[%s2140 + $0x20] sm:$0xf]
      %v2150 = vld [vmem:[%s2140 + $0x24] sm:$0xf]
      %v2151 = vld [vmem:[%s2140 + $0x28] sm:$0xf]
      %v2152 = vld [vmem:[%s2140 + $0x2c] sm:$0xf]
      %v2153 = vld [vmem:[%s2140 + $0x30] sm:$0xf]
      %v2154 = vld [vmem:[%s2140 + $0x34] sm:$0xf]
      %v2155 = vld [vmem:[%s2140 + $0x38] sm:$0xf]
      %v2156 = vld [vmem:[%s2140 + $0x3c] sm:$0xf]
      %v2157 = vld [vmem:[%s2140 + $0x40] sm:$0xf]
      %v2158 = vld [vmem:[%s2140 + $0x44] sm:$0xf]
      %v2159 = vld [vmem:[%s2140 + $0x48] sm:$0xf]
      %v2160 = vld [vmem:[%s2140 + $0x4c] sm:$0xf]
      %v2161 = vld [vmem:[%s2140 + $0x50] sm:$0xf]
      %v2162 = vld [vmem:[%s2140 + $0x54] sm:$0xf]
      %v2163 = vld [vmem:[%s2140 + $0x58] sm:$0xf]
      %v2164 = vld [vmem:[%s2140 + $0x5c] sm:$0xf]
      %v2165 = vld [vmem:[%s2140 + $0x60] sm:$0xf]
      %v2166 = vld [vmem:[%s2140 + $0x64] sm:$0xf]
      %v2167 = vld [vmem:[%s2140 + $0x68] sm:$0xf]
      %v2168 = vld [vmem:[%s2140 + $0x6c] sm:$0xf]
      %v2169 = vld [vmem:[%s2140 + $0x70] sm:$0xf]
      %v2170 = vld [vmem:[%s2140 + $0x74] sm:$0xf]
      %v2171 = vld [vmem:[%s2140 + $0x78] sm:$0xf]
      %v2172 = vld [vmem:[%s2140 + $0x7c] sm:$0xf]
      %v2173 = vunpack.c.l.bf16 %v2141
      %v2174 = vunpack.c.l.bf16 %v2142
      %v2175 = vunpack.c.l.bf16 %v2143
      %v2176 = vunpack.c.l.bf16 %v2144
      %v2177 = vunpack.c.l.bf16 %v2145
      %v2178 = vunpack.c.l.bf16 %v2146
      %v2179 = vunpack.c.l.bf16 %v2147
      %v2180 = vunpack.c.l.bf16 %v2148
      %v2181 = vunpack.c.l.bf16 %v2149
      %v2182 = vunpack.c.l.bf16 %v2150
      %v2183 = vunpack.c.l.bf16 %v2151
      %v2184 = vunpack.c.l.bf16 %v2152
      %v2185 = vunpack.c.l.bf16 %v2153
      %v2186 = vunpack.c.l.bf16 %v2154
      %v2187 = vunpack.c.l.bf16 %v2155
      %v2188 = vunpack.c.l.bf16 %v2156
      %v2189 = vunpack.c.l.bf16 %v2157
      %v2190 = vunpack.c.l.bf16 %v2158
      %v2191 = vunpack.c.l.bf16 %v2159
      %v2192 = vunpack.c.l.bf16 %v2160
      %v2193 = vunpack.c.l.bf16 %v2161
      %v2194 = vunpack.c.l.bf16 %v2162
      %v2195 = vunpack.c.l.bf16 %v2163
      %v2196 = vunpack.c.l.bf16 %v2164
      %v2197 = vunpack.c.l.bf16 %v2165
      %v2198 = vunpack.c.l.bf16 %v2166
      %v2199 = vunpack.c.l.bf16 %v2167
      %v2200 = vunpack.c.l.bf16 %v2168
      %v2201 = vunpack.c.l.bf16 %v2169
      %v2202 = vunpack.c.l.bf16 %v2170
      %v2203 = vunpack.c.l.bf16 %v2171
      %v2204 = vunpack.c.l.bf16 %v2172
      %v2205 = vpack.c.bf16 %v2174, %v2173
      %v2206 = vpack.c.bf16 %v2176, %v2175
      %v2207 = vpack.c.bf16 %v2178, %v2177
      %v2208 = vpack.c.bf16 %v2180, %v2179
      %v2209 = vpack.c.bf16 %v2182, %v2181
      %v2210 = vpack.c.bf16 %v2184, %v2183
      %v2211 = vpack.c.bf16 %v2186, %v2185
      %v2212 = vpack.c.bf16 %v2188, %v2187
      %v2213 = vpack.c.bf16 %v2190, %v2189
      %v2214 = vpack.c.bf16 %v2192, %v2191
      %v2215 = vpack.c.bf16 %v2194, %v2193
      %v2216 = vpack.c.bf16 %v2196, %v2195
      %v2217 = vpack.c.bf16 %v2198, %v2197
      %v2218 = vpack.c.bf16 %v2200, %v2199
      %v2219 = vpack.c.bf16 %v2202, %v2201
      %v2220 = vpack.c.bf16 %v2204, %v2203
      %s2221 = scalar_lea.vmem %s1, 128
      %v2222 = vld [vmem:[%s2221] sm:$0xf]
      %v2223 = vld [vmem:[%s2221 + $0x4] sm:$0xf]
      %v2224 = vld [vmem:[%s2221 + $0x8] sm:$0xf]
      %v2225 = vld [vmem:[%s2221 + $0xc] sm:$0xf]
      %v2226 = vld [vmem:[%s2221 + $0x10] sm:$0xf]
      %v2227 = vld [vmem:[%s2221 + $0x14] sm:$0xf]
      %v2228 = vld [vmem:[%s2221 + $0x18] sm:$0xf]
      %v2229 = vld [vmem:[%s2221 + $0x1c] sm:$0xf]
      %v2230 = vld [vmem:[%s2221 + $0x20] sm:$0xf]
      %v2231 = vld [vmem:[%s2221 + $0x24] sm:$0xf]
      %v2232 = vld [vmem:[%s2221 + $0x28] sm:$0xf]
      %v2233 = vld [vmem:[%s2221 + $0x2c] sm:$0xf]
      %v2234 = vld [vmem:[%s2221 + $0x30] sm:$0xf]
      %v2235 = vld [vmem:[%s2221 + $0x34] sm:$0xf]
      %v2236 = vld [vmem:[%s2221 + $0x38] sm:$0xf]
      %v2237 = vld [vmem:[%s2221 + $0x3c] sm:$0xf]
      %v2254 = vunpack.c.l.b16 %v2222
      %v2255 = vunpack.c.l.b16 %v2223
      %v2256 = vunpack.c.l.b16 %v2224
      %v2257 = vunpack.c.l.b16 %v2225
      %v2258 = vunpack.c.l.b16 %v2226
      %v2259 = vunpack.c.l.b16 %v2227
      %v2260 = vunpack.c.l.b16 %v2228
      %v2261 = vunpack.c.l.b16 %v2229
      %v2262 = vunpack.c.l.b16 %v2230
      %v2263 = vunpack.c.l.b16 %v2231
      %v2264 = vunpack.c.l.b16 %v2232
      %v2265 = vunpack.c.l.b16 %v2233
      %v2266 = vunpack.c.l.b16 %v2234
      %v2267 = vunpack.c.l.b16 %v2235
      %v2268 = vunpack.c.l.b16 %v2236
      %v2269 = vunpack.c.l.b16 %v2237
      %v2270 = vpack.c.b16 %v2255, %v2254
      %v2271 = vpack.c.b16 %v2257, %v2256
      %v2272 = vpack.c.b16 %v2259, %v2258
      %v2273 = vpack.c.b16 %v2261, %v2260
      %v2274 = vpack.c.b16 %v2263, %v2262
      %v2275 = vpack.c.b16 %v2265, %v2264
      %v2276 = vpack.c.b16 %v2267, %v2266
      %v2277 = vpack.c.b16 %v2269, %v2268
      %2286 = vmatprep.subr.bf16.mxu0 0
      %2287 = vmatpush1.bf16.msra.mxu0 %v2270
      %2288 = vmatprep.subr.bf16.mxu0 0
      %2289 = vmatpush1.bf16.msra.mxu0 %v2271
      %2290 = vmatprep.subr.bf16.mxu0 0
      %2291 = vmatpush1.bf16.msra.mxu0 %v2272
      %2292 = vmatprep.subr.bf16.mxu0 0
      %2293 = vmatpush1.bf16.msra.mxu0 %v2273
      %2294 = vmatprep.subr.bf16.mxu0 0
      %2295 = vmatpush1.bf16.msra.mxu0 %v2274
      %2296 = vmatprep.subr.bf16.mxu0 0
      %2297 = vmatpush1.bf16.msra.mxu0 %v2275
      %2298 = vmatprep.subr.bf16.mxu0 0
      %2299 = vmatpush1.bf16.msra.mxu0 %v2276
      %2300 = vmatprep.subr.bf16.mxu0 0
      %2301 = vmatpush1.bf16.msra.mxu0 %v2277
      %2302 = vmatprep.subr.bf16.mxu0 0
      %2303 = vmatpush1.bf16.msra.mxu0 0
      %2304 = vmatprep.subr.bf16.mxu0 0
      %2305 = vmatpush1.bf16.msra.mxu0 0
      %2306 = vmatprep.subr.bf16.mxu0 0
      %2307 = vmatpush1.bf16.msra.mxu0 0
      %2308 = vmatprep.subr.bf16.mxu0 0
      %2309 = vmatpush1.bf16.msra.mxu0 0
      %2310 = vmatprep.subr.bf16.mxu0 0
      %2311 = vmatpush1.bf16.msra.mxu0 0
      %2312 = vmatprep.subr.bf16.mxu0 0
      %2313 = vmatpush1.bf16.msra.mxu0 0
      %2314 = vmatprep.subr.bf16.mxu0 0
      %2315 = vmatpush1.bf16.msra.mxu0 0
      %2316 = vmatprep.subr.bf16.mxu0 0
      %2317 = vmatpush1.bf16.msra.mxu0 0
      %2318 = vmatprep.mubr.bf16.mxu0 0
      %2319 = vmatmul.mubr.bf16.gmra.mrb[0].mxu0 %v2205
      %v2320 = vpop.f32.mrb[0].mxu0
      %v2321 = vadd.f32 0.0, %v2320
      %v2322 = vpop.f32.mrb[0].mxu0
      %v2323 = vpop.f32.mrb[0].mxu0
      %v2324 = vadd.f32 0.0, %v2323
      %v2325 = vpop.f32.mrb[0].mxu0
      %2326 = vmatprep.mubr.bf16.mxu0 0
      %2327 = vmatmul.mubr.bf16.gmra.mrb[0].mxu0 %v2206
      %v2328 = vpop.f32.mrb[0].mxu0
      %v2329 = vadd.f32 0.0, %v2328
      %v2330 = vpop.f32.mrb[0].mxu0
      %v2331 = vpop.f32.mrb[0].mxu0
      %v2332 = vadd.f32 0.0, %v2331
      %v2333 = vpop.f32.mrb[0].mxu0
      %2334 = vmatprep.mubr.bf16.mxu0 0
      %2335 = vmatmul.mubr.bf16.gmra.mrb[0].mxu0 %v2207
      %v2336 = vpop.f32.mrb[0].mxu0
      %v2337 = vadd.f32 0.0, %v2336
      %v2338 = vpop.f32.mrb[0].mxu0
      %v2339 = vpop.f32.mrb[0].mxu0
      %v2340 = vadd.f32 0.0, %v2339
      %v2341 = vpop.f32.mrb[0].mxu0
      %2342 = vmatprep.mubr.bf16.mxu0 0
      %2343 = vmatmul.mubr.bf16.gmra.mrb[0].mxu0 %v2208
      %v2344 = vpop.f32.mrb[0].mxu0
      %v2345 = vadd.f32 0.0, %v2344
      %v2346 = vpop.f32.mrb[0].mxu0
      %v2347 = vpop.f32.mrb[0].mxu0
      %v2348 = vadd.f32 0.0, %v2347
      %v2349 = vpop.f32.mrb[0].mxu0
      %2350 = vmatprep.mubr.bf16.mxu0 0
      %2351 = vmatmul.mubr.bf16.gmra.mrb[0].mxu0 %v2209
      %v2352 = vpop.f32.mrb[0].mxu0
      %v2353 = vadd.f32 0.0, %v2352
      %v2354 = vpop.f32.mrb[0].mxu0
      %v2355 = vpop.f32.mrb[0].mxu0
      %v2356 = vadd.f32 0.0, %v2355
      %v2357 = vpop.f32.mrb[0].mxu0
      %2358 = vmatprep.mubr.bf16.mxu0 0
      %2359 = vmatmul.mubr.bf16.gmra.mrb[0].mxu0 %v2210
      %v2360 = vpop.f32.mrb[0].mxu0
      %v2361 = vadd.f32 0.0, %v2360
      %v2362 = vpop.f32.mrb[0].mxu0
      %v2363 = vpop.f32.mrb[0].mxu0
      %v2364 = vadd.f32 0.0, %v2363
      %v2365 = vpop.f32.mrb[0].mxu0
      %2366 = vmatprep.mubr.bf16.mxu0 0
      %2367 = vmatmul.mubr.bf16.gmra.mrb[0].mxu0 %v2211
      %v2368 = vpop.f32.mrb[0].mxu0
      %v2369 = vadd.f32 0.0, %v2368
      %v2370 = vpop.f32.mrb[0].mxu0
      %v2371 = vpop.f32.mrb[0].mxu0
      %v2372 = vadd.f32 0.0, %v2371
      %v2373 = vpop.f32.mrb[0].mxu0
      %2374 = vmatprep.mubr.bf16.mxu0 0
      %2375 = vmatmul.mubr.bf16.gmra.mrb[0].mxu0 %v2212
      %v2376 = vpop.f32.mrb[0].mxu0
      %v2377 = vadd.f32 0.0, %v2376
      %v2378 = vpop.f32.mrb[0].mxu0
      %v2379 = vpop.f32.mrb[0].mxu0
      %v2380 = vadd.f32 0.0, %v2379
      %v2381 = vpop.f32.mrb[0].mxu0
      %2382 = vmatprep.mubr.bf16.mxu0 0
      %2383 = vmatmul.mubr.bf16.gmra.mrb[0].mxu0 %v2213
      %v2384 = vpop.f32.mrb[0].mxu0
      %v2385 = vadd.f32 0.0, %v2384
      %v2386 = vpop.f32.mrb[0].mxu0
      %v2387 = vpop.f32.mrb[0].mxu0
      %v2388 = vadd.f32 0.0, %v2387
      %v2389 = vpop.f32.mrb[0].mxu0
      %2390 = vmatprep.mubr.bf16.mxu0 0
      %2391 = vmatmul.mubr.bf16.gmra.mrb[0].mxu0 %v2214
      %v2392 = vpop.f32.mrb[0].mxu0
      %v2393 = vadd.f32 0.0, %v2392
      %v2394 = vpop.f32.mrb[0].mxu0
      %v2395 = vpop.f32.mrb[0].mxu0
      %v2396 = vadd.f32 0.0, %v2395
      %v2397 = vpop.f32.mrb[0].mxu0
      %2398 = vmatprep.mubr.bf16.mxu0 0
      %2399 = vmatmul.mubr.bf16.gmra.mrb[0].mxu0 %v2215
      %v2400 = vpop.f32.mrb[0].mxu0
      %v2401 = vadd.f32 0.0, %v2400
      %v2402 = vpop.f32.mrb[0].mxu0
      %v2403 = vpop.f32.mrb[0].mxu0
      %v2404 = vadd.f32 0.0, %v2403
      %v2405 = vpop.f32.mrb[0].mxu0
      %2406 = vmatprep.mubr.bf16.mxu0 0
      %2407 = vmatmul.mubr.bf16.gmra.mrb[0].mxu0 %v2216
      %v2408 = vpop.f32.mrb[0].mxu0
      %v2409 = vadd.f32 0.0, %v2408
      %v2410 = vpop.f32.mrb[0].mxu0
      %v2411 = vpop.f32.mrb[0].mxu0
      %v2412 = vadd.f32 0.0, %v2411
      %v2413 = vpop.f32.mrb[0].mxu0
      %2414 = vmatprep.mubr.bf16.mxu0 0
      %2415 = vmatmul.mubr.bf16.gmra.mrb[0].mxu0 %v2217
      %v2416 = vpop.f32.mrb[0].mxu0
      %v2417 = vadd.f32 0.0, %v2416
      %v2418 = vpop.f32.mrb[0].mxu0
      %v2419 = vpop.f32.mrb[0].mxu0
      %v2420 = vadd.f32 0.0, %v2419
      %v2421 = vpop.f32.mrb[0].mxu0
      %2422 = vmatprep.mubr.bf16.mxu0 0
      %2423 = vmatmul.mubr.bf16.gmra.mrb[0].mxu0 %v2218
      %v2424 = vpop.f32.mrb[0].mxu0
      %v2425 = vadd.f32 0.0, %v2424
      %v2426 = vpop.f32.mrb[0].mxu0
      %v2427 = vpop.f32.mrb[0].mxu0
      %v2428 = vadd.f32 0.0, %v2427
      %v2429 = vpop.f32.mrb[0].mxu0
      %2430 = vmatprep.mubr.bf16.mxu0 0
      %2431 = vmatmul.mubr.bf16.gmra.mrb[0].mxu0 %v2219
      %v2432 = vpop.f32.mrb[0].mxu0
      %v2433 = vadd.f32 0.0, %v2432
      %v2434 = vpop.f32.mrb[0].mxu0
      %v2435 = vpop.f32.mrb[0].mxu0
      %v2436 = vadd.f32 0.0, %v2435
      %v2437 = vpop.f32.mrb[0].mxu0
      %2438 = vmatprep.mubr.bf16.mxu0 0
      %2439 = vmatmul.mubr.bf16.gmra.mrb[0].mxu0 %v2220
      %v2440 = vpop.f32.mrb[0].mxu0
      %v2441 = vadd.f32 0.0, %v2440
      %v2442 = vpop.f32.mrb[0].mxu0
      %v2443 = vpop.f32.mrb[0].mxu0
      %v2444 = vadd.f32 0.0, %v2443
      %v2445 = vpop.f32.mrb[0].mxu0
      %2446 = vdwg.mxu0
      %v2447 = vadd.f32 %v2108, %v2321
      %v2448 = vadd.f32 %v2109, %v2324
      %v2449 = vadd.f32 %v2110, %v2329
      %v2450 = vadd.f32 %v2111, %v2332
      %v2451 = vadd.f32 %v2112, %v2337
      %v2452 = vadd.f32 %v2113, %v2340
      %v2453 = vadd.f32 %v2114, %v2345
      %v2454 = vadd.f32 %v2115, %v2348
      %v2455 = vadd.f32 %v2116, %v2353
      %v2456 = vadd.f32 %v2117, %v2356
      %v2457 = vadd.f32 %v2118, %v2361
      %v2458 = vadd.f32 %v2119, %v2364
      %v2459 = vadd.f32 %v2120, %v2369
      %v2460 = vadd.f32 %v2121, %v2372
      %v2461 = vadd.f32 %v2122, %v2377
      %v2462 = vadd.f32 %v2123, %v2380
      %v2463 = vadd.f32 %v2124, %v2385
      %v2464 = vadd.f32 %v2125, %v2388
      %v2465 = vadd.f32 %v2126, %v2393
      %v2466 = vadd.f32 %v2127, %v2396
      %v2467 = vadd.f32 %v2128, %v2401
      %v2468 = vadd.f32 %v2129, %v2404
      %v2469 = vadd.f32 %v2130, %v2409
      %v2470 = vadd.f32 %v2131, %v2412
      %v2471 = vadd.f32 %v2132, %v2417
      %v2472 = vadd.f32 %v2133, %v2420
      %v2473 = vadd.f32 %v2134, %v2425
      %v2474 = vadd.f32 %v2135, %v2428
      %v2475 = vadd.f32 %v2136, %v2433
      %v2476 = vadd.f32 %v2137, %v2436
      %v2477 = vadd.f32 %v2138, %v2441
      %v2478 = vadd.f32 %v2139, %v2444
      %s2479 = scalar_lea.vmem %s165, 296
      %v2480 = vld [vmem:[%s2479] sm:$0xf]
      %v2481 = vld [vmem:[%s2479 + $0x4] sm:$0xf]
      %v2482 = vld [vmem:[%s2479 + $0x8] sm:$0xf]
      %v2483 = vld [vmem:[%s2479 + $0xc] sm:$0xf]
      %v2484 = vld [vmem:[%s2479 + $0x10] sm:$0xf]
      %v2485 = vld [vmem:[%s2479 + $0x14] sm:$0xf]
      %v2486 = vld [vmem:[%s2479 + $0x18] sm:$0xf]
      %v2487 = vld [vmem:[%s2479 + $0x1c] sm:$0xf]
      %v2488 = vld [vmem:[%s2479 + $0x20] sm:$0xf]
      %v2489 = vld [vmem:[%s2479 + $0x24] sm:$0xf]
      %v2490 = vld [vmem:[%s2479 + $0x28] sm:$0xf]
      %v2491 = vld [vmem:[%s2479 + $0x2c] sm:$0xf]
      %v2492 = vld [vmem:[%s2479 + $0x30] sm:$0xf]
      %v2493 = vld [vmem:[%s2479 + $0x34] sm:$0xf]
      %v2494 = vld [vmem:[%s2479 + $0x38] sm:$0xf]
      %v2495 = vld [vmem:[%s2479 + $0x3c] sm:$0xf]
      %v2496 = vld [vmem:[%s2479 + $0x40] sm:$0xf]
      %v2497 = vld [vmem:[%s2479 + $0x44] sm:$0xf]
      %v2498 = vld [vmem:[%s2479 + $0x48] sm:$0xf]
      %v2499 = vld [vmem:[%s2479 + $0x4c] sm:$0xf]
      %v2500 = vld [vmem:[%s2479 + $0x50] sm:$0xf]
      %v2501 = vld [vmem:[%s2479 + $0x54] sm:$0xf]
      %v2502 = vld [vmem:[%s2479 + $0x58] sm:$0xf]
      %v2503 = vld [vmem:[%s2479 + $0x5c] sm:$0xf]
      %v2504 = vld [vmem:[%s2479 + $0x60] sm:$0xf]
      %v2505 = vld [vmem:[%s2479 + $0x64] sm:$0xf]
      %v2506 = vld [vmem:[%s2479 + $0x68] sm:$0xf]
      %v2507 = vld [vmem:[%s2479 + $0x6c] sm:$0xf]
      %v2508 = vld [vmem:[%s2479 + $0x70] sm:$0xf]
      %v2509 = vld [vmem:[%s2479 + $0x74] sm:$0xf]
      %v2510 = vld [vmem:[%s2479 + $0x78] sm:$0xf]
      %v2511 = vld [vmem:[%s2479 + $0x7c] sm:$0xf]
      %v2512 = vunpack.c.l.bf16 %v2480
      %v2513 = vunpack.c.l.bf16 %v2481
      %v2514 = vunpack.c.l.bf16 %v2482
      %v2515 = vunpack.c.l.bf16 %v2483
      %v2516 = vunpack.c.l.bf16 %v2484
      %v2517 = vunpack.c.l.bf16 %v2485
      %v2518 = vunpack.c.l.bf16 %v2486
      %v2519 = vunpack.c.l.bf16 %v2487
      %v2520 = vunpack.c.l.bf16 %v2488
      %v2521 = vunpack.c.l.bf16 %v2489
      %v2522 = vunpack.c.l.bf16 %v2490
      %v2523 = vunpack.c.l.bf16 %v2491
      %v2524 = vunpack.c.l.bf16 %v2492
      %v2525 = vunpack.c.l.bf16 %v2493
      %v2526 = vunpack.c.l.bf16 %v2494
      %v2527 = vunpack.c.l.bf16 %v2495
      %v2528 = vunpack.c.l.bf16 %v2496
      %v2529 = vunpack.c.l.bf16 %v2497
      %v2530 = vunpack.c.l.bf16 %v2498
      %v2531 = vunpack.c.l.bf16 %v2499
      %v2532 = vunpack.c.l.bf16 %v2500
      %v2533 = vunpack.c.l.bf16 %v2501
      %v2534 = vunpack.c.l.bf16 %v2502
      %v2535 = vunpack.c.l.bf16 %v2503
      %v2536 = vunpack.c.l.bf16 %v2504
      %v2537 = vunpack.c.l.bf16 %v2505
      %v2538 = vunpack.c.l.bf16 %v2506
      %v2539 = vunpack.c.l.bf16 %v2507
      %v2540 = vunpack.c.l.bf16 %v2508
      %v2541 = vunpack.c.l.bf16 %v2509
      %v2542 = vunpack.c.l.bf16 %v2510
      %v2543 = vunpack.c.l.bf16 %v2511
      %v2544 = vpack.c.bf16 %v2513, %v2512
      %v2545 = vpack.c.bf16 %v2515, %v2514
      %v2546 = vpack.c.bf16 %v2517, %v2516
      %v2547 = vpack.c.bf16 %v2519, %v2518
      %v2548 = vpack.c.bf16 %v2521, %v2520
      %v2549 = vpack.c.bf16 %v2523, %v2522
      %v2550 = vpack.c.bf16 %v2525, %v2524
      %v2551 = vpack.c.bf16 %v2527, %v2526
      %v2552 = vpack.c.bf16 %v2529, %v2528
      %v2553 = vpack.c.bf16 %v2531, %v2530
      %v2554 = vpack.c.bf16 %v2533, %v2532
      %v2555 = vpack.c.bf16 %v2535, %v2534
      %v2556 = vpack.c.bf16 %v2537, %v2536
      %v2557 = vpack.c.bf16 %v2539, %v2538
      %v2558 = vpack.c.bf16 %v2541, %v2540
      %v2559 = vpack.c.bf16 %v2543, %v2542
      %s2560 = scalar_lea.vmem %s1, 320
      %v2561 = vld [vmem:[%s2560] sm:$0xf]
      %v2562 = vld [vmem:[%s2560 + $0x4] sm:$0xf]
      %v2563 = vld [vmem:[%s2560 + $0x8] sm:$0xf]
      %v2564 = vld [vmem:[%s2560 + $0xc] sm:$0xf]
      %v2565 = vld [vmem:[%s2560 + $0x10] sm:$0xf]
      %v2566 = vld [vmem:[%s2560 + $0x14] sm:$0xf]
      %v2567 = vld [vmem:[%s2560 + $0x18] sm:$0xf]
      %v2568 = vld [vmem:[%s2560 + $0x1c] sm:$0xf]
      %v2569 = vld [vmem:[%s2560 + $0x20] sm:$0xf]
      %v2570 = vld [vmem:[%s2560 + $0x24] sm:$0xf]
      %v2571 = vld [vmem:[%s2560 + $0x28] sm:$0xf]
      %v2572 = vld [vmem:[%s2560 + $0x2c] sm:$0xf]
      %v2573 = vld [vmem:[%s2560 + $0x30] sm:$0xf]
      %v2574 = vld [vmem:[%s2560 + $0x34] sm:$0xf]
      %v2575 = vld [vmem:[%s2560 + $0x38] sm:$0xf]
      %v2576 = vld [vmem:[%s2560 + $0x3c] sm:$0xf]
      %v2593 = vunpack.c.l.b16 %v2561
      %v2594 = vunpack.c.l.b16 %v2562
      %v2595 = vunpack.c.l.b16 %v2563
      %v2596 = vunpack.c.l.b16 %v2564
      %v2597 = vunpack.c.l.b16 %v2565
      %v2598 = vunpack.c.l.b16 %v2566
      %v2599 = vunpack.c.l.b16 %v2567
      %v2600 = vunpack.c.l.b16 %v2568
      %v2601 = vunpack.c.l.b16 %v2569
      %v2602 = vunpack.c.l.b16 %v2570
      %v2603 = vunpack.c.l.b16 %v2571
      %v2604 = vunpack.c.l.b16 %v2572
      %v2605 = vunpack.c.l.b16 %v2573
      %v2606 = vunpack.c.l.b16 %v2574
      %v2607 = vunpack.c.l.b16 %v2575
      %v2608 = vunpack.c.l.b16 %v2576
      %v2609 = vpack.c.b16 %v2594, %v2593
      %v2610 = vpack.c.b16 %v2596, %v2595
      %v2611 = vpack.c.b16 %v2598, %v2597
      %v2612 = vpack.c.b16 %v2600, %v2599
      %v2613 = vpack.c.b16 %v2602, %v2601
      %v2614 = vpack.c.b16 %v2604, %v2603
      %v2615 = vpack.c.b16 %v2606, %v2605
      %v2616 = vpack.c.b16 %v2608, %v2607
      %2625 = vmatprep.subr.bf16.mxu0 0
      %2626 = vmatpush1.bf16.msra.mxu0 %v2609
      %2627 = vmatprep.subr.bf16.mxu0 0
      %2628 = vmatpush1.bf16.msra.mxu0 %v2610
      %2629 = vmatprep.subr.bf16.mxu0 0
      %2630 = vmatpush1.bf16.msra.mxu0 %v2611
      %2631 = vmatprep.subr.bf16.mxu0 0
      %2632 = vmatpush1.bf16.msra.mxu0 %v2612
      %2633 = vmatprep.subr.bf16.mxu0 0
      %2634 = vmatpush1.bf16.msra.mxu0 %v2613
      %2635 = vmatprep.subr.bf16.mxu0 0
      %2636 = vmatpush1.bf16.msra.mxu0 %v2614
      %2637 = vmatprep.subr.bf16.mxu0 0
      %2638 = vmatpush1.bf16.msra.mxu0 %v2615
      %2639 = vmatprep.subr.bf16.mxu0 0
      %2640 = vmatpush1.bf16.msra.mxu0 %v2616
      %2641 = vmatprep.subr.bf16.mxu0 0
      %2642 = vmatpush1.bf16.msra.mxu0 0
      %2643 = vmatprep.subr.bf16.mxu0 0
      %2644 = vmatpush1.bf16.msra.mxu0 0
      %2645 = vmatprep.subr.bf16.mxu0 0
      %2646 = vmatpush1.bf16.msra.mxu0 0
      %2647 = vmatprep.subr.bf16.mxu0 0
      %2648 = vmatpush1.bf16.msra.mxu0 0
      %2649 = vmatprep.subr.bf16.mxu0 0
      %2650 = vmatpush1.bf16.msra.mxu0 0
      %2651 = vmatprep.subr.bf16.mxu0 0
      %2652 = vmatpush1.bf16.msra.mxu0 0
      %2653 = vmatprep.subr.bf16.mxu0 0
      %2654 = vmatpush1.bf16.msra.mxu0 0
      %2655 = vmatprep.subr.bf16.mxu0 0
      %2656 = vmatpush1.bf16.msra.mxu0 0
      %2657 = vmatprep.mubr.bf16.mxu0 0
      %2658 = vmatmul.mubr.bf16.gmra.mrb[0].mxu0 %v2544
      %v2659 = vpop.f32.mrb[0].mxu0
      %v2660 = vadd.f32 0.0, %v2659
      %v2661 = vpop.f32.mrb[0].mxu0
      %v2662 = vpop.f32.mrb[0].mxu0
      %v2663 = vadd.f32 0.0, %v2662
      %v2664 = vpop.f32.mrb[0].mxu0
      %2665 = vmatprep.mubr.bf16.mxu0 0
      %2666 = vmatmul.mubr.bf16.gmra.mrb[0].mxu0 %v2545
      %v2667 = vpop.f32.mrb[0].mxu0
      %v2668 = vadd.f32 0.0, %v2667
      %v2669 = vpop.f32.mrb[0].mxu0
      %v2670 = vpop.f32.mrb[0].mxu0
      %v2671 = vadd.f32 0.0, %v2670
      %v2672 = vpop.f32.mrb[0].mxu0
      %2673 = vmatprep.mubr.bf16.mxu0 0
      %2674 = vmatmul.mubr.bf16.gmra.mrb[0].mxu0 %v2546
      %v2675 = vpop.f32.mrb[0].mxu0
      %v2676 = vadd.f32 0.0, %v2675
      %v2677 = vpop.f32.mrb[0].mxu0
      %v2678 = vpop.f32.mrb[0].mxu0
      %v2679 = vadd.f32 0.0, %v2678
      %v2680 = vpop.f32.mrb[0].mxu0
      %2681 = vmatprep.mubr.bf16.mxu0 0
      %2682 = vmatmul.mubr.bf16.gmra.mrb[0].mxu0 %v2547
      %v2683 = vpop.f32.mrb[0].mxu0
      %v2684 = vadd.f32 0.0, %v2683
      %v2685 = vpop.f32.mrb[0].mxu0
      %v2686 = vpop.f32.mrb[0].mxu0
      %v2687 = vadd.f32 0.0, %v2686
      %v2688 = vpop.f32.mrb[0].mxu0
      %2689 = vmatprep.mubr.bf16.mxu0 0
      %2690 = vmatmul.mubr.bf16.gmra.mrb[0].mxu0 %v2548
      %v2691 = vpop.f32.mrb[0].mxu0
      %v2692 = vadd.f32 0.0, %v2691
      %v2693 = vpop.f32.mrb[0].mxu0
      %v2694 = vpop.f32.mrb[0].mxu0
      %v2695 = vadd.f32 0.0, %v2694
      %v2696 = vpop.f32.mrb[0].mxu0
      %2697 = vmatprep.mubr.bf16.mxu0 0
      %2698 = vmatmul.mubr.bf16.gmra.mrb[0].mxu0 %v2549
      %v2699 = vpop.f32.mrb[0].mxu0
      %v2700 = vadd.f32 0.0, %v2699
      %v2701 = vpop.f32.mrb[0].mxu0
      %v2702 = vpop.f32.mrb[0].mxu0
      %v2703 = vadd.f32 0.0, %v2702
      %v2704 = vpop.f32.mrb[0].mxu0
      %2705 = vmatprep.mubr.bf16.mxu0 0
      %2706 = vmatmul.mubr.bf16.gmra.mrb[0].mxu0 %v2550
      %v2707 = vpop.f32.mrb[0].mxu0
      %v2708 = vadd.f32 0.0, %v2707
      %v2709 = vpop.f32.mrb[0].mxu0
      %v2710 = vpop.f32.mrb[0].mxu0
      %v2711 = vadd.f32 0.0, %v2710
      %v2712 = vpop.f32.mrb[0].mxu0
      %2713 = vmatprep.mubr.bf16.mxu0 0
      %2714 = vmatmul.mubr.bf16.gmra.mrb[0].mxu0 %v2551
      %v2715 = vpop.f32.mrb[0].mxu0
      %v2716 = vadd.f32 0.0, %v2715
      %v2717 = vpop.f32.mrb[0].mxu0
      %v2718 = vpop.f32.mrb[0].mxu0
      %v2719 = vadd.f32 0.0, %v2718
      %v2720 = vpop.f32.mrb[0].mxu0
      %2721 = vmatprep.mubr.bf16.mxu0 0
      %2722 = vmatmul.mubr.bf16.gmra.mrb[0].mxu0 %v2552
      %v2723 = vpop.f32.mrb[0].mxu0
      %v2724 = vadd.f32 0.0, %v2723
      %v2725 = vpop.f32.mrb[0].mxu0
      %v2726 = vpop.f32.mrb[0].mxu0
      %v2727 = vadd.f32 0.0, %v2726
      %v2728 = vpop.f32.mrb[0].mxu0
      %2729 = vmatprep.mubr.bf16.mxu0 0
      %2730 = vmatmul.mubr.bf16.gmra.mrb[0].mxu0 %v2553
      %v2731 = vpop.f32.mrb[0].mxu0
      %v2732 = vadd.f32 0.0, %v2731
      %v2733 = vpop.f32.mrb[0].mxu0
      %v2734 = vpop.f32.mrb[0].mxu0
      %v2735 = vadd.f32 0.0, %v2734
      %v2736 = vpop.f32.mrb[0].mxu0
      %2737 = vmatprep.mubr.bf16.mxu0 0
      %2738 = vmatmul.mubr.bf16.gmra.mrb[0].mxu0 %v2554
      %v2739 = vpop.f32.mrb[0].mxu0
      %v2740 = vadd.f32 0.0, %v2739
      %v2741 = vpop.f32.mrb[0].mxu0
      %v2742 = vpop.f32.mrb[0].mxu0
      %v2743 = vadd.f32 0.0, %v2742
      %v2744 = vpop.f32.mrb[0].mxu0
      %2745 = vmatprep.mubr.bf16.mxu0 0
      %2746 = vmatmul.mubr.bf16.gmra.mrb[0].mxu0 %v2555
      %v2747 = vpop.f32.mrb[0].mxu0
      %v2748 = vadd.f32 0.0, %v2747
      %v2749 = vpop.f32.mrb[0].mxu0
      %v2750 = vpop.f32.mrb[0].mxu0
      %v2751 = vadd.f32 0.0, %v2750
      %v2752 = vpop.f32.mrb[0].mxu0
      %2753 = vmatprep.mubr.bf16.mxu0 0
      %2754 = vmatmul.mubr.bf16.gmra.mrb[0].mxu0 %v2556
      %v2755 = vpop.f32.mrb[0].mxu0
      %v2756 = vadd.f32 0.0, %v2755
      %v2757 = vpop.f32.mrb[0].mxu0
      %v2758 = vpop.f32.mrb[0].mxu0
      %v2759 = vadd.f32 0.0, %v2758
      %v2760 = vpop.f32.mrb[0].mxu0
      %2761 = vmatprep.mubr.bf16.mxu0 0
      %2762 = vmatmul.mubr.bf16.gmra.mrb[0].mxu0 %v2557
      %v2763 = vpop.f32.mrb[0].mxu0
      %v2764 = vadd.f32 0.0, %v2763
      %v2765 = vpop.f32.mrb[0].mxu0
      %v2766 = vpop.f32.mrb[0].mxu0
      %v2767 = vadd.f32 0.0, %v2766
      %v2768 = vpop.f32.mrb[0].mxu0
      %2769 = vmatprep.mubr.bf16.mxu0 0
      %2770 = vmatmul.mubr.bf16.gmra.mrb[0].mxu0 %v2558
      %v2771 = vpop.f32.mrb[0].mxu0
      %v2772 = vadd.f32 0.0, %v2771
      %v2773 = vpop.f32.mrb[0].mxu0
      %v2774 = vpop.f32.mrb[0].mxu0
      %v2775 = vadd.f32 0.0, %v2774
      %v2776 = vpop.f32.mrb[0].mxu0
      %2777 = vmatprep.mubr.bf16.mxu0 0
      %2778 = vmatmul.mubr.bf16.gmra.mrb[0].mxu0 %v2559
      %v2779 = vpop.f32.mrb[0].mxu0
      %v2780 = vadd.f32 0.0, %v2779
      %v2781 = vpop.f32.mrb[0].mxu0
      %v2782 = vpop.f32.mrb[0].mxu0
      %v2783 = vadd.f32 0.0, %v2782
      %v2784 = vpop.f32.mrb[0].mxu0
      %2785 = vdwg.mxu0
      %v2786 = vadd.f32 %v2447, %v2660
      %v2787 = vadd.f32 %v2448, %v2663
      %v2788 = vadd.f32 %v2449, %v2668
      %v2789 = vadd.f32 %v2450, %v2671
      %v2790 = vadd.f32 %v2451, %v2676
      %v2791 = vadd.f32 %v2452, %v2679
      %v2792 = vadd.f32 %v2453, %v2684
      %v2793 = vadd.f32 %v2454, %v2687
      %v2794 = vadd.f32 %v2455, %v2692
      %v2795 = vadd.f32 %v2456, %v2695
      %v2796 = vadd.f32 %v2457, %v2700
      %v2797 = vadd.f32 %v2458, %v2703
      %v2798 = vadd.f32 %v2459, %v2708
      %v2799 = vadd.f32 %v2460, %v2711
      %v2800 = vadd.f32 %v2461, %v2716
      %v2801 = vadd.f32 %v2462, %v2719
      %v2802 = vadd.f32 %v2463, %v2724
      %v2803 = vadd.f32 %v2464, %v2727
      %v2804 = vadd.f32 %v2465, %v2732
      %v2805 = vadd.f32 %v2466, %v2735
      %v2806 = vadd.f32 %v2467, %v2740
      %v2807 = vadd.f32 %v2468, %v2743
      %v2808 = vadd.f32 %v2469, %v2748
      %v2809 = vadd.f32 %v2470, %v2751
      %v2810 = vadd.f32 %v2471, %v2756
      %v2811 = vadd.f32 %v2472, %v2759
      %v2812 = vadd.f32 %v2473, %v2764
      %v2813 = vadd.f32 %v2474, %v2767
      %v2814 = vadd.f32 %v2475, %v2772
      %v2815 = vadd.f32 %v2476, %v2775
      %v2816 = vadd.f32 %v2477, %v2780
      %v2817 = vadd.f32 %v2478, %v2783
      %s2818 = scalar_lea.vmem %s165, 304
      %v2819 = vld [vmem:[%s2818] sm:$0xf]
      %v2820 = vld [vmem:[%s2818 + $0x4] sm:$0xf]
      %v2821 = vld [vmem:[%s2818 + $0x8] sm:$0xf]
      %v2822 = vld [vmem:[%s2818 + $0xc] sm:$0xf]
      %v2823 = vld [vmem:[%s2818 + $0x10] sm:$0xf]
      %v2824 = vld [vmem:[%s2818 + $0x14] sm:$0xf]
      %v2825 = vld [vmem:[%s2818 + $0x18] sm:$0xf]
      %v2826 = vld [vmem:[%s2818 + $0x1c] sm:$0xf]
      %v2827 = vld [vmem:[%s2818 + $0x20] sm:$0xf]
      %v2828 = vld [vmem:[%s2818 + $0x24] sm:$0xf]
      %v2829 = vld [vmem:[%s2818 + $0x28] sm:$0xf]
      %v2830 = vld [vmem:[%s2818 + $0x2c] sm:$0xf]
      %v2831 = vld [vmem:[%s2818 + $0x30] sm:$0xf]
      %v2832 = vld [vmem:[%s2818 + $0x34] sm:$0xf]
      %v2833 = vld [vmem:[%s2818 + $0x38] sm:$0xf]
      %v2834 = vld [vmem:[%s2818 + $0x3c] sm:$0xf]
      %v2835 = vld [vmem:[%s2818 + $0x40] sm:$0xf]
      %v2836 = vld [vmem:[%s2818 + $0x44] sm:$0xf]
      %v2837 = vld [vmem:[%s2818 + $0x48] sm:$0xf]
      %v2838 = vld [vmem:[%s2818 + $0x4c] sm:$0xf]
      %v2839 = vld [vmem:[%s2818 + $0x50] sm:$0xf]
      %v2840 = vld [vmem:[%s2818 + $0x54] sm:$0xf]
      %v2841 = vld [vmem:[%s2818 + $0x58] sm:$0xf]
      %v2842 = vld [vmem:[%s2818 + $0x5c] sm:$0xf]
      %v2843 = vld [vmem:[%s2818 + $0x60] sm:$0xf]
      %v2844 = vld [vmem:[%s2818 + $0x64] sm:$0xf]
      %v2845 = vld [vmem:[%s2818 + $0x68] sm:$0xf]
      %v2846 = vld [vmem:[%s2818 + $0x6c] sm:$0xf]
      %v2847 = vld [vmem:[%s2818 + $0x70] sm:$0xf]
      %v2848 = vld [vmem:[%s2818 + $0x74] sm:$0xf]
      %v2849 = vld [vmem:[%s2818 + $0x78] sm:$0xf]
      %v2850 = vld [vmem:[%s2818 + $0x7c] sm:$0xf]
      %v2851 = vunpack.c.l.bf16 %v2819
      %v2852 = vunpack.c.l.bf16 %v2820
      %v2853 = vunpack.c.l.bf16 %v2821
      %v2854 = vunpack.c.l.bf16 %v2822
      %v2855 = vunpack.c.l.bf16 %v2823
      %v2856 = vunpack.c.l.bf16 %v2824
      %v2857 = vunpack.c.l.bf16 %v2825
      %v2858 = vunpack.c.l.bf16 %v2826
      %v2859 = vunpack.c.l.bf16 %v2827
      %v2860 = vunpack.c.l.bf16 %v2828
      %v2861 = vunpack.c.l.bf16 %v2829
      %v2862 = vunpack.c.l.bf16 %v2830
      %v2863 = vunpack.c.l.bf16 %v2831
      %v2864 = vunpack.c.l.bf16 %v2832
      %v2865 = vunpack.c.l.bf16 %v2833
      %v2866 = vunpack.c.l.bf16 %v2834
      %v2867 = vunpack.c.l.bf16 %v2835
      %v2868 = vunpack.c.l.bf16 %v2836
      %v2869 = vunpack.c.l.bf16 %v2837
      %v2870 = vunpack.c.l.bf16 %v2838
      %v2871 = vunpack.c.l.bf16 %v2839
      %v2872 = vunpack.c.l.bf16 %v2840
      %v2873 = vunpack.c.l.bf16 %v2841
      %v2874 = vunpack.c.l.bf16 %v2842
      %v2875 = vunpack.c.l.bf16 %v2843
      %v2876 = vunpack.c.l.bf16 %v2844
      %v2877 = vunpack.c.l.bf16 %v2845
      %v2878 = vunpack.c.l.bf16 %v2846
      %v2879 = vunpack.c.l.bf16 %v2847
      %v2880 = vunpack.c.l.bf16 %v2848
      %v2881 = vunpack.c.l.bf16 %v2849
      %v2882 = vunpack.c.l.bf16 %v2850
      %v2883 = vpack.c.bf16 %v2852, %v2851
      %v2884 = vpack.c.bf16 %v2854, %v2853
      %v2885 = vpack.c.bf16 %v2856, %v2855
      %v2886 = vpack.c.bf16 %v2858, %v2857
      %v2887 = vpack.c.bf16 %v2860, %v2859
      %v2888 = vpack.c.bf16 %v2862, %v2861
      %v2889 = vpack.c.bf16 %v2864, %v2863
      %v2890 = vpack.c.bf16 %v2866, %v2865
      %v2891 = vpack.c.bf16 %v2868, %v2867
      %v2892 = vpack.c.bf16 %v2870, %v2869
      %v2893 = vpack.c.bf16 %v2872, %v2871
      %v2894 = vpack.c.bf16 %v2874, %v2873
      %v2895 = vpack.c.bf16 %v2876, %v2875
      %v2896 = vpack.c.bf16 %v2878, %v2877
      %v2897 = vpack.c.bf16 %v2880, %v2879
      %v2898 = vpack.c.bf16 %v2882, %v2881
      %s2899 = scalar_lea.vmem %s1, 512
      %v2900 = vld [vmem:[%s2899] sm:$0xf]
      %v2901 = vld [vmem:[%s2899 + $0x4] sm:$0xf]
      %v2902 = vld [vmem:[%s2899 + $0x8] sm:$0xf]
      %v2903 = vld [vmem:[%s2899 + $0xc] sm:$0xf]
      %v2904 = vld [vmem:[%s2899 + $0x10] sm:$0xf]
      %v2905 = vld [vmem:[%s2899 + $0x14] sm:$0xf]
      %v2906 = vld [vmem:[%s2899 + $0x18] sm:$0xf]
      %v2907 = vld [vmem:[%s2899 + $0x1c] sm:$0xf]
      %v2908 = vld [vmem:[%s2899 + $0x20] sm:$0xf]
      %v2909 = vld [vmem:[%s2899 + $0x24] sm:$0xf]
      %v2910 = vld [vmem:[%s2899 + $0x28] sm:$0xf]
      %v2911 = vld [vmem:[%s2899 + $0x2c] sm:$0xf]
      %v2912 = vld [vmem:[%s2899 + $0x30] sm:$0xf]
      %v2913 = vld [vmem:[%s2899 + $0x34] sm:$0xf]
      %v2914 = vld [vmem:[%s2899 + $0x38] sm:$0xf]
      %v2915 = vld [vmem:[%s2899 + $0x3c] sm:$0xf]
      %v2932 = vunpack.c.l.b16 %v2900
      %v2933 = vunpack.c.l.b16 %v2901
      %v2934 = vunpack.c.l.b16 %v2902
      %v2935 = vunpack.c.l.b16 %v2903
      %v2936 = vunpack.c.l.b16 %v2904
      %v2937 = vunpack.c.l.b16 %v2905
      %v2938 = vunpack.c.l.b16 %v2906
      %v2939 = vunpack.c.l.b16 %v2907
      %v2940 = vunpack.c.l.b16 %v2908
      %v2941 = vunpack.c.l.b16 %v2909
      %v2942 = vunpack.c.l.b16 %v2910
      %v2943 = vunpack.c.l.b16 %v2911
      %v2944 = vunpack.c.l.b16 %v2912
      %v2945 = vunpack.c.l.b16 %v2913
      %v2946 = vunpack.c.l.b16 %v2914
      %v2947 = vunpack.c.l.b16 %v2915
      %v2948 = vpack.c.b16 %v2933, %v2932
      %v2949 = vpack.c.b16 %v2935, %v2934
      %v2950 = vpack.c.b16 %v2937, %v2936
      %v2951 = vpack.c.b16 %v2939, %v2938
      %v2952 = vpack.c.b16 %v2941, %v2940
      %v2953 = vpack.c.b16 %v2943, %v2942
      %v2954 = vpack.c.b16 %v2945, %v2944
      %v2955 = vpack.c.b16 %v2947, %v2946
      %2964 = vmatprep.subr.bf16.mxu0 0
      %2965 = vmatpush1.bf16.msra.mxu0 %v2948
      %2966 = vmatprep.subr.bf16.mxu0 0
      %2967 = vmatpush1.bf16.msra.mxu0 %v2949
      %2968 = vmatprep.subr.bf16.mxu0 0
      %2969 = vmatpush1.bf16.msra.mxu0 %v2950
      %2970 = vmatprep.subr.bf16.mxu0 0
      %2971 = vmatpush1.bf16.msra.mxu0 %v2951
      %2972 = vmatprep.subr.bf16.mxu0 0
      %2973 = vmatpush1.bf16.msra.mxu0 %v2952
      %2974 = vmatprep.subr.bf16.mxu0 0
      %2975 = vmatpush1.bf16.msra.mxu0 %v2953
      %2976 = vmatprep.subr.bf16.mxu0 0
      %2977 = vmatpush1.bf16.msra.mxu0 %v2954
      %2978 = vmatprep.subr.bf16.mxu0 0
      %2979 = vmatpush1.bf16.msra.mxu0 %v2955
      %2980 = vmatprep.subr.bf16.mxu0 0
      %2981 = vmatpush1.bf16.msra.mxu0 0
      %2982 = vmatprep.subr.bf16.mxu0 0
      %2983 = vmatpush1.bf16.msra.mxu0 0
      %2984 = vmatprep.subr.bf16.mxu0 0
      %2985 = vmatpush1.bf16.msra.mxu0 0
      %2986 = vmatprep.subr.bf16.mxu0 0
      %2987 = vmatpush1.bf16.msra.mxu0 0
      %2988 = vmatprep.subr.bf16.mxu0 0
      %2989 = vmatpush1.bf16.msra.mxu0 0
      %2990 = vmatprep.subr.bf16.mxu0 0
      %2991 = vmatpush1.bf16.msra.mxu0 0
      %2992 = vmatprep.subr.bf16.mxu0 0
      %2993 = vmatpush1.bf16.msra.mxu0 0
      %2994 = vmatprep.subr.bf16.mxu0 0
      %2995 = vmatpush1.bf16.msra.mxu0 0
      %2996 = vmatprep.mubr.bf16.mxu0 0
      %2997 = vmatmul.mubr.bf16.gmra.mrb[0].mxu0 %v2883
      %v2998 = vpop.f32.mrb[0].mxu0
      %v2999 = vadd.f32 0.0, %v2998
      %v3000 = vpop.f32.mrb[0].mxu0
      %v3001 = vpop.f32.mrb[0].mxu0
      %v3002 = vadd.f32 0.0, %v3001
      %v3003 = vpop.f32.mrb[0].mxu0
      %3004 = vmatprep.mubr.bf16.mxu0 0
      %3005 = vmatmul.mubr.bf16.gmra.mrb[0].mxu0 %v2884
      %v3006 = vpop.f32.mrb[0].mxu0
      %v3007 = vadd.f32 0.0, %v3006
      %v3008 = vpop.f32.mrb[0].mxu0
      %v3009 = vpop.f32.mrb[0].mxu0
      %v3010 = vadd.f32 0.0, %v3009
      %v3011 = vpop.f32.mrb[0].mxu0
      %3012 = vmatprep.mubr.bf16.mxu0 0
      %3013 = vmatmul.mubr.bf16.gmra.mrb[0].mxu0 %v2885
      %v3014 = vpop.f32.mrb[0].mxu0
      %v3015 = vadd.f32 0.0, %v3014
      %v3016 = vpop.f32.mrb[0].mxu0
      %v3017 = vpop.f32.mrb[0].mxu0
      %v3018 = vadd.f32 0.0, %v3017
      %v3019 = vpop.f32.mrb[0].mxu0
      %3020 = vmatprep.mubr.bf16.mxu0 0
      %3021 = vmatmul.mubr.bf16.gmra.mrb[0].mxu0 %v2886
      %v3022 = vpop.f32.mrb[0].mxu0
      %v3023 = vadd.f32 0.0, %v3022
      %v3024 = vpop.f32.mrb[0].mxu0
      %v3025 = vpop.f32.mrb[0].mxu0
      %v3026 = vadd.f32 0.0, %v3025
      %v3027 = vpop.f32.mrb[0].mxu0
      %3028 = vmatprep.mubr.bf16.mxu0 0
      %3029 = vmatmul.mubr.bf16.gmra.mrb[0].mxu0 %v2887
      %v3030 = vpop.f32.mrb[0].mxu0
      %v3031 = vadd.f32 0.0, %v3030
      %v3032 = vpop.f32.mrb[0].mxu0
      %v3033 = vpop.f32.mrb[0].mxu0
      %v3034 = vadd.f32 0.0, %v3033
      %v3035 = vpop.f32.mrb[0].mxu0
      %3036 = vmatprep.mubr.bf16.mxu0 0
      %3037 = vmatmul.mubr.bf16.gmra.mrb[0].mxu0 %v2888
      %v3038 = vpop.f32.mrb[0].mxu0
      %v3039 = vadd.f32 0.0, %v3038
      %v3040 = vpop.f32.mrb[0].mxu0
      %v3041 = vpop.f32.mrb[0].mxu0
      %v3042 = vadd.f32 0.0, %v3041
      %v3043 = vpop.f32.mrb[0].mxu0
      %3044 = vmatprep.mubr.bf16.mxu0 0
      %3045 = vmatmul.mubr.bf16.gmra.mrb[0].mxu0 %v2889
      %v3046 = vpop.f32.mrb[0].mxu0
      %v3047 = vadd.f32 0.0, %v3046
      %v3048 = vpop.f32.mrb[0].mxu0
      %v3049 = vpop.f32.mrb[0].mxu0
      %v3050 = vadd.f32 0.0, %v3049
      %v3051 = vpop.f32.mrb[0].mxu0
      %3052 = vmatprep.mubr.bf16.mxu0 0
      %3053 = vmatmul.mubr.bf16.gmra.mrb[0].mxu0 %v2890
      %v3054 = vpop.f32.mrb[0].mxu0
      %v3055 = vadd.f32 0.0, %v3054
      %v3056 = vpop.f32.mrb[0].mxu0
      %v3057 = vpop.f32.mrb[0].mxu0
      %v3058 = vadd.f32 0.0, %v3057
      %v3059 = vpop.f32.mrb[0].mxu0
      %3060 = vmatprep.mubr.bf16.mxu0 0
      %3061 = vmatmul.mubr.bf16.gmra.mrb[0].mxu0 %v2891
      %v3062 = vpop.f32.mrb[0].mxu0
      %v3063 = vadd.f32 0.0, %v3062
      %v3064 = vpop.f32.mrb[0].mxu0
      %v3065 = vpop.f32.mrb[0].mxu0
      %v3066 = vadd.f32 0.0, %v3065
      %v3067 = vpop.f32.mrb[0].mxu0
      %3068 = vmatprep.mubr.bf16.mxu0 0
      %3069 = vmatmul.mubr.bf16.gmra.mrb[0].mxu0 %v2892
      %v3070 = vpop.f32.mrb[0].mxu0
      %v3071 = vadd.f32 0.0, %v3070
      %v3072 = vpop.f32.mrb[0].mxu0
      %v3073 = vpop.f32.mrb[0].mxu0
      %v3074 = vadd.f32 0.0, %v3073
      %v3075 = vpop.f32.mrb[0].mxu0
      %3076 = vmatprep.mubr.bf16.mxu0 0
      %3077 = vmatmul.mubr.bf16.gmra.mrb[0].mxu0 %v2893
      %v3078 = vpop.f32.mrb[0].mxu0
      %v3079 = vadd.f32 0.0, %v3078
      %v3080 = vpop.f32.mrb[0].mxu0
      %v3081 = vpop.f32.mrb[0].mxu0
      %v3082 = vadd.f32 0.0, %v3081
      %v3083 = vpop.f32.mrb[0].mxu0
      %3084 = vmatprep.mubr.bf16.mxu0 0
      %3085 = vmatmul.mubr.bf16.gmra.mrb[0].mxu0 %v2894
      %v3086 = vpop.f32.mrb[0].mxu0
      %v3087 = vadd.f32 0.0, %v3086
      %v3088 = vpop.f32.mrb[0].mxu0
      %v3089 = vpop.f32.mrb[0].mxu0
      %v3090 = vadd.f32 0.0, %v3089
      %v3091 = vpop.f32.mrb[0].mxu0
      %3092 = vmatprep.mubr.bf16.mxu0 0
      %3093 = vmatmul.mubr.bf16.gmra.mrb[0].mxu0 %v2895
      %v3094 = vpop.f32.mrb[0].mxu0
      %v3095 = vadd.f32 0.0, %v3094
      %v3096 = vpop.f32.mrb[0].mxu0
      %v3097 = vpop.f32.mrb[0].mxu0
      %v3098 = vadd.f32 0.0, %v3097
      %v3099 = vpop.f32.mrb[0].mxu0
      %3100 = vmatprep.mubr.bf16.mxu0 0
      %3101 = vmatmul.mubr.bf16.gmra.mrb[0].mxu0 %v2896
      %v3102 = vpop.f32.mrb[0].mxu0
      %v3103 = vadd.f32 0.0, %v3102
      %v3104 = vpop.f32.mrb[0].mxu0
      %v3105 = vpop.f32.mrb[0].mxu0
      %v3106 = vadd.f32 0.0, %v3105
      %v3107 = vpop.f32.mrb[0].mxu0
      %3108 = vmatprep.mubr.bf16.mxu0 0
      %3109 = vmatmul.mubr.bf16.gmra.mrb[0].mxu0 %v2897
      %v3110 = vpop.f32.mrb[0].mxu0
      %v3111 = vadd.f32 0.0, %v3110
      %v3112 = vpop.f32.mrb[0].mxu0
      %v3113 = vpop.f32.mrb[0].mxu0
      %v3114 = vadd.f32 0.0, %v3113
      %v3115 = vpop.f32.mrb[0].mxu0
      %3116 = vmatprep.mubr.bf16.mxu0 0
      %3117 = vmatmul.mubr.bf16.gmra.mrb[0].mxu0 %v2898
      %v3118 = vpop.f32.mrb[0].mxu0
      %v3119 = vadd.f32 0.0, %v3118
      %v3120 = vpop.f32.mrb[0].mxu0
      %v3121 = vpop.f32.mrb[0].mxu0
      %v3122 = vadd.f32 0.0, %v3121
      %v3123 = vpop.f32.mrb[0].mxu0
      %3124 = vdwg.mxu0
      %v3125 = vadd.f32 %v2786, %v2999
      %v3126 = vadd.f32 %v2787, %v3002
      %v3127 = vadd.f32 %v2788, %v3007
      %v3128 = vadd.f32 %v2789, %v3010
      %v3129 = vadd.f32 %v2790, %v3015
      %v3130 = vadd.f32 %v2791, %v3018
      %v3131 = vadd.f32 %v2792, %v3023
      %v3132 = vadd.f32 %v2793, %v3026
      %v3133 = vadd.f32 %v2794, %v3031
      %v3134 = vadd.f32 %v2795, %v3034
      %v3135 = vadd.f32 %v2796, %v3039
      %v3136 = vadd.f32 %v2797, %v3042
      %v3137 = vadd.f32 %v2798, %v3047
      %v3138 = vadd.f32 %v2799, %v3050
      %v3139 = vadd.f32 %v2800, %v3055
      %v3140 = vadd.f32 %v2801, %v3058
      %v3141 = vadd.f32 %v2802, %v3063
      %v3142 = vadd.f32 %v2803, %v3066
      %v3143 = vadd.f32 %v2804, %v3071
      %v3144 = vadd.f32 %v2805, %v3074
      %v3145 = vadd.f32 %v2806, %v3079
      %v3146 = vadd.f32 %v2807, %v3082
      %v3147 = vadd.f32 %v2808, %v3087
      %v3148 = vadd.f32 %v2809, %v3090
      %v3149 = vadd.f32 %v2810, %v3095
      %v3150 = vadd.f32 %v2811, %v3098
      %v3151 = vadd.f32 %v2812, %v3103
      %v3152 = vadd.f32 %v2813, %v3106
      %v3153 = vadd.f32 %v2814, %v3111
      %v3154 = vadd.f32 %v2815, %v3114
      %v3155 = vadd.f32 %v2816, %v3119
      %v3156 = vadd.f32 %v2817, %v3122
      %v3157 = vld [vmem:[%s2] sm:$0x1]
      %v3159 = vlaneseq
      %v3160 = vshrl.u32 %v3159, 7
      %v3161 = vsub.s32 0, %v3160
      %v3162 = vrot.slane %v3157, %v3161
      %v3164 = vadd.f32 %v3125, %v3162
      %v3165 = vadd.f32 %v3126, %v3162
      %v3166 = vadd.f32 %v3127, %v3162
      %v3167 = vadd.f32 %v3128, %v3162
      %v3168 = vadd.f32 %v3129, %v3162
      %v3169 = vadd.f32 %v3130, %v3162
      %v3170 = vadd.f32 %v3131, %v3162
      %v3171 = vadd.f32 %v3132, %v3162
      %v3172 = vadd.f32 %v3133, %v3162
      %v3173 = vadd.f32 %v3134, %v3162
      %v3174 = vadd.f32 %v3135, %v3162
      %v3175 = vadd.f32 %v3136, %v3162
      %v3176 = vadd.f32 %v3137, %v3162
      %v3177 = vadd.f32 %v3138, %v3162
      %v3178 = vadd.f32 %v3139, %v3162
      %v3179 = vadd.f32 %v3140, %v3162
      %v3180 = vadd.f32 %v3141, %v3162
      %v3181 = vadd.f32 %v3142, %v3162
      %v3182 = vadd.f32 %v3143, %v3162
      %v3183 = vadd.f32 %v3144, %v3162
      %v3184 = vadd.f32 %v3145, %v3162
      %v3185 = vadd.f32 %v3146, %v3162
      %v3186 = vadd.f32 %v3147, %v3162
      %v3187 = vadd.f32 %v3148, %v3162
      %v3188 = vadd.f32 %v3149, %v3162
      %v3189 = vadd.f32 %v3150, %v3162
      %v3190 = vadd.f32 %v3151, %v3162
      %v3191 = vadd.f32 %v3152, %v3162
      %v3192 = vadd.f32 %v3153, %v3162
      %v3193 = vadd.f32 %v3154, %v3162
      %v3194 = vadd.f32 %v3155, %v3162
      %v3195 = vadd.f32 %v3156, %v3162
      %v3196 = vmax.f32 %v3164, 0.0
      %v3197 = vmax.f32 %v3165, 0.0
      %v3198 = vmax.f32 %v3166, 0.0
      %v3199 = vmax.f32 %v3167, 0.0
      %v3200 = vmax.f32 %v3168, 0.0
      %v3201 = vmax.f32 %v3169, 0.0
      %v3202 = vmax.f32 %v3170, 0.0
      %v3203 = vmax.f32 %v3171, 0.0
      %v3204 = vmax.f32 %v3172, 0.0
      %v3205 = vmax.f32 %v3173, 0.0
      %v3206 = vmax.f32 %v3174, 0.0
      %v3207 = vmax.f32 %v3175, 0.0
      %v3208 = vmax.f32 %v3176, 0.0
      %v3209 = vmax.f32 %v3177, 0.0
      %v3210 = vmax.f32 %v3178, 0.0
      %v3211 = vmax.f32 %v3179, 0.0
      %v3212 = vmax.f32 %v3180, 0.0
      %v3213 = vmax.f32 %v3181, 0.0
      %v3214 = vmax.f32 %v3182, 0.0
      %v3215 = vmax.f32 %v3183, 0.0
      %v3216 = vmax.f32 %v3184, 0.0
      %v3217 = vmax.f32 %v3185, 0.0
      %v3218 = vmax.f32 %v3186, 0.0
      %v3219 = vmax.f32 %v3187, 0.0
      %v3220 = vmax.f32 %v3188, 0.0
      %v3221 = vmax.f32 %v3189, 0.0
      %v3222 = vmax.f32 %v3190, 0.0
      %v3223 = vmax.f32 %v3191, 0.0
      %v3224 = vmax.f32 %v3192, 0.0
      %v3225 = vmax.f32 %v3193, 0.0
      %v3226 = vmax.f32 %v3194, 0.0
      %v3227 = vmax.f32 %v3195, 0.0
      %v3228 = vpack.c.bf16 %v3197, %v3196
      %v3229 = vpack.c.bf16 %v3199, %v3198
      %v3230 = vpack.c.bf16 %v3201, %v3200
      %v3231 = vpack.c.bf16 %v3203, %v3202
      %v3232 = vpack.c.bf16 %v3205, %v3204
      %v3233 = vpack.c.bf16 %v3207, %v3206
      %v3234 = vpack.c.bf16 %v3209, %v3208
      %v3235 = vpack.c.bf16 %v3211, %v3210
      %v3236 = vpack.c.bf16 %v3213, %v3212
      %v3237 = vpack.c.bf16 %v3215, %v3214
      %v3238 = vpack.c.bf16 %v3217, %v3216
      %v3239 = vpack.c.bf16 %v3219, %v3218
      %v3240 = vpack.c.bf16 %v3221, %v3220
      %v3241 = vpack.c.bf16 %v3223, %v3222
      %v3242 = vpack.c.bf16 %v3225, %v3224
      %v3243 = vpack.c.bf16 %v3227, %v3226
      %v3260 = vunpack.c.l.b16 %v3228
      %v3261 = vunpack.c.h.b16 %v3228
      %v3262 = vunpack.c.l.b16 %v3229
      %v3263 = vunpack.c.h.b16 %v3229
      %v3264 = vunpack.c.l.b16 %v3230
      %v3265 = vunpack.c.h.b16 %v3230
      %v3266 = vunpack.c.l.b16 %v3231
      %v3267 = vunpack.c.h.b16 %v3231
      %v3268 = vunpack.c.l.b16 %v3232
      %v3269 = vunpack.c.h.b16 %v3232
      %v3270 = vunpack.c.l.b16 %v3233
      %v3271 = vunpack.c.h.b16 %v3233
      %v3272 = vunpack.c.l.b16 %v3234
      %v3273 = vunpack.c.h.b16 %v3234
      %v3274 = vunpack.c.l.b16 %v3235
      %v3275 = vunpack.c.h.b16 %v3235
      %v3276 = vunpack.c.l.b16 %v3236
      %v3277 = vunpack.c.h.b16 %v3236
      %v3278 = vunpack.c.l.b16 %v3237
      %v3279 = vunpack.c.h.b16 %v3237
      %v3280 = vunpack.c.l.b16 %v3238
      %v3281 = vunpack.c.h.b16 %v3238
      %v3282 = vunpack.c.l.b16 %v3239
      %v3283 = vunpack.c.h.b16 %v3239
      %v3284 = vunpack.c.l.b16 %v3240
      %v3285 = vunpack.c.h.b16 %v3240
      %v3286 = vunpack.c.l.b16 %v3241
      %v3287 = vunpack.c.h.b16 %v3241
      %v3288 = vunpack.c.l.b16 %v3242
      %v3289 = vunpack.c.h.b16 %v3242
      %v3290 = vunpack.c.l.b16 %v3243
      %v3291 = vunpack.c.h.b16 %v3243
      %v3292 = vpack.c.b16 %v3260, %v3260
      %v3293 = vpack.c.b16 %v3261, %v3261
      %v3294 = vpack.c.b16 %v3262, %v3262
      %v3295 = vpack.c.b16 %v3263, %v3263
      %v3296 = vpack.c.b16 %v3264, %v3264
      %v3297 = vpack.c.b16 %v3265, %v3265
      %v3298 = vpack.c.b16 %v3266, %v3266
      %v3299 = vpack.c.b16 %v3267, %v3267
      %v3300 = vpack.c.b16 %v3268, %v3268
      %v3301 = vpack.c.b16 %v3269, %v3269
      %v3302 = vpack.c.b16 %v3270, %v3270
      %v3303 = vpack.c.b16 %v3271, %v3271
      %v3304 = vpack.c.b16 %v3272, %v3272
      %v3305 = vpack.c.b16 %v3273, %v3273
      %v3306 = vpack.c.b16 %v3274, %v3274
      %v3307 = vpack.c.b16 %v3275, %v3275
      %v3308 = vpack.c.b16 %v3276, %v3276
      %v3309 = vpack.c.b16 %v3277, %v3277
      %v3310 = vpack.c.b16 %v3278, %v3278
      %v3311 = vpack.c.b16 %v3279, %v3279
      %v3312 = vpack.c.b16 %v3280, %v3280
      %v3313 = vpack.c.b16 %v3281, %v3281
      %v3314 = vpack.c.b16 %v3282, %v3282
      %v3315 = vpack.c.b16 %v3283, %v3283
      %v3316 = vpack.c.b16 %v3284, %v3284
      %v3317 = vpack.c.b16 %v3285, %v3285
      %v3318 = vpack.c.b16 %v3286, %v3286
      %v3319 = vpack.c.b16 %v3287, %v3287
      %v3320 = vpack.c.b16 %v3288, %v3288
      %v3321 = vpack.c.b16 %v3289, %v3289
      %v3322 = vpack.c.b16 %v3290, %v3290
      %v3323 = vpack.c.b16 %v3291, %v3291
      %3356 = vst [vmem:[%s170] sm:$0xf] %v3292
      %3357 = vst [vmem:[%s170 + $0x4] sm:$0xf] %v3293
      %3358 = vst [vmem:[%s170 + $0x8] sm:$0xf] %v3294
      %3359 = vst [vmem:[%s170 + $0xc] sm:$0xf] %v3295
      %3360 = vst [vmem:[%s170 + $0x10] sm:$0xf] %v3296
      %3361 = vst [vmem:[%s170 + $0x14] sm:$0xf] %v3297
      %3362 = vst [vmem:[%s170 + $0x18] sm:$0xf] %v3298
      %3363 = vst [vmem:[%s170 + $0x1c] sm:$0xf] %v3299
      %3364 = vst [vmem:[%s170 + $0x20] sm:$0xf] %v3300
      %3365 = vst [vmem:[%s170 + $0x24] sm:$0xf] %v3301
      %3366 = vst [vmem:[%s170 + $0x28] sm:$0xf] %v3302
      %3367 = vst [vmem:[%s170 + $0x2c] sm:$0xf] %v3303
      %3368 = vst [vmem:[%s170 + $0x30] sm:$0xf] %v3304
      %3369 = vst [vmem:[%s170 + $0x34] sm:$0xf] %v3305
      %3370 = vst [vmem:[%s170 + $0x38] sm:$0xf] %v3306
      %3371 = vst [vmem:[%s170 + $0x3c] sm:$0xf] %v3307
      %3372 = vst [vmem:[%s170 + $0x40] sm:$0xf] %v3308
      %3373 = vst [vmem:[%s170 + $0x44] sm:$0xf] %v3309
      %3374 = vst [vmem:[%s170 + $0x48] sm:$0xf] %v3310
      %3375 = vst [vmem:[%s170 + $0x4c] sm:$0xf] %v3311
      %3376 = vst [vmem:[%s170 + $0x50] sm:$0xf] %v3312
      %3377 = vst [vmem:[%s170 + $0x54] sm:$0xf] %v3313
      %3378 = vst [vmem:[%s170 + $0x58] sm:$0xf] %v3314
      %3379 = vst [vmem:[%s170 + $0x5c] sm:$0xf] %v3315
      %3380 = vst [vmem:[%s170 + $0x60] sm:$0xf] %v3316
      %3381 = vst [vmem:[%s170 + $0x64] sm:$0xf] %v3317
      %3382 = vst [vmem:[%s170 + $0x68] sm:$0xf] %v3318
      %3383 = vst [vmem:[%s170 + $0x6c] sm:$0xf] %v3319
      %3384 = vst [vmem:[%s170 + $0x70] sm:$0xf] %v3320
      %3385 = vst [vmem:[%s170 + $0x74] sm:$0xf] %v3321
      %3386 = vst [vmem:[%s170 + $0x78] sm:$0xf] %v3322
      %3387 = vst [vmem:[%s170 + $0x7c] sm:$0xf] %v3323
      %p3388 = scmp.lt.s32.totalorder %s14, 1
      %s3389 = scalar_select %p3388, %s14, 1
      %s3390 = smul.addr %s3389, 32
      %s3391 = smul.addr %s3390, 4
      %s3392 = scalar_lea.vmem %s3, %s3391
      // Predicated region
      $region33: #{_lambda_.9} parent=31 // pred_check
        %p3393 = pneg %p100
      $region34: #{_lambda_.9} parent=31 // pred_check_branch
        %3395 = sbr.rel (%p3393) target = $region36
      $region35: #{_lambda_.9} parent=31 // pred_region
        _
      $region36: #{_lambda_.9} parent=31 // pred_fallthru
        _
    $region32: #{_lambda_.9} parent=5 // pred_fallthru
      _
    %p3396 = scmp.le.s32.totalorder 2, %s9
    // Predicated region
    $region37: #{_lambda_.9} parent=5 // pred_check
      %p3397 = pneg %p3396
    $region38: #{_lambda_.9} parent=5 // pred_check_branch
      %3399 = sbr.rel (%p3397) target = $region40
    $region39: #{_lambda_.9} parent=5 // pred_region
      %s3400 = ssub.s32 %s9, 2
      // Predicated region
      $region41: #{_lambda_.9} parent=39 // pred_check
        %p3401 = pneg %p106
      $region42: #{_lambda_.9} parent=39 // pred_check_branch
        %3403 = sbr.rel (%p3401) target = $region44
      $region43: #{_lambda_.9} parent=39 // pred_region
        %p3404 = scmp.lt.s32.totalorder %s15, 1
        %s3405 = scalar_select %p3404, %s15, 1
        %s3406 = smul.addr %s3405, 32
        %s3407 = smul.addr %s3406, 4
        %s3408 = scalar_lea.vmem %s3, %s3407
      $region44: #{_lambda_.9} parent=39 // pred_fallthru
        _
    $region40: #{_lambda_.9} parent=5 // pred_fallthru
      _
  $region6: #{_lambda_.9} parent=0 // loop_footer
    %s13 = sadd.s32 1, %s9
  $region7: #{_lambda_.9} parent=0 // loop_footer_branch
    %8 = sbr.rel target = $region3
  $region8: #{_lambda_.9} parent=0 // loop_exit
    _

// kernel: _lambda_.13
$region0: #{_lambda_.13}
  #allocation0 [shape = 'u32[]', space=smem, size = 0x4, offset = 0x4, fixed_abs, tag = 'smem constant byte address 0x4 - core index']
  #allocation1 [shape = 'u32[144,128]{1,0:T(1,128)}', space=vmem, size = 0x12000, scoped, tag = 'internal scratch']
  %s0 = inlined_call_operand.vmem [shape: bf16[2,3,10,8,128], index: 0, kind: input, shape index: {}]
  %s1 = inlined_call_operand.vmem [shape: bf16[3,3,128,128], index: 1, kind: input, shape index: {}]
  %s2 = inlined_call_operand.vmem [shape: f32[1,128], index: 2, kind: input, shape index: {}]
  %s3 = inlined_call_operand.vmem [shape: bf16[2,64,128], index: 3, kind: output, shape index: {}]
  %s4 = sld [smem:[#allocation0]]
  $region45: #{_lambda_.13} parent=0
    _
  %s6 = ssub.s32 1, %s4
  %s7 = scalar_select 0, %s6, %s4
  loop: start=0, step=1, limit=4
  $region2: #{_lambda_.13} parent=0 // loop_pre_header
    _
  $region3: #{_lambda_.13} parent=0 // loop_header
    %s9 = sphi 0, %s13
    %p10 = scmp.ge.s32.totalorder %s9, 4
    %s19 = sphi 0, %s21
    %s22 = sphi 0, %s19
    %s23 = sphi 0, %s22
    %s39 = sphi 0, %s23
    %s43 = sphi 0, %s43
    %s45 = sphi 0, %s43
    %s46 = sphi 0, %s45
    %s60 = sphi 0, %s46
    %s64 = sphi 0, %s64
    %s66 = sphi 0, %s64
    %s67 = sphi 0, %s66
    %s81 = sphi 0, %s67
    %s87 = sphi 0, %s89
    %s90 = sphi 0, %s87
    %s91 = sphi 0, %s90
    %s107 = sphi 0, %s91
  $region4: #{_lambda_.13} parent=0 // loop_header_branch
    %12 = sbr.rel (%p10) target = $region8
  $region5: #{_lambda_.13} parent=0 // loop_body
    %s14 = ssub.s32 %s9, 1
    %s15 = ssub.s32 %s9, 2
    %s16 = sadd.s32 %s9, 1
    %s17 = ssub.s32 %s9, %s16
    %p18 = scmp.eq.s32.totalorder %s17, 0
    %s20 = sadd.s32 %s19, 1
    %s21 = scalar_select %p18, %s19, %s20
    %p24 = pneg %p18
    %p25 = scmp.eq.s32.totalorder %s9, 1
    %p26 = por %p24, %p25
    %p27 = scmp.ne.s32.totalorder %s19, %s22
    %p28 = scmp.eq.s32.totalorder %s9, 0
    %p29 = por %p27, %p28
    %p30 = scmp.ne.s32.totalorder %s19, %s22
    %p31 = scmp.eq.s32.totalorder %s14, 1
    %p32 = por %p30, %p31
    %p33 = scmp.ne.s32.totalorder %s22, %s23
    %p34 = scmp.eq.s32.totalorder %s14, 0
    %p35 = por %p33, %p34
    %p36 = scmp.ne.s32.totalorder %s22, %s23
    %p37 = scmp.eq.s32.totalorder %s15, 1
    %p38 = por %p36, %p37
    %p40 = scmp.ne.s32.totalorder %s23, %s39
    %p41 = scmp.eq.s32.totalorder %s15, 0
    %p42 = por %p40, %p41
    %s44 = sadd.s32 %s43, 1
    %p47 = scmp.eq.s32.totalorder %s9, 1
    %p48 = scmp.ne.s32.totalorder %s43, %s45
    %p49 = scmp.eq.s32.totalorder %s9, 0
    %p50 = por %p48, %p49
    %p51 = scmp.ne.s32.totalorder %s43, %s45
    %p52 = scmp.eq.s32.totalorder %s14, 1
    %p53 = por %p51, %p52
    %p54 = scmp.ne.s32.totalorder %s45, %s46
    %p55 = scmp.eq.s32.totalorder %s14, 0
    %p56 = por %p54, %p55
    %p57 = scmp.ne.s32.totalorder %s45, %s46
    %p58 = scmp.eq.s32.totalorder %s15, 1
    %p59 = por %p57, %p58
    %p61 = scmp.ne.s32.totalorder %s46, %s60
    %p62 = scmp.eq.s32.totalorder %s15, 0
    %p63 = por %p61, %p62
    %s65 = sadd.s32 %s64, 1
    %p68 = scmp.eq.s32.totalorder %s9, 1
    %p69 = scmp.ne.s32.totalorder %s64, %s66
    %p70 = scmp.eq.s32.totalorder %s9, 0
    %p71 = por %p69, %p70
    %p72 = scmp.ne.s32.totalorder %s64, %s66
    %p73 = scmp.eq.s32.totalorder %s14, 1
    %p74 = por %p72, %p73
    %p75 = scmp.ne.s32.totalorder %s66, %s67
    %p76 = scmp.eq.s32.totalorder %s14, 0
    %p77 = por %p75, %p76
    %p78 = scmp.ne.s32.totalorder %s66, %s67
    %p79 = scmp.eq.s32.totalorder %s15, 1
    %p80 = por %p78, %p79
    %p82 = scmp.ne.s32.totalorder %s67, %s81
    %p83 = scmp.eq.s32.totalorder %s15, 0
    %p84 = por %p82, %p83
    %s85 = ssub.s32 %s9, %s16
    %p86 = scmp.eq.s32.totalorder %s85, 0
    %s88 = sadd.s32 %s87, 1
    %s89 = scalar_select %p86, %s87, %s88
    %p92 = pneg %p86
    %p93 = scmp.eq.s32.totalorder %s9, 1
    %p94 = por %p92, %p93
    %p95 = scmp.ne.s32.totalorder %s87, %s90
    %p96 = scmp.eq.s32.totalorder %s9, 0
    %p97 = por %p95, %p96
    %p98 = scmp.ne.s32.totalorder %s87, %s90
    %p99 = scmp.eq.s32.totalorder %s14, 1
    %p100 = por %p98, %p99
    %p101 = scmp.ne.s32.totalorder %s90, %s91
    %p102 = scmp.eq.s32.totalorder %s14, 0
    %p103 = por %p101, %p102
    %p104 = scmp.ne.s32.totalorder %s90, %s91
    %p105 = scmp.eq.s32.totalorder %s15, 1
    %p106 = por %p104, %p105
    %p108 = scmp.ne.s32.totalorder %s91, %s107
    %p109 = scmp.eq.s32.totalorder %s15, 0
    %p110 = por %p108, %p109
    %p111 = scmp.le.s32.totalorder 1, %s9
    %p112 = scmp.lt.s32.totalorder %s9, 3
    %p113 = pnand %p111, %p112
    %p114 = pneg %p113
    // Predicated region
    $region9: #{_lambda_.13} parent=5 // pred_check
      _
    $region10: #{_lambda_.13} parent=5 // pred_check_branch
      %116 = sbr.rel (%p113) target = $region12
    $region11: #{_lambda_.13} parent=5 // pred_region
      %s117 = ssub.s32 %s9, 1
      // Predicated region
      $region13: #{_lambda_.13} parent=11 // pred_check
        %p118 = pneg %p56
      $region14: #{_lambda_.13} parent=11 // pred_check_branch
        %120 = sbr.rel (%p118) target = $region16
      $region15: #{_lambda_.13} parent=11 // pred_region
        _
      $region16: #{_lambda_.13} parent=11 // pred_fallthru
        _
      // Predicated region
      $region17: #{_lambda_.13} parent=11 // pred_check
        %p121 = pneg %p77
      $region18: #{_lambda_.13} parent=11 // pred_check_branch
        %123 = sbr.rel (%p121) target = $region20
      $region19: #{_lambda_.13} parent=11 // pred_region
        _
      $region20: #{_lambda_.13} parent=11 // pred_fallthru
        _
    $region12: #{_lambda_.13} parent=5 // pred_fallthru
      _
    %p124 = scmp.lt.s32.totalorder %s9, 2
    // Predicated region
    $region21: #{_lambda_.13} parent=5 // pred_check
      %p125 = pneg %p124
    $region22: #{_lambda_.13} parent=5 // pred_check_branch
      %127 = sbr.rel (%p125) target = $region24
    $region23: #{_lambda_.13} parent=5 // pred_region
      // Predicated region
      $region25: #{_lambda_.13} parent=23 // pred_check
        %p128 = pneg %p29
      $region26: #{_lambda_.13} parent=23 // pred_check_branch
        %130 = sbr.rel (%p128) target = $region28
      $region27: #{_lambda_.13} parent=23 // pred_region
        %p131 = scmp.lt.s32.totalorder %s9, 1
        %s132 = scalar_select %p131, %s9, 1
        %s133 = smul.addr %s132, 30
        %s134 = smul.addr %s133, 4
        %s135 = scalar_lea.vmem %s0, %s134
      $region28: #{_lambda_.13} parent=23 // pred_fallthru
        _
    $region24: #{_lambda_.13} parent=5 // pred_fallthru
      _
    %p136 = scmp.le.s32.totalorder 1, %s9
    %p137 = scmp.lt.s32.totalorder %s9, 3
    %p138 = pnand %p136, %p137
    %p139 = pneg %p138
    // Predicated region
    $region29: #{_lambda_.13} parent=5 // pred_check
      _
    $region30: #{_lambda_.13} parent=5 // pred_check_branch
      %141 = sbr.rel (%p138) target = $region32
    $region31: #{_lambda_.13} parent=5 // pred_region
      %s142 = ssub.s32 %s9, 1
      %p143 = scmp.lt.s32.totalorder %s14, 1
      %s144 = scalar_select %p143, %s14, 1
      %s145 = smul.addr %s144, 30
      %s146 = smul.addr %s145, 4
      %s147 = scalar_lea.vmem %s0, %s146
      %p148 = pneg %p35
      %p149 = pneg %p32
      %p150 = pneg %p56
      %p151 = pneg %p53
      %p152 = pneg %p77
      %p153 = pneg %p74
      %p154 = pneg %p103
      %p155 = pneg %p100
      %p156 = scmp.lt.s32.totalorder %s14, 1
      %s157 = scalar_select %p156, %s14, 1
      %s158 = smul.addr %s157, 8
      %s159 = smul.addr %s158, 4
      %s160 = scalar_lea.vmem %s3, %s159
      %p161 = scmp.lt.s32.totalorder %s14, 1
      %s162 = scalar_select %p161, %s14, 1
      %s163 = smul.addr %s162, 30
      %s164 = smul.addr %s163, 4
      %s165 = scalar_lea.vmem %s0, %s164
      %p166 = scmp.lt.s32.totalorder %s14, 1
      %s167 = scalar_select %p166, %s14, 1
      %s168 = smul.addr %s167, 8
      %s169 = smul.addr %s168, 4
      %s170 = scalar_lea.vmem %s3, %s169
      %v172 = vld [vmem:[%s165] sm:$0xf]
      %v173 = vld [vmem:[%s165 + $0x4] sm:$0xf]
      %v174 = vld [vmem:[%s165 + $0x8] sm:$0xf]
      %v175 = vld [vmem:[%s165 + $0xc] sm:$0xf]
      %v176 = vld [vmem:[%s165 + $0x10] sm:$0xf]
      %v177 = vld [vmem:[%s165 + $0x14] sm:$0xf]
      %v178 = vld [vmem:[%s165 + $0x18] sm:$0xf]
      %v179 = vld [vmem:[%s165 + $0x1c] sm:$0xf]
      %v180 = vunpack.c.l.bf16 %v172
      %v181 = vunpack.c.l.bf16 %v173
      %v182 = vunpack.c.l.bf16 %v174
      %v183 = vunpack.c.l.bf16 %v175
      %v184 = vunpack.c.l.bf16 %v176
      %v185 = vunpack.c.l.bf16 %v177
      %v186 = vunpack.c.l.bf16 %v178
      %v187 = vunpack.c.l.bf16 %v179
      %v188 = vpack.c.bf16 %v181, %v180
      %v189 = vpack.c.bf16 %v183, %v182
      %v190 = vpack.c.bf16 %v185, %v184
      %v191 = vpack.c.bf16 %v187, %v186
      %v192 = vld [vmem:[%s1] sm:$0xf]
      %v193 = vld [vmem:[%s1 + $0x4] sm:$0xf]
      %v194 = vld [vmem:[%s1 + $0x8] sm:$0xf]
      %v195 = vld [vmem:[%s1 + $0xc] sm:$0xf]
      %v196 = vld [vmem:[%s1 + $0x10] sm:$0xf]
      %v197 = vld [vmem:[%s1 + $0x14] sm:$0xf]
      %v198 = vld [vmem:[%s1 + $0x18] sm:$0xf]
      %v199 = vld [vmem:[%s1 + $0x1c] sm:$0xf]
      %v200 = vld [vmem:[%s1 + $0x20] sm:$0xf]
      %v201 = vld [vmem:[%s1 + $0x24] sm:$0xf]
      %v202 = vld [vmem:[%s1 + $0x28] sm:$0xf]
      %v203 = vld [vmem:[%s1 + $0x2c] sm:$0xf]
      %v204 = vld [vmem:[%s1 + $0x30] sm:$0xf]
      %v205 = vld [vmem:[%s1 + $0x34] sm:$0xf]
      %v206 = vld [vmem:[%s1 + $0x38] sm:$0xf]
      %v207 = vld [vmem:[%s1 + $0x3c] sm:$0xf]
      %s208 = scalar_lea.vmem %s165, 4
      %v209 = vld [vmem:[%s208] sm:$0xf]
      %v210 = vld [vmem:[%s208 + $0x4] sm:$0xf]
      %v211 = vld [vmem:[%s208 + $0x8] sm:$0xf]
      %v212 = vld [vmem:[%s208 + $0xc] sm:$0xf]
      %v213 = vld [vmem:[%s208 + $0x10] sm:$0xf]
      %v214 = vld [vmem:[%s208 + $0x14] sm:$0xf]
      %v215 = vld [vmem:[%s208 + $0x18] sm:$0xf]
      %v216 = vld [vmem:[%s208 + $0x1c] sm:$0xf]
      %v217 = vunpack.c.l.bf16 %v209
      %v218 = vunpack.c.l.bf16 %v210
      %v219 = vunpack.c.l.bf16 %v211
      %v220 = vunpack.c.l.bf16 %v212
      %v221 = vunpack.c.l.bf16 %v213
      %v222 = vunpack.c.l.bf16 %v214
      %v223 = vunpack.c.l.bf16 %v215
      %v224 = vunpack.c.l.bf16 %v216
      %v225 = vpack.c.bf16 %v218, %v217
      %v226 = vpack.c.bf16 %v220, %v219
      %v227 = vpack.c.bf16 %v222, %v221
      %v228 = vpack.c.bf16 %v224, %v223
      %s229 = scalar_lea.vmem %s1, 192
      %v230 = vld [vmem:[%s229] sm:$0xf]
      %v231 = vld [vmem:[%s229 + $0x4] sm:$0xf]
      %v232 = vld [vmem:[%s229 + $0x8] sm:$0xf]
      %v233 = vld [vmem:[%s229 + $0xc] sm:$0xf]
      %v234 = vld [vmem:[%s229 + $0x10] sm:$0xf]
      %v235 = vld [vmem:[%s229 + $0x14] sm:$0xf]
      %v236 = vld [vmem:[%s229 + $0x18] sm:$0xf]
      %v237 = vld [vmem:[%s229 + $0x1c] sm:$0xf]
      %v238 = vld [vmem:[%s229 + $0x20] sm:$0xf]
      %v239 = vld [vmem:[%s229 + $0x24] sm:$0xf]
      %v240 = vld [vmem:[%s229 + $0x28] sm:$0xf]
      %v241 = vld [vmem:[%s229 + $0x2c] sm:$0xf]
      %v242 = vld [vmem:[%s229 + $0x30] sm:$0xf]
      %v243 = vld [vmem:[%s229 + $0x34] sm:$0xf]
      %v244 = vld [vmem:[%s229 + $0x38] sm:$0xf]
      %v245 = vld [vmem:[%s229 + $0x3c] sm:$0xf]
      %v262 = vunpack.c.l.b16 %v230
      %v263 = vunpack.c.l.b16 %v231
      %v264 = vunpack.c.l.b16 %v232
      %v265 = vunpack.c.l.b16 %v233
      %v266 = vunpack.c.l.b16 %v234
      %v267 = vunpack.c.l.b16 %v235
      %v268 = vunpack.c.l.b16 %v236
      %v269 = vunpack.c.l.b16 %v237
      %v270 = vunpack.c.l.b16 %v238
      %v271 = vunpack.c.l.b16 %v239
      %v272 = vunpack.c.l.b16 %v240
      %v273 = vunpack.c.l.b16 %v241
      %v274 = vunpack.c.l.b16 %v242
      %v275 = vunpack.c.l.b16 %v243
      %v276 = vunpack.c.l.b16 %v244
      %v277 = vunpack.c.l.b16 %v245
      %v278 = vpack.c.b16 %v263, %v262
      %v279 = vpack.c.b16 %v265, %v264
      %v280 = vpack.c.b16 %v267, %v266
      %v281 = vpack.c.b16 %v269, %v268
      %v282 = vpack.c.b16 %v271, %v270
      %v283 = vpack.c.b16 %v273, %v272
      %v284 = vpack.c.b16 %v275, %v274
      %v285 = vpack.c.b16 %v277, %v276
      %294 = vmatprep.subr.bf16.mxu0 0
      %295 = vmatpush1.bf16.msra.mxu0 %v278
      %296 = vmatprep.subr.bf16.mxu0 0
      %297 = vmatpush1.bf16.msra.mxu0 %v279
      %298 = vmatprep.subr.bf16.mxu0 0
      %299 = vmatpush1.bf16.msra.mxu0 %v280
      %300 = vmatprep.subr.bf16.mxu0 0
      %301 = vmatpush1.bf16.msra.mxu0 %v281
      %302 = vmatprep.subr.bf16.mxu0 0
      %303 = vmatpush1.bf16.msra.mxu0 %v282
      %304 = vmatprep.subr.bf16.mxu0 0
      %305 = vmatpush1.bf16.msra.mxu0 %v283
      %306 = vmatprep.subr.bf16.mxu0 0
      %307 = vmatpush1.bf16.msra.mxu0 %v284
      %308 = vmatprep.subr.bf16.mxu0 0
      %309 = vmatpush1.bf16.msra.mxu0 %v285
      %310 = vmatprep.subr.bf16.mxu0 0
      %311 = vmatpush1.bf16.msra.mxu0 0
      %312 = vmatprep.subr.bf16.mxu0 0
      %313 = vmatpush1.bf16.msra.mxu0 0
      %314 = vmatprep.subr.bf16.mxu0 0
      %315 = vmatpush1.bf16.msra.mxu0 0
      %316 = vmatprep.subr.bf16.mxu0 0
      %317 = vmatpush1.bf16.msra.mxu0 0
      %318 = vmatprep.subr.bf16.mxu0 0
      %319 = vmatpush1.bf16.msra.mxu0 0
      %320 = vmatprep.subr.bf16.mxu0 0
      %321 = vmatpush1.bf16.msra.mxu0 0
      %322 = vmatprep.subr.bf16.mxu0 0
      %323 = vmatpush1.bf16.msra.mxu0 0
      %324 = vmatprep.subr.bf16.mxu0 0
      %325 = vmatpush1.bf16.msra.mxu0 0
      %326 = vmatprep.mubr.bf16.mxu0 0
      %327 = vmatmul.mubr.bf16.gmra.mrb[0].mxu0 %v225
      %v328 = vpop.f32.mrb[0].mxu0
      %v329 = vadd.f32 0.0, %v328
      %v330 = vpop.f32.mrb[0].mxu0
      %v331 = vpop.f32.mrb[0].mxu0
      %v332 = vadd.f32 0.0, %v331
      %v333 = vpop.f32.mrb[0].mxu0
      %334 = vmatprep.mubr.bf16.mxu0 0
      %335 = vmatmul.mubr.bf16.gmra.mrb[0].mxu0 %v226
      %v336 = vpop.f32.mrb[0].mxu0
      %v337 = vadd.f32 0.0, %v336
      %v338 = vpop.f32.mrb[0].mxu0
      %v339 = vpop.f32.mrb[0].mxu0
      %v340 = vadd.f32 0.0, %v339
      %v341 = vpop.f32.mrb[0].mxu0
      %342 = vmatprep.mubr.bf16.mxu0 0
      %343 = vmatmul.mubr.bf16.gmra.mrb[0].mxu0 %v227
      %v344 = vpop.f32.mrb[0].mxu0
      %v345 = vadd.f32 0.0, %v344
      %v346 = vpop.f32.mrb[0].mxu0
      %v347 = vpop.f32.mrb[0].mxu0
      %v348 = vadd.f32 0.0, %v347
      %v349 = vpop.f32.mrb[0].mxu0
      %350 = vmatprep.mubr.bf16.mxu0 0
      %351 = vmatmul.mubr.bf16.gmra.mrb[0].mxu0 %v228
      %v352 = vpop.f32.mrb[0].mxu0
      %v353 = vadd.f32 0.0, %v352
      %v354 = vpop.f32.mrb[0].mxu0
      %v355 = vpop.f32.mrb[0].mxu0
      %v356 = vadd.f32 0.0, %v355
      %v357 = vpop.f32.mrb[0].mxu0
      %358 = vdwg.mxu0
      %v375 = vunpack.c.l.b16 %v192
      %v376 = vunpack.c.l.b16 %v193
      %v377 = vunpack.c.l.b16 %v194
      %v378 = vunpack.c.l.b16 %v195
      %v379 = vunpack.c.l.b16 %v196
      %v380 = vunpack.c.l.b16 %v197
      %v381 = vunpack.c.l.b16 %v198
      %v382 = vunpack.c.l.b16 %v199
      %v383 = vunpack.c.l.b16 %v200
      %v384 = vunpack.c.l.b16 %v201
      %v385 = vunpack.c.l.b16 %v202
      %v386 = vunpack.c.l.b16 %v203
      %v387 = vunpack.c.l.b16 %v204
      %v388 = vunpack.c.l.b16 %v205
      %v389 = vunpack.c.l.b16 %v206
      %v390 = vunpack.c.l.b16 %v207
      %v391 = vpack.c.b16 %v376, %v375
      %v392 = vpack.c.b16 %v378, %v377
      %v393 = vpack.c.b16 %v380, %v379
      %v394 = vpack.c.b16 %v382, %v381
      %v395 = vpack.c.b16 %v384, %v383
      %v396 = vpack.c.b16 %v386, %v385
      %v397 = vpack.c.b16 %v388, %v387
      %v398 = vpack.c.b16 %v390, %v389
      %407 = vmatprep.subr.bf16.mxu0 0
      %408 = vmatpush1.bf16.msra.mxu0 %v391
      %409 = vmatprep.subr.bf16.mxu0 0
      %410 = vmatpush1.bf16.msra.mxu0 %v392
      %411 = vmatprep.subr.bf16.mxu0 0
      %412 = vmatpush1.bf16.msra.mxu0 %v393
      %413 = vmatprep.subr.bf16.mxu0 0
      %414 = vmatpush1.bf16.msra.mxu0 %v394
      %415 = vmatprep.subr.bf16.mxu0 0
      %416 = vmatpush1.bf16.msra.mxu0 %v395
      %417 = vmatprep.subr.bf16.mxu0 0
      %418 = vmatpush1.bf16.msra.mxu0 %v396
      %419 = vmatprep.subr.bf16.mxu0 0
      %420 = vmatpush1.bf16.msra.mxu0 %v397
      %421 = vmatprep.subr.bf16.mxu0 0
      %422 = vmatpush1.bf16.msra.mxu0 %v398
      %423 = vmatprep.subr.bf16.mxu0 0
      %424 = vmatpush1.bf16.msra.mxu0 0
      %425 = vmatprep.subr.bf16.mxu0 0
      %426 = vmatpush1.bf16.msra.mxu0 0
      %427 = vmatprep.subr.bf16.mxu0 0
      %428 = vmatpush1.bf16.msra.mxu0 0
      %429 = vmatprep.subr.bf16.mxu0 0
      %430 = vmatpush1.bf16.msra.mxu0 0
      %431 = vmatprep.subr.bf16.mxu0 0
      %432 = vmatpush1.bf16.msra.mxu0 0
      %433 = vmatprep.subr.bf16.mxu0 0
      %434 = vmatpush1.bf16.msra.mxu0 0
      %435 = vmatprep.subr.bf16.mxu0 0
      %436 = vmatpush1.bf16.msra.mxu0 0
      %437 = vmatprep.subr.bf16.mxu0 0
      %438 = vmatpush1.bf16.msra.mxu0 0
      %439 = vmatprep.mubr.bf16.mxu0 0
      %440 = vmatmul.mubr.bf16.gmra.mrb[0].mxu0 %v188
      %v441 = vpop.f32.mrb[0].mxu0
      %v442 = vadd.f32 %v329, %v441
      %v443 = vpop.f32.mrb[0].mxu0
      %v444 = vpop.f32.mrb[0].mxu0
      %v445 = vadd.f32 %v332, %v444
      %v446 = vpop.f32.mrb[0].mxu0
      %447 = vmatprep.mubr.bf16.mxu0 0
      %448 = vmatmul.mubr.bf16.gmra.mrb[0].mxu0 %v189
      %v449 = vpop.f32.mrb[0].mxu0
      %v450 = vadd.f32 %v337, %v449
      %v451 = vpop.f32.mrb[0].mxu0
      %v452 = vpop.f32.mrb[0].mxu0
      %v453 = vadd.f32 %v340, %v452
      %v454 = vpop.f32.mrb[0].mxu0
      %455 = vmatprep.mubr.bf16.mxu0 0
      %456 = vmatmul.mubr.bf16.gmra.mrb[0].mxu0 %v190
      %v457 = vpop.f32.mrb[0].mxu0
      %v458 = vadd.f32 %v345, %v457
      %v459 = vpop.f32.mrb[0].mxu0
      %v460 = vpop.f32.mrb[0].mxu0
      %v461 = vadd.f32 %v348, %v460
      %v462 = vpop.f32.mrb[0].mxu0
      %463 = vmatprep.mubr.bf16.mxu0 0
      %464 = vmatmul.mubr.bf16.gmra.mrb[0].mxu0 %v191
      %v465 = vpop.f32.mrb[0].mxu0
      %v466 = vadd.f32 %v353, %v465
      %v467 = vpop.f32.mrb[0].mxu0
      %v468 = vpop.f32.mrb[0].mxu0
      %v469 = vadd.f32 %v356, %v468
      %v470 = vpop.f32.mrb[0].mxu0
      %471 = vdwg.mxu0
      %s472 = scalar_lea.vmem %s165, 8
      %v473 = vld [vmem:[%s472] sm:$0xf]
      %v474 = vld [vmem:[%s472 + $0x4] sm:$0xf]
      %v475 = vld [vmem:[%s472 + $0x8] sm:$0xf]
      %v476 = vld [vmem:[%s472 + $0xc] sm:$0xf]
      %v477 = vld [vmem:[%s472 + $0x10] sm:$0xf]
      %v478 = vld [vmem:[%s472 + $0x14] sm:$0xf]
      %v479 = vld [vmem:[%s472 + $0x18] sm:$0xf]
      %v480 = vld [vmem:[%s472 + $0x1c] sm:$0xf]
      %v481 = vunpack.c.l.bf16 %v473
      %v482 = vunpack.c.l.bf16 %v474
      %v483 = vunpack.c.l.bf16 %v475
      %v484 = vunpack.c.l.bf16 %v476
      %v485 = vunpack.c.l.bf16 %v477
      %v486 = vunpack.c.l.bf16 %v478
      %v487 = vunpack.c.l.bf16 %v479
      %v488 = vunpack.c.l.bf16 %v480
      %v489 = vpack.c.bf16 %v482, %v481
      %v490 = vpack.c.bf16 %v484, %v483
      %v491 = vpack.c.bf16 %v486, %v485
      %v492 = vpack.c.bf16 %v488, %v487
      %s493 = scalar_lea.vmem %s1, 384
      %v494 = vld [vmem:[%s493] sm:$0xf]
      %v495 = vld [vmem:[%s493 + $0x4] sm:$0xf]
      %v496 = vld [vmem:[%s493 + $0x8] sm:$0xf]
      %v497 = vld [vmem:[%s493 + $0xc] sm:$0xf]
      %v498 = vld [vmem:[%s493 + $0x10] sm:$0xf]
      %v499 = vld [vmem:[%s493 + $0x14] sm:$0xf]
      %v500 = vld [vmem:[%s493 + $0x18] sm:$0xf]
      %v501 = vld [vmem:[%s493 + $0x1c] sm:$0xf]
      %v502 = vld [vmem:[%s493 + $0x20] sm:$0xf]
      %v503 = vld [vmem:[%s493 + $0x24] sm:$0xf]
      %v504 = vld [vmem:[%s493 + $0x28] sm:$0xf]
      %v505 = vld [vmem:[%s493 + $0x2c] sm:$0xf]
      %v506 = vld [vmem:[%s493 + $0x30] sm:$0xf]
      %v507 = vld [vmem:[%s493 + $0x34] sm:$0xf]
      %v508 = vld [vmem:[%s493 + $0x38] sm:$0xf]
      %v509 = vld [vmem:[%s493 + $0x3c] sm:$0xf]
      %v526 = vunpack.c.l.b16 %v494
      %v527 = vunpack.c.l.b16 %v495
      %v528 = vunpack.c.l.b16 %v496
      %v529 = vunpack.c.l.b16 %v497
      %v530 = vunpack.c.l.b16 %v498
      %v531 = vunpack.c.l.b16 %v499
      %v532 = vunpack.c.l.b16 %v500
      %v533 = vunpack.c.l.b16 %v501
      %v534 = vunpack.c.l.b16 %v502
      %v535 = vunpack.c.l.b16 %v503
      %v536 = vunpack.c.l.b16 %v504
      %v537 = vunpack.c.l.b16 %v505
      %v538 = vunpack.c.l.b16 %v506
      %v539 = vunpack.c.l.b16 %v507
      %v540 = vunpack.c.l.b16 %v508
      %v541 = vunpack.c.l.b16 %v509
      %v542 = vpack.c.b16 %v527, %v526
      %v543 = vpack.c.b16 %v529, %v528
      %v544 = vpack.c.b16 %v531, %v530
      %v545 = vpack.c.b16 %v533, %v532
      %v546 = vpack.c.b16 %v535, %v534
      %v547 = vpack.c.b16 %v537, %v536
      %v548 = vpack.c.b16 %v539, %v538
      %v549 = vpack.c.b16 %v541, %v540
      %558 = vmatprep.subr.bf16.mxu0 0
      %559 = vmatpush1.bf16.msra.mxu0 %v542
      %560 = vmatprep.subr.bf16.mxu0 0
      %561 = vmatpush1.bf16.msra.mxu0 %v543
      %562 = vmatprep.subr.bf16.mxu0 0
      %563 = vmatpush1.bf16.msra.mxu0 %v544
      %564 = vmatprep.subr.bf16.mxu0 0
      %565 = vmatpush1.bf16.msra.mxu0 %v545
      %566 = vmatprep.subr.bf16.mxu0 0
      %567 = vmatpush1.bf16.msra.mxu0 %v546
      %568 = vmatprep.subr.bf16.mxu0 0
      %569 = vmatpush1.bf16.msra.mxu0 %v547
      %570 = vmatprep.subr.bf16.mxu0 0
      %571 = vmatpush1.bf16.msra.mxu0 %v548
      %572 = vmatprep.subr.bf16.mxu0 0
      %573 = vmatpush1.bf16.msra.mxu0 %v549
      %574 = vmatprep.subr.bf16.mxu0 0
      %575 = vmatpush1.bf16.msra.mxu0 0
      %576 = vmatprep.subr.bf16.mxu0 0
      %577 = vmatpush1.bf16.msra.mxu0 0
      %578 = vmatprep.subr.bf16.mxu0 0
      %579 = vmatpush1.bf16.msra.mxu0 0
      %580 = vmatprep.subr.bf16.mxu0 0
      %581 = vmatpush1.bf16.msra.mxu0 0
      %582 = vmatprep.subr.bf16.mxu0 0
      %583 = vmatpush1.bf16.msra.mxu0 0
      %584 = vmatprep.subr.bf16.mxu0 0
      %585 = vmatpush1.bf16.msra.mxu0 0
      %586 = vmatprep.subr.bf16.mxu0 0
      %587 = vmatpush1.bf16.msra.mxu0 0
      %588 = vmatprep.subr.bf16.mxu0 0
      %589 = vmatpush1.bf16.msra.mxu0 0
      %590 = vmatprep.mubr.bf16.mxu0 0
      %591 = vmatmul.mubr.bf16.gmra.mrb[0].mxu0 %v489
      %v592 = vpop.f32.mrb[0].mxu0
      %v593 = vadd.f32 0.0, %v592
      %v594 = vpop.f32.mrb[0].mxu0
      %v595 = vpop.f32.mrb[0].mxu0
      %v596 = vadd.f32 0.0, %v595
      %v597 = vpop.f32.mrb[0].mxu0
      %598 = vmatprep.mubr.bf16.mxu0 0
      %599 = vmatmul.mubr.bf16.gmra.mrb[0].mxu0 %v490
      %v600 = vpop.f32.mrb[0].mxu0
      %v601 = vadd.f32 0.0, %v600
      %v602 = vpop.f32.mrb[0].mxu0
      %v603 = vpop.f32.mrb[0].mxu0
      %v604 = vadd.f32 0.0, %v603
      %v605 = vpop.f32.mrb[0].mxu0
      %606 = vmatprep.mubr.bf16.mxu0 0
      %607 = vmatmul.mubr.bf16.gmra.mrb[0].mxu0 %v491
      %v608 = vpop.f32.mrb[0].mxu0
      %v609 = vadd.f32 0.0, %v608
      %v610 = vpop.f32.mrb[0].mxu0
      %v611 = vpop.f32.mrb[0].mxu0
      %v612 = vadd.f32 0.0, %v611
      %v613 = vpop.f32.mrb[0].mxu0
      %614 = vmatprep.mubr.bf16.mxu0 0
      %615 = vmatmul.mubr.bf16.gmra.mrb[0].mxu0 %v492
      %v616 = vpop.f32.mrb[0].mxu0
      %v617 = vadd.f32 0.0, %v616
      %v618 = vpop.f32.mrb[0].mxu0
      %v619 = vpop.f32.mrb[0].mxu0
      %v620 = vadd.f32 0.0, %v619
      %v621 = vpop.f32.mrb[0].mxu0
      %622 = vdwg.mxu0
      %v623 = vadd.f32 %v442, %v593
      %v624 = vadd.f32 %v445, %v596
      %v625 = vadd.f32 %v450, %v601
      %v626 = vadd.f32 %v453, %v604
      %v627 = vadd.f32 %v458, %v609
      %v628 = vadd.f32 %v461, %v612
      %v629 = vadd.f32 %v466, %v617
      %v630 = vadd.f32 %v469, %v620
      %s631 = scalar_lea.vmem %s165, 40
      %v632 = vld [vmem:[%s631] sm:$0xf]
      %v633 = vld [vmem:[%s631 + $0x4] sm:$0xf]
      %v634 = vld [vmem:[%s631 + $0x8] sm:$0xf]
      %v635 = vld [vmem:[%s631 + $0xc] sm:$0xf]
      %v636 = vld [vmem:[%s631 + $0x10] sm:$0xf]
      %v637 = vld [vmem:[%s631 + $0x14] sm:$0xf]
      %v638 = vld [vmem:[%s631 + $0x18] sm:$0xf]
      %v639 = vld [vmem:[%s631 + $0x1c] sm:$0xf]
      %v640 = vunpack.c.l.bf16 %v632
      %v641 = vunpack.c.l.bf16 %v633
      %v642 = vunpack.c.l.bf16 %v634
      %v643 = vunpack.c.l.bf16 %v635
      %v644 = vunpack.c.l.bf16 %v636
      %v645 = vunpack.c.l.bf16 %v637
      %v646 = vunpack.c.l.bf16 %v638
      %v647 = vunpack.c.l.bf16 %v639
      %v648 = vpack.c.bf16 %v641, %v640
      %v649 = vpack.c.bf16 %v643, %v642
      %v650 = vpack.c.bf16 %v645, %v644
      %v651 = vpack.c.bf16 %v647, %v646
      %s652 = scalar_lea.vmem %s1, 64
      %v653 = vld [vmem:[%s652] sm:$0xf]
      %v654 = vld [vmem:[%s652 + $0x4] sm:$0xf]
      %v655 = vld [vmem:[%s652 + $0x8] sm:$0xf]
      %v656 = vld [vmem:[%s652 + $0xc] sm:$0xf]
      %v657 = vld [vmem:[%s652 + $0x10] sm:$0xf]
      %v658 = vld [vmem:[%s652 + $0x14] sm:$0xf]
      %v659 = vld [vmem:[%s652 + $0x18] sm:$0xf]
      %v660 = vld [vmem:[%s652 + $0x1c] sm:$0xf]
      %v661 = vld [vmem:[%s652 + $0x20] sm:$0xf]
      %v662 = vld [vmem:[%s652 + $0x24] sm:$0xf]
      %v663 = vld [vmem:[%s652 + $0x28] sm:$0xf]
      %v664 = vld [vmem:[%s652 + $0x2c] sm:$0xf]
      %v665 = vld [vmem:[%s652 + $0x30] sm:$0xf]
      %v666 = vld [vmem:[%s652 + $0x34] sm:$0xf]
      %v667 = vld [vmem:[%s652 + $0x38] sm:$0xf]
      %v668 = vld [vmem:[%s652 + $0x3c] sm:$0xf]
      %v685 = vunpack.c.l.b16 %v653
      %v686 = vunpack.c.l.b16 %v654
      %v687 = vunpack.c.l.b16 %v655
      %v688 = vunpack.c.l.b16 %v656
      %v689 = vunpack.c.l.b16 %v657
      %v690 = vunpack.c.l.b16 %v658
      %v691 = vunpack.c.l.b16 %v659
      %v692 = vunpack.c.l.b16 %v660
      %v693 = vunpack.c.l.b16 %v661
      %v694 = vunpack.c.l.b16 %v662
      %v695 = vunpack.c.l.b16 %v663
      %v696 = vunpack.c.l.b16 %v664
      %v697 = vunpack.c.l.b16 %v665
      %v698 = vunpack.c.l.b16 %v666
      %v699 = vunpack.c.l.b16 %v667
      %v700 = vunpack.c.l.b16 %v668
      %v701 = vpack.c.b16 %v686, %v685
      %v702 = vpack.c.b16 %v688, %v687
      %v703 = vpack.c.b16 %v690, %v689
      %v704 = vpack.c.b16 %v692, %v691
      %v705 = vpack.c.b16 %v694, %v693
      %v706 = vpack.c.b16 %v696, %v695
      %v707 = vpack.c.b16 %v698, %v697
      %v708 = vpack.c.b16 %v700, %v699
      %717 = vmatprep.subr.bf16.mxu0 0
      %718 = vmatpush1.bf16.msra.mxu0 %v701
      %719 = vmatprep.subr.bf16.mxu0 0
      %720 = vmatpush1.bf16.msra.mxu0 %v702
      %721 = vmatprep.subr.bf16.mxu0 0
      %722 = vmatpush1.bf16.msra.mxu0 %v703
      %723 = vmatprep.subr.bf16.mxu0 0
      %724 = vmatpush1.bf16.msra.mxu0 %v704
      %725 = vmatprep.subr.bf16.mxu0 0
      %726 = vmatpush1.bf16.msra.mxu0 %v705
      %727 = vmatprep.subr.bf16.mxu0 0
      %728 = vmatpush1.bf16.msra.mxu0 %v706
      %729 = vmatprep.subr.bf16.mxu0 0
      %730 = vmatpush1.bf16.msra.mxu0 %v707
      %731 = vmatprep.subr.bf16.mxu0 0
      %732 = vmatpush1.bf16.msra.mxu0 %v708
      %733 = vmatprep.subr.bf16.mxu0 0
      %734 = vmatpush1.bf16.msra.mxu0 0
      %735 = vmatprep.subr.bf16.mxu0 0
      %736 = vmatpush1.bf16.msra.mxu0 0
      %737 = vmatprep.subr.bf16.mxu0 0
      %738 = vmatpush1.bf16.msra.mxu0 0
      %739 = vmatprep.subr.bf16.mxu0 0
      %740 = vmatpush1.bf16.msra.mxu0 0
      %741 = vmatprep.subr.bf16.mxu0 0
      %742 = vmatpush1.bf16.msra.mxu0 0
      %743 = vmatprep.subr.bf16.mxu0 0
      %744 = vmatpush1.bf16.msra.mxu0 0
      %745 = vmatprep.subr.bf16.mxu0 0
      %746 = vmatpush1.bf16.msra.mxu0 0
      %747 = vmatprep.subr.bf16.mxu0 0
      %748 = vmatpush1.bf16.msra.mxu0 0
      %749 = vmatprep.mubr.bf16.mxu0 0
      %750 = vmatmul.mubr.bf16.gmra.mrb[0].mxu0 %v648
      %v751 = vpop.f32.mrb[0].mxu0
      %v752 = vadd.f32 0.0, %v751
      %v753 = vpop.f32.mrb[0].mxu0
      %v754 = vpop.f32.mrb[0].mxu0
      %v755 = vadd.f32 0.0, %v754
      %v756 = vpop.f32.mrb[0].mxu0
      %757 = vmatprep.mubr.bf16.mxu0 0
      %758 = vmatmul.mubr.bf16.gmra.mrb[0].mxu0 %v649
      %v759 = vpop.f32.mrb[0].mxu0
      %v760 = vadd.f32 0.0, %v759
      %v761 = vpop.f32.mrb[0].mxu0
      %v762 = vpop.f32.mrb[0].mxu0
      %v763 = vadd.f32 0.0, %v762
      %v764 = vpop.f32.mrb[0].mxu0
      %765 = vmatprep.mubr.bf16.mxu0 0
      %766 = vmatmul.mubr.bf16.gmra.mrb[0].mxu0 %v650
      %v767 = vpop.f32.mrb[0].mxu0
      %v768 = vadd.f32 0.0, %v767
      %v769 = vpop.f32.mrb[0].mxu0
      %v770 = vpop.f32.mrb[0].mxu0
      %v771 = vadd.f32 0.0, %v770
      %v772 = vpop.f32.mrb[0].mxu0
      %773 = vmatprep.mubr.bf16.mxu0 0
      %774 = vmatmul.mubr.bf16.gmra.mrb[0].mxu0 %v651
      %v775 = vpop.f32.mrb[0].mxu0
      %v776 = vadd.f32 0.0, %v775
      %v777 = vpop.f32.mrb[0].mxu0
      %v778 = vpop.f32.mrb[0].mxu0
      %v779 = vadd.f32 0.0, %v778
      %v780 = vpop.f32.mrb[0].mxu0
      %781 = vdwg.mxu0
      %v782 = vadd.f32 %v623, %v752
      %v783 = vadd.f32 %v624, %v755
      %v784 = vadd.f32 %v625, %v760
      %v785 = vadd.f32 %v626, %v763
      %v786 = vadd.f32 %v627, %v768
      %v787 = vadd.f32 %v628, %v771
      %v788 = vadd.f32 %v629, %v776
      %v789 = vadd.f32 %v630, %v779
      %s790 = scalar_lea.vmem %s165, 44
      %v791 = vld [vmem:[%s790] sm:$0xf]
      %v792 = vld [vmem:[%s790 + $0x4] sm:$0xf]
      %v793 = vld [vmem:[%s790 + $0x8] sm:$0xf]
      %v794 = vld [vmem:[%s790 + $0xc] sm:$0xf]
      %v795 = vld [vmem:[%s790 + $0x10] sm:$0xf]
      %v796 = vld [vmem:[%s790 + $0x14] sm:$0xf]
      %v797 = vld [vmem:[%s790 + $0x18] sm:$0xf]
      %v798 = vld [vmem:[%s790 + $0x1c] sm:$0xf]
      %v799 = vunpack.c.l.bf16 %v791
      %v800 = vunpack.c.l.bf16 %v792
      %v801 = vunpack.c.l.bf16 %v793
      %v802 = vunpack.c.l.bf16 %v794
      %v803 = vunpack.c.l.bf16 %v795
      %v804 = vunpack.c.l.bf16 %v796
      %v805 = vunpack.c.l.bf16 %v797
      %v806 = vunpack.c.l.bf16 %v798
      %v807 = vpack.c.bf16 %v800, %v799
      %v808 = vpack.c.bf16 %v802, %v801
      %v809 = vpack.c.bf16 %v804, %v803
      %v810 = vpack.c.bf16 %v806, %v805
      %s811 = scalar_lea.vmem %s1, 256
      %v812 = vld [vmem:[%s811] sm:$0xf]
      %v813 = vld [vmem:[%s811 + $0x4] sm:$0xf]
      %v814 = vld [vmem:[%s811 + $0x8] sm:$0xf]
      %v815 = vld [vmem:[%s811 + $0xc] sm:$0xf]
      %v816 = vld [vmem:[%s811 + $0x10] sm:$0xf]
      %v817 = vld [vmem:[%s811 + $0x14] sm:$0xf]
      %v818 = vld [vmem:[%s811 + $0x18] sm:$0xf]
      %v819 = vld [vmem:[%s811 + $0x1c] sm:$0xf]
      %v820 = vld [vmem:[%s811 + $0x20] sm:$0xf]
      %v821 = vld [vmem:[%s811 + $0x24] sm:$0xf]
      %v822 = vld [vmem:[%s811 + $0x28] sm:$0xf]
      %v823 = vld [vmem:[%s811 + $0x2c] sm:$0xf]
      %v824 = vld [vmem:[%s811 + $0x30] sm:$0xf]
      %v825 = vld [vmem:[%s811 + $0x34] sm:$0xf]
      %v826 = vld [vmem:[%s811 + $0x38] sm:$0xf]
      %v827 = vld [vmem:[%s811 + $0x3c] sm:$0xf]
      %v844 = vunpack.c.l.b16 %v812
      %v845 = vunpack.c.l.b16 %v813
      %v846 = vunpack.c.l.b16 %v814
      %v847 = vunpack.c.l.b16 %v815
      %v848 = vunpack.c.l.b16 %v816
      %v849 = vunpack.c.l.b16 %v817
      %v850 = vunpack.c.l.b16 %v818
      %v851 = vunpack.c.l.b16 %v819
      %v852 = vunpack.c.l.b16 %v820
      %v853 = vunpack.c.l.b16 %v821
      %v854 = vunpack.c.l.b16 %v822
      %v855 = vunpack.c.l.b16 %v823
      %v856 = vunpack.c.l.b16 %v824
      %v857 = vunpack.c.l.b16 %v825
      %v858 = vunpack.c.l.b16 %v826
      %v859 = vunpack.c.l.b16 %v827
      %v860 = vpack.c.b16 %v845, %v844
      %v861 = vpack.c.b16 %v847, %v846
      %v862 = vpack.c.b16 %v849, %v848
      %v863 = vpack.c.b16 %v851, %v850
      %v864 = vpack.c.b16 %v853, %v852
      %v865 = vpack.c.b16 %v855, %v854
      %v866 = vpack.c.b16 %v857, %v856
      %v867 = vpack.c.b16 %v859, %v858
      %876 = vmatprep.subr.bf16.mxu0 0
      %877 = vmatpush1.bf16.msra.mxu0 %v860
      %878 = vmatprep.subr.bf16.mxu0 0
      %879 = vmatpush1.bf16.msra.mxu0 %v861
      %880 = vmatprep.subr.bf16.mxu0 0
      %881 = vmatpush1.bf16.msra.mxu0 %v862
      %882 = vmatprep.subr.bf16.mxu0 0
      %883 = vmatpush1.bf16.msra.mxu0 %v863
      %884 = vmatprep.subr.bf16.mxu0 0
      %885 = vmatpush1.bf16.msra.mxu0 %v864
      %886 = vmatprep.subr.bf16.mxu0 0
      %887 = vmatpush1.bf16.msra.mxu0 %v865
      %888 = vmatprep.subr.bf16.mxu0 0
      %889 = vmatpush1.bf16.msra.mxu0 %v866
      %890 = vmatprep.subr.bf16.mxu0 0
      %891 = vmatpush1.bf16.msra.mxu0 %v867
      %892 = vmatprep.subr.bf16.mxu0 0
      %893 = vmatpush1.bf16.msra.mxu0 0
      %894 = vmatprep.subr.bf16.mxu0 0
      %895 = vmatpush1.bf16.msra.mxu0 0
      %896 = vmatprep.subr.bf16.mxu0 0
      %897 = vmatpush1.bf16.msra.mxu0 0
      %898 = vmatprep.subr.bf16.mxu0 0
      %899 = vmatpush1.bf16.msra.mxu0 0
      %900 = vmatprep.subr.bf16.mxu0 0
      %901 = vmatpush1.bf16.msra.mxu0 0
      %902 = vmatprep.subr.bf16.mxu0 0
      %903 = vmatpush1.bf16.msra.mxu0 0
      %904 = vmatprep.subr.bf16.mxu0 0
      %905 = vmatpush1.bf16.msra.mxu0 0
      %906 = vmatprep.subr.bf16.mxu0 0
      %907 = vmatpush1.bf16.msra.mxu0 0
      %908 = vmatprep.mubr.bf16.mxu0 0
      %909 = vmatmul.mubr.bf16.gmra.mrb[0].mxu0 %v807
      %v910 = vpop.f32.mrb[0].mxu0
      %v911 = vadd.f32 0.0, %v910
      %v912 = vpop.f32.mrb[0].mxu0
      %v913 = vpop.f32.mrb[0].mxu0
      %v914 = vadd.f32 0.0, %v913
      %v915 = vpop.f32.mrb[0].mxu0
      %916 = vmatprep.mubr.bf16.mxu0 0
      %917 = vmatmul.mubr.bf16.gmra.mrb[0].mxu0 %v808
      %v918 = vpop.f32.mrb[0].mxu0
      %v919 = vadd.f32 0.0, %v918
      %v920 = vpop.f32.mrb[0].mxu0
      %v921 = vpop.f32.mrb[0].mxu0
      %v922 = vadd.f32 0.0, %v921
      %v923 = vpop.f32.mrb[0].mxu0
      %924 = vmatprep.mubr.bf16.mxu0 0
      %925 = vmatmul.mubr.bf16.gmra.mrb[0].mxu0 %v809
      %v926 = vpop.f32.mrb[0].mxu0
      %v927 = vadd.f32 0.0, %v926
      %v928 = vpop.f32.mrb[0].mxu0
      %v929 = vpop.f32.mrb[0].mxu0
      %v930 = vadd.f32 0.0, %v929
      %v931 = vpop.f32.mrb[0].mxu0
      %932 = vmatprep.mubr.bf16.mxu0 0
      %933 = vmatmul.mubr.bf16.gmra.mrb[0].mxu0 %v810
      %v934 = vpop.f32.mrb[0].mxu0
      %v935 = vadd.f32 0.0, %v934
      %v936 = vpop.f32.mrb[0].mxu0
      %v937 = vpop.f32.mrb[0].mxu0
      %v938 = vadd.f32 0.0, %v937
      %v939 = vpop.f32.mrb[0].mxu0
      %940 = vdwg.mxu0
      %v941 = vadd.f32 %v782, %v911
      %v942 = vadd.f32 %v783, %v914
      %v943 = vadd.f32 %v784, %v919
      %v944 = vadd.f32 %v785, %v922
      %v945 = vadd.f32 %v786, %v927
      %v946 = vadd.f32 %v787, %v930
      %v947 = vadd.f32 %v788, %v935
      %v948 = vadd.f32 %v789, %v938
      %s949 = scalar_lea.vmem %s165, 48
      %v950 = vld [vmem:[%s949] sm:$0xf]
      %v951 = vld [vmem:[%s949 + $0x4] sm:$0xf]
      %v952 = vld [vmem:[%s949 + $0x8] sm:$0xf]
      %v953 = vld [vmem:[%s949 + $0xc] sm:$0xf]
      %v954 = vld [vmem:[%s949 + $0x10] sm:$0xf]
      %v955 = vld [vmem:[%s949 + $0x14] sm:$0xf]
      %v956 = vld [vmem:[%s949 + $0x18] sm:$0xf]
      %v957 = vld [vmem:[%s949 + $0x1c] sm:$0xf]
      %v958 = vunpack.c.l.bf16 %v950
      %v959 = vunpack.c.l.bf16 %v951
      %v960 = vunpack.c.l.bf16 %v952
      %v961 = vunpack.c.l.bf16 %v953
      %v962 = vunpack.c.l.bf16 %v954
      %v963 = vunpack.c.l.bf16 %v955
      %v964 = vunpack.c.l.bf16 %v956
      %v965 = vunpack.c.l.bf16 %v957
      %v966 = vpack.c.bf16 %v959, %v958
      %v967 = vpack.c.bf16 %v961, %v960
      %v968 = vpack.c.bf16 %v963, %v962
      %v969 = vpack.c.bf16 %v965, %v964
      %s970 = scalar_lea.vmem %s1, 448
      %v971 = vld [vmem:[%s970] sm:$0xf]
      %v972 = vld [vmem:[%s970 + $0x4] sm:$0xf]
      %v973 = vld [vmem:[%s970 + $0x8] sm:$0xf]
      %v974 = vld [vmem:[%s970 + $0xc] sm:$0xf]
      %v975 = vld [vmem:[%s970 + $0x10] sm:$0xf]
      %v976 = vld [vmem:[%s970 + $0x14] sm:$0xf]
      %v977 = vld [vmem:[%s970 + $0x18] sm:$0xf]
      %v978 = vld [vmem:[%s970 + $0x1c] sm:$0xf]
      %v979 = vld [vmem:[%s970 + $0x20] sm:$0xf]
      %v980 = vld [vmem:[%s970 + $0x24] sm:$0xf]
      %v981 = vld [vmem:[%s970 + $0x28] sm:$0xf]
      %v982 = vld [vmem:[%s970 + $0x2c] sm:$0xf]
      %v983 = vld [vmem:[%s970 + $0x30] sm:$0xf]
      %v984 = vld [vmem:[%s970 + $0x34] sm:$0xf]
      %v985 = vld [vmem:[%s970 + $0x38] sm:$0xf]
      %v986 = vld [vmem:[%s970 + $0x3c] sm:$0xf]
      %v1003 = vunpack.c.l.b16 %v971
      %v1004 = vunpack.c.l.b16 %v972
      %v1005 = vunpack.c.l.b16 %v973
      %v1006 = vunpack.c.l.b16 %v974
      %v1007 = vunpack.c.l.b16 %v975
      %v1008 = vunpack.c.l.b16 %v976
      %v1009 = vunpack.c.l.b16 %v977
      %v1010 = vunpack.c.l.b16 %v978
      %v1011 = vunpack.c.l.b16 %v979
      %v1012 = vunpack.c.l.b16 %v980
      %v1013 = vunpack.c.l.b16 %v981
      %v1014 = vunpack.c.l.b16 %v982
      %v1015 = vunpack.c.l.b16 %v983
      %v1016 = vunpack.c.l.b16 %v984
      %v1017 = vunpack.c.l.b16 %v985
      %v1018 = vunpack.c.l.b16 %v986
      %v1019 = vpack.c.b16 %v1004, %v1003
      %v1020 = vpack.c.b16 %v1006, %v1005
      %v1021 = vpack.c.b16 %v1008, %v1007
      %v1022 = vpack.c.b16 %v1010, %v1009
      %v1023 = vpack.c.b16 %v1012, %v1011
      %v1024 = vpack.c.b16 %v1014, %v1013
      %v1025 = vpack.c.b16 %v1016, %v1015
      %v1026 = vpack.c.b16 %v1018, %v1017
      %1035 = vmatprep.subr.bf16.mxu0 0
      %1036 = vmatpush1.bf16.msra.mxu0 %v1019
      %1037 = vmatprep.subr.bf16.mxu0 0
      %1038 = vmatpush1.bf16.msra.mxu0 %v1020
      %1039 = vmatprep.subr.bf16.mxu0 0
      %1040 = vmatpush1.bf16.msra.mxu0 %v1021
      %1041 = vmatprep.subr.bf16.mxu0 0
      %1042 = vmatpush1.bf16.msra.mxu0 %v1022
      %1043 = vmatprep.subr.bf16.mxu0 0
      %1044 = vmatpush1.bf16.msra.mxu0 %v1023
      %1045 = vmatprep.subr.bf16.mxu0 0
      %1046 = vmatpush1.bf16.msra.mxu0 %v1024
      %1047 = vmatprep.subr.bf16.mxu0 0
      %1048 = vmatpush1.bf16.msra.mxu0 %v1025
      %1049 = vmatprep.subr.bf16.mxu0 0
      %1050 = vmatpush1.bf16.msra.mxu0 %v1026
      %1051 = vmatprep.subr.bf16.mxu0 0
      %1052 = vmatpush1.bf16.msra.mxu0 0
      %1053 = vmatprep.subr.bf16.mxu0 0
      %1054 = vmatpush1.bf16.msra.mxu0 0
      %1055 = vmatprep.subr.bf16.mxu0 0
      %1056 = vmatpush1.bf16.msra.mxu0 0
      %1057 = vmatprep.subr.bf16.mxu0 0
      %1058 = vmatpush1.bf16.msra.mxu0 0
      %1059 = vmatprep.subr.bf16.mxu0 0
      %1060 = vmatpush1.bf16.msra.mxu0 0
      %1061 = vmatprep.subr.bf16.mxu0 0
      %1062 = vmatpush1.bf16.msra.mxu0 0
      %1063 = vmatprep.subr.bf16.mxu0 0
      %1064 = vmatpush1.bf16.msra.mxu0 0
      %1065 = vmatprep.subr.bf16.mxu0 0
      %1066 = vmatpush1.bf16.msra.mxu0 0
      %1067 = vmatprep.mubr.bf16.mxu0 0
      %1068 = vmatmul.mubr.bf16.gmra.mrb[0].mxu0 %v966
      %v1069 = vpop.f32.mrb[0].mxu0
      %v1070 = vadd.f32 0.0, %v1069
      %v1071 = vpop.f32.mrb[0].mxu0
      %v1072 = vpop.f32.mrb[0].mxu0
      %v1073 = vadd.f32 0.0, %v1072
      %v1074 = vpop.f32.mrb[0].mxu0
      %1075 = vmatprep.mubr.bf16.mxu0 0
      %1076 = vmatmul.mubr.bf16.gmra.mrb[0].mxu0 %v967
      %v1077 = vpop.f32.mrb[0].mxu0
      %v1078 = vadd.f32 0.0, %v1077
      %v1079 = vpop.f32.mrb[0].mxu0
      %v1080 = vpop.f32.mrb[0].mxu0
      %v1081 = vadd.f32 0.0, %v1080
      %v1082 = vpop.f32.mrb[0].mxu0
      %1083 = vmatprep.mubr.bf16.mxu0 0
      %1084 = vmatmul.mubr.bf16.gmra.mrb[0].mxu0 %v968
      %v1085 = vpop.f32.mrb[0].mxu0
      %v1086 = vadd.f32 0.0, %v1085
      %v1087 = vpop.f32.mrb[0].mxu0
      %v1088 = vpop.f32.mrb[0].mxu0
      %v1089 = vadd.f32 0.0, %v1088
      %v1090 = vpop.f32.mrb[0].mxu0
      %1091 = vmatprep.mubr.bf16.mxu0 0
      %1092 = vmatmul.mubr.bf16.gmra.mrb[0].mxu0 %v969
      %v1093 = vpop.f32.mrb[0].mxu0
      %v1094 = vadd.f32 0.0, %v1093
      %v1095 = vpop.f32.mrb[0].mxu0
      %v1096 = vpop.f32.mrb[0].mxu0
      %v1097 = vadd.f32 0.0, %v1096
      %v1098 = vpop.f32.mrb[0].mxu0
      %1099 = vdwg.mxu0
      %v1100 = vadd.f32 %v941, %v1070
      %v1101 = vadd.f32 %v942, %v1073
      %v1102 = vadd.f32 %v943, %v1078
      %v1103 = vadd.f32 %v944, %v1081
      %v1104 = vadd.f32 %v945, %v1086
      %v1105 = vadd.f32 %v946, %v1089
      %v1106 = vadd.f32 %v947, %v1094
      %v1107 = vadd.f32 %v948, %v1097
      %s1108 = scalar_lea.vmem %s165, 80
      %v1109 = vld [vmem:[%s1108] sm:$0xf]
      %v1110 = vld [vmem:[%s1108 + $0x4] sm:$0xf]
      %v1111 = vld [vmem:[%s1108 + $0x8] sm:$0xf]
      %v1112 = vld [vmem:[%s1108 + $0xc] sm:$0xf]
      %v1113 = vld [vmem:[%s1108 + $0x10] sm:$0xf]
      %v1114 = vld [vmem:[%s1108 + $0x14] sm:$0xf]
      %v1115 = vld [vmem:[%s1108 + $0x18] sm:$0xf]
      %v1116 = vld [vmem:[%s1108 + $0x1c] sm:$0xf]
      %v1117 = vunpack.c.l.bf16 %v1109
      %v1118 = vunpack.c.l.bf16 %v1110
      %v1119 = vunpack.c.l.bf16 %v1111
      %v1120 = vunpack.c.l.bf16 %v1112
      %v1121 = vunpack.c.l.bf16 %v1113
      %v1122 = vunpack.c.l.bf16 %v1114
      %v1123 = vunpack.c.l.bf16 %v1115
      %v1124 = vunpack.c.l.bf16 %v1116
      %v1125 = vpack.c.bf16 %v1118, %v1117
      %v1126 = vpack.c.bf16 %v1120, %v1119
      %v1127 = vpack.c.bf16 %v1122, %v1121
      %v1128 = vpack.c.bf16 %v1124, %v1123
      %s1129 = scalar_lea.vmem %s1, 128
      %v1130 = vld [vmem:[%s1129] sm:$0xf]
      %v1131 = vld [vmem:[%s1129 + $0x4] sm:$0xf]
      %v1132 = vld [vmem:[%s1129 + $0x8] sm:$0xf]
      %v1133 = vld [vmem:[%s1129 + $0xc] sm:$0xf]
      %v1134 = vld [vmem:[%s1129 + $0x10] sm:$0xf]
      %v1135 = vld [vmem:[%s1129 + $0x14] sm:$0xf]
      %v1136 = vld [vmem:[%s1129 + $0x18] sm:$0xf]
      %v1137 = vld [vmem:[%s1129 + $0x1c] sm:$0xf]
      %v1138 = vld [vmem:[%s1129 + $0x20] sm:$0xf]
      %v1139 = vld [vmem:[%s1129 + $0x24] sm:$0xf]
      %v1140 = vld [vmem:[%s1129 + $0x28] sm:$0xf]
      %v1141 = vld [vmem:[%s1129 + $0x2c] sm:$0xf]
      %v1142 = vld [vmem:[%s1129 + $0x30] sm:$0xf]
      %v1143 = vld [vmem:[%s1129 + $0x34] sm:$0xf]
      %v1144 = vld [vmem:[%s1129 + $0x38] sm:$0xf]
      %v1145 = vld [vmem:[%s1129 + $0x3c] sm:$0xf]
      %v1162 = vunpack.c.l.b16 %v1130
      %v1163 = vunpack.c.l.b16 %v1131
      %v1164 = vunpack.c.l.b16 %v1132
      %v1165 = vunpack.c.l.b16 %v1133
      %v1166 = vunpack.c.l.b16 %v1134
      %v1167 = vunpack.c.l.b16 %v1135
      %v1168 = vunpack.c.l.b16 %v1136
      %v1169 = vunpack.c.l.b16 %v1137
      %v1170 = vunpack.c.l.b16 %v1138
      %v1171 = vunpack.c.l.b16 %v1139
      %v1172 = vunpack.c.l.b16 %v1140
      %v1173 = vunpack.c.l.b16 %v1141
      %v1174 = vunpack.c.l.b16 %v1142
      %v1175 = vunpack.c.l.b16 %v1143
      %v1176 = vunpack.c.l.b16 %v1144
      %v1177 = vunpack.c.l.b16 %v1145
      %v1178 = vpack.c.b16 %v1163, %v1162
      %v1179 = vpack.c.b16 %v1165, %v1164
      %v1180 = vpack.c.b16 %v1167, %v1166
      %v1181 = vpack.c.b16 %v1169, %v1168
      %v1182 = vpack.c.b16 %v1171, %v1170
      %v1183 = vpack.c.b16 %v1173, %v1172
      %v1184 = vpack.c.b16 %v1175, %v1174
      %v1185 = vpack.c.b16 %v1177, %v1176
      %1194 = vmatprep.subr.bf16.mxu0 0
      %1195 = vmatpush1.bf16.msra.mxu0 %v1178
      %1196 = vmatprep.subr.bf16.mxu0 0
      %1197 = vmatpush1.bf16.msra.mxu0 %v1179
      %1198 = vmatprep.subr.bf16.mxu0 0
      %1199 = vmatpush1.bf16.msra.mxu0 %v1180
      %1200 = vmatprep.subr.bf16.mxu0 0
      %1201 = vmatpush1.bf16.msra.mxu0 %v1181
      %1202 = vmatprep.subr.bf16.mxu0 0
      %1203 = vmatpush1.bf16.msra.mxu0 %v1182
      %1204 = vmatprep.subr.bf16.mxu0 0
      %1205 = vmatpush1.bf16.msra.mxu0 %v1183
      %1206 = vmatprep.subr.bf16.mxu0 0
      %1207 = vmatpush1.bf16.msra.mxu0 %v1184
      %1208 = vmatprep.subr.bf16.mxu0 0
      %1209 = vmatpush1.bf16.msra.mxu0 %v1185
      %1210 = vmatprep.subr.bf16.mxu0 0
      %1211 = vmatpush1.bf16.msra.mxu0 0
      %1212 = vmatprep.subr.bf16.mxu0 0
      %1213 = vmatpush1.bf16.msra.mxu0 0
      %1214 = vmatprep.subr.bf16.mxu0 0
      %1215 = vmatpush1.bf16.msra.mxu0 0
      %1216 = vmatprep.subr.bf16.mxu0 0
      %1217 = vmatpush1.bf16.msra.mxu0 0
      %1218 = vmatprep.subr.bf16.mxu0 0
      %1219 = vmatpush1.bf16.msra.mxu0 0
      %1220 = vmatprep.subr.bf16.mxu0 0
      %1221 = vmatpush1.bf16.msra.mxu0 0
      %1222 = vmatprep.subr.bf16.mxu0 0
      %1223 = vmatpush1.bf16.msra.mxu0 0
      %1224 = vmatprep.subr.bf16.mxu0 0
      %1225 = vmatpush1.bf16.msra.mxu0 0
      %1226 = vmatprep.mubr.bf16.mxu0 0
      %1227 = vmatmul.mubr.bf16.gmra.mrb[0].mxu0 %v1125
      %v1228 = vpop.f32.mrb[0].mxu0
      %v1229 = vadd.f32 0.0, %v1228
      %v1230 = vpop.f32.mrb[0].mxu0
      %v1231 = vpop.f32.mrb[0].mxu0
      %v1232 = vadd.f32 0.0, %v1231
      %v1233 = vpop.f32.mrb[0].mxu0
      %1234 = vmatprep.mubr.bf16.mxu0 0
      %1235 = vmatmul.mubr.bf16.gmra.mrb[0].mxu0 %v1126
      %v1236 = vpop.f32.mrb[0].mxu0
      %v1237 = vadd.f32 0.0, %v1236
      %v1238 = vpop.f32.mrb[0].mxu0
      %v1239 = vpop.f32.mrb[0].mxu0
      %v1240 = vadd.f32 0.0, %v1239
      %v1241 = vpop.f32.mrb[0].mxu0
      %1242 = vmatprep.mubr.bf16.mxu0 0
      %1243 = vmatmul.mubr.bf16.gmra.mrb[0].mxu0 %v1127
      %v1244 = vpop.f32.mrb[0].mxu0
      %v1245 = vadd.f32 0.0, %v1244
      %v1246 = vpop.f32.mrb[0].mxu0
      %v1247 = vpop.f32.mrb[0].mxu0
      %v1248 = vadd.f32 0.0, %v1247
      %v1249 = vpop.f32.mrb[0].mxu0
      %1250 = vmatprep.mubr.bf16.mxu0 0
      %1251 = vmatmul.mubr.bf16.gmra.mrb[0].mxu0 %v1128
      %v1252 = vpop.f32.mrb[0].mxu0
      %v1253 = vadd.f32 0.0, %v1252
      %v1254 = vpop.f32.mrb[0].mxu0
      %v1255 = vpop.f32.mrb[0].mxu0
      %v1256 = vadd.f32 0.0, %v1255
      %v1257 = vpop.f32.mrb[0].mxu0
      %1258 = vdwg.mxu0
      %v1259 = vadd.f32 %v1100, %v1229
      %v1260 = vadd.f32 %v1101, %v1232
      %v1261 = vadd.f32 %v1102, %v1237
      %v1262 = vadd.f32 %v1103, %v1240
      %v1263 = vadd.f32 %v1104, %v1245
      %v1264 = vadd.f32 %v1105, %v1248
      %v1265 = vadd.f32 %v1106, %v1253
      %v1266 = vadd.f32 %v1107, %v1256
      %s1267 = scalar_lea.vmem %s165, 84
      %v1268 = vld [vmem:[%s1267] sm:$0xf]
      %v1269 = vld [vmem:[%s1267 + $0x4] sm:$0xf]
      %v1270 = vld [vmem:[%s1267 + $0x8] sm:$0xf]
      %v1271 = vld [vmem:[%s1267 + $0xc] sm:$0xf]
      %v1272 = vld [vmem:[%s1267 + $0x10] sm:$0xf]
      %v1273 = vld [vmem:[%s1267 + $0x14] sm:$0xf]
      %v1274 = vld [vmem:[%s1267 + $0x18] sm:$0xf]
      %v1275 = vld [vmem:[%s1267 + $0x1c] sm:$0xf]
      %v1276 = vunpack.c.l.bf16 %v1268
      %v1277 = vunpack.c.l.bf16 %v1269
      %v1278 = vunpack.c.l.bf16 %v1270
      %v1279 = vunpack.c.l.bf16 %v1271
      %v1280 = vunpack.c.l.bf16 %v1272
      %v1281 = vunpack.c.l.bf16 %v1273
      %v1282 = vunpack.c.l.bf16 %v1274
      %v1283 = vunpack.c.l.bf16 %v1275
      %v1284 = vpack.c.bf16 %v1277, %v1276
      %v1285 = vpack.c.bf16 %v1279, %v1278
      %v1286 = vpack.c.bf16 %v1281, %v1280
      %v1287 = vpack.c.bf16 %v1283, %v1282
      %s1288 = scalar_lea.vmem %s1, 320
      %v1289 = vld [vmem:[%s1288] sm:$0xf]
      %v1290 = vld [vmem:[%s1288 + $0x4] sm:$0xf]
      %v1291 = vld [vmem:[%s1288 + $0x8] sm:$0xf]
      %v1292 = vld [vmem:[%s1288 + $0xc] sm:$0xf]
      %v1293 = vld [vmem:[%s1288 + $0x10] sm:$0xf]
      %v1294 = vld [vmem:[%s1288 + $0x14] sm:$0xf]
      %v1295 = vld [vmem:[%s1288 + $0x18] sm:$0xf]
      %v1296 = vld [vmem:[%s1288 + $0x1c] sm:$0xf]
      %v1297 = vld [vmem:[%s1288 + $0x20] sm:$0xf]
      %v1298 = vld [vmem:[%s1288 + $0x24] sm:$0xf]
      %v1299 = vld [vmem:[%s1288 + $0x28] sm:$0xf]
      %v1300 = vld [vmem:[%s1288 + $0x2c] sm:$0xf]
      %v1301 = vld [vmem:[%s1288 + $0x30] sm:$0xf]
      %v1302 = vld [vmem:[%s1288 + $0x34] sm:$0xf]
      %v1303 = vld [vmem:[%s1288 + $0x38] sm:$0xf]
      %v1304 = vld [vmem:[%s1288 + $0x3c] sm:$0xf]
      %v1321 = vunpack.c.l.b16 %v1289
      %v1322 = vunpack.c.l.b16 %v1290
      %v1323 = vunpack.c.l.b16 %v1291
      %v1324 = vunpack.c.l.b16 %v1292
      %v1325 = vunpack.c.l.b16 %v1293
      %v1326 = vunpack.c.l.b16 %v1294
      %v1327 = vunpack.c.l.b16 %v1295
      %v1328 = vunpack.c.l.b16 %v1296
      %v1329 = vunpack.c.l.b16 %v1297
      %v1330 = vunpack.c.l.b16 %v1298
      %v1331 = vunpack.c.l.b16 %v1299
      %v1332 = vunpack.c.l.b16 %v1300
      %v1333 = vunpack.c.l.b16 %v1301
      %v1334 = vunpack.c.l.b16 %v1302
      %v1335 = vunpack.c.l.b16 %v1303
      %v1336 = vunpack.c.l.b16 %v1304
      %v1337 = vpack.c.b16 %v1322, %v1321
      %v1338 = vpack.c.b16 %v1324, %v1323
      %v1339 = vpack.c.b16 %v1326, %v1325
      %v1340 = vpack.c.b16 %v1328, %v1327
      %v1341 = vpack.c.b16 %v1330, %v1329
      %v1342 = vpack.c.b16 %v1332, %v1331
      %v1343 = vpack.c.b16 %v1334, %v1333
      %v1344 = vpack.c.b16 %v1336, %v1335
      %1353 = vmatprep.subr.bf16.mxu0 0
      %1354 = vmatpush1.bf16.msra.mxu0 %v1337
      %1355 = vmatprep.subr.bf16.mxu0 0
      %1356 = vmatpush1.bf16.msra.mxu0 %v1338
      %1357 = vmatprep.subr.bf16.mxu0 0
      %1358 = vmatpush1.bf16.msra.mxu0 %v1339
      %1359 = vmatprep.subr.bf16.mxu0 0
      %1360 = vmatpush1.bf16.msra.mxu0 %v1340
      %1361 = vmatprep.subr.bf16.mxu0 0
      %1362 = vmatpush1.bf16.msra.mxu0 %v1341
      %1363 = vmatprep.subr.bf16.mxu0 0
      %1364 = vmatpush1.bf16.msra.mxu0 %v1342
      %1365 = vmatprep.subr.bf16.mxu0 0
      %1366 = vmatpush1.bf16.msra.mxu0 %v1343
      %1367 = vmatprep.subr.bf16.mxu0 0
      %1368 = vmatpush1.bf16.msra.mxu0 %v1344
      %1369 = vmatprep.subr.bf16.mxu0 0
      %1370 = vmatpush1.bf16.msra.mxu0 0
      %1371 = vmatprep.subr.bf16.mxu0 0
      %1372 = vmatpush1.bf16.msra.mxu0 0
      %1373 = vmatprep.subr.bf16.mxu0 0
      %1374 = vmatpush1.bf16.msra.mxu0 0
      %1375 = vmatprep.subr.bf16.mxu0 0
      %1376 = vmatpush1.bf16.msra.mxu0 0
      %1377 = vmatprep.subr.bf16.mxu0 0
      %1378 = vmatpush1.bf16.msra.mxu0 0
      %1379 = vmatprep.subr.bf16.mxu0 0
      %1380 = vmatpush1.bf16.msra.mxu0 0
      %1381 = vmatprep.subr.bf16.mxu0 0
      %1382 = vmatpush1.bf16.msra.mxu0 0
      %1383 = vmatprep.subr.bf16.mxu0 0
      %1384 = vmatpush1.bf16.msra.mxu0 0
      %1385 = vmatprep.mubr.bf16.mxu0 0
      %1386 = vmatmul.mubr.bf16.gmra.mrb[0].mxu0 %v1284
      %v1387 = vpop.f32.mrb[0].mxu0
      %v1388 = vadd.f32 0.0, %v1387
      %v1389 = vpop.f32.mrb[0].mxu0
      %v1390 = vpop.f32.mrb[0].mxu0
      %v1391 = vadd.f32 0.0, %v1390
      %v1392 = vpop.f32.mrb[0].mxu0
      %1393 = vmatprep.mubr.bf16.mxu0 0
      %1394 = vmatmul.mubr.bf16.gmra.mrb[0].mxu0 %v1285
      %v1395 = vpop.f32.mrb[0].mxu0
      %v1396 = vadd.f32 0.0, %v1395
      %v1397 = vpop.f32.mrb[0].mxu0
      %v1398 = vpop.f32.mrb[0].mxu0
      %v1399 = vadd.f32 0.0, %v1398
      %v1400 = vpop.f32.mrb[0].mxu0
      %1401 = vmatprep.mubr.bf16.mxu0 0
      %1402 = vmatmul.mubr.bf16.gmra.mrb[0].mxu0 %v1286
      %v1403 = vpop.f32.mrb[0].mxu0
      %v1404 = vadd.f32 0.0, %v1403
      %v1405 = vpop.f32.mrb[0].mxu0
      %v1406 = vpop.f32.mrb[0].mxu0
      %v1407 = vadd.f32 0.0, %v1406
      %v1408 = vpop.f32.mrb[0].mxu0
      %1409 = vmatprep.mubr.bf16.mxu0 0
      %1410 = vmatmul.mubr.bf16.gmra.mrb[0].mxu0 %v1287
      %v1411 = vpop.f32.mrb[0].mxu0
      %v1412 = vadd.f32 0.0, %v1411
      %v1413 = vpop.f32.mrb[0].mxu0
      %v1414 = vpop.f32.mrb[0].mxu0
      %v1415 = vadd.f32 0.0, %v1414
      %v1416 = vpop.f32.mrb[0].mxu0
      %1417 = vdwg.mxu0
      %v1418 = vadd.f32 %v1259, %v1388
      %v1419 = vadd.f32 %v1260, %v1391
      %v1420 = vadd.f32 %v1261, %v1396
      %v1421 = vadd.f32 %v1262, %v1399
      %v1422 = vadd.f32 %v1263, %v1404
      %v1423 = vadd.f32 %v1264, %v1407
      %v1424 = vadd.f32 %v1265, %v1412
      %v1425 = vadd.f32 %v1266, %v1415
      %s1426 = scalar_lea.vmem %s165, 88
      %v1427 = vld [vmem:[%s1426] sm:$0xf]
      %v1428 = vld [vmem:[%s1426 + $0x4] sm:$0xf]
      %v1429 = vld [vmem:[%s1426 + $0x8] sm:$0xf]
      %v1430 = vld [vmem:[%s1426 + $0xc] sm:$0xf]
      %v1431 = vld [vmem:[%s1426 + $0x10] sm:$0xf]
      %v1432 = vld [vmem:[%s1426 + $0x14] sm:$0xf]
      %v1433 = vld [vmem:[%s1426 + $0x18] sm:$0xf]
      %v1434 = vld [vmem:[%s1426 + $0x1c] sm:$0xf]
      %v1435 = vunpack.c.l.bf16 %v1427
      %v1436 = vunpack.c.l.bf16 %v1428
      %v1437 = vunpack.c.l.bf16 %v1429
      %v1438 = vunpack.c.l.bf16 %v1430
      %v1439 = vunpack.c.l.bf16 %v1431
      %v1440 = vunpack.c.l.bf16 %v1432
      %v1441 = vunpack.c.l.bf16 %v1433
      %v1442 = vunpack.c.l.bf16 %v1434
      %v1443 = vpack.c.bf16 %v1436, %v1435
      %v1444 = vpack.c.bf16 %v1438, %v1437
      %v1445 = vpack.c.bf16 %v1440, %v1439
      %v1446 = vpack.c.bf16 %v1442, %v1441
      %s1447 = scalar_lea.vmem %s1, 512
      %v1448 = vld [vmem:[%s1447] sm:$0xf]
      %v1449 = vld [vmem:[%s1447 + $0x4] sm:$0xf]
      %v1450 = vld [vmem:[%s1447 + $0x8] sm:$0xf]
      %v1451 = vld [vmem:[%s1447 + $0xc] sm:$0xf]
      %v1452 = vld [vmem:[%s1447 + $0x10] sm:$0xf]
      %v1453 = vld [vmem:[%s1447 + $0x14] sm:$0xf]
      %v1454 = vld [vmem:[%s1447 + $0x18] sm:$0xf]
      %v1455 = vld [vmem:[%s1447 + $0x1c] sm:$0xf]
      %v1456 = vld [vmem:[%s1447 + $0x20] sm:$0xf]
      %v1457 = vld [vmem:[%s1447 + $0x24] sm:$0xf]
      %v1458 = vld [vmem:[%s1447 + $0x28] sm:$0xf]
      %v1459 = vld [vmem:[%s1447 + $0x2c] sm:$0xf]
      %v1460 = vld [vmem:[%s1447 + $0x30] sm:$0xf]
      %v1461 = vld [vmem:[%s1447 + $0x34] sm:$0xf]
      %v1462 = vld [vmem:[%s1447 + $0x38] sm:$0xf]
      %v1463 = vld [vmem:[%s1447 + $0x3c] sm:$0xf]
      %v1480 = vunpack.c.l.b16 %v1448
      %v1481 = vunpack.c.l.b16 %v1449
      %v1482 = vunpack.c.l.b16 %v1450
      %v1483 = vunpack.c.l.b16 %v1451
      %v1484 = vunpack.c.l.b16 %v1452
      %v1485 = vunpack.c.l.b16 %v1453
      %v1486 = vunpack.c.l.b16 %v1454
      %v1487 = vunpack.c.l.b16 %v1455
      %v1488 = vunpack.c.l.b16 %v1456
      %v1489 = vunpack.c.l.b16 %v1457
      %v1490 = vunpack.c.l.b16 %v1458
      %v1491 = vunpack.c.l.b16 %v1459
      %v1492 = vunpack.c.l.b16 %v1460
      %v1493 = vunpack.c.l.b16 %v1461
      %v1494 = vunpack.c.l.b16 %v1462
      %v1495 = vunpack.c.l.b16 %v1463
      %v1496 = vpack.c.b16 %v1481, %v1480
      %v1497 = vpack.c.b16 %v1483, %v1482
      %v1498 = vpack.c.b16 %v1485, %v1484
      %v1499 = vpack.c.b16 %v1487, %v1486
      %v1500 = vpack.c.b16 %v1489, %v1488
      %v1501 = vpack.c.b16 %v1491, %v1490
      %v1502 = vpack.c.b16 %v1493, %v1492
      %v1503 = vpack.c.b16 %v1495, %v1494
      %1512 = vmatprep.subr.bf16.mxu0 0
      %1513 = vmatpush1.bf16.msra.mxu0 %v1496
      %1514 = vmatprep.subr.bf16.mxu0 0
      %1515 = vmatpush1.bf16.msra.mxu0 %v1497
      %1516 = vmatprep.subr.bf16.mxu0 0
      %1517 = vmatpush1.bf16.msra.mxu0 %v1498
      %1518 = vmatprep.subr.bf16.mxu0 0
      %1519 = vmatpush1.bf16.msra.mxu0 %v1499
      %1520 = vmatprep.subr.bf16.mxu0 0
      %1521 = vmatpush1.bf16.msra.mxu0 %v1500
      %1522 = vmatprep.subr.bf16.mxu0 0
      %1523 = vmatpush1.bf16.msra.mxu0 %v1501
      %1524 = vmatprep.subr.bf16.mxu0 0
      %1525 = vmatpush1.bf16.msra.mxu0 %v1502
      %1526 = vmatprep.subr.bf16.mxu0 0
      %1527 = vmatpush1.bf16.msra.mxu0 %v1503
      %1528 = vmatprep.subr.bf16.mxu0 0
      %1529 = vmatpush1.bf16.msra.mxu0 0
      %1530 = vmatprep.subr.bf16.mxu0 0
      %1531 = vmatpush1.bf16.msra.mxu0 0
      %1532 = vmatprep.subr.bf16.mxu0 0
      %1533 = vmatpush1.bf16.msra.mxu0 0
      %1534 = vmatprep.subr.bf16.mxu0 0
      %1535 = vmatpush1.bf16.msra.mxu0 0
      %1536 = vmatprep.subr.bf16.mxu0 0
      %1537 = vmatpush1.bf16.msra.mxu0 0
      %1538 = vmatprep.subr.bf16.mxu0 0
      %1539 = vmatpush1.bf16.msra.mxu0 0
      %1540 = vmatprep.subr.bf16.mxu0 0
      %1541 = vmatpush1.bf16.msra.mxu0 0
      %1542 = vmatprep.subr.bf16.mxu0 0
      %1543 = vmatpush1.bf16.msra.mxu0 0
      %1544 = vmatprep.mubr.bf16.mxu0 0
      %1545 = vmatmul.mubr.bf16.gmra.mrb[0].mxu0 %v1443
      %v1546 = vpop.f32.mrb[0].mxu0
      %v1547 = vadd.f32 0.0, %v1546
      %v1548 = vpop.f32.mrb[0].mxu0
      %v1549 = vpop.f32.mrb[0].mxu0
      %v1550 = vadd.f32 0.0, %v1549
      %v1551 = vpop.f32.mrb[0].mxu0
      %1552 = vmatprep.mubr.bf16.mxu0 0
      %1553 = vmatmul.mubr.bf16.gmra.mrb[0].mxu0 %v1444
      %v1554 = vpop.f32.mrb[0].mxu0
      %v1555 = vadd.f32 0.0, %v1554
      %v1556 = vpop.f32.mrb[0].mxu0
      %v1557 = vpop.f32.mrb[0].mxu0
      %v1558 = vadd.f32 0.0, %v1557
      %v1559 = vpop.f32.mrb[0].mxu0
      %1560 = vmatprep.mubr.bf16.mxu0 0
      %1561 = vmatmul.mubr.bf16.gmra.mrb[0].mxu0 %v1445
      %v1562 = vpop.f32.mrb[0].mxu0
      %v1563 = vadd.f32 0.0, %v1562
      %v1564 = vpop.f32.mrb[0].mxu0
      %v1565 = vpop.f32.mrb[0].mxu0
      %v1566 = vadd.f32 0.0, %v1565
      %v1567 = vpop.f32.mrb[0].mxu0
      %1568 = vmatprep.mubr.bf16.mxu0 0
      %1569 = vmatmul.mubr.bf16.gmra.mrb[0].mxu0 %v1446
      %v1570 = vpop.f32.mrb[0].mxu0
      %v1571 = vadd.f32 0.0, %v1570
      %v1572 = vpop.f32.mrb[0].mxu0
      %v1573 = vpop.f32.mrb[0].mxu0
      %v1574 = vadd.f32 0.0, %v1573
      %v1575 = vpop.f32.mrb[0].mxu0
      %1576 = vdwg.mxu0
      %v1577 = vadd.f32 %v1418, %v1547
      %v1578 = vadd.f32 %v1419, %v1550
      %v1579 = vadd.f32 %v1420, %v1555
      %v1580 = vadd.f32 %v1421, %v1558
      %v1581 = vadd.f32 %v1422, %v1563
      %v1582 = vadd.f32 %v1423, %v1566
      %v1583 = vadd.f32 %v1424, %v1571
      %v1584 = vadd.f32 %v1425, %v1574
      %v1585 = vld [vmem:[%s2] sm:$0x1]
      %v1587 = vlaneseq
      %v1588 = vshrl.u32 %v1587, 7
      %v1589 = vsub.s32 0, %v1588
      %v1590 = vrot.slane %v1585, %v1589
      %v1592 = vadd.f32 %v1577, %v1590
      %v1593 = vadd.f32 %v1578, %v1590
      %v1594 = vadd.f32 %v1579, %v1590
      %v1595 = vadd.f32 %v1580, %v1590
      %v1596 = vadd.f32 %v1581, %v1590
      %v1597 = vadd.f32 %v1582, %v1590
      %v1598 = vadd.f32 %v1583, %v1590
      %v1599 = vadd.f32 %v1584, %v1590
      %v1600 = vmax.f32 %v1592, 0.0
      %v1601 = vmax.f32 %v1593, 0.0
      %v1602 = vmax.f32 %v1594, 0.0
      %v1603 = vmax.f32 %v1595, 0.0
      %v1604 = vmax.f32 %v1596, 0.0
      %v1605 = vmax.f32 %v1597, 0.0
      %v1606 = vmax.f32 %v1598, 0.0
      %v1607 = vmax.f32 %v1599, 0.0
      %v1608 = vpack.c.bf16 %v1601, %v1600
      %v1609 = vpack.c.bf16 %v1603, %v1602
      %v1610 = vpack.c.bf16 %v1605, %v1604
      %v1611 = vpack.c.bf16 %v1607, %v1606
      %v1616 = vunpack.c.l.b16 %v1608
      %v1617 = vunpack.c.h.b16 %v1608
      %v1618 = vunpack.c.l.b16 %v1609
      %v1619 = vunpack.c.h.b16 %v1609
      %v1620 = vunpack.c.l.b16 %v1610
      %v1621 = vunpack.c.h.b16 %v1610
      %v1622 = vunpack.c.l.b16 %v1611
      %v1623 = vunpack.c.h.b16 %v1611
      %v1624 = vpack.c.b16 %v1616, %v1616
      %v1625 = vpack.c.b16 %v1617, %v1617
      %v1626 = vpack.c.b16 %v1618, %v1618
      %v1627 = vpack.c.b16 %v1619, %v1619
      %v1628 = vpack.c.b16 %v1620, %v1620
      %v1629 = vpack.c.b16 %v1621, %v1621
      %v1630 = vpack.c.b16 %v1622, %v1622
      %v1631 = vpack.c.b16 %v1623, %v1623
      %1640 = vst [vmem:[%s170] sm:$0xf] %v1624
      %1641 = vst [vmem:[%s170 + $0x4] sm:$0xf] %v1625
      %1642 = vst [vmem:[%s170 + $0x8] sm:$0xf] %v1626
      %1643 = vst [vmem:[%s170 + $0xc] sm:$0xf] %v1627
      %1644 = vst [vmem:[%s170 + $0x10] sm:$0xf] %v1628
      %1645 = vst [vmem:[%s170 + $0x14] sm:$0xf] %v1629
      %1646 = vst [vmem:[%s170 + $0x18] sm:$0xf] %v1630
      %1647 = vst [vmem:[%s170 + $0x1c] sm:$0xf] %v1631
      %p1648 = scmp.lt.s32.totalorder %s14, 1
      %s1649 = scalar_select %p1648, %s14, 1
      %s1650 = smul.addr %s1649, 8
      %s1651 = smul.addr %s1650, 4
      %s1652 = scalar_lea.vmem %s3, %s1651
      // Predicated region
      $region33: #{_lambda_.13} parent=31 // pred_check
        %p1653 = pneg %p100
      $region34: #{_lambda_.13} parent=31 // pred_check_branch
        %1655 = sbr.rel (%p1653) target = $region36
      $region35: #{_lambda_.13} parent=31 // pred_region
        _
      $region36: #{_lambda_.13} parent=31 // pred_fallthru
        _
    $region32: #{_lambda_.13} parent=5 // pred_fallthru
      _
    %p1656 = scmp.le.s32.totalorder 2, %s9
    // Predicated region
    $region37: #{_lambda_.13} parent=5 // pred_check
      %p1657 = pneg %p1656
    $region38: #{_lambda_.13} parent=5 // pred_check_branch
      %1659 = sbr.rel (%p1657) target = $region40
    $region39: #{_lambda_.13} parent=5 // pred_region
      %s1660 = ssub.s32 %s9, 2
      // Predicated region
      $region41: #{_lambda_.13} parent=39 // pred_check
        %p1661 = pneg %p106
      $region42: #{_lambda_.13} parent=39 // pred_check_branch
        %1663 = sbr.rel (%p1661) target = $region44
      $region43: #{_lambda_.13} parent=39 // pred_region
        %p1664 = scmp.lt.s32.totalorder %s15, 1
        %s1665 = scalar_select %p1664, %s15, 1
        %s1666 = smul.addr %s1665, 8
        %s1667 = smul.addr %s1666, 4
        %s1668 = scalar_lea.vmem %s3, %s1667
      $region44: #{_lambda_.13} parent=39 // pred_fallthru
        _
    $region40: #{_lambda_.13} parent=5 // pred_fallthru
      _
  $region6: #{_lambda_.13} parent=0 // loop_footer
    %s13 = sadd.s32 1, %s9
  $region7: #{_lambda_.13} parent=0 // loop_footer_branch
    %8 = sbr.rel target = $region3
  $region8: #{_lambda_.13} parent=0 // loop_exit
    _

// kernel: _lambda_.15
$region0: #{_lambda_.15}
  #allocation0 [shape = 'u32[]', space=smem, size = 0x4, offset = 0x4, fixed_abs, tag = 'smem constant byte address 0x4 - core index']
  #allocation1 [shape = 'u32[144,128]{1,0:T(1,128)}', space=vmem, size = 0x12000, scoped, tag = 'internal scratch']
  #allocation2 [shape = 'f32[65,128]{1,0:T(8,128)}', space=vmem, size = 0x9000, scoped, tag = 'scratch operand']
  %s0 = inlined_call_operand.vmem [shape: bf16[2,64,128], index: 0, kind: input, shape index: {}]
  %s1 = inlined_call_operand.vmem [shape: f32[1,128], index: 1, kind: input, shape index: {}]
  %s2 = inlined_call_operand.vmem [shape: f32[64,128], index: 2, kind: input, shape index: {}]
  %s3 = inlined_call_operand.vmem [shape: bf16[128,384], index: 3, kind: input, shape index: {}]
  %s4 = inlined_call_operand.vmem [shape: f32[1,384], index: 4, kind: input, shape index: {}]
  %s5 = inlined_call_operand.vmem [shape: bf16[128,128], index: 5, kind: input, shape index: {}]
  %s6 = inlined_call_operand.vmem [shape: f32[1,128], index: 6, kind: input, shape index: {}]
  %s7 = inlined_call_operand.vmem [shape: f32[2,65,128], index: 7, kind: output, shape index: {}]
  %s8 = sld [smem:[#allocation0]]
  $region61: #{_lambda_.15} parent=0
    _
  %s10 = ssub.s32 1, %s8
  %s11 = scalar_select 0, %s10, %s8
  loop: start=0, step=1, limit=4
  $region2: #{_lambda_.15} parent=0 // loop_pre_header
    _
  $region3: #{_lambda_.15} parent=0 // loop_header
    %s13 = sphi 0, %s17
    %p14 = scmp.ge.s32.totalorder %s13, 4
    %s23 = sphi 0, %s25
    %s26 = sphi 0, %s23
    %s27 = sphi 0, %s26
    %s43 = sphi 0, %s27
    %s47 = sphi 0, %s47
    %s49 = sphi 0, %s47
    %s50 = sphi 0, %s49
    %s64 = sphi 0, %s50
    %s68 = sphi 0, %s68
    %s70 = sphi 0, %s68
    %s71 = sphi 0, %s70
    %s85 = sphi 0, %s71
    %s89 = sphi 0, %s89
    %s91 = sphi 0, %s89
    %s92 = sphi 0, %s91
    %s106 = sphi 0, %s92
    %s110 = sphi 0, %s110
    %s112 = sphi 0, %s110
    %s113 = sphi 0, %s112
    %s127 = sphi 0, %s113
    %s131 = sphi 0, %s131
    %s133 = sphi 0, %s131
    %s134 = sphi 0, %s133
    %s148 = sphi 0, %s134
    %s152 = sphi 0, %s152
    %s154 = sphi 0, %s152
    %s155 = sphi 0, %s154
    %s169 = sphi 0, %s155
    %s175 = sphi 0, %s177
    %s178 = sphi 0, %s175
    %s179 = sphi 0, %s178
    %s195 = sphi 0, %s179
  $region4: #{_lambda_.15} parent=0 // loop_header_branch
    %16 = sbr.rel (%p14) target = $region8
  $region5: #{_lambda_.15} parent=0 // loop_body
    %s18 = ssub.s32 %s13, 1
    %s19 = ssub.s32 %s13, 2
    %s20 = sadd.s32 %s13, 1
    %s21 = ssub.s32 %s13, %s20
    %p22 = scmp.eq.s32.totalorder %s21, 0
    %s24 = sadd.s32 %s23, 1
    %s25 = scalar_select %p22, %s23, %s24
    %p28 = pneg %p22
    %p29 = scmp.eq.s32.totalorder %s13, 1
    %p30 = por %p28, %p29
    %p31 = scmp.ne.s32.totalorder %s23, %s26
    %p32 = scmp.eq.s32.totalorder %s13, 0
    %p33 = por %p31, %p32
    %p34 = scmp.ne.s32.totalorder %s23, %s26
    %p35 = scmp.eq.s32.totalorder %s18, 1
    %p36 = por %p34, %p35
    %p37 = scmp.ne.s32.totalorder %s26, %s27
    %p38 = scmp.eq.s32.totalorder %s18, 0
    %p39 = por %p37, %p38
    %p40 = scmp.ne.s32.totalorder %s26, %s27
    %p41 = scmp.eq.s32.totalorder %s19, 1
    %p42 = por %p40, %p41
    %p44 = scmp.ne.s32.totalorder %s27, %s43
    %p45 = scmp.eq.s32.totalorder %s19, 0
    %p46 = por %p44, %p45
    %s48 = sadd.s32 %s47, 1
    %p51 = scmp.eq.s32.totalorder %s13, 1
    %p52 = scmp.ne.s32.totalorder %s47, %s49
    %p53 = scmp.eq.s32.totalorder %s13, 0
    %p54 = por %p52, %p53
    %p55 = scmp.ne.s32.totalorder %s47, %s49
    %p56 = scmp.eq.s32.totalorder %s18, 1
    %p57 = por %p55, %p56
    %p58 = scmp.ne.s32.totalorder %s49, %s50
    %p59 = scmp.eq.s32.totalorder %s18, 0
    %p60 = por %p58, %p59
    %p61 = scmp.ne.s32.totalorder %s49, %s50
    %p62 = scmp.eq.s32.totalorder %s19, 1
    %p63 = por %p61, %p62
    %p65 = scmp.ne.s32.totalorder %s50, %s64
    %p66 = scmp.eq.s32.totalorder %s19, 0
    %p67 = por %p65, %p66
    %s69 = sadd.s32 %s68, 1
    %p72 = scmp.eq.s32.totalorder %s13, 1
    %p73 = scmp.ne.s32.totalorder %s68, %s70
    %p74 = scmp.eq.s32.totalorder %s13, 0
    %p75 = por %p73, %p74
    %p76 = scmp.ne.s32.totalorder %s68, %s70
    %p77 = scmp.eq.s32.totalorder %s18, 1
    %p78 = por %p76, %p77
    %p79 = scmp.ne.s32.totalorder %s70, %s71
    %p80 = scmp.eq.s32.totalorder %s18, 0
    %p81 = por %p79, %p80
    %p82 = scmp.ne.s32.totalorder %s70, %s71
    %p83 = scmp.eq.s32.totalorder %s19, 1
    %p84 = por %p82, %p83
    %p86 = scmp.ne.s32.totalorder %s71, %s85
    %p87 = scmp.eq.s32.totalorder %s19, 0
    %p88 = por %p86, %p87
    %s90 = sadd.s32 %s89, 1
    %p93 = scmp.eq.s32.totalorder %s13, 1
    %p94 = scmp.ne.s32.totalorder %s89, %s91
    %p95 = scmp.eq.s32.totalorder %s13, 0
    %p96 = por %p94, %p95
    %p97 = scmp.ne.s32.totalorder %s89, %s91
    %p98 = scmp.eq.s32.totalorder %s18, 1
    %p99 = por %p97, %p98
    %p100 = scmp.ne.s32.totalorder %s91, %s92
    %p101 = scmp.eq.s32.totalorder %s18, 0
    %p102 = por %p100, %p101
    %p103 = scmp.ne.s32.totalorder %s91, %s92
    %p104 = scmp.eq.s32.totalorder %s19, 1
    %p105 = por %p103, %p104
    %p107 = scmp.ne.s32.totalorder %s92, %s106
    %p108 = scmp.eq.s32.totalorder %s19, 0
    %p109 = por %p107, %p108
    %s111 = sadd.s32 %s110, 1
    %p114 = scmp.eq.s32.totalorder %s13, 1
    %p115 = scmp.ne.s32.totalorder %s110, %s112
    %p116 = scmp.eq.s32.totalorder %s13, 0
    %p117 = por %p115, %p116
    %p118 = scmp.ne.s32.totalorder %s110, %s112
    %p119 = scmp.eq.s32.totalorder %s18, 1
    %p120 = por %p118, %p119
    %p121 = scmp.ne.s32.totalorder %s112, %s113
    %p122 = scmp.eq.s32.totalorder %s18, 0
    %p123 = por %p121, %p122
    %p124 = scmp.ne.s32.totalorder %s112, %s113
    %p125 = scmp.eq.s32.totalorder %s19, 1
    %p126 = por %p124, %p125
    %p128 = scmp.ne.s32.totalorder %s113, %s127
    %p129 = scmp.eq.s32.totalorder %s19, 0
    %p130 = por %p128, %p129
    %s132 = sadd.s32 %s131, 1
    %p135 = scmp.eq.s32.totalorder %s13, 1
    %p136 = scmp.ne.s32.totalorder %s131, %s133
    %p137 = scmp.eq.s32.totalorder %s13, 0
    %p138 = por %p136, %p137
    %p139 = scmp.ne.s32.totalorder %s131, %s133
    %p140 = scmp.eq.s32.totalorder %s18, 1
    %p141 = por %p139, %p140
    %p142 = scmp.ne.s32.totalorder %s133, %s134
    %p143 = scmp.eq.s32.totalorder %s18, 0
    %p144 = por %p142, %p143
    %p145 = scmp.ne.s32.totalorder %s133, %s134
    %p146 = scmp.eq.s32.totalorder %s19, 1
    %p147 = por %p145, %p146
    %p149 = scmp.ne.s32.totalorder %s134, %s148
    %p150 = scmp.eq.s32.totalorder %s19, 0
    %p151 = por %p149, %p150
    %s153 = sadd.s32 %s152, 1
    %p156 = scmp.eq.s32.totalorder %s13, 1
    %p157 = scmp.ne.s32.totalorder %s152, %s154
    %p158 = scmp.eq.s32.totalorder %s13, 0
    %p159 = por %p157, %p158
    %p160 = scmp.ne.s32.totalorder %s152, %s154
    %p161 = scmp.eq.s32.totalorder %s18, 1
    %p162 = por %p160, %p161
    %p163 = scmp.ne.s32.totalorder %s154, %s155
    %p164 = scmp.eq.s32.totalorder %s18, 0
    %p165 = por %p163, %p164
    %p166 = scmp.ne.s32.totalorder %s154, %s155
    %p167 = scmp.eq.s32.totalorder %s19, 1
    %p168 = por %p166, %p167
    %p170 = scmp.ne.s32.totalorder %s155, %s169
    %p171 = scmp.eq.s32.totalorder %s19, 0
    %p172 = por %p170, %p171
    %s173 = ssub.s32 %s13, %s20
    %p174 = scmp.eq.s32.totalorder %s173, 0
    %s176 = sadd.s32 %s175, 1
    %s177 = scalar_select %p174, %s175, %s176
    %p180 = pneg %p174
    %p181 = scmp.eq.s32.totalorder %s13, 1
    %p182 = por %p180, %p181
    %p183 = scmp.ne.s32.totalorder %s175, %s178
    %p184 = scmp.eq.s32.totalorder %s13, 0
    %p185 = por %p183, %p184
    %p186 = scmp.ne.s32.totalorder %s175, %s178
    %p187 = scmp.eq.s32.totalorder %s18, 1
    %p188 = por %p186, %p187
    %p189 = scmp.ne.s32.totalorder %s178, %s179
    %p190 = scmp.eq.s32.totalorder %s18, 0
    %p191 = por %p189, %p190
    %p192 = scmp.ne.s32.totalorder %s178, %s179
    %p193 = scmp.eq.s32.totalorder %s19, 1
    %p194 = por %p192, %p193
    %p196 = scmp.ne.s32.totalorder %s179, %s195
    %p197 = scmp.eq.s32.totalorder %s19, 0
    %p198 = por %p196, %p197
    %p199 = scmp.le.s32.totalorder 1, %s13
    %p200 = scmp.lt.s32.totalorder %s13, 3
    %p201 = pnand %p199, %p200
    %p202 = pneg %p201
    // Predicated region
    $region9: #{_lambda_.15} parent=5 // pred_check
      _
    $region10: #{_lambda_.15} parent=5 // pred_check_branch
      %204 = sbr.rel (%p201) target = $region12
    $region11: #{_lambda_.15} parent=5 // pred_region
      %s205 = ssub.s32 %s13, 1
      // Predicated region
      $region13: #{_lambda_.15} parent=11 // pred_check
        %p206 = pneg %p60
      $region14: #{_lambda_.15} parent=11 // pred_check_branch
        %208 = sbr.rel (%p206) target = $region16
      $region15: #{_lambda_.15} parent=11 // pred_region
        _
      $region16: #{_lambda_.15} parent=11 // pred_fallthru
        _
      // Predicated region
      $region17: #{_lambda_.15} parent=11 // pred_check
        %p209 = pneg %p81
      $region18: #{_lambda_.15} parent=11 // pred_check_branch
        %211 = sbr.rel (%p209) target = $region20
      $region19: #{_lambda_.15} parent=11 // pred_region
        _
      $region20: #{_lambda_.15} parent=11 // pred_fallthru
        _
      // Predicated region
      $region21: #{_lambda_.15} parent=11 // pred_check
        %p212 = pneg %p102
      $region22: #{_lambda_.15} parent=11 // pred_check_branch
        %214 = sbr.rel (%p212) target = $region24
      $region23: #{_lambda_.15} parent=11 // pred_region
        _
      $region24: #{_lambda_.15} parent=11 // pred_fallthru
        _
      // Predicated region
      $region25: #{_lambda_.15} parent=11 // pred_check
        %p215 = pneg %p123
      $region26: #{_lambda_.15} parent=11 // pred_check_branch
        %217 = sbr.rel (%p215) target = $region28
      $region27: #{_lambda_.15} parent=11 // pred_region
        _
      $region28: #{_lambda_.15} parent=11 // pred_fallthru
        _
      // Predicated region
      $region29: #{_lambda_.15} parent=11 // pred_check
        %p218 = pneg %p144
      $region30: #{_lambda_.15} parent=11 // pred_check_branch
        %220 = sbr.rel (%p218) target = $region32
      $region31: #{_lambda_.15} parent=11 // pred_region
        _
      $region32: #{_lambda_.15} parent=11 // pred_fallthru
        _
      // Predicated region
      $region33: #{_lambda_.15} parent=11 // pred_check
        %p221 = pneg %p165
      $region34: #{_lambda_.15} parent=11 // pred_check_branch
        %223 = sbr.rel (%p221) target = $region36
      $region35: #{_lambda_.15} parent=11 // pred_region
        _
      $region36: #{_lambda_.15} parent=11 // pred_fallthru
        _
    $region12: #{_lambda_.15} parent=5 // pred_fallthru
      _
    %p224 = scmp.lt.s32.totalorder %s13, 2
    // Predicated region
    $region37: #{_lambda_.15} parent=5 // pred_check
      %p225 = pneg %p224
    $region38: #{_lambda_.15} parent=5 // pred_check_branch
      %227 = sbr.rel (%p225) target = $region40
    $region39: #{_lambda_.15} parent=5 // pred_region
      // Predicated region
      $region41: #{_lambda_.15} parent=39 // pred_check
        %p228 = pneg %p33
      $region42: #{_lambda_.15} parent=39 // pred_check_branch
        %230 = sbr.rel (%p228) target = $region44
      $region43: #{_lambda_.15} parent=39 // pred_region
        %p231 = scmp.lt.s32.totalorder %s13, 1
        %s232 = scalar_select %p231, %s13, 1
        %s233 = smul.addr %s232, 8
        %s234 = smul.addr %s233, 4
        %s235 = scalar_lea.vmem %s0, %s234
      $region44: #{_lambda_.15} parent=39 // pred_fallthru
        _
    $region40: #{_lambda_.15} parent=5 // pred_fallthru
      _
    %p236 = scmp.le.s32.totalorder 1, %s13
    %p237 = scmp.lt.s32.totalorder %s13, 3
    %p238 = pnand %p236, %p237
    %p239 = pneg %p238
    // Predicated region
    $region45: #{_lambda_.15} parent=5 // pred_check
      _
    $region46: #{_lambda_.15} parent=5 // pred_check_branch
      %241 = sbr.rel (%p238) target = $region48
    $region47: #{_lambda_.15} parent=5 // pred_region
      %s242 = ssub.s32 %s13, 1
      %p243 = scmp.lt.s32.totalorder %s18, 1
      %s244 = scalar_select %p243, %s18, 1
      %s245 = smul.addr %s244, 8
      %s246 = smul.addr %s245, 4
      %s247 = scalar_lea.vmem %s0, %s246
      %p248 = pneg %p39
      %p249 = pneg %p36
      %p250 = pneg %p60
      %p251 = pneg %p57
      %p252 = pneg %p81
      %p253 = pneg %p78
      %p254 = pneg %p102
      %p255 = pneg %p99
      %p256 = pneg %p123
      %p257 = pneg %p120
      %p258 = pneg %p144
      %p259 = pneg %p141
      %p260 = pneg %p165
      %p261 = pneg %p162
      %p262 = pneg %p191
      %p263 = pneg %p188
      %p264 = scmp.lt.s32.totalorder %s18, 1
      %s265 = scalar_select %p264, %s18, 1
      %s266 = smul.addr %s265, 9
      %s267 = smul.addr %s266, 8
      %s268 = scalar_lea.vmem %s7, %s267
      %p269 = scmp.lt.s32.totalorder %s18, 1
      %s270 = scalar_select %p269, %s18, 1
      %s271 = smul.addr %s270, 8
      %s272 = smul.addr %s271, 4
      %s273 = scalar_lea.vmem %s0, %s272
      %p274 = scmp.lt.s32.totalorder %s18, 1
      %s275 = scalar_select %p274, %s18, 1
      %s276 = smul.addr %s275, 9
      %s277 = smul.addr %s276, 8
      %s278 = scalar_lea.vmem %s7, %s277
      %v280 = vld [vmem:[%s273] sm:$0xf]
      %v281 = vld [vmem:[%s273 + $0x4] sm:$0xf]
      %v282 = vld [vmem:[%s273 + $0x8] sm:$0xf]
      %v283 = vld [vmem:[%s273 + $0xc] sm:$0xf]
      %v284 = vld [vmem:[%s273 + $0x10] sm:$0xf]
      %v285 = vld [vmem:[%s273 + $0x14] sm:$0xf]
      %v286 = vld [vmem:[%s273 + $0x18] sm:$0xf]
      %v287 = vld [vmem:[%s273 + $0x1c] sm:$0xf]
      %v288 = vunpack.c.l.bf16 %v280
      %v289 = vunpack.c.l.bf16 %v281
      %v290 = vunpack.c.l.bf16 %v282
      %v291 = vunpack.c.l.bf16 %v283
      %v292 = vunpack.c.l.bf16 %v284
      %v293 = vunpack.c.l.bf16 %v285
      %v294 = vunpack.c.l.bf16 %v286
      %v295 = vunpack.c.l.bf16 %v287
      %v296 = vadd.f32 %v288, %v289
      %v297 = vadd.f32 %v296, %v290
      %v298 = vadd.f32 %v297, %v291
      %v299 = vadd.f32 %v298, %v292
      %v300 = vadd.f32 %v299, %v293
      %v301 = vadd.f32 %v300, %v294
      %v302 = vadd.f32 %v301, %v295
      %v303 = vrot.slane %v302, 4
      %v304 = vadd.f32 %v302, %v303
      %v305 = vrot.slane %v304, 2
      %v306 = vadd.f32 %v304, %v305
      %v307 = vrot.slane %v306, 1
      %v308 = vadd.f32 %v306, %v307
      %v309 = vrcp.pop 64.0
      %v310 = vmul.f32 %v308, %v309
      %v311 = vld [vmem:[%s1] sm:$0x1]
      %v312 = vadd.f32 %v310, %v311
      %313 = vst [vmem:[#allocation2] sm:$0x1] %v312
      %v314 = vld [vmem:[%s2] sm:$0xff]
      %v315 = vld [vmem:[%s2 + $0x8] sm:$0xff]
      %v316 = vld [vmem:[%s2 + $0x10] sm:$0xff]
      %v317 = vld [vmem:[%s2 + $0x18] sm:$0xff]
      %v318 = vld [vmem:[%s2 + $0x20] sm:$0xff]
      %v319 = vld [vmem:[%s2 + $0x28] sm:$0xff]
      %v320 = vld [vmem:[%s2 + $0x30] sm:$0xff]
      %v321 = vld [vmem:[%s2 + $0x38] sm:$0xff]
      %v322 = vadd.f32 %v288, %v314
      %v323 = vadd.f32 %v289, %v315
      %v324 = vadd.f32 %v290, %v316
      %v325 = vadd.f32 %v291, %v317
      %v326 = vadd.f32 %v292, %v318
      %v327 = vadd.f32 %v293, %v319
      %v328 = vadd.f32 %v294, %v320
      %v329 = vadd.f32 %v295, %v321
      %330 = vst [vmem:[#allocation2 + $0x1] sm:$0xff] %v322
      %331 = vst [vmem:[#allocation2 + $0x9] sm:$0xff] %v323
      %332 = vst [vmem:[#allocation2 + $0x11] sm:$0xff] %v324
      %333 = vst [vmem:[#allocation2 + $0x19] sm:$0xff] %v325
      %334 = vst [vmem:[#allocation2 + $0x21] sm:$0xff] %v326
      %335 = vst [vmem:[#allocation2 + $0x29] sm:$0xff] %v327
      %336 = vst [vmem:[#allocation2 + $0x31] sm:$0xff] %v328
      %337 = vst [vmem:[#allocation2 + $0x39] sm:$0xff] %v329
      %v338 = vld [vmem:[#allocation2] sm:$0xff]
      %v339 = vld [vmem:[#allocation2 + $0x8] sm:$0xff]
      %v340 = vld [vmem:[#allocation2 + $0x10] sm:$0xff]
      %v341 = vld [vmem:[#allocation2 + $0x18] sm:$0xff]
      %v342 = vld [vmem:[#allocation2 + $0x20] sm:$0xff]
      %v343 = vld [vmem:[#allocation2 + $0x28] sm:$0xff]
      %v344 = vld [vmem:[#allocation2 + $0x30] sm:$0xff]
      %v345 = vld [vmem:[#allocation2 + $0x38] sm:$0xff]
      %v346 = vld [vmem:[#allocation2 + $0x40] sm:$0x1]
      %v347 = vpack.c.bf16 %v339, %v338
      %v348 = vpack.c.bf16 %v341, %v340
      %v349 = vpack.c.bf16 %v343, %v342
      %v350 = vpack.c.bf16 %v345, %v344
      %v351 = vpack.c.bf16 %v346, %v346
      %v352 = vld [vmem:[%s3] sm:$0xff]
      %v353 = vld [vmem:[%s3 + $0x8] sm:$0xf]
      %v354 = vld [vmem:[%s3 + $0xc] sm:$0xff]
      %v355 = vld [vmem:[%s3 + $0x14] sm:$0xf]
      %v356 = vld [vmem:[%s3 + $0x18] sm:$0xff]
      %v357 = vld [vmem:[%s3 + $0x20] sm:$0xf]
      %v358 = vld [vmem:[%s3 + $0x24] sm:$0xff]
      %v359 = vld [vmem:[%s3 + $0x2c] sm:$0xf]
      %v360 = vld [vmem:[%s3 + $0x30] sm:$0xff]
      %v361 = vld [vmem:[%s3 + $0x38] sm:$0xf]
      %v362 = vld [vmem:[%s3 + $0x3c] sm:$0xff]
      %v363 = vld [vmem:[%s3 + $0x44] sm:$0xf]
      %v364 = vld [vmem:[%s3 + $0x48] sm:$0xff]
      %v365 = vld [vmem:[%s3 + $0x50] sm:$0xf]
      %v366 = vld [vmem:[%s3 + $0x54] sm:$0xff]
      %v367 = vld [vmem:[%s3 + $0x5c] sm:$0xf]
      %v368 = vld [vmem:[%s3 + $0x60] sm:$0xff]
      %v369 = vld [vmem:[%s3 + $0x68] sm:$0xf]
      %v370 = vld [vmem:[%s3 + $0x6c] sm:$0xff]
      %v371 = vld [vmem:[%s3 + $0x74] sm:$0xf]
      %v372 = vld [vmem:[%s3 + $0x78] sm:$0xff]
      %v373 = vld [vmem:[%s3 + $0x80] sm:$0xf]
      %v374 = vld [vmem:[%s3 + $0x84] sm:$0xff]
      %v375 = vld [vmem:[%s3 + $0x8c] sm:$0xf]
      %v376 = vld [vmem:[%s3 + $0x90] sm:$0xff]
      %v377 = vld [vmem:[%s3 + $0x98] sm:$0xf]
      %v378 = vld [vmem:[%s3 + $0x9c] sm:$0xff]
      %v379 = vld [vmem:[%s3 + $0xa4] sm:$0xf]
      %v380 = vld [vmem:[%s3 + $0xa8] sm:$0xff]
      %v381 = vld [vmem:[%s3 + $0xb0] sm:$0xf]
      %v382 = vld [vmem:[%s3 + $0xb4] sm:$0xff]
      %v383 = vld [vmem:[%s3 + $0xbc] sm:$0xf]
      %v384 = vld [vmem:[%s4] sm:$0x7]
      %v386 = vlaneseq
      %v387 = vshrl.u32 %v386, 7
      %v388 = vsub.s32 0, %v387
      %v389 = vrot.slane %v384, %v388
      %v390 = vlaneseq
      %v391 = vshrl.u32 %v390, 7
      %v392 = vsub.s32 1, %v391
      %v393 = vrot.slane %v384, %v392
      %v394 = vlaneseq
      %v395 = vshrl.u32 %v394, 7
      %v396 = vsub.s32 2, %v395
      %v397 = vrot.slane %v384, %v396
      %v433 = vunpack.c.l.b16 %v352
      %v434 = vunpack.c.h.b16 %v352
      %v435 = vunpack.c.l.b16 %v353
      %v436 = vunpack.c.l.b16 %v354
      %v437 = vunpack.c.h.b16 %v354
      %v438 = vunpack.c.l.b16 %v355
      %v439 = vunpack.c.l.b16 %v356
      %v440 = vunpack.c.h.b16 %v356
      %v441 = vunpack.c.l.b16 %v357
      %v442 = vunpack.c.l.b16 %v358
      %v443 = vunpack.c.h.b16 %v358
      %v444 = vunpack.c.l.b16 %v359
      %v445 = vunpack.c.l.b16 %v360
      %v446 = vunpack.c.h.b16 %v360
      %v447 = vunpack.c.l.b16 %v361
      %v448 = vunpack.c.l.b16 %v362
      %v449 = vunpack.c.h.b16 %v362
      %v450 = vunpack.c.l.b16 %v363
      %v451 = vunpack.c.l.b16 %v364
      %v452 = vunpack.c.h.b16 %v364
      %v453 = vunpack.c.l.b16 %v365
      %v454 = vunpack.c.l.b16 %v366
      %v455 = vunpack.c.h.b16 %v366
      %v456 = vunpack.c.l.b16 %v367
      %v457 = vunpack.c.l.b16 %v368
      %v458 = vunpack.c.h.b16 %v368
      %v459 = vunpack.c.l.b16 %v369
      %v460 = vunpack.c.l.b16 %v370
      %v461 = vunpack.c.h.b16 %v370
      %v462 = vunpack.c.l.b16 %v371
      %v463 = vunpack.c.l.b16 %v372
      %v464 = vunpack.c.h.b16 %v372
      %v465 = vunpack.c.l.b16 %v373
      %v466 = vunpack.c.l.b16 %v374
      %v467 = vunpack.c.h.b16 %v374
      %v468 = vunpack.c.l.b16 %v375
      %v469 = vunpack.c.l.b16 %v376
      %v470 = vunpack.c.h.b16 %v376
      %v471 = vunpack.c.l.b16 %v377
      %v472 = vunpack.c.l.b16 %v378
      %v473 = vunpack.c.h.b16 %v378
      %v474 = vunpack.c.l.b16 %v379
      %v475 = vunpack.c.l.b16 %v380
      %v476 = vunpack.c.h.b16 %v380
      %v477 = vunpack.c.l.b16 %v381
      %v478 = vunpack.c.l.b16 %v382
      %v479 = vunpack.c.h.b16 %v382
      %v480 = vunpack.c.l.b16 %v383
      %v481 = vpack.c.b16 %v436, %v433
      %v482 = vpack.c.b16 %v437, %v434
      %v483 = vpack.c.b16 %v438, %v435
      %v484 = vpack.c.b16 %v442, %v439
      %v485 = vpack.c.b16 %v443, %v440
      %v486 = vpack.c.b16 %v444, %v441
      %v487 = vpack.c.b16 %v448, %v445
      %v488 = vpack.c.b16 %v449, %v446
      %v489 = vpack.c.b16 %v450, %v447
      %v490 = vpack.c.b16 %v454, %v451
      %v491 = vpack.c.b16 %v455, %v452
      %v492 = vpack.c.b16 %v456, %v453
      %v493 = vpack.c.b16 %v460, %v457
      %v494 = vpack.c.b16 %v461, %v458
      %v495 = vpack.c.b16 %v462, %v459
      %v496 = vpack.c.b16 %v466, %v463
      %v497 = vpack.c.b16 %v467, %v464
      %v498 = vpack.c.b16 %v468, %v465
      %v499 = vpack.c.b16 %v472, %v469
      %v500 = vpack.c.b16 %v473, %v470
      %v501 = vpack.c.b16 %v474, %v471
      %v502 = vpack.c.b16 %v478, %v475
      %v503 = vpack.c.b16 %v479, %v476
      %v504 = vpack.c.b16 %v480, %v477
      %529 = vmatprep.subr.bf16.mxu0 %v482
      %530 = vmatpush1.bf16.msra.mxu0 %v481
      %531 = vmatprep.subr.bf16.mxu0 %v485
      %532 = vmatpush1.bf16.msra.mxu0 %v484
      %533 = vmatprep.subr.bf16.mxu0 %v488
      %534 = vmatpush1.bf16.msra.mxu0 %v487
      %535 = vmatprep.subr.bf16.mxu0 %v491
      %536 = vmatpush1.bf16.msra.mxu0 %v490
      %537 = vmatprep.subr.bf16.mxu0 %v494
      %538 = vmatpush1.bf16.msra.mxu0 %v493
      %539 = vmatprep.subr.bf16.mxu0 %v497
      %540 = vmatpush1.bf16.msra.mxu0 %v496
      %541 = vmatprep.subr.bf16.mxu0 %v500
      %542 = vmatpush1.bf16.msra.mxu0 %v499
      %543 = vmatprep.subr.bf16.mxu0 %v503
      %544 = vmatpush1.bf16.msra.mxu0 %v502
      %545 = vmatprep.subr.bf16.mxu0 0
      %546 = vmatpush1.bf16.msra.mxu0 0
      %547 = vmatprep.subr.bf16.mxu0 0
      %548 = vmatpush1.bf16.msra.mxu0 0
      %549 = vmatprep.subr.bf16.mxu0 0
      %550 = vmatpush1.bf16.msra.mxu0 0
      %551 = vmatprep.subr.bf16.mxu0 0
      %552 = vmatpush1.bf16.msra.mxu0 0
      %553 = vmatprep.subr.bf16.mxu0 0
      %554 = vmatpush1.bf16.msra.mxu0 0
      %555 = vmatprep.subr.bf16.mxu0 0
      %556 = vmatpush1.bf16.msra.mxu0 0
      %557 = vmatprep.subr.bf16.mxu0 0
      %558 = vmatpush1.bf16.msra.mxu0 0
      %559 = vmatprep.subr.bf16.mxu0 0
      %560 = vmatpush1.bf16.msra.mxu0 0
      %561 = vmatprep.mubr.bf16.mxu0 0
      %562 = vmatmul.mubr.bf16.gmra.mrb[0].mxu0 %v347
      %v563 = vpop.f32.mrb[0].mxu0
      %v564 = vadd.f32 %v389, %v563
      %v565 = vpop.f32.mrb[0].mxu0
      %v566 = vadd.f32 %v393, %v565
      %v567 = vpop.f32.mrb[0].mxu0
      %v568 = vadd.f32 %v389, %v567
      %v569 = vpop.f32.mrb[0].mxu0
      %v570 = vadd.f32 %v393, %v569
      %571 = vmatprep.mubr.bf16.mxu0 0
      %572 = vmatmul.mubr.bf16.gmra.mrb[0].mxu0 %v348
      %v573 = vpop.f32.mrb[0].mxu0
      %v574 = vadd.f32 %v389, %v573
      %v575 = vpop.f32.mrb[0].mxu0
      %v576 = vadd.f32 %v393, %v575
      %v577 = vpop.f32.mrb[0].mxu0
      %v578 = vadd.f32 %v389, %v577
      %v579 = vpop.f32.mrb[0].mxu0
      %v580 = vadd.f32 %v393, %v579
      %581 = vmatprep.mubr.bf16.mxu0 0
      %582 = vmatmul.mubr.bf16.gmra.mrb[0].mxu0 %v349
      %v583 = vpop.f32.mrb[0].mxu0
      %v584 = vadd.f32 %v389, %v583
      %v585 = vpop.f32.mrb[0].mxu0
      %v586 = vadd.f32 %v393, %v585
      %v587 = vpop.f32.mrb[0].mxu0
      %v588 = vadd.f32 %v389, %v587
      %v589 = vpop.f32.mrb[0].mxu0
      %v590 = vadd.f32 %v393, %v589
      %591 = vmatprep.mubr.bf16.mxu0 0
      %592 = vmatmul.mubr.bf16.gmra.mrb[0].mxu0 %v350
      %v593 = vpop.f32.mrb[0].mxu0
      %v594 = vadd.f32 %v389, %v593
      %v595 = vpop.f32.mrb[0].mxu0
      %v596 = vadd.f32 %v393, %v595
      %v597 = vpop.f32.mrb[0].mxu0
      %v598 = vadd.f32 %v389, %v597
      %v599 = vpop.f32.mrb[0].mxu0
      %v600 = vadd.f32 %v393, %v599
      %601 = vmatprep.mubr.bf16.mxu0 0
      %602 = vmatmul.mubr.bf16.gmra.mrb[0].mxu0 %v351
      %v603 = vpop.f32.mrb[0].mxu0
      %v604 = vadd.f32 %v389, %v603
      %v605 = vpop.f32.mrb[0].mxu0
      %v606 = vadd.f32 %v393, %v605
      %v607 = vpop.f32.mrb[0].mxu0
      %v608 = vpop.f32.mrb[0].mxu0
      %609 = vdwg.mxu0
      %610 = vmatprep.subr.bf16.mxu0 0
      %611 = vmatpush1.bf16.msra.mxu0 %v483
      %612 = vmatprep.subr.bf16.mxu0 0
      %613 = vmatpush1.bf16.msra.mxu0 %v486
      %614 = vmatprep.subr.bf16.mxu0 0
      %615 = vmatpush1.bf16.msra.mxu0 %v489
      %616 = vmatprep.subr.bf16.mxu0 0
      %617 = vmatpush1.bf16.msra.mxu0 %v492
      %618 = vmatprep.subr.bf16.mxu0 0
      %619 = vmatpush1.bf16.msra.mxu0 %v495
      %620 = vmatprep.subr.bf16.mxu0 0
      %621 = vmatpush1.bf16.msra.mxu0 %v498
      %622 = vmatprep.subr.bf16.mxu0 0
      %623 = vmatpush1.bf16.msra.mxu0 %v501
      %624 = vmatprep.subr.bf16.mxu0 0
      %625 = vmatpush1.bf16.msra.mxu0 %v504
      %626 = vmatprep.subr.bf16.mxu0 0
      %627 = vmatpush1.bf16.msra.mxu0 0
      %628 = vmatprep.subr.bf16.mxu0 0
      %629 = vmatpush1.bf16.msra.mxu0 0
      %630 = vmatprep.subr.bf16.mxu0 0
      %631 = vmatpush1.bf16.msra.mxu0 0
      %632 = vmatprep.subr.bf16.mxu0 0
      %633 = vmatpush1.bf16.msra.mxu0 0
      %634 = vmatprep.subr.bf16.mxu0 0
      %635 = vmatpush1.bf16.msra.mxu0 0
      %636 = vmatprep.subr.bf16.mxu0 0
      %637 = vmatpush1.bf16.msra.mxu0 0
      %638 = vmatprep.subr.bf16.mxu0 0
      %639 = vmatpush1.bf16.msra.mxu0 0
      %640 = vmatprep.subr.bf16.mxu0 0
      %641 = vmatpush1.bf16.msra.mxu0 0
      %642 = vmatprep.mubr.bf16.mxu0 0
      %643 = vmatmul.mubr.bf16.gmra.mrb[0].mxu0 %v347
      %v644 = vpop.f32.mrb[0].mxu0
      %v645 = vadd.f32 %v397, %v644
      %v646 = vpop.f32.mrb[0].mxu0
      %v647 = vpop.f32.mrb[0].mxu0
      %v648 = vadd.f32 %v397, %v647
      %v649 = vpop.f32.mrb[0].mxu0
      %650 = vmatprep.mubr.bf16.mxu0 0
      %651 = vmatmul.mubr.bf16.gmra.mrb[0].mxu0 %v348
      %v652 = vpop.f32.mrb[0].mxu0
      %v653 = vadd.f32 %v397, %v652
      %v654 = vpop.f32.mrb[0].mxu0
      %v655 = vpop.f32.mrb[0].mxu0
      %v656 = vadd.f32 %v397, %v655
      %v657 = vpop.f32.mrb[0].mxu0
      %658 = vmatprep.mubr.bf16.mxu0 0
      %659 = vmatmul.mubr.bf16.gmra.mrb[0].mxu0 %v349
      %v660 = vpop.f32.mrb[0].mxu0
      %v661 = vadd.f32 %v397, %v660
      %v662 = vpop.f32.mrb[0].mxu0
      %v663 = vpop.f32.mrb[0].mxu0
      %v664 = vadd.f32 %v397, %v663
      %v665 = vpop.f32.mrb[0].mxu0
      %666 = vmatprep.mubr.bf16.mxu0 0
      %667 = vmatmul.mubr.bf16.gmra.mrb[0].mxu0 %v350
      %v668 = vpop.f32.mrb[0].mxu0
      %v669 = vadd.f32 %v397, %v668
      %v670 = vpop.f32.mrb[0].mxu0
      %v671 = vpop.f32.mrb[0].mxu0
      %v672 = vadd.f32 %v397, %v671
      %v673 = vpop.f32.mrb[0].mxu0
      %674 = vmatprep.mubr.bf16.mxu0 0
      %675 = vmatmul.mubr.bf16.gmra.mrb[0].mxu0 %v351
      %v676 = vpop.f32.mrb[0].mxu0
      %v677 = vadd.f32 %v397, %v676
      %v678 = vpop.f32.mrb[0].mxu0
      %v679 = vpop.f32.mrb[0].mxu0
      %v680 = vpop.f32.mrb[0].mxu0
      %681 = vdwg.mxu0
      %v682 = vpack.c.bf16 %v568, %v564
      %v683 = vpack.c.bf16 %v578, %v574
      %v684 = vpack.c.bf16 %v588, %v584
      %v685 = vpack.c.bf16 %v598, %v594
      %v686 = vpack.c.bf16 %v604, %v604
      %v687 = vpack.c.bf16 %v570, %v566
      %v688 = vpack.c.bf16 %v580, %v576
      %v689 = vpack.c.bf16 %v590, %v586
      %v690 = vpack.c.bf16 %v600, %v596
      %v691 = vpack.c.bf16 %v606, %v606
      %v692 = vpack.c.bf16 %v648, %v645
      %v693 = vpack.c.bf16 %v656, %v653
      %v694 = vpack.c.bf16 %v664, %v661
      %v695 = vpack.c.bf16 %v672, %v669
      %v696 = vpack.c.bf16 %v677, %v677
      %vm697 = vcmask 261120
      %v699 = vsel %vm697, %v682, 0
      %v702 = vsel %vm697, %v683, 0
      %v705 = vsel %vm697, %v684, 0
      %v708 = vsel %vm697, %v685, 0
      %v711 = vsel %vm697, %v686, 0
      %v714 = vsel %vm697, %v687, 0
      %v717 = vsel %vm697, %v688, 0
      %v720 = vsel %vm697, %v689, 0
      %v723 = vsel %vm697, %v690, 0
      %v726 = vsel %vm697, %v691, 0
      %728 = vmatprep.subr.bf16.mxu0 0
      %729 = vmatpush1.bf16.xpose.msra.mxu0 %v714
      %730 = vmatprep.subr.bf16.mxu0 0
      %731 = vmatpush1.bf16.xpose.msra.mxu0 %v717
      %732 = vmatprep.subr.bf16.mxu0 0
      %733 = vmatpush1.bf16.xpose.msra.mxu0 %v720
      %734 = vmatprep.subr.bf16.mxu0 0
      %735 = vmatpush1.bf16.xpose.msra.mxu0 %v723
      %736 = vmatprep.subr.bf16.mxu0 0
      %737 = vmatpush1.bf16.xpose.msra.mxu0 %v726
      %738 = vmatprep.subr.bf16.mxu0 0
      %739 = vmatpush1.bf16.xpose.msra.mxu0 0
      %740 = vmatprep.subr.bf16.mxu0 0
      %741 = vmatpush1.bf16.xpose.msra.mxu0 0
      %742 = vmatprep.subr.bf16.mxu0 0
      %743 = vmatpush1.bf16.xpose.msra.mxu0 0
      %744 = vmatprep.subr.bf16.mxu0 0
      %745 = vmatpush1.bf16.xpose.msra.mxu0 0
      %746 = vmatprep.subr.bf16.mxu0 0
      %747 = vmatpush1.bf16.xpose.msra.mxu0 0
      %748 = vmatprep.subr.bf16.mxu0 0
      %749 = vmatpush1.bf16.xpose.msra.mxu0 0
      %750 = vmatprep.subr.bf16.mxu0 0
      %751 = vmatpush1.bf16.xpose.msra.mxu0 0
      %752 = vmatprep.subr.bf16.mxu0 0
      %753 = vmatpush1.bf16.xpose.msra.mxu0 0
      %754 = vmatprep.subr.bf16.mxu0 0
      %755 = vmatpush1.bf16.xpose.msra.mxu0 0
      %756 = vmatprep.subr.bf16.mxu0 0
      %757 = vmatpush1.bf16.xpose.msra.mxu0 0
      %758 = vmatprep.subr.bf16.mxu0 0
      %759 = vmatpush1.bf16.xpose.msra.mxu0 0
      %760 = vmatprep.mubr.bf16.mxu0 0
      %761 = vmatmul.mubr.bf16.gmra.mrb[0].mxu0 %v699
      %v762 = vpop.f32.mrb[0].mxu0
      %v763 = vadd.f32 0.0, %v762
      %v764 = vpop.f32.mrb[0].mxu0
      %v765 = vpop.f32.mrb[0].mxu0
      %v766 = vadd.f32 0.0, %v765
      %v767 = vpop.f32.mrb[0].mxu0
      %768 = vmatprep.mubr.bf16.mxu0 0
      %769 = vmatmul.mubr.bf16.gmra.mrb[0].mxu0 %v702
      %v770 = vpop.f32.mrb[0].mxu0
      %v771 = vadd.f32 0.0, %v770
      %v772 = vpop.f32.mrb[0].mxu0
      %v773 = vpop.f32.mrb[0].mxu0
      %v774 = vadd.f32 0.0, %v773
      %v775 = vpop.f32.mrb[0].mxu0
      %776 = vmatprep.mubr.bf16.mxu0 0
      %777 = vmatmul.mubr.bf16.gmra.mrb[0].mxu0 %v705
      %v778 = vpop.f32.mrb[0].mxu0
      %v779 = vadd.f32 0.0, %v778
      %v780 = vpop.f32.mrb[0].mxu0
      %v781 = vpop.f32.mrb[0].mxu0
      %v782 = vadd.f32 0.0, %v781
      %v783 = vpop.f32.mrb[0].mxu0
      %784 = vmatprep.mubr.bf16.mxu0 0
      %785 = vmatmul.mubr.bf16.gmra.mrb[0].mxu0 %v708
      %v786 = vpop.f32.mrb[0].mxu0
      %v787 = vadd.f32 0.0, %v786
      %v788 = vpop.f32.mrb[0].mxu0
      %v789 = vpop.f32.mrb[0].mxu0
      %v790 = vadd.f32 0.0, %v789
      %v791 = vpop.f32.mrb[0].mxu0
      %792 = vmatprep.mubr.bf16.mxu0 0
      %793 = vmatmul.mubr.bf16.gmra.mrb[0].mxu0 %v711
      %v794 = vpop.f32.mrb[0].mxu0
      %v795 = vadd.f32 0.0, %v794
      %v796 = vpop.f32.mrb[0].mxu0
      %v797 = vpop.f32.mrb[0].mxu0
      %v798 = vpop.f32.mrb[0].mxu0
      %799 = vdwg.mxu0
      %vm800 = vcmask 531456
      %v801 = vsel %vm800, %v763, -inf
      %802 = vmax.xlane.f32.xlu0 %v801
      %v803 = vpop.xlane.xlu0 %802
      %v804 = vsel %vm800, %v766, -inf
      %805 = vmax.xlane.f32.xlu0 %v804
      %v806 = vpop.xlane.xlu0 %805
      %v807 = vsel %vm800, %v771, -inf
      %808 = vmax.xlane.f32.xlu0 %v807
      %v809 = vpop.xlane.xlu0 %808
      %v810 = vsel %vm800, %v774, -inf
      %811 = vmax.xlane.f32.xlu0 %v810
      %v812 = vpop.xlane.xlu0 %811
      %v813 = vsel %vm800, %v779, -inf
      %814 = vmax.xlane.f32.xlu0 %v813
      %v815 = vpop.xlane.xlu0 %814
      %v816 = vsel %vm800, %v782, -inf
      %817 = vmax.xlane.f32.xlu0 %v816
      %v818 = vpop.xlane.xlu0 %817
      %v819 = vsel %vm800, %v787, -inf
      %820 = vmax.xlane.f32.xlu0 %v819
      %v821 = vpop.xlane.xlu0 %820
      %v822 = vsel %vm800, %v790, -inf
      %823 = vmax.xlane.f32.xlu0 %v822
      %v824 = vpop.xlane.xlu0 %823
      %vm825 = vcmask 524288
      %v826 = vsel %vm825, %v795, -inf
      %827 = vmax.xlane.f32.xlu0 %v826
      %v828 = vpop.xlane.xlu0 %827
      %v829 = vsub.f32 %v763, %v803
      %v830 = vsub.f32 %v766, %v806
      %v831 = vsub.f32 %v771, %v809
      %v832 = vsub.f32 %v774, %v812
      %v833 = vsub.f32 %v779, %v815
      %v834 = vsub.f32 %v782, %v818
      %v835 = vsub.f32 %v787, %v821
      %v836 = vsub.f32 %v790, %v824
      %v837 = vsub.f32 %v795, %v828
      %v838 = vmul.f32 %v829, 1.442695
      %v839 = vpow.pop %v838
      %v840 = vmul.f32 %v830, 1.442695
      %v841 = vpow.pop %v840
      %v842 = vmul.f32 %v831, 1.442695
      %v843 = vpow.pop %v842
      %v844 = vmul.f32 %v832, 1.442695
      %v845 = vpow.pop %v844
      %v846 = vmul.f32 %v833, 1.442695
      %v847 = vpow.pop %v846
      %v848 = vmul.f32 %v834, 1.442695
      %v849 = vpow.pop %v848
      %v850 = vmul.f32 %v835, 1.442695
      %v851 = vpow.pop %v850
      %v852 = vmul.f32 %v836, 1.442695
      %v853 = vpow.pop %v852
      %v854 = vmul.f32 %v837, 1.442695
      %v855 = vpow.pop %v854
      %v856 = vsel %vm800, %v839, 0.0
      %857 = vadd.xlane.f32.xlu0 %v856
      %v858 = vpop.xlane.xlu0 %857
      %v859 = vsel %vm800, %v841, 0.0
      %860 = vadd.xlane.f32.xlu0 %v859
      %v861 = vpop.xlane.xlu0 %860
      %v862 = vsel %vm800, %v843, 0.0
      %863 = vadd.xlane.f32.xlu0 %v862
      %v864 = vpop.xlane.xlu0 %863
      %v865 = vsel %vm800, %v845, 0.0
      %866 = vadd.xlane.f32.xlu0 %v865
      %v867 = vpop.xlane.xlu0 %866
      %v868 = vsel %vm800, %v847, 0.0
      %869 = vadd.xlane.f32.xlu0 %v868
      %v870 = vpop.xlane.xlu0 %869
      %v871 = vsel %vm800, %v849, 0.0
      %872 = vadd.xlane.f32.xlu0 %v871
      %v873 = vpop.xlane.xlu0 %872
      %v874 = vsel %vm800, %v851, 0.0
      %875 = vadd.xlane.f32.xlu0 %v874
      %v876 = vpop.xlane.xlu0 %875
      %v877 = vsel %vm800, %v853, 0.0
      %878 = vadd.xlane.f32.xlu0 %v877
      %v879 = vpop.xlane.xlu0 %878
      %v880 = vsel %vm825, %v855, 0.0
      %881 = vadd.xlane.f32.xlu0 %v880
      %v882 = vpop.xlane.xlu0 %881
      %v883 = vrcp.pop %v858
      %v884 = vrcp.pop %v861
      %v885 = vrcp.pop %v864
      %v886 = vrcp.pop %v867
      %v887 = vrcp.pop %v870
      %v888 = vrcp.pop %v873
      %v889 = vrcp.pop %v876
      %v890 = vrcp.pop %v879
      %v891 = vrcp.pop %v882
      %v892 = vpack.c.bf16 %v841, %v839
      %v893 = vpack.c.bf16 %v845, %v843
      %v894 = vpack.c.bf16 %v849, %v847
      %v895 = vpack.c.bf16 %v853, %v851
      %v896 = vpack.c.bf16 %v855, %v855
      %v898 = vsel %vm800, %v892, 0
      %v901 = vsel %vm800, %v893, 0
      %v904 = vsel %vm800, %v894, 0
      %v907 = vsel %vm800, %v895, 0
      %v910 = vsel %vm800, %v896, 0
      %vm912 = vcmask 1040384
      %v913 = vsel 0, 4294967295, 65535
      %v914 = vsel %vm912, %v913, 0
      %v916 = vand.u32 %v696, %v914
      %918 = vmatprep.subr.bf16.mxu0 0
      %919 = vmatpush1.bf16.msra.mxu0 %v692
      %920 = vmatprep.subr.bf16.mxu0 0
      %921 = vmatpush1.bf16.msra.mxu0 %v693
      %922 = vmatprep.subr.bf16.mxu0 0
      %923 = vmatpush1.bf16.msra.mxu0 %v694
      %924 = vmatprep.subr.bf16.mxu0 0
      %925 = vmatpush1.bf16.msra.mxu0 %v695
      %926 = vmatprep.subr.bf16.mxu0 0
      %927 = vmatpush1.bf16.msra.mxu0 %v916
      %928 = vmatprep.subr.bf16.mxu0 0
      %929 = vmatpush1.bf16.msra.mxu0 0
      %930 = vmatprep.subr.bf16.mxu0 0
      %931 = vmatpush1.bf16.msra.mxu0 0
      %932 = vmatprep.subr.bf16.mxu0 0
      %933 = vmatpush1.bf16.msra.mxu0 0
      %934 = vmatprep.subr.bf16.mxu0 0
      %935 = vmatpush1.bf16.msra.mxu0 0
      %936 = vmatprep.subr.bf16.mxu0 0
      %937 = vmatpush1.bf16.msra.mxu0 0
      %938 = vmatprep.subr.bf16.mxu0 0
      %939 = vmatpush1.bf16.msra.mxu0 0
      %940 = vmatprep.subr.bf16.mxu0 0
      %941 = vmatpush1.bf16.msra.mxu0 0
      %942 = vmatprep.subr.bf16.mxu0 0
      %943 = vmatpush1.bf16.msra.mxu0 0
      %944 = vmatprep.subr.bf16.mxu0 0
      %945 = vmatpush1.bf16.msra.mxu0 0
      %946 = vmatprep.subr.bf16.mxu0 0
      %947 = vmatpush1.bf16.msra.mxu0 0
      %948 = vmatprep.subr.bf16.mxu0 0
      %949 = vmatpush1.bf16.msra.mxu0 0
      %950 = vmatprep.mubr.bf16.mxu0 0
      %951 = vmatmul.mubr.bf16.gmra.mrb[0].mxu0 %v898
      %v952 = vpop.f32.mrb[0].mxu0
      %v953 = vadd.f32 0.0, %v952
      %v954 = vpop.f32.mrb[0].mxu0
      %v955 = vpop.f32.mrb[0].mxu0
      %v956 = vadd.f32 0.0, %v955
      %v957 = vpop.f32.mrb[0].mxu0
      %958 = vmatprep.mubr.bf16.mxu0 0
      %959 = vmatmul.mubr.bf16.gmra.mrb[0].mxu0 %v901
      %v960 = vpop.f32.mrb[0].mxu0
      %v961 = vadd.f32 0.0, %v960
      %v962 = vpop.f32.mrb[0].mxu0
      %v963 = vpop.f32.mrb[0].mxu0
      %v964 = vadd.f32 0.0, %v963
      %v965 = vpop.f32.mrb[0].mxu0
      %966 = vmatprep.mubr.bf16.mxu0 0
      %967 = vmatmul.mubr.bf16.gmra.mrb[0].mxu0 %v904
      %v968 = vpop.f32.mrb[0].mxu0
      %v969 = vadd.f32 0.0, %v968
      %v970 = vpop.f32.mrb[0].mxu0
      %v971 = vpop.f32.mrb[0].mxu0
      %v972 = vadd.f32 0.0, %v971
      %v973 = vpop.f32.mrb[0].mxu0
      %974 = vmatprep.mubr.bf16.mxu0 0
      %975 = vmatmul.mubr.bf16.gmra.mrb[0].mxu0 %v907
      %v976 = vpop.f32.mrb[0].mxu0
      %v977 = vadd.f32 0.0, %v976
      %v978 = vpop.f32.mrb[0].mxu0
      %v979 = vpop.f32.mrb[0].mxu0
      %v980 = vadd.f32 0.0, %v979
      %v981 = vpop.f32.mrb[0].mxu0
      %982 = vmatprep.mubr.bf16.mxu0 0
      %983 = vmatmul.mubr.bf16.gmra.mrb[0].mxu0 %v910
      %v984 = vpop.f32.mrb[0].mxu0
      %v985 = vadd.f32 0.0, %v984
      %v986 = vpop.f32.mrb[0].mxu0
      %v987 = vpop.f32.mrb[0].mxu0
      %v988 = vpop.f32.mrb[0].mxu0
      %989 = vdwg.mxu0
      %v990 = vmul.f32 %v953, %v883
      %v991 = vmul.f32 %v956, %v884
      %v992 = vmul.f32 %v961, %v885
      %v993 = vmul.f32 %v964, %v886
      %v994 = vmul.f32 %v969, %v887
      %v995 = vmul.f32 %v972, %v888
      %v996 = vmul.f32 %v977, %v889
      %v997 = vmul.f32 %v980, %v890
      %v998 = vmul.f32 %v985, %v891
      %1004 = vrot.lane.b32.xlu0 %v682, 96
      %v1005 = vpop.permute.xlu0 %1004
      %1006 = vrot.lane.b32.xlu0 %v683, 96
      %v1007 = vpop.permute.xlu0 %1006
      %1008 = vrot.lane.b32.xlu0 %v684, 96
      %v1009 = vpop.permute.xlu0 %1008
      %1010 = vrot.lane.b32.xlu0 %v685, 96
      %v1011 = vpop.permute.xlu0 %1010
      %1012 = vrot.lane.b32.xlu0 %v686, 96
      %v1013 = vpop.permute.xlu0 %1012
      %1019 = vrot.lane.b32.xlu0 %v687, 96
      %v1020 = vpop.permute.xlu0 %1019
      %1021 = vrot.lane.b32.xlu0 %v688, 96
      %v1022 = vpop.permute.xlu0 %1021
      %1023 = vrot.lane.b32.xlu0 %v689, 96
      %v1024 = vpop.permute.xlu0 %1023
      %1025 = vrot.lane.b32.xlu0 %v690, 96
      %v1026 = vpop.permute.xlu0 %1025
      %1027 = vrot.lane.b32.xlu0 %v691, 96
      %v1028 = vpop.permute.xlu0 %1027
      %v1030 = vsel %vm697, %v1005, 0
      %v1033 = vsel %vm697, %v1007, 0
      %v1036 = vsel %vm697, %v1009, 0
      %v1039 = vsel %vm697, %v1011, 0
      %v1042 = vsel %vm697, %v1013, 0
      %v1045 = vsel %vm697, %v1020, 0
      %v1048 = vsel %vm697, %v1022, 0
      %v1051 = vsel %vm697, %v1024, 0
      %v1054 = vsel %vm697, %v1026, 0
      %v1057 = vsel %vm697, %v1028, 0
      %1059 = vmatprep.subr.bf16.mxu0 0
      %1060 = vmatpush1.bf16.xpose.msra.mxu0 %v1045
      %1061 = vmatprep.subr.bf16.mxu0 0
      %1062 = vmatpush1.bf16.xpose.msra.mxu0 %v1048
      %1063 = vmatprep.subr.bf16.mxu0 0
      %1064 = vmatpush1.bf16.xpose.msra.mxu0 %v1051
      %1065 = vmatprep.subr.bf16.mxu0 0
      %1066 = vmatpush1.bf16.xpose.msra.mxu0 %v1054
      %1067 = vmatprep.subr.bf16.mxu0 0
      %1068 = vmatpush1.bf16.xpose.msra.mxu0 %v1057
      %1069 = vmatprep.subr.bf16.mxu0 0
      %1070 = vmatpush1.bf16.xpose.msra.mxu0 0
      %1071 = vmatprep.subr.bf16.mxu0 0
      %1072 = vmatpush1.bf16.xpose.msra.mxu0 0
      %1073 = vmatprep.subr.bf16.mxu0 0
      %1074 = vmatpush1.bf16.xpose.msra.mxu0 0
      %1075 = vmatprep.subr.bf16.mxu0 0
      %1076 = vmatpush1.bf16.xpose.msra.mxu0 0
      %1077 = vmatprep.subr.bf16.mxu0 0
      %1078 = vmatpush1.bf16.xpose.msra.mxu0 0
      %1079 = vmatprep.subr.bf16.mxu0 0
      %1080 = vmatpush1.bf16.xpose.msra.mxu0 0
      %1081 = vmatprep.subr.bf16.mxu0 0
      %1082 = vmatpush1.bf16.xpose.msra.mxu0 0
      %1083 = vmatprep.subr.bf16.mxu0 0
      %1084 = vmatpush1.bf16.xpose.msra.mxu0 0
      %1085 = vmatprep.subr.bf16.mxu0 0
      %1086 = vmatpush1.bf16.xpose.msra.mxu0 0
      %1087 = vmatprep.subr.bf16.mxu0 0
      %1088 = vmatpush1.bf16.xpose.msra.mxu0 0
      %1089 = vmatprep.subr.bf16.mxu0 0
      %1090 = vmatpush1.bf16.xpose.msra.mxu0 0
      %1091 = vmatprep.mubr.bf16.mxu0 0
      %1092 = vmatmul.mubr.bf16.gmra.mrb[0].mxu0 %v1030
      %v1093 = vpop.f32.mrb[0].mxu0
      %v1094 = vadd.f32 0.0, %v1093
      %v1095 = vpop.f32.mrb[0].mxu0
      %v1096 = vpop.f32.mrb[0].mxu0
      %v1097 = vadd.f32 0.0, %v1096
      %v1098 = vpop.f32.mrb[0].mxu0
      %1099 = vmatprep.mubr.bf16.mxu0 0
      %1100 = vmatmul.mubr.bf16.gmra.mrb[0].mxu0 %v1033
      %v1101 = vpop.f32.mrb[0].mxu0
      %v1102 = vadd.f32 0.0, %v1101
      %v1103 = vpop.f32.mrb[0].mxu0
      %v1104 = vpop.f32.mrb[0].mxu0
      %v1105 = vadd.f32 0.0, %v1104
      %v1106 = vpop.f32.mrb[0].mxu0
      %1107 = vmatprep.mubr.bf16.mxu0 0
      %1108 = vmatmul.mubr.bf16.gmra.mrb[0].mxu0 %v1036
      %v1109 = vpop.f32.mrb[0].mxu0
      %v1110 = vadd.f32 0.0, %v1109
      %v1111 = vpop.f32.mrb[0].mxu0
      %v1112 = vpop.f32.mrb[0].mxu0
      %v1113 = vadd.f32 0.0, %v1112
      %v1114 = vpop.f32.mrb[0].mxu0
      %1115 = vmatprep.mubr.bf16.mxu0 0
      %1116 = vmatmul.mubr.bf16.gmra.mrb[0].mxu0 %v1039
      %v1117 = vpop.f32.mrb[0].mxu0
      %v1118 = vadd.f32 0.0, %v1117
      %v1119 = vpop.f32.mrb[0].mxu0
      %v1120 = vpop.f32.mrb[0].mxu0
      %v1121 = vadd.f32 0.0, %v1120
      %v1122 = vpop.f32.mrb[0].mxu0
      %1123 = vmatprep.mubr.bf16.mxu0 0
      %1124 = vmatmul.mubr.bf16.gmra.mrb[0].mxu0 %v1042
      %v1125 = vpop.f32.mrb[0].mxu0
      %v1126 = vadd.f32 0.0, %v1125
      %v1127 = vpop.f32.mrb[0].mxu0
      %v1128 = vpop.f32.mrb[0].mxu0
      %v1129 = vpop.f32.mrb[0].mxu0
      %1130 = vdwg.mxu0
      %v1131 = vsel %vm800, %v1094, -inf
      %1132 = vmax.xlane.f32.xlu0 %v1131
      %v1133 = vpop.xlane.xlu0 %1132
      %v1134 = vsel %vm800, %v1097, -inf
      %1135 = vmax.xlane.f32.xlu0 %v1134
      %v1136 = vpop.xlane.xlu0 %1135
      %v1137 = vsel %vm800, %v1102, -inf
      %1138 = vmax.xlane.f32.xlu0 %v1137
      %v1139 = vpop.xlane.xlu0 %1138
      %v1140 = vsel %vm800, %v1105, -inf
      %1141 = vmax.xlane.f32.xlu0 %v1140
      %v1142 = vpop.xlane.xlu0 %1141
      %v1143 = vsel %vm800, %v1110, -inf
      %1144 = vmax.xlane.f32.xlu0 %v1143
      %v1145 = vpop.xlane.xlu0 %1144
      %v1146 = vsel %vm800, %v1113, -inf
      %1147 = vmax.xlane.f32.xlu0 %v1146
      %v1148 = vpop.xlane.xlu0 %1147
      %v1149 = vsel %vm800, %v1118, -inf
      %1150 = vmax.xlane.f32.xlu0 %v1149
      %v1151 = vpop.xlane.xlu0 %1150
      %v1152 = vsel %vm800, %v1121, -inf
      %1153 = vmax.xlane.f32.xlu0 %v1152
      %v1154 = vpop.xlane.xlu0 %1153
      %v1155 = vsel %vm825, %v1126, -inf
      %1156 = vmax.xlane.f32.xlu0 %v1155
      %v1157 = vpop.xlane.xlu0 %1156
      %v1158 = vsub.f32 %v1094, %v1133
      %v1159 = vsub.f32 %v1097, %v1136
      %v1160 = vsub.f32 %v1102, %v1139
      %v1161 = vsub.f32 %v1105, %v1142
      %v1162 = vsub.f32 %v1110, %v1145
      %v1163 = vsub.f32 %v1113, %v1148
      %v1164 = vsub.f32 %v1118, %v1151
      %v1165 = vsub.f32 %v1121, %v1154
      %v1166 = vsub.f32 %v1126, %v1157
      %v1167 = vmul.f32 %v1158, 1.442695
      %v1168 = vpow.pop %v1167
      %v1169 = vmul.f32 %v1159, 1.442695
      %v1170 = vpow.pop %v1169
      %v1171 = vmul.f32 %v1160, 1.442695
      %v1172 = vpow.pop %v1171
      %v1173 = vmul.f32 %v1161, 1.442695
      %v1174 = vpow.pop %v1173
      %v1175 = vmul.f32 %v1162, 1.442695
      %v1176 = vpow.pop %v1175
      %v1177 = vmul.f32 %v1163, 1.442695
      %v1178 = vpow.pop %v1177
      %v1179 = vmul.f32 %v1164, 1.442695
      %v1180 = vpow.pop %v1179
      %v1181 = vmul.f32 %v1165, 1.442695
      %v1182 = vpow.pop %v1181
      %v1183 = vmul.f32 %v1166, 1.442695
      %v1184 = vpow.pop %v1183
      %v1185 = vsel %vm800, %v1168, 0.0
      %1186 = vadd.xlane.f32.xlu0 %v1185
      %v1187 = vpop.xlane.xlu0 %1186
      %v1188 = vsel %vm800, %v1170, 0.0
      %1189 = vadd.xlane.f32.xlu0 %v1188
      %v1190 = vpop.xlane.xlu0 %1189
      %v1191 = vsel %vm800, %v1172, 0.0
      %1192 = vadd.xlane.f32.xlu0 %v1191
      %v1193 = vpop.xlane.xlu0 %1192
      %v1194 = vsel %vm800, %v1174, 0.0
      %1195 = vadd.xlane.f32.xlu0 %v1194
      %v1196 = vpop.xlane.xlu0 %1195
      %v1197 = vsel %vm800, %v1176, 0.0
      %1198 = vadd.xlane.f32.xlu0 %v1197
      %v1199 = vpop.xlane.xlu0 %1198
      %v1200 = vsel %vm800, %v1178, 0.0
      %1201 = vadd.xlane.f32.xlu0 %v1200
      %v1202 = vpop.xlane.xlu0 %1201
      %v1203 = vsel %vm800, %v1180, 0.0
      %1204 = vadd.xlane.f32.xlu0 %v1203
      %v1205 = vpop.xlane.xlu0 %1204
      %v1206 = vsel %vm800, %v1182, 0.0
      %1207 = vadd.xlane.f32.xlu0 %v1206
      %v1208 = vpop.xlane.xlu0 %1207
      %v1209 = vsel %vm825, %v1184, 0.0
      %1210 = vadd.xlane.f32.xlu0 %v1209
      %v1211 = vpop.xlane.xlu0 %1210
      %v1212 = vrcp.pop %v1187
      %v1213 = vrcp.pop %v1190
      %v1214 = vrcp.pop %v1193
      %v1215 = vrcp.pop %v1196
      %v1216 = vrcp.pop %v1199
      %v1217 = vrcp.pop %v1202
      %v1218 = vrcp.pop %v1205
      %v1219 = vrcp.pop %v1208
      %v1220 = vrcp.pop %v1211
      %v1221 = vpack.c.bf16 %v1170, %v1168
      %v1222 = vpack.c.bf16 %v1174, %v1172
      %v1223 = vpack.c.bf16 %v1178, %v1176
      %v1224 = vpack.c.bf16 %v1182, %v1180
      %v1225 = vpack.c.bf16 %v1184, %v1184
      %1231 = vrot.lane.b32.xlu0 %v692, 96
      %v1232 = vpop.permute.xlu0 %1231
      %1233 = vrot.lane.b32.xlu0 %v693, 96
      %v1234 = vpop.permute.xlu0 %1233
      %1235 = vrot.lane.b32.xlu0 %v694, 96
      %v1236 = vpop.permute.xlu0 %1235
      %1237 = vrot.lane.b32.xlu0 %v695, 96
      %v1238 = vpop.permute.xlu0 %1237
      %1239 = vrot.lane.b32.xlu0 %v696, 96
      %v1240 = vpop.permute.xlu0 %1239
      %v1246 = vsel %vm800, %v1221, 0
      %v1249 = vsel %vm800, %v1222, 0
      %v1252 = vsel %vm800, %v1223, 0
      %v1255 = vsel %vm800, %v1224, 0
      %v1258 = vsel %vm800, %v1225, 0
      %v1261 = vand.u32 %v1240, %v914
      %1263 = vmatprep.subr.bf16.mxu0 0
      %1264 = vmatpush1.bf16.msra.mxu0 %v1232
      %1265 = vmatprep.subr.bf16.mxu0 0
      %1266 = vmatpush1.bf16.msra.mxu0 %v1234
      %1267 = vmatprep.subr.bf16.mxu0 0
      %1268 = vmatpush1.bf16.msra.mxu0 %v1236
      %1269 = vmatprep.subr.bf16.mxu0 0
      %1270 = vmatpush1.bf16.msra.mxu0 %v1238
      %1271 = vmatprep.subr.bf16.mxu0 0
      %1272 = vmatpush1.bf16.msra.mxu0 %v1261
      %1273 = vmatprep.subr.bf16.mxu0 0
      %1274 = vmatpush1.bf16.msra.mxu0 0
      %1275 = vmatprep.subr.bf16.mxu0 0
      %1276 = vmatpush1.bf16.msra.mxu0 0
      %1277 = vmatprep.subr.bf16.mxu0 0
      %1278 = vmatpush1.bf16.msra.mxu0 0
      %1279 = vmatprep.subr.bf16.mxu0 0
      %1280 = vmatpush1.bf16.msra.mxu0 0
      %1281 = vmatprep.subr.bf16.mxu0 0
      %1282 = vmatpush1.bf16.msra.mxu0 0
      %1283 = vmatprep.subr.bf16.mxu0 0
      %1284 = vmatpush1.bf16.msra.mxu0 0
      %1285 = vmatprep.subr.bf16.mxu0 0
      %1286 = vmatpush1.bf16.msra.mxu0 0
      %1287 = vmatprep.subr.bf16.mxu0 0
      %1288 = vmatpush1.bf16.msra.mxu0 0
      %1289 = vmatprep.subr.bf16.mxu0 0
      %1290 = vmatpush1.bf16.msra.mxu0 0
      %1291 = vmatprep.subr.bf16.mxu0 0
      %1292 = vmatpush1.bf16.msra.mxu0 0
      %1293 = vmatprep.subr.bf16.mxu0 0
      %1294 = vmatpush1.bf16.msra.mxu0 0
      %1295 = vmatprep.mubr.bf16.mxu0 0
      %1296 = vmatmul.mubr.bf16.gmra.mrb[0].mxu0 %v1246
      %v1297 = vpop.f32.mrb[0].mxu0
      %v1298 = vadd.f32 0.0, %v1297
      %v1299 = vpop.f32.mrb[0].mxu0
      %v1300 = vpop.f32.mrb[0].mxu0
      %v1301 = vadd.f32 0.0, %v1300
      %v1302 = vpop.f32.mrb[0].mxu0
      %1303 = vmatprep.mubr.bf16.mxu0 0
      %1304 = vmatmul.mubr.bf16.gmra.mrb[0].mxu0 %v1249
      %v1305 = vpop.f32.mrb[0].mxu0
      %v1306 = vadd.f32 0.0, %v1305
      %v1307 = vpop.f32.mrb[0].mxu0
      %v1308 = vpop.f32.mrb[0].mxu0
      %v1309 = vadd.f32 0.0, %v1308
      %v1310 = vpop.f32.mrb[0].mxu0
      %1311 = vmatprep.mubr.bf16.mxu0 0
      %1312 = vmatmul.mubr.bf16.gmra.mrb[0].mxu0 %v1252
      %v1313 = vpop.f32.mrb[0].mxu0
      %v1314 = vadd.f32 0.0, %v1313
      %v1315 = vpop.f32.mrb[0].mxu0
      %v1316 = vpop.f32.mrb[0].mxu0
      %v1317 = vadd.f32 0.0, %v1316
      %v1318 = vpop.f32.mrb[0].mxu0
      %1319 = vmatprep.mubr.bf16.mxu0 0
      %1320 = vmatmul.mubr.bf16.gmra.mrb[0].mxu0 %v1255
      %v1321 = vpop.f32.mrb[0].mxu0
      %v1322 = vadd.f32 0.0, %v1321
      %v1323 = vpop.f32.mrb[0].mxu0
      %v1324 = vpop.f32.mrb[0].mxu0
      %v1325 = vadd.f32 0.0, %v1324
      %v1326 = vpop.f32.mrb[0].mxu0
      %1327 = vmatprep.mubr.bf16.mxu0 0
      %1328 = vmatmul.mubr.bf16.gmra.mrb[0].mxu0 %v1258
      %v1329 = vpop.f32.mrb[0].mxu0
      %v1330 = vadd.f32 0.0, %v1329
      %v1331 = vpop.f32.mrb[0].mxu0
      %v1332 = vpop.f32.mrb[0].mxu0
      %v1333 = vpop.f32.mrb[0].mxu0
      %1334 = vdwg.mxu0
      %v1335 = vmul.f32 %v1298, %v1212
      %v1336 = vmul.f32 %v1301, %v1213
      %v1337 = vmul.f32 %v1306, %v1214
      %v1338 = vmul.f32 %v1309, %v1215
      %v1339 = vmul.f32 %v1314, %v1216
      %v1340 = vmul.f32 %v1317, %v1217
      %v1341 = vmul.f32 %v1322, %v1218
      %v1342 = vmul.f32 %v1325, %v1219
      %v1343 = vmul.f32 %v1330, %v1220
      %1344 = vrot.lane.b32.xlu0 %v682, 64
      %v1345 = vpop.permute.xlu0 %1344
      %1346 = vrot.lane.b32.xlu0 %v683, 64
      %v1347 = vpop.permute.xlu0 %1346
      %1348 = vrot.lane.b32.xlu0 %v684, 64
      %v1349 = vpop.permute.xlu0 %1348
      %1350 = vrot.lane.b32.xlu0 %v685, 64
      %v1351 = vpop.permute.xlu0 %1350
      %1352 = vrot.lane.b32.xlu0 %v686, 64
      %v1353 = vpop.permute.xlu0 %1352
      %1354 = vrot.lane.b32.xlu0 %v687, 64
      %v1355 = vpop.permute.xlu0 %1354
      %1356 = vrot.lane.b32.xlu0 %v688, 64
      %v1357 = vpop.permute.xlu0 %1356
      %1358 = vrot.lane.b32.xlu0 %v689, 64
      %v1359 = vpop.permute.xlu0 %1358
      %1360 = vrot.lane.b32.xlu0 %v690, 64
      %v1361 = vpop.permute.xlu0 %1360
      %1362 = vrot.lane.b32.xlu0 %v691, 64
      %v1363 = vpop.permute.xlu0 %1362
      %v1365 = vsel %vm697, %v1345, 0
      %v1368 = vsel %vm697, %v1347, 0
      %v1371 = vsel %vm697, %v1349, 0
      %v1374 = vsel %vm697, %v1351, 0
      %v1377 = vsel %vm697, %v1353, 0
      %v1380 = vsel %vm697, %v1355, 0
      %v1383 = vsel %vm697, %v1357, 0
      %v1386 = vsel %vm697, %v1359, 0
      %v1389 = vsel %vm697, %v1361, 0
      %v1392 = vsel %vm697, %v1363, 0
      %1394 = vmatprep.subr.bf16.mxu0 0
      %1395 = vmatpush1.bf16.xpose.msra.mxu0 %v1380
      %1396 = vmatprep.subr.bf16.mxu0 0
      %1397 = vmatpush1.bf16.xpose.msra.mxu0 %v1383
      %1398 = vmatprep.subr.bf16.mxu0 0
      %1399 = vmatpush1.bf16.xpose.msra.mxu0 %v1386
      %1400 = vmatprep.subr.bf16.mxu0 0
      %1401 = vmatpush1.bf16.xpose.msra.mxu0 %v1389
      %1402 = vmatprep.subr.bf16.mxu0 0
      %1403 = vmatpush1.bf16.xpose.msra.mxu0 %v1392
      %1404 = vmatprep.subr.bf16.mxu0 0
      %1405 = vmatpush1.bf16.xpose.msra.mxu0 0
      %1406 = vmatprep.subr.bf16.mxu0 0
      %1407 = vmatpush1.bf16.xpose.msra.mxu0 0
      %1408 = vmatprep.subr.bf16.mxu0 0
      %1409 = vmatpush1.bf16.xpose.msra.mxu0 0
      %1410 = vmatprep.subr.bf16.mxu0 0
      %1411 = vmatpush1.bf16.xpose.msra.mxu0 0
      %1412 = vmatprep.subr.bf16.mxu0 0
      %1413 = vmatpush1.bf16.xpose.msra.mxu0 0
      %1414 = vmatprep.subr.bf16.mxu0 0
      %1415 = vmatpush1.bf16.xpose.msra.mxu0 0
      %1416 = vmatprep.subr.bf16.mxu0 0
      %1417 = vmatpush1.bf16.xpose.msra.mxu0 0
      %1418 = vmatprep.subr.bf16.mxu0 0
      %1419 = vmatpush1.bf16.xpose.msra.mxu0 0
      %1420 = vmatprep.subr.bf16.mxu0 0
      %1421 = vmatpush1.bf16.xpose.msra.mxu0 0
      %1422 = vmatprep.subr.bf16.mxu0 0
      %1423 = vmatpush1.bf16.xpose.msra.mxu0 0
      %1424 = vmatprep.subr.bf16.mxu0 0
      %1425 = vmatpush1.bf16.xpose.msra.mxu0 0
      %1426 = vmatprep.mubr.bf16.mxu0 0
      %1427 = vmatmul.mubr.bf16.gmra.mrb[0].mxu0 %v1365
      %v1428 = vpop.f32.mrb[0].mxu0
      %v1429 = vadd.f32 0.0, %v1428
      %v1430 = vpop.f32.mrb[0].mxu0
      %v1431 = vpop.f32.mrb[0].mxu0
      %v1432 = vadd.f32 0.0, %v1431
      %v1433 = vpop.f32.mrb[0].mxu0
      %1434 = vmatprep.mubr.bf16.mxu0 0
      %1435 = vmatmul.mubr.bf16.gmra.mrb[0].mxu0 %v1368
      %v1436 = vpop.f32.mrb[0].mxu0
      %v1437 = vadd.f32 0.0, %v1436
      %v1438 = vpop.f32.mrb[0].mxu0
      %v1439 = vpop.f32.mrb[0].mxu0
      %v1440 = vadd.f32 0.0, %v1439
      %v1441 = vpop.f32.mrb[0].mxu0
      %1442 = vmatprep.mubr.bf16.mxu0 0
      %1443 = vmatmul.mubr.bf16.gmra.mrb[0].mxu0 %v1371
      %v1444 = vpop.f32.mrb[0].mxu0
      %v1445 = vadd.f32 0.0, %v1444
      %v1446 = vpop.f32.mrb[0].mxu0
      %v1447 = vpop.f32.mrb[0].mxu0
      %v1448 = vadd.f32 0.0, %v1447
      %v1449 = vpop.f32.mrb[0].mxu0
      %1450 = vmatprep.mubr.bf16.mxu0 0
      %1451 = vmatmul.mubr.bf16.gmra.mrb[0].mxu0 %v1374
      %v1452 = vpop.f32.mrb[0].mxu0
      %v1453 = vadd.f32 0.0, %v1452
      %v1454 = vpop.f32.mrb[0].mxu0
      %v1455 = vpop.f32.mrb[0].mxu0
      %v1456 = vadd.f32 0.0, %v1455
      %v1457 = vpop.f32.mrb[0].mxu0
      %1458 = vmatprep.mubr.bf16.mxu0 0
      %1459 = vmatmul.mubr.bf16.gmra.mrb[0].mxu0 %v1377
      %v1460 = vpop.f32.mrb[0].mxu0
      %v1461 = vadd.f32 0.0, %v1460
      %v1462 = vpop.f32.mrb[0].mxu0
      %v1463 = vpop.f32.mrb[0].mxu0
      %v1464 = vpop.f32.mrb[0].mxu0
      %1465 = vdwg.mxu0
      %v1466 = vsel %vm800, %v1429, -inf
      %1467 = vmax.xlane.f32.xlu0 %v1466
      %v1468 = vpop.xlane.xlu0 %1467
      %v1469 = vsel %vm800, %v1432, -inf
      %1470 = vmax.xlane.f32.xlu0 %v1469
      %v1471 = vpop.xlane.xlu0 %1470
      %v1472 = vsel %vm800, %v1437, -inf
      %1473 = vmax.xlane.f32.xlu0 %v1472
      %v1474 = vpop.xlane.xlu0 %1473
      %v1475 = vsel %vm800, %v1440, -inf
      %1476 = vmax.xlane.f32.xlu0 %v1475
      %v1477 = vpop.xlane.xlu0 %1476
      %v1478 = vsel %vm800, %v1445, -inf
      %1479 = vmax.xlane.f32.xlu0 %v1478
      %v1480 = vpop.xlane.xlu0 %1479
      %v1481 = vsel %vm800, %v1448, -inf
      %1482 = vmax.xlane.f32.xlu0 %v1481
      %v1483 = vpop.xlane.xlu0 %1482
      %v1484 = vsel %vm800, %v1453, -inf
      %1485 = vmax.xlane.f32.xlu0 %v1484
      %v1486 = vpop.xlane.xlu0 %1485
      %v1487 = vsel %vm800, %v1456, -inf
      %1488 = vmax.xlane.f32.xlu0 %v1487
      %v1489 = vpop.xlane.xlu0 %1488
      %v1490 = vsel %vm825, %v1461, -inf
      %1491 = vmax.xlane.f32.xlu0 %v1490
      %v1492 = vpop.xlane.xlu0 %1491
      %v1493 = vsub.f32 %v1429, %v1468
      %v1494 = vsub.f32 %v1432, %v1471
      %v1495 = vsub.f32 %v1437, %v1474
      %v1496 = vsub.f32 %v1440, %v1477
      %v1497 = vsub.f32 %v1445, %v1480
      %v1498 = vsub.f32 %v1448, %v1483
      %v1499 = vsub.f32 %v1453, %v1486
      %v1500 = vsub.f32 %v1456, %v1489
      %v1501 = vsub.f32 %v1461, %v1492
      %v1502 = vmul.f32 %v1493, 1.442695
      %v1503 = vpow.pop %v1502
      %v1504 = vmul.f32 %v1494, 1.442695
      %v1505 = vpow.pop %v1504
      %v1506 = vmul.f32 %v1495, 1.442695
      %v1507 = vpow.pop %v1506
      %v1508 = vmul.f32 %v1496, 1.442695
      %v1509 = vpow.pop %v1508
      %v1510 = vmul.f32 %v1497, 1.442695
      %v1511 = vpow.pop %v1510
      %v1512 = vmul.f32 %v1498, 1.442695
      %v1513 = vpow.pop %v1512
      %v1514 = vmul.f32 %v1499, 1.442695
      %v1515 = vpow.pop %v1514
      %v1516 = vmul.f32 %v1500, 1.442695
      %v1517 = vpow.pop %v1516
      %v1518 = vmul.f32 %v1501, 1.442695
      %v1519 = vpow.pop %v1518
      %v1520 = vsel %vm800, %v1503, 0.0
      %1521 = vadd.xlane.f32.xlu0 %v1520
      %v1522 = vpop.xlane.xlu0 %1521
      %v1523 = vsel %vm800, %v1505, 0.0
      %1524 = vadd.xlane.f32.xlu0 %v1523
      %v1525 = vpop.xlane.xlu0 %1524
      %v1526 = vsel %vm800, %v1507, 0.0
      %1527 = vadd.xlane.f32.xlu0 %v1526
      %v1528 = vpop.xlane.xlu0 %1527
      %v1529 = vsel %vm800, %v1509, 0.0
      %1530 = vadd.xlane.f32.xlu0 %v1529
      %v1531 = vpop.xlane.xlu0 %1530
      %v1532 = vsel %vm800, %v1511, 0.0
      %1533 = vadd.xlane.f32.xlu0 %v1532
      %v1534 = vpop.xlane.xlu0 %1533
      %v1535 = vsel %vm800, %v1513, 0.0
      %1536 = vadd.xlane.f32.xlu0 %v1535
      %v1537 = vpop.xlane.xlu0 %1536
      %v1538 = vsel %vm800, %v1515, 0.0
      %1539 = vadd.xlane.f32.xlu0 %v1538
      %v1540 = vpop.xlane.xlu0 %1539
      %v1541 = vsel %vm800, %v1517, 0.0
      %1542 = vadd.xlane.f32.xlu0 %v1541
      %v1543 = vpop.xlane.xlu0 %1542
      %v1544 = vsel %vm825, %v1519, 0.0
      %1545 = vadd.xlane.f32.xlu0 %v1544
      %v1546 = vpop.xlane.xlu0 %1545
      %v1547 = vrcp.pop %v1522
      %v1548 = vrcp.pop %v1525
      %v1549 = vrcp.pop %v1528
      %v1550 = vrcp.pop %v1531
      %v1551 = vrcp.pop %v1534
      %v1552 = vrcp.pop %v1537
      %v1553 = vrcp.pop %v1540
      %v1554 = vrcp.pop %v1543
      %v1555 = vrcp.pop %v1546
      %v1556 = vpack.c.bf16 %v1505, %v1503
      %v1557 = vpack.c.bf16 %v1509, %v1507
      %v1558 = vpack.c.bf16 %v1513, %v1511
      %v1559 = vpack.c.bf16 %v1517, %v1515
      %v1560 = vpack.c.bf16 %v1519, %v1519
      %1561 = vrot.lane.b32.xlu0 %v692, 64
      %v1562 = vpop.permute.xlu0 %1561
      %1563 = vrot.lane.b32.xlu0 %v693, 64
      %v1564 = vpop.permute.xlu0 %1563
      %1565 = vrot.lane.b32.xlu0 %v694, 64
      %v1566 = vpop.permute.xlu0 %1565
      %1567 = vrot.lane.b32.xlu0 %v695, 64
      %v1568 = vpop.permute.xlu0 %1567
      %1569 = vrot.lane.b32.xlu0 %v696, 64
      %v1570 = vpop.permute.xlu0 %1569
      %v1576 = vsel %vm800, %v1556, 0
      %v1579 = vsel %vm800, %v1557, 0
      %v1582 = vsel %vm800, %v1558, 0
      %v1585 = vsel %vm800, %v1559, 0
      %v1588 = vsel %vm800, %v1560, 0
      %v1591 = vand.u32 %v1570, %v914
      %1593 = vmatprep.subr.bf16.mxu0 0
      %1594 = vmatpush1.bf16.msra.mxu0 %v1562
      %1595 = vmatprep.subr.bf16.mxu0 0
      %1596 = vmatpush1.bf16.msra.mxu0 %v1564
      %1597 = vmatprep.subr.bf16.mxu0 0
      %1598 = vmatpush1.bf16.msra.mxu0 %v1566
      %1599 = vmatprep.subr.bf16.mxu0 0
      %1600 = vmatpush1.bf16.msra.mxu0 %v1568
      %1601 = vmatprep.subr.bf16.mxu0 0
      %1602 = vmatpush1.bf16.msra.mxu0 %v1591
      %1603 = vmatprep.subr.bf16.mxu0 0
      %1604 = vmatpush1.bf16.msra.mxu0 0
      %1605 = vmatprep.subr.bf16.mxu0 0
      %1606 = vmatpush1.bf16.msra.mxu0 0
      %1607 = vmatprep.subr.bf16.mxu0 0
      %1608 = vmatpush1.bf16.msra.mxu0 0
      %1609 = vmatprep.subr.bf16.mxu0 0
      %1610 = vmatpush1.bf16.msra.mxu0 0
      %1611 = vmatprep.subr.bf16.mxu0 0
      %1612 = vmatpush1.bf16.msra.mxu0 0
      %1613 = vmatprep.subr.bf16.mxu0 0
      %1614 = vmatpush1.bf16.msra.mxu0 0
      %1615 = vmatprep.subr.bf16.mxu0 0
      %1616 = vmatpush1.bf16.msra.mxu0 0
      %1617 = vmatprep.subr.bf16.mxu0 0
      %1618 = vmatpush1.bf16.msra.mxu0 0
      %1619 = vmatprep.subr.bf16.mxu0 0
      %1620 = vmatpush1.bf16.msra.mxu0 0
      %1621 = vmatprep.subr.bf16.mxu0 0
      %1622 = vmatpush1.bf16.msra.mxu0 0
      %1623 = vmatprep.subr.bf16.mxu0 0
      %1624 = vmatpush1.bf16.msra.mxu0 0
      %1625 = vmatprep.mubr.bf16.mxu0 0
      %1626 = vmatmul.mubr.bf16.gmra.mrb[0].mxu0 %v1576
      %v1627 = vpop.f32.mrb[0].mxu0
      %v1628 = vadd.f32 0.0, %v1627
      %v1629 = vpop.f32.mrb[0].mxu0
      %v1630 = vpop.f32.mrb[0].mxu0
      %v1631 = vadd.f32 0.0, %v1630
      %v1632 = vpop.f32.mrb[0].mxu0
      %1633 = vmatprep.mubr.bf16.mxu0 0
      %1634 = vmatmul.mubr.bf16.gmra.mrb[0].mxu0 %v1579
      %v1635 = vpop.f32.mrb[0].mxu0
      %v1636 = vadd.f32 0.0, %v1635
      %v1637 = vpop.f32.mrb[0].mxu0
      %v1638 = vpop.f32.mrb[0].mxu0
      %v1639 = vadd.f32 0.0, %v1638
      %v1640 = vpop.f32.mrb[0].mxu0
      %1641 = vmatprep.mubr.bf16.mxu0 0
      %1642 = vmatmul.mubr.bf16.gmra.mrb[0].mxu0 %v1582
      %v1643 = vpop.f32.mrb[0].mxu0
      %v1644 = vadd.f32 0.0, %v1643
      %v1645 = vpop.f32.mrb[0].mxu0
      %v1646 = vpop.f32.mrb[0].mxu0
      %v1647 = vadd.f32 0.0, %v1646
      %v1648 = vpop.f32.mrb[0].mxu0
      %1649 = vmatprep.mubr.bf16.mxu0 0
      %1650 = vmatmul.mubr.bf16.gmra.mrb[0].mxu0 %v1585
      %v1651 = vpop.f32.mrb[0].mxu0
      %v1652 = vadd.f32 0.0, %v1651
      %v1653 = vpop.f32.mrb[0].mxu0
      %v1654 = vpop.f32.mrb[0].mxu0
      %v1655 = vadd.f32 0.0, %v1654
      %v1656 = vpop.f32.mrb[0].mxu0
      %1657 = vmatprep.mubr.bf16.mxu0 0
      %1658 = vmatmul.mubr.bf16.gmra.mrb[0].mxu0 %v1588
      %v1659 = vpop.f32.mrb[0].mxu0
      %v1660 = vadd.f32 0.0, %v1659
      %v1661 = vpop.f32.mrb[0].mxu0
      %v1662 = vpop.f32.mrb[0].mxu0
      %v1663 = vpop.f32.mrb[0].mxu0
      %1664 = vdwg.mxu0
      %v1665 = vmul.f32 %v1628, %v1547
      %v1666 = vmul.f32 %v1631, %v1548
      %v1667 = vmul.f32 %v1636, %v1549
      %v1668 = vmul.f32 %v1639, %v1550
      %v1669 = vmul.f32 %v1644, %v1551
      %v1670 = vmul.f32 %v1647, %v1552
      %v1671 = vmul.f32 %v1652, %v1553
      %v1672 = vmul.f32 %v1655, %v1554
      %v1673 = vmul.f32 %v1660, %v1555
      %1674 = vrot.lane.b32.xlu0 %v682, 32
      %v1675 = vpop.permute.xlu0 %1674
      %1676 = vrot.lane.b32.xlu0 %v683, 32
      %v1677 = vpop.permute.xlu0 %1676
      %1678 = vrot.lane.b32.xlu0 %v684, 32
      %v1679 = vpop.permute.xlu0 %1678
      %1680 = vrot.lane.b32.xlu0 %v685, 32
      %v1681 = vpop.permute.xlu0 %1680
      %1682 = vrot.lane.b32.xlu0 %v686, 32
      %v1683 = vpop.permute.xlu0 %1682
      %1684 = vrot.lane.b32.xlu0 %v687, 32
      %v1685 = vpop.permute.xlu0 %1684
      %1686 = vrot.lane.b32.xlu0 %v688, 32
      %v1687 = vpop.permute.xlu0 %1686
      %1688 = vrot.lane.b32.xlu0 %v689, 32
      %v1689 = vpop.permute.xlu0 %1688
      %1690 = vrot.lane.b32.xlu0 %v690, 32
      %v1691 = vpop.permute.xlu0 %1690
      %1692 = vrot.lane.b32.xlu0 %v691, 32
      %v1693 = vpop.permute.xlu0 %1692
      %v1695 = vsel %vm697, %v1675, 0
      %v1698 = vsel %vm697, %v1677, 0
      %v1701 = vsel %vm697, %v1679, 0
      %v1704 = vsel %vm697, %v1681, 0
      %v1707 = vsel %vm697, %v1683, 0
      %v1710 = vsel %vm697, %v1685, 0
      %v1713 = vsel %vm697, %v1687, 0
      %v1716 = vsel %vm697, %v1689, 0
      %v1719 = vsel %vm697, %v1691, 0
      %v1722 = vsel %vm697, %v1693, 0
      %1724 = vmatprep.subr.bf16.mxu0 0
      %1725 = vmatpush1.bf16.xpose.msra.mxu0 %v1710
      %1726 = vmatprep.subr.bf16.mxu0 0
      %1727 = vmatpush1.bf16.xpose.msra.mxu0 %v1713
      %1728 = vmatprep.subr.bf16.mxu0 0
      %1729 = vmatpush1.bf16.xpose.msra.mxu0 %v1716
      %1730 = vmatprep.subr.bf16.mxu0 0
      %1731 = vmatpush1.bf16.xpose.msra.mxu0 %v1719
      %1732 = vmatprep.subr.bf16.mxu0 0
      %1733 = vmatpush1.bf16.xpose.msra.mxu0 %v1722
      %1734 = vmatprep.subr.bf16.mxu0 0
      %1735 = vmatpush1.bf16.xpose.msra.mxu0 0
      %1736 = vmatprep.subr.bf16.mxu0 0
      %1737 = vmatpush1.bf16.xpose.msra.mxu0 0
      %1738 = vmatprep.subr.bf16.mxu0 0
      %1739 = vmatpush1.bf16.xpose.msra.mxu0 0
      %1740 = vmatprep.subr.bf16.mxu0 0
      %1741 = vmatpush1.bf16.xpose.msra.mxu0 0
      %1742 = vmatprep.subr.bf16.mxu0 0
      %1743 = vmatpush1.bf16.xpose.msra.mxu0 0
      %1744 = vmatprep.subr.bf16.mxu0 0
      %1745 = vmatpush1.bf16.xpose.msra.mxu0 0
      %1746 = vmatprep.subr.bf16.mxu0 0
      %1747 = vmatpush1.bf16.xpose.msra.mxu0 0
      %1748 = vmatprep.subr.bf16.mxu0 0
      %1749 = vmatpush1.bf16.xpose.msra.mxu0 0
      %1750 = vmatprep.subr.bf16.mxu0 0
      %1751 = vmatpush1.bf16.xpose.msra.mxu0 0
      %1752 = vmatprep.subr.bf16.mxu0 0
      %1753 = vmatpush1.bf16.xpose.msra.mxu0 0
      %1754 = vmatprep.subr.bf16.mxu0 0
      %1755 = vmatpush1.bf16.xpose.msra.mxu0 0
      %1756 = vmatprep.mubr.bf16.mxu0 0
      %1757 = vmatmul.mubr.bf16.gmra.mrb[0].mxu0 %v1695
      %v1758 = vpop.f32.mrb[0].mxu0
      %v1759 = vadd.f32 0.0, %v1758
      %v1760 = vpop.f32.mrb[0].mxu0
      %v1761 = vpop.f32.mrb[0].mxu0
      %v1762 = vadd.f32 0.0, %v1761
      %v1763 = vpop.f32.mrb[0].mxu0
      %1764 = vmatprep.mubr.bf16.mxu0 0
      %1765 = vmatmul.mubr.bf16.gmra.mrb[0].mxu0 %v1698
      %v1766 = vpop.f32.mrb[0].mxu0
      %v1767 = vadd.f32 0.0, %v1766
      %v1768 = vpop.f32.mrb[0].mxu0
      %v1769 = vpop.f32.mrb[0].mxu0
      %v1770 = vadd.f32 0.0, %v1769
      %v1771 = vpop.f32.mrb[0].mxu0
      %1772 = vmatprep.mubr.bf16.mxu0 0
      %1773 = vmatmul.mubr.bf16.gmra.mrb[0].mxu0 %v1701
      %v1774 = vpop.f32.mrb[0].mxu0
      %v1775 = vadd.f32 0.0, %v1774
      %v1776 = vpop.f32.mrb[0].mxu0
      %v1777 = vpop.f32.mrb[0].mxu0
      %v1778 = vadd.f32 0.0, %v1777
      %v1779 = vpop.f32.mrb[0].mxu0
      %1780 = vmatprep.mubr.bf16.mxu0 0
      %1781 = vmatmul.mubr.bf16.gmra.mrb[0].mxu0 %v1704
      %v1782 = vpop.f32.mrb[0].mxu0
      %v1783 = vadd.f32 0.0, %v1782
      %v1784 = vpop.f32.mrb[0].mxu0
      %v1785 = vpop.f32.mrb[0].mxu0
      %v1786 = vadd.f32 0.0, %v1785
      %v1787 = vpop.f32.mrb[0].mxu0
      %1788 = vmatprep.mubr.bf16.mxu0 0
      %1789 = vmatmul.mubr.bf16.gmra.mrb[0].mxu0 %v1707
      %v1790 = vpop.f32.mrb[0].mxu0
      %v1791 = vadd.f32 0.0, %v1790
      %v1792 = vpop.f32.mrb[0].mxu0
      %v1793 = vpop.f32.mrb[0].mxu0
      %v1794 = vpop.f32.mrb[0].mxu0
      %1795 = vdwg.mxu0
      %v1796 = vsel %vm800, %v1759, -inf
      %1797 = vmax.xlane.f32.xlu0 %v1796
      %v1798 = vpop.xlane.xlu0 %1797
      %v1799 = vsel %vm800, %v1762, -inf
      %1800 = vmax.xlane.f32.xlu0 %v1799
      %v1801 = vpop.xlane.xlu0 %1800
      %v1802 = vsel %vm800, %v1767, -inf
      %1803 = vmax.xlane.f32.xlu0 %v1802
      %v1804 = vpop.xlane.xlu0 %1803
      %v1805 = vsel %vm800, %v1770, -inf
      %1806 = vmax.xlane.f32.xlu0 %v1805
      %v1807 = vpop.xlane.xlu0 %1806
      %v1808 = vsel %vm800, %v1775, -inf
      %1809 = vmax.xlane.f32.xlu0 %v1808
      %v1810 = vpop.xlane.xlu0 %1809
      %v1811 = vsel %vm800, %v1778, -inf
      %1812 = vmax.xlane.f32.xlu0 %v1811
      %v1813 = vpop.xlane.xlu0 %1812
      %v1814 = vsel %vm800, %v1783, -inf
      %1815 = vmax.xlane.f32.xlu0 %v1814
      %v1816 = vpop.xlane.xlu0 %1815
      %v1817 = vsel %vm800, %v1786, -inf
      %1818 = vmax.xlane.f32.xlu0 %v1817
      %v1819 = vpop.xlane.xlu0 %1818
      %v1820 = vsel %vm825, %v1791, -inf
      %1821 = vmax.xlane.f32.xlu0 %v1820
      %v1822 = vpop.xlane.xlu0 %1821
      %v1823 = vsub.f32 %v1759, %v1798
      %v1824 = vsub.f32 %v1762, %v1801
      %v1825 = vsub.f32 %v1767, %v1804
      %v1826 = vsub.f32 %v1770, %v1807
      %v1827 = vsub.f32 %v1775, %v1810
      %v1828 = vsub.f32 %v1778, %v1813
      %v1829 = vsub.f32 %v1783, %v1816
      %v1830 = vsub.f32 %v1786, %v1819
      %v1831 = vsub.f32 %v1791, %v1822
      %v1832 = vmul.f32 %v1823, 1.442695
      %v1833 = vpow.pop %v1832
      %v1834 = vmul.f32 %v1824, 1.442695
      %v1835 = vpow.pop %v1834
      %v1836 = vmul.f32 %v1825, 1.442695
      %v1837 = vpow.pop %v1836
      %v1838 = vmul.f32 %v1826, 1.442695
      %v1839 = vpow.pop %v1838
      %v1840 = vmul.f32 %v1827, 1.442695
      %v1841 = vpow.pop %v1840
      %v1842 = vmul.f32 %v1828, 1.442695
      %v1843 = vpow.pop %v1842
      %v1844 = vmul.f32 %v1829, 1.442695
      %v1845 = vpow.pop %v1844
      %v1846 = vmul.f32 %v1830, 1.442695
      %v1847 = vpow.pop %v1846
      %v1848 = vmul.f32 %v1831, 1.442695
      %v1849 = vpow.pop %v1848
      %v1850 = vsel %vm800, %v1833, 0.0
      %1851 = vadd.xlane.f32.xlu0 %v1850
      %v1852 = vpop.xlane.xlu0 %1851
      %v1853 = vsel %vm800, %v1835, 0.0
      %1854 = vadd.xlane.f32.xlu0 %v1853
      %v1855 = vpop.xlane.xlu0 %1854
      %v1856 = vsel %vm800, %v1837, 0.0
      %1857 = vadd.xlane.f32.xlu0 %v1856
      %v1858 = vpop.xlane.xlu0 %1857
      %v1859 = vsel %vm800, %v1839, 0.0
      %1860 = vadd.xlane.f32.xlu0 %v1859
      %v1861 = vpop.xlane.xlu0 %1860
      %v1862 = vsel %vm800, %v1841, 0.0
      %1863 = vadd.xlane.f32.xlu0 %v1862
      %v1864 = vpop.xlane.xlu0 %1863
      %v1865 = vsel %vm800, %v1843, 0.0
      %1866 = vadd.xlane.f32.xlu0 %v1865
      %v1867 = vpop.xlane.xlu0 %1866
      %v1868 = vsel %vm800, %v1845, 0.0
      %1869 = vadd.xlane.f32.xlu0 %v1868
      %v1870 = vpop.xlane.xlu0 %1869
      %v1871 = vsel %vm800, %v1847, 0.0
      %1872 = vadd.xlane.f32.xlu0 %v1871
      %v1873 = vpop.xlane.xlu0 %1872
      %v1874 = vsel %vm825, %v1849, 0.0
      %1875 = vadd.xlane.f32.xlu0 %v1874
      %v1876 = vpop.xlane.xlu0 %1875
      %v1877 = vrcp.pop %v1852
      %v1878 = vrcp.pop %v1855
      %v1879 = vrcp.pop %v1858
      %v1880 = vrcp.pop %v1861
      %v1881 = vrcp.pop %v1864
      %v1882 = vrcp.pop %v1867
      %v1883 = vrcp.pop %v1870
      %v1884 = vrcp.pop %v1873
      %v1885 = vrcp.pop %v1876
      %v1886 = vpack.c.bf16 %v1835, %v1833
      %v1887 = vpack.c.bf16 %v1839, %v1837
      %v1888 = vpack.c.bf16 %v1843, %v1841
      %v1889 = vpack.c.bf16 %v1847, %v1845
      %v1890 = vpack.c.bf16 %v1849, %v1849
      %1891 = vrot.lane.b32.xlu0 %v692, 32
      %v1892 = vpop.permute.xlu0 %1891
      %1893 = vrot.lane.b32.xlu0 %v693, 32
      %v1894 = vpop.permute.xlu0 %1893
      %1895 = vrot.lane.b32.xlu0 %v694, 32
      %v1896 = vpop.permute.xlu0 %1895
      %1897 = vrot.lane.b32.xlu0 %v695, 32
      %v1898 = vpop.permute.xlu0 %1897
      %1899 = vrot.lane.b32.xlu0 %v696, 32
      %v1900 = vpop.permute.xlu0 %1899
      %v1906 = vsel %vm800, %v1886, 0
      %v1909 = vsel %vm800, %v1887, 0
      %v1912 = vsel %vm800, %v1888, 0
      %v1915 = vsel %vm800, %v1889, 0
      %v1918 = vsel %vm800, %v1890, 0
      %v1921 = vand.u32 %v1900, %v914
      %1923 = vmatprep.subr.bf16.mxu0 0
      %1924 = vmatpush1.bf16.msra.mxu0 %v1892
      %1925 = vmatprep.subr.bf16.mxu0 0
      %1926 = vmatpush1.bf16.msra.mxu0 %v1894
      %1927 = vmatprep.subr.bf16.mxu0 0
      %1928 = vmatpush1.bf16.msra.mxu0 %v1896
      %1929 = vmatprep.subr.bf16.mxu0 0
      %1930 = vmatpush1.bf16.msra.mxu0 %v1898
      %1931 = vmatprep.subr.bf16.mxu0 0
      %1932 = vmatpush1.bf16.msra.mxu0 %v1921
      %1933 = vmatprep.subr.bf16.mxu0 0
      %1934 = vmatpush1.bf16.msra.mxu0 0
      %1935 = vmatprep.subr.bf16.mxu0 0
      %1936 = vmatpush1.bf16.msra.mxu0 0
      %1937 = vmatprep.subr.bf16.mxu0 0
      %1938 = vmatpush1.bf16.msra.mxu0 0
      %1939 = vmatprep.subr.bf16.mxu0 0
      %1940 = vmatpush1.bf16.msra.mxu0 0
      %1941 = vmatprep.subr.bf16.mxu0 0
      %1942 = vmatpush1.bf16.msra.mxu0 0
      %1943 = vmatprep.subr.bf16.mxu0 0
      %1944 = vmatpush1.bf16.msra.mxu0 0
      %1945 = vmatprep.subr.bf16.mxu0 0
      %1946 = vmatpush1.bf16.msra.mxu0 0
      %1947 = vmatprep.subr.bf16.mxu0 0
      %1948 = vmatpush1.bf16.msra.mxu0 0
      %1949 = vmatprep.subr.bf16.mxu0 0
      %1950 = vmatpush1.bf16.msra.mxu0 0
      %1951 = vmatprep.subr.bf16.mxu0 0
      %1952 = vmatpush1.bf16.msra.mxu0 0
      %1953 = vmatprep.subr.bf16.mxu0 0
      %1954 = vmatpush1.bf16.msra.mxu0 0
      %1955 = vmatprep.mubr.bf16.mxu0 0
      %1956 = vmatmul.mubr.bf16.gmra.mrb[0].mxu0 %v1906
      %v1957 = vpop.f32.mrb[0].mxu0
      %v1958 = vadd.f32 0.0, %v1957
      %v1959 = vpop.f32.mrb[0].mxu0
      %v1960 = vpop.f32.mrb[0].mxu0
      %v1961 = vadd.f32 0.0, %v1960
      %v1962 = vpop.f32.mrb[0].mxu0
      %1963 = vmatprep.mubr.bf16.mxu0 0
      %1964 = vmatmul.mubr.bf16.gmra.mrb[0].mxu0 %v1909
      %v1965 = vpop.f32.mrb[0].mxu0
      %v1966 = vadd.f32 0.0, %v1965
      %v1967 = vpop.f32.mrb[0].mxu0
      %v1968 = vpop.f32.mrb[0].mxu0
      %v1969 = vadd.f32 0.0, %v1968
      %v1970 = vpop.f32.mrb[0].mxu0
      %1971 = vmatprep.mubr.bf16.mxu0 0
      %1972 = vmatmul.mubr.bf16.gmra.mrb[0].mxu0 %v1912
      %v1973 = vpop.f32.mrb[0].mxu0
      %v1974 = vadd.f32 0.0, %v1973
      %v1975 = vpop.f32.mrb[0].mxu0
      %v1976 = vpop.f32.mrb[0].mxu0
      %v1977 = vadd.f32 0.0, %v1976
      %v1978 = vpop.f32.mrb[0].mxu0
      %1979 = vmatprep.mubr.bf16.mxu0 0
      %1980 = vmatmul.mubr.bf16.gmra.mrb[0].mxu0 %v1915
      %v1981 = vpop.f32.mrb[0].mxu0
      %v1982 = vadd.f32 0.0, %v1981
      %v1983 = vpop.f32.mrb[0].mxu0
      %v1984 = vpop.f32.mrb[0].mxu0
      %v1985 = vadd.f32 0.0, %v1984
      %v1986 = vpop.f32.mrb[0].mxu0
      %1987 = vmatprep.mubr.bf16.mxu0 0
      %1988 = vmatmul.mubr.bf16.gmra.mrb[0].mxu0 %v1918
      %v1989 = vpop.f32.mrb[0].mxu0
      %v1990 = vadd.f32 0.0, %v1989
      %v1991 = vpop.f32.mrb[0].mxu0
      %v1992 = vpop.f32.mrb[0].mxu0
      %v1993 = vpop.f32.mrb[0].mxu0
      %1994 = vdwg.mxu0
      %v1995 = vmul.f32 %v1958, %v1877
      %v1996 = vmul.f32 %v1961, %v1878
      %v1997 = vmul.f32 %v1966, %v1879
      %v1998 = vmul.f32 %v1969, %v1880
      %v1999 = vmul.f32 %v1974, %v1881
      %v2000 = vmul.f32 %v1977, %v1882
      %v2001 = vmul.f32 %v1982, %v1883
      %v2002 = vmul.f32 %v1985, %v1884
      %v2003 = vmul.f32 %v1990, %v1885
      %2013 = vrot.lane.b32.xlu0 %v1335, 32
      %v2014 = vpop.permute.xlu0 %2013
      %2015 = vrot.lane.b32.xlu0 %v1336, 32
      %v2016 = vpop.permute.xlu0 %2015
      %2017 = vrot.lane.b32.xlu0 %v1337, 32
      %v2018 = vpop.permute.xlu0 %2017
      %2019 = vrot.lane.b32.xlu0 %v1338, 32
      %v2020 = vpop.permute.xlu0 %2019
      %2021 = vrot.lane.b32.xlu0 %v1339, 32
      %v2022 = vpop.permute.xlu0 %2021
      %2023 = vrot.lane.b32.xlu0 %v1340, 32
      %v2024 = vpop.permute.xlu0 %2023
      %2025 = vrot.lane.b32.xlu0 %v1341, 32
      %v2026 = vpop.permute.xlu0 %2025
      %2027 = vrot.lane.b32.xlu0 %v1342, 32
      %v2028 = vpop.permute.xlu0 %2027
      %2029 = vrot.lane.b32.xlu0 %v1343, 32
      %v2030 = vpop.permute.xlu0 %2029
      %2049 = vrot.lane.b32.xlu0 %v1665, 64
      %v2050 = vpop.permute.xlu0 %2049
      %2051 = vrot.lane.b32.xlu0 %v1666, 64
      %v2052 = vpop.permute.xlu0 %2051
      %2053 = vrot.lane.b32.xlu0 %v1667, 64
      %v2054 = vpop.permute.xlu0 %2053
      %2055 = vrot.lane.b32.xlu0 %v1668, 64
      %v2056 = vpop.permute.xlu0 %2055
      %2057 = vrot.lane.b32.xlu0 %v1669, 64
      %v2058 = vpop.permute.xlu0 %2057
      %2059 = vrot.lane.b32.xlu0 %v1670, 64
      %v2060 = vpop.permute.xlu0 %2059
      %2061 = vrot.lane.b32.xlu0 %v1671, 64
      %v2062 = vpop.permute.xlu0 %2061
      %2063 = vrot.lane.b32.xlu0 %v1672, 64
      %v2064 = vpop.permute.xlu0 %2063
      %2065 = vrot.lane.b32.xlu0 %v1673, 64
      %v2066 = vpop.permute.xlu0 %2065
      %2085 = vrot.lane.b32.xlu0 %v1995, 96
      %v2086 = vpop.permute.xlu0 %2085
      %2087 = vrot.lane.b32.xlu0 %v1996, 96
      %v2088 = vpop.permute.xlu0 %2087
      %2089 = vrot.lane.b32.xlu0 %v1997, 96
      %v2090 = vpop.permute.xlu0 %2089
      %2091 = vrot.lane.b32.xlu0 %v1998, 96
      %v2092 = vpop.permute.xlu0 %2091
      %2093 = vrot.lane.b32.xlu0 %v1999, 96
      %v2094 = vpop.permute.xlu0 %2093
      %2095 = vrot.lane.b32.xlu0 %v2000, 96
      %v2096 = vpop.permute.xlu0 %2095
      %2097 = vrot.lane.b32.xlu0 %v2001, 96
      %v2098 = vpop.permute.xlu0 %2097
      %2099 = vrot.lane.b32.xlu0 %v2002, 96
      %v2100 = vpop.permute.xlu0 %2099
      %2101 = vrot.lane.b32.xlu0 %v2003, 96
      %v2102 = vpop.permute.xlu0 %2101
      %v2112 = vsel %vm697, %v990, %v2014
      %v2113 = vsel %vm697, %v991, %v2016
      %v2114 = vsel %vm697, %v992, %v2018
      %v2115 = vsel %vm697, %v993, %v2020
      %v2116 = vsel %vm697, %v994, %v2022
      %v2117 = vsel %vm697, %v995, %v2024
      %v2118 = vsel %vm697, %v996, %v2026
      %v2119 = vsel %vm697, %v997, %v2028
      %v2120 = vsel %vm697, %v998, %v2030
      %vm2121 = vcmask 523264
      %v2122 = vsel %vm2121, %v2112, %v2050
      %v2123 = vsel %vm2121, %v2113, %v2052
      %v2124 = vsel %vm2121, %v2114, %v2054
      %v2125 = vsel %vm2121, %v2115, %v2056
      %v2126 = vsel %vm2121, %v2116, %v2058
      %v2127 = vsel %vm2121, %v2117, %v2060
      %v2128 = vsel %vm2121, %v2118, %v2062
      %v2129 = vsel %vm2121, %v2119, %v2064
      %v2130 = vsel %vm2121, %v2120, %v2066
      %vm2131 = vcmask 785408
      %v2132 = vsel %vm2131, %v2122, %v2086
      %v2133 = vsel %vm2131, %v2123, %v2088
      %v2134 = vsel %vm2131, %v2124, %v2090
      %v2135 = vsel %vm2131, %v2125, %v2092
      %v2136 = vsel %vm2131, %v2126, %v2094
      %v2137 = vsel %vm2131, %v2127, %v2096
      %v2138 = vsel %vm2131, %v2128, %v2098
      %v2139 = vsel %vm2131, %v2129, %v2100
      %v2140 = vsel %vm2131, %v2130, %v2102
      %v2141 = vpack.c.bf16 %v2133, %v2132
      %v2142 = vpack.c.bf16 %v2135, %v2134
      %v2143 = vpack.c.bf16 %v2137, %v2136
      %v2144 = vpack.c.bf16 %v2139, %v2138
      %v2145 = vpack.c.bf16 %v2140, %v2140
      %v2146 = vld [vmem:[%s5] sm:$0xf]
      %v2147 = vld [vmem:[%s5 + $0x4] sm:$0xf]
      %v2148 = vld [vmem:[%s5 + $0x8] sm:$0xf]
      %v2149 = vld [vmem:[%s5 + $0xc] sm:$0xf]
      %v2150 = vld [vmem:[%s5 + $0x10] sm:$0xf]
      %v2151 = vld [vmem:[%s5 + $0x14] sm:$0xf]
      %v2152 = vld [vmem:[%s5 + $0x18] sm:$0xf]
      %v2153 = vld [vmem:[%s5 + $0x1c] sm:$0xf]
      %v2154 = vld [vmem:[%s5 + $0x20] sm:$0xf]
      %v2155 = vld [vmem:[%s5 + $0x24] sm:$0xf]
      %v2156 = vld [vmem:[%s5 + $0x28] sm:$0xf]
      %v2157 = vld [vmem:[%s5 + $0x2c] sm:$0xf]
      %v2158 = vld [vmem:[%s5 + $0x30] sm:$0xf]
      %v2159 = vld [vmem:[%s5 + $0x34] sm:$0xf]
      %v2160 = vld [vmem:[%s5 + $0x38] sm:$0xf]
      %v2161 = vld [vmem:[%s5 + $0x3c] sm:$0xf]
      %v2162 = vld [vmem:[%s6] sm:$0x1]
      %v2164 = vlaneseq
      %v2165 = vshrl.u32 %v2164, 7
      %v2166 = vsub.s32 0, %v2165
      %v2167 = vrot.slane %v2162, %v2166
      %v2185 = vunpack.c.l.b16 %v2146
      %v2186 = vunpack.c.l.b16 %v2147
      %v2187 = vunpack.c.l.b16 %v2148
      %v2188 = vunpack.c.l.b16 %v2149
      %v2189 = vunpack.c.l.b16 %v2150
      %v2190 = vunpack.c.l.b16 %v2151
      %v2191 = vunpack.c.l.b16 %v2152
      %v2192 = vunpack.c.l.b16 %v2153
      %v2193 = vunpack.c.l.b16 %v2154
      %v2194 = vunpack.c.l.b16 %v2155
      %v2195 = vunpack.c.l.b16 %v2156
      %v2196 = vunpack.c.l.b16 %v2157
      %v2197 = vunpack.c.l.b16 %v2158
      %v2198 = vunpack.c.l.b16 %v2159
      %v2199 = vunpack.c.l.b16 %v2160
      %v2200 = vunpack.c.l.b16 %v2161
      %v2201 = vpack.c.b16 %v2186, %v2185
      %v2202 = vpack.c.b16 %v2188, %v2187
      %v2203 = vpack.c.b16 %v2190, %v2189
      %v2204 = vpack.c.b16 %v2192, %v2191
      %v2205 = vpack.c.b16 %v2194, %v2193
      %v2206 = vpack.c.b16 %v2196, %v2195
      %v2207 = vpack.c.b16 %v2198, %v2197
      %v2208 = vpack.c.b16 %v2200, %v2199
      %2217 = vmatprep.subr.bf16.mxu0 0
      %2218 = vmatpush1.bf16.msra.mxu0 %v2201
      %2219 = vmatprep.subr.bf16.mxu0 0
      %2220 = vmatpush1.bf16.msra.mxu0 %v2202
      %2221 = vmatprep.subr.bf16.mxu0 0
      %2222 = vmatpush1.bf16.msra.mxu0 %v2203
      %2223 = vmatprep.subr.bf16.mxu0 0
      %2224 = vmatpush1.bf16.msra.mxu0 %v2204
      %2225 = vmatprep.subr.bf16.mxu0 0
      %2226 = vmatpush1.bf16.msra.mxu0 %v2205
      %2227 = vmatprep.subr.bf16.mxu0 0
      %2228 = vmatpush1.bf16.msra.mxu0 %v2206
      %2229 = vmatprep.subr.bf16.mxu0 0
      %2230 = vmatpush1.bf16.msra.mxu0 %v2207
      %2231 = vmatprep.subr.bf16.mxu0 0
      %2232 = vmatpush1.bf16.msra.mxu0 %v2208
      %2233 = vmatprep.subr.bf16.mxu0 0
      %2234 = vmatpush1.bf16.msra.mxu0 0
      %2235 = vmatprep.subr.bf16.mxu0 0
      %2236 = vmatpush1.bf16.msra.mxu0 0
      %2237 = vmatprep.subr.bf16.mxu0 0
      %2238 = vmatpush1.bf16.msra.mxu0 0
      %2239 = vmatprep.subr.bf16.mxu0 0
      %2240 = vmatpush1.bf16.msra.mxu0 0
      %2241 = vmatprep.subr.bf16.mxu0 0
      %2242 = vmatpush1.bf16.msra.mxu0 0
      %2243 = vmatprep.subr.bf16.mxu0 0
      %2244 = vmatpush1.bf16.msra.mxu0 0
      %2245 = vmatprep.subr.bf16.mxu0 0
      %2246 = vmatpush1.bf16.msra.mxu0 0
      %2247 = vmatprep.subr.bf16.mxu0 0
      %2248 = vmatpush1.bf16.msra.mxu0 0
      %2249 = vmatprep.mubr.bf16.mxu0 0
      %2250 = vmatmul.mubr.bf16.gmra.mrb[0].mxu0 %v2141
      %v2251 = vpop.f32.mrb[0].mxu0
      %v2252 = vadd.f32 %v2167, %v2251
      %v2253 = vpop.f32.mrb[0].mxu0
      %v2254 = vpop.f32.mrb[0].mxu0
      %v2255 = vadd.f32 %v2167, %v2254
      %v2256 = vpop.f32.mrb[0].mxu0
      %2257 = vmatprep.mubr.bf16.mxu0 0
      %2258 = vmatmul.mubr.bf16.gmra.mrb[0].mxu0 %v2142
      %v2259 = vpop.f32.mrb[0].mxu0
      %v2260 = vadd.f32 %v2167, %v2259
      %v2261 = vpop.f32.mrb[0].mxu0
      %v2262 = vpop.f32.mrb[0].mxu0
      %v2263 = vadd.f32 %v2167, %v2262
      %v2264 = vpop.f32.mrb[0].mxu0
      %2265 = vmatprep.mubr.bf16.mxu0 0
      %2266 = vmatmul.mubr.bf16.gmra.mrb[0].mxu0 %v2143
      %v2267 = vpop.f32.mrb[0].mxu0
      %v2268 = vadd.f32 %v2167, %v2267
      %v2269 = vpop.f32.mrb[0].mxu0
      %v2270 = vpop.f32.mrb[0].mxu0
      %v2271 = vadd.f32 %v2167, %v2270
      %v2272 = vpop.f32.mrb[0].mxu0
      %2273 = vmatprep.mubr.bf16.mxu0 0
      %2274 = vmatmul.mubr.bf16.gmra.mrb[0].mxu0 %v2144
      %v2275 = vpop.f32.mrb[0].mxu0
      %v2276 = vadd.f32 %v2167, %v2275
      %v2277 = vpop.f32.mrb[0].mxu0
      %v2278 = vpop.f32.mrb[0].mxu0
      %v2279 = vadd.f32 %v2167, %v2278
      %v2280 = vpop.f32.mrb[0].mxu0
      %2281 = vmatprep.mubr.bf16.mxu0 0
      %2282 = vmatmul.mubr.bf16.gmra.mrb[0].mxu0 %v2145
      %v2283 = vpop.f32.mrb[0].mxu0
      %v2284 = vadd.f32 %v2167, %v2283
      %v2285 = vpop.f32.mrb[0].mxu0
      %v2286 = vpop.f32.mrb[0].mxu0
      %v2287 = vpop.f32.mrb[0].mxu0
      %2288 = vdwg.mxu0
      %2289 = vst [vmem:[%s278] sm:$0xff] %v2252
      %2290 = vst [vmem:[%s278 + $0x8] sm:$0xff] %v2255
      %2291 = vst [vmem:[%s278 + $0x10] sm:$0xff] %v2260
      %2292 = vst [vmem:[%s278 + $0x18] sm:$0xff] %v2263
      %2293 = vst [vmem:[%s278 + $0x20] sm:$0xff] %v2268
      %2294 = vst [vmem:[%s278 + $0x28] sm:$0xff] %v2271
      %2295 = vst [vmem:[%s278 + $0x30] sm:$0xff] %v2276
      %2296 = vst [vmem:[%s278 + $0x38] sm:$0xff] %v2279
      %2297 = vst [vmem:[%s278 + $0x40] sm:$0x1] %v2284
      %p2298 = scmp.lt.s32.totalorder %s18, 1
      %s2299 = scalar_select %p2298, %s18, 1
      %s2300 = smul.addr %s2299, 9
      %s2301 = smul.addr %s2300, 8
      %s2302 = scalar_lea.vmem %s7, %s2301
      // Predicated region
      $region49: #{_lambda_.15} parent=47 // pred_check
        %p2303 = pneg %p188
      $region50: #{_lambda_.15} parent=47 // pred_check_branch
        %2305 = sbr.rel (%p2303) target = $region52
      $region51: #{_lambda_.15} parent=47 // pred_region
        _
      $region52: #{_lambda_.15} parent=47 // pred_fallthru
        _
    $region48: #{_lambda_.15} parent=5 // pred_fallthru
      _
    %p2306 = scmp.le.s32.totalorder 2, %s13
    // Predicated region
    $region53: #{_lambda_.15} parent=5 // pred_check
      %p2307 = pneg %p2306
    $region54: #{_lambda_.15} parent=5 // pred_check_branch
      %2309 = sbr.rel (%p2307) target = $region56
    $region55: #{_lambda_.15} parent=5 // pred_region
      %s2310 = ssub.s32 %s13, 2
      // Predicated region
      $region57: #{_lambda_.15} parent=55 // pred_check
        %p2311 = pneg %p194
      $region58: #{_lambda_.15} parent=55 // pred_check_branch
        %2313 = sbr.rel (%p2311) target = $region60
      $region59: #{_lambda_.15} parent=55 // pred_region
        %p2314 = scmp.lt.s32.totalorder %s19, 1
        %s2315 = scalar_select %p2314, %s19, 1
        %s2316 = smul.addr %s2315, 9
        %s2317 = smul.addr %s2316, 8
        %s2318 = scalar_lea.vmem %s7, %s2317
      $region60: #{_lambda_.15} parent=55 // pred_fallthru
        _
    $region56: #{_lambda_.15} parent=5 // pred_fallthru
      _
  $region6: #{_lambda_.15} parent=0 // loop_footer
    %s17 = sadd.s32 1, %s13
  $region7: #{_lambda_.15} parent=0 // loop_footer_branch
    %12 = sbr.rel target = $region3
  $region8: #{_lambda_.15} parent=0 // loop_exit
    _

</llo_original>
